<compile_context>
chip_gen: v7x
topology: tpu7x:2x2x1
jax: 0.10.0
libtpu: 0.0.40
codegen_flags: <defaults>
</compile_context>

<pallas_src>
import functools
import math

import jax
import jax.numpy as jnp
from jax.experimental import pallas as pl
from jax.experimental.pallas import tpu as pltpu

LANE = 128


def _round_up(x, m):
    return (x + m - 1) // m * m


# ------------------------------ Pallas kernel ------------------------------

def _layer_kernel(a_ref, w_ref, gamma_ref, beta_ref, o_ref, acc_ref, *,
                  n_groups, cg, count, act, eps=1e-5):
    """Fully fused decoder layer.

    a_ref   : [Mpad, Kpad]        bf16 im2col patches (zero-padded rows)
    w_ref   : [Kpad, n_groups*cg] bf16 flattened weight (zero-padded lanes)
    gamma/beta : [1, cg]          f32  BN affine params (zero in padded lanes)
    o_ref   : [Mpad, n_groups*cg] bf16 output
    acc_ref : [Mpad, n_groups*cg] f32  VMEM scratch (single dot, no += loop)
    """
    acc_ref[...] = jnp.dot(a_ref[...], w_ref[...],
                           preferred_element_type=jnp.float32)

    if act == "tanh":                                   # final layer: no BN
        for g in range(n_groups):
            sl = slice(g * cg, (g + 1) * cg)
            o_ref[:, sl] = jnp.tanh(acc_ref[:, sl]).astype(o_ref.dtype)
        return

    # Pass 1: per-channel sum / sum-of-squares, folded across the sub-pixel
    # phase groups.  Each group is a 128-aligned lane block, padded rows and
    # padded lanes are exact zeros, so the sums are unaffected; divide by the
    # real element count.
    f1 = jnp.zeros((1, cg), jnp.float32)
    f2 = jnp.zeros((1, cg), jnp.float32)
    for g in range(n_groups):
        blk = acc_ref[:, g * cg:(g + 1) * cg]
        f1 = f1 + jnp.sum(blk, axis=0, keepdims=True)
        f2 = f2 + jnp.sum(blk * blk, axis=0, keepdims=True)
    inv_n = 1.0 / float(count)
    mean = f1 * inv_n
    var = f2 * inv_n - mean * mean        # biased, training-mode variance
    scale = gamma_ref[...] * jax.lax.rsqrt(var + eps)
    shift = beta_ref[...] - mean * scale

    # Pass 2: normalize + activation, lane-dense bf16 stores.
    for g in range(n_groups):
        sl = slice(g * cg, (g + 1) * cg)
        blk = acc_ref[:, sl] * scale + shift
        if act == "relu":
            blk = jnp.maximum(blk, 0.0)
        else:                                           # leaky_relu(0.2)
            blk = jnp.where(blk >= 0.0, blk, 0.2 * blk)
        o_ref[:, sl] = blk.astype(o_ref.dtype)


def fused_layer(patches, weight, gamma, beta, *, n_groups, cg, count, act):
    """One decoder layer = one pallas_call.  Everything (patches, weight,
    f32 accumulator, bf16 output) fits comfortably in VMEM at these sizes,
    so the grid is a single point and the weight is loaded exactly once."""
    mpad, kpad = patches.shape
    kw, npad = weight.shape
    assert kw == kpad and npad == n_groups * cg

    kern = functools.partial(_layer_kernel, n_groups=n_groups, cg=cg,
                             count=count, act=act)
    return pl.pallas_call(
        kern,
        out_shape=jax.ShapeDtypeStruct((mpad, npad), jnp.bfloat16),
        grid=(1,),
        in_specs=[pl.BlockSpec((mpad, kpad), lambda i: (0, 0)),
                  pl.BlockSpec((kpad, npad), lambda i: (0, 0)),
                  pl.BlockSpec((1, cg), lambda i: (0, 0)),
                  pl.BlockSpec((1, cg), lambda i: (0, 0))],
        out_specs=pl.BlockSpec((mpad, npad), lambda i: (0, 0)),
        scratch_shapes=[pltpu.VMEM((mpad, npad), jnp.float32)],
        compiler_params=pltpu.CompilerParams(
            dimension_semantics=("arbitrary",)),
    )(patches, weight, gamma, beta)


# ----------------------- layout / weight preparation -----------------------

def _extract_patches_3x3(x):
    """x: (N, H, W, C) NHWC -> [N*H*W, 9*C]; columns ordered (dy, dx, c).

    C is always a multiple of 128 here (padded channels carried between
    layers), so every slice / concat stays lane-dense."""
    n, h, w, c = x.shape
    xp = jnp.pad(x, ((0, 0), (1, 1), (1, 1), (0, 0)))
    cols = [xp[:, a:a + h, b:b + w, :] for a in range(3) for b in range(3)]
    return jnp.concatenate(cols, axis=-1).reshape(n * h * w, 9 * c)


def _subpixel_convt_weight(w, cin_pad, cg):
    """ConvTranspose2d(k=4, s=2, p=1) weight (Cin, Cout, 4, 4) -> equivalent
    stride-1 3x3 conv weight [9*cin_pad, 4*cg]; rows ordered (dy, dx, ci),
    cols ordered (phase_y, phase_x, co padded to cg)."""
    cin, cout = w.shape[0], w.shape[1]
    t = jnp.zeros((3, 3, cin_pad, 2, 2, cg), w.dtype)
    for py in range(2):
        for px in range(2):
            for d in range(2):
                for e in range(2):
                    t = t.at[py + d, px + e, :cin, py, px, :cout].set(
                        w[:, :, 3 - 2 * d - py, 3 - 2 * e - px])
    return t.reshape(9 * cin_pad, 4 * cg)


def _conv3x3_weight(w, cin_pad, cg):
    """Conv2d weight (Cout, Cin, 3, 3) -> [9*cin_pad, cg], rows (dy, dx, ci)."""
    cout, cin = w.shape[0], w.shape[1]
    t = jnp.zeros((3, 3, cin_pad, cg), w.dtype)
    t = t.at[:, :, :cin, :cout].set(w.transpose(2, 3, 1, 0))
    return t.reshape(9 * cin_pad, cg)


def _latent_weight(w, cin_pad, cg):
    """ConvTranspose2d(k=4, s=1, p=0) on a 1x1 input is a plain matmul:
    weight (Cin, Cout, 4, 4) -> [cin_pad, 16*cg], cols ordered (y, x, co)."""
    cin, cout = w.shape[0], w.shape[1]
    t = jnp.zeros((cin_pad, 4, 4, cg), w.dtype)
    t = t.at[:cin, :, :, :cout].set(w.transpose(0, 2, 3, 1))
    return t.reshape(cin_pad, 16 * cg)


# -------------------------------- Decoder --------------------------------

class PallasDecoder:
    def __init__(self, input_size, latent_vec_size, num_input_channels,
                 n_features, extra_layers=0, key=None):
        assert input_size % 16 == 0, "Input size should be a multiple of 16"
        if key is None:
            key = jax.random.PRNGKey(42)
        exp_factor = int(math.log(input_size // 4, 2)) - 1
        n_in = n_features * 2 ** exp_factor
        self.latent_vec_size = latent_vec_size
        self.num_input_channels = num_input_channels

        def nxt():
            nonlocal key
            key, sub = jax.random.split(key)
            return sub

        def bn(c, cg):
            g = 1.0 + 0.1 * jax.random.normal(nxt(), (c,), jnp.float32)
            b = 0.1 * jax.random.normal(nxt(), (c,), jnp.float32)
            gp = jnp.zeros((1, cg), jnp.float32).at[0, :c].set(g)
            bp = jnp.zeros((1, cg), jnp.float32).at[0, :c].set(b)
            return g, b, gp, bp

        blocks = []

        # latent_input: ConvT(latent, n_in, k4 s1 p0) + BN + ReLU
        cg = _round_up(n_in, LANE)
        kpad = _round_up(latent_vec_size, LANE)
        w = 0.05 * jax.random.normal(nxt(), (latent_vec_size, n_in, 4, 4),
                                     jnp.float32)
        g, b, gp, bp = bn(n_in, cg)
        blocks.append(dict(kind="latent", w_raw=w,
                           w=_latent_weight(w, kpad, cg).astype(jnp.bfloat16),
                           kpad=kpad, n_groups=16, cout=n_in, cg=cg,
                           gamma=g, beta=b, gamma_p=gp, beta_p=bp,
                           act="relu"))
        cin_carry = cg          # padded channels carried into the next layer

        # inverse_pyramid: ConvT(k4 s2 p1) + BN + ReLU
        size = input_size // 2
        while size > 4:
            n_out = n_in // 2
            cg = _round_up(n_out, LANE)
            w = 0.05 * jax.random.normal(nxt(), (n_in, n_out, 4, 4),
                                         jnp.float32)
            g, b, gp, bp = bn(n_out, cg)
            blocks.append(dict(
                kind="convt", w_raw=w,
                w=_subpixel_convt_weight(w, cin_carry, cg).astype(jnp.bfloat16),
                kpad=9 * cin_carry, n_groups=4, cout=n_out, cg=cg,
                gamma=g, beta=b, gamma_p=gp, beta_p=bp, act="relu"))
            n_in = n_out
            cin_carry = cg
            size //= 2

        # extra layers: Conv(k3 s1 p1) + BN + LeakyReLU(0.2)
        for _ in range(extra_layers):
            cg = _round_up(n_in, LANE)
            w = 0.05 * jax.random.normal(nxt(), (n_in, n_in, 3, 3),
                                         jnp.float32)
            g, b, gp, bp = bn(n_in, cg)
            blocks.append(dict(
                kind="conv", w_raw=w,
                w=_conv3x3_weight(w, cin_carry, cg).astype(jnp.bfloat16),
                kpad=9 * cin_carry, n_groups=1, cout=n_in, cg=cg,
                gamma=g, beta=b, gamma_p=gp, beta_p=bp, act="leaky_relu"))
            cin_carry = cg

        # final: ConvT(n_in, num_input_channels, k4 s2 p1) + Tanh
        cg = _round_up(num_input_channels, LANE)
        w = 0.05 * jax.random.normal(nxt(), (n_in, num_input_channels, 4, 4),
                                     jnp.float32)
        blocks.append(dict(
            kind="convt", w_raw=w,
            w=_subpixel_convt_weight(w, cin_carry, cg).astype(jnp.bfloat16),
            kpad=9 * cin_carry, n_groups=4, cout=num_input_channels, cg=cg,
            gamma=None, beta=None,
            gamma_p=jnp.zeros((1, cg), jnp.float32),
            beta_p=jnp.zeros((1, cg), jnp.float32), act="tanh"))
        self.blocks = blocks

    def forward(self, x):
        """x: NCHW (N, latent, 1, 1) f32 -> NCHW (N, C, H, W) f32."""
        n = x.shape[0]
        # Latent layer (1x1 spatial input) is a plain matmul; lane-pad latent.
        kpad0 = self.blocks[0]["kpad"]
        h2d = jnp.zeros((n, kpad0), jnp.bfloat16)
        h2d = h2d.at[:, :self.latent_vec_size].set(
            x.reshape(n, -1).astype(jnp.bfloat16))

        h = None
        hin = win = 1
        for blk in self.blocks:
            if blk["kind"] == "latent":
                patches = h2d
            else:
                _, hin, win, _ = h.shape
                patches = _extract_patches_3x3(h)
            m = patches.shape[0]
            mpad = _round_up(m, 16)              # bf16-native sublane tile
            if mpad != m:
                patches = jnp.pad(patches, ((0, mpad - m), (0, 0)))

            count = m * blk["n_groups"]          # real samples per BN channel
            y = fused_layer(patches, blk["w"], blk["gamma_p"], blk["beta_p"],
                            n_groups=blk["n_groups"], cg=blk["cg"],
                            count=count, act=blk["act"])
            body = y[:m]
            cg = blk["cg"]
            if blk["kind"] == "latent":
                h = body.reshape(n, 4, 4, cg)
            elif blk["kind"] == "convt":
                # depth-to-space: interleave the 4 sub-pixel phases
                # (last dim stays a multiple of 128 -> lane-dense).
                h = body.reshape(n, hin, win, 2, 2, cg)
                h = h.transpose(0, 1, 3, 2, 4, 5).reshape(
                    n, 2 * hin, 2 * win, cg)
            else:
                h = body.reshape(n, hin, win, cg)
        # Slice off the lane padding and go NHWC -> NCHW once at module exit.
        return h[..., :self.num_input_channels].transpose(
            0, 3, 1, 2).astype(jnp.float32)


# --------------------------- pure-JAX reference ---------------------------

def ref_forward(blocks, x):
    """Faithful NCHW reference (lax convs), same bf16-in / f32-accumulate
    precision and training-mode (batch-stat) BatchNorm as the Pallas path."""
    # TODO(synk): PyTorch eval-mode BatchNorm would use running stats; both
    # paths here use batch statistics (fresh module / training semantics).
    h = x.astype(jnp.float32)
    for blk in blocks:
        w = blk["w_raw"]
        hb = h.astype(jnp.bfloat16)
        wb = w.astype(jnp.bfloat16)
        if blk["kind"] in ("latent", "convt"):
            k = w.shape[2]
            stride = 1 if blk["kind"] == "latent" else 2
            pad = 0 if blk["kind"] == "latent" else 1
            wflip = wb[:, :, ::-1, ::-1].transpose(1, 0, 2, 3)  # (Cout,Cin,k,k)
            h = jax.lax.conv_general_dilated(
                hb, wflip, window_strides=(1, 1),
                padding=[(k - 1 - pad,) * 2] * 2,
                lhs_dilation=(stride, stride),
                dimension_numbers=("NCHW", "OIHW", "NCHW"),
                preferred_element_type=jnp.float32)
        else:
            h = jax.lax.conv_general_dilated(
                hb, wb, window_strides=(1, 1), padding=[(1, 1)] * 2,
                dimension_numbers=("NCHW", "OIHW", "NCHW"),
                preferred_element_type=jnp.float32)
        if blk["act"] == "tanh":
            h = jnp.tanh(h)
        else:
            mean = h.mean(axis=(0, 2, 3), keepdims=True)
            var = jnp.square(h - mean).mean(axis=(0, 2, 3), keepdims=True)
            h = (h - mean) * jax.lax.rsqrt(var + 1e-5)
            h = h * blk["gamma"].reshape(1, -1, 1, 1) \
                + blk["beta"].reshape(1, -1, 1, 1)
            h = jnp.maximum(h, 0.0) if blk["act"] == "relu" \
                else jnp.where(h >= 0.0, h, 0.2 * h)
    return h


if __name__ == "__main__":
    input_size = 16          # must be multiple of 16
    latent_vec_size = 8
    num_input_channels = 3
    n_features = 8
    extra_layers = 1
    batch = 2

    dec = PallasDecoder(input_size, latent_vec_size, num_input_channels,
                        n_features, extra_layers, key=jax.random.PRNGKey(42))

    x = jax.random.normal(jax.random.PRNGKey(0),
                          (batch, latent_vec_size, 1, 1), jnp.float32)

    fwd = jax.jit(dec.forward)
    out = jax.block_until_ready(fwd(x))

    assert out.shape == (batch, num_input_channels, input_size, input_size), \
        out.shape
    ref = jax.block_until_ready(ref_forward(dec.blocks, x))
    err = float(jnp.max(jnp.abs(out - ref)))
    # Both paths feed bf16 activations/weights to the MXU with f32
    # accumulation; tolerance sized for bf16 rounding noise through 4 layers.
    assert err < 1e-1, f"max abs err {err}"

    print("KERNEL_OK")
</pallas_src>

<mosaic_0001>
module attributes {stable_mosaic.version = 11 : i64} {
  func.func @_layer_kernel(%arg0: i32, %arg1: memref<16x128xbf16, #tpu.memory_space<vmem>>, %arg2: memref<128x2048xbf16, #tpu.memory_space<vmem>>, %arg3: memref<1x128xf32, #tpu.memory_space<vmem>>, %arg4: memref<1x128xf32, #tpu.memory_space<vmem>>, %arg5: memref<16x2048xbf16, #tpu.memory_space<vmem>>, %arg6: memref<16x2048xf32, #tpu.memory_space<vmem>>) attributes {dimension_semantics = [#tpu.dimension_semantics<arbitrary>], iteration_bounds = array<i64: 1>, scalar_prefetch = 0 : i64, scratch_operands = 1 : i64, tpu.core_type = #tpu.core_type<tc>, window_params = [{pipeline_mode = #tpu.pipeline_mode<synchronous>, transform_indices = @transform_0, window_bounds = array<i64: 16, 128>}, {pipeline_mode = #tpu.pipeline_mode<synchronous>, transform_indices = @transform_1, window_bounds = array<i64: 128, 2048>}, {pipeline_mode = #tpu.pipeline_mode<synchronous>, transform_indices = @transform_2, window_bounds = array<i64: 1, 128>}, {pipeline_mode = #tpu.pipeline_mode<synchronous>, transform_indices = @transform_3, window_bounds = array<i64: 1, 128>}, {pipeline_mode = #tpu.pipeline_mode<synchronous>, transform_indices = @transform_4, window_bounds = array<i64: 16, 2048>}]} {
    %c0 = arith.constant 0 : index
    %c0_0 = arith.constant 0 : index
    %0 = vector.load %arg1[%c0, %c0_0] : memref<16x128xbf16, #tpu.memory_space<vmem>>, vector<16x128xbf16>
    %c0_1 = arith.constant 0 : index
    %c0_2 = arith.constant 0 : index
    %1 = vector.load %arg2[%c0_1, %c0_2] : memref<128x2048xbf16, #tpu.memory_space<vmem>>, vector<128x2048xbf16>
    %cst = arith.constant dense<0.000000e+00> : vector<16x2048xf32>
    %2 = tpu.matmul %0, %1, %cst {dimension_numbers = #tpu.dot_dimension_numbers<[1], [0], [0], [1], [0, 0, 1, 1], [], []>} : vector<16x128xbf16>, vector<128x2048xbf16>, vector<16x2048xf32> -> vector<16x2048xf32>
    %c0_3 = arith.constant 0 : index
    %c0_4 = arith.constant 0 : index
    %3 = vector.load %arg6[%c0_3, %c0_4] : memref<16x2048xf32, #tpu.memory_space<vmem>>, vector<16x2048xf32>
    tpu.vector_store %arg6[%c0_3, %c0_4], %2 {strides = array<i32>} : memref<16x2048xf32, #tpu.memory_space<vmem>>, vector<16x2048xf32>,
    %cst_5 = arith.constant 0.000000e+00 : f32
    %4 = vector.broadcast %cst_5 : f32 to vector<1x128xf32>
    %cst_6 = arith.constant 0.000000e+00 : f32
    %5 = vector.broadcast %cst_6 : f32 to vector<1x128xf32>
    %c0_7 = arith.constant 0 : index
    %c0_8 = arith.constant 0 : index
    %6 = vector.load %arg6[%c0_7, %c0_8] : memref<16x2048xf32, #tpu.memory_space<vmem>>, vector<16x128xf32>
    %cst_9 = arith.constant dense<0.000000e+00> : vector<128xf32>
    %7 = vector.multi_reduction <add>, %6, %cst_9 [0] : vector<16x128xf32> to vector<128xf32>
    %8 = vector.shape_cast %7 : vector<128xf32> to vector<1x128xf32>
    %9 = arith.addf %4, %8 : vector<1x128xf32>
    %10 = arith.mulf %6, %6 : vector<16x128xf32>
    %cst_10 = arith.constant dense<0.000000e+00> : vector<128xf32>
    %11 = vector.multi_reduction <add>, %10, %cst_10 [0] : vector<16x128xf32> to vector<128xf32>
    %12 = vector.shape_cast %11 : vector<128xf32> to vector<1x128xf32>
    %13 = arith.addf %5, %12 : vector<1x128xf32>
    %c0_11 = arith.constant 0 : index
    %c128 = arith.constant 128 : index
    %14 = vector.load %arg6[%c0_11, %c128] : memref<16x2048xf32, #tpu.memory_space<vmem>>, vector<16x128xf32>
    %cst_12 = arith.constant dense<0.000000e+00> : vector<128xf32>
    %15 = vector.multi_reduction <add>, %14, %cst_12 [0] : vector<16x128xf32> to vector<128xf32>
    %16 = vector.shape_cast %15 : vector<128xf32> to vector<1x128xf32>
    %17 = arith.addf %9, %16 : vector<1x128xf32>
    %18 = arith.mulf %14, %14 : vector<16x128xf32>
    %cst_13 = arith.constant dense<0.000000e+00> : vector<128xf32>
    %19 = vector.multi_reduction <add>, %18, %cst_13 [0] : vector<16x128xf32> to vector<128xf32>
    %20 = vector.shape_cast %19 : vector<128xf32> to vector<1x128xf32>
    %21 = arith.addf %13, %20 : vector<1x128xf32>
    %c0_14 = arith.constant 0 : index
    %c256 = arith.constant 256 : index
    %22 = vector.load %arg6[%c0_14, %c256] : memref<16x2048xf32, #tpu.memory_space<vmem>>, vector<16x128xf32>
    %cst_15 = arith.constant dense<0.000000e+00> : vector<128xf32>
    %23 = vector.multi_reduction <add>, %22, %cst_15 [0] : vector<16x128xf32> to vector<128xf32>
    %24 = vector.shape_cast %23 : vector<128xf32> to vector<1x128xf32>
    %25 = arith.addf %17, %24 : vector<1x128xf32>
    %26 = arith.mulf %22, %22 : vector<16x128xf32>
    %cst_16 = arith.constant dense<0.000000e+00> : vector<128xf32>
    %27 = vector.multi_reduction <add>, %26, %cst_16 [0] : vector<16x128xf32> to vector<128xf32>
    %28 = vector.shape_cast %27 : vector<128xf32> to vector<1x128xf32>
    %29 = arith.addf %21, %28 : vector<1x128xf32>
    %c0_17 = arith.constant 0 : index
    %c384 = arith.constant 384 : index
    %30 = vector.load %arg6[%c0_17, %c384] : memref<16x2048xf32, #tpu.memory_space<vmem>>, vector<16x128xf32>
    %cst_18 = arith.constant dense<0.000000e+00> : vector<128xf32>
    %31 = vector.multi_reduction <add>, %30, %cst_18 [0] : vector<16x128xf32> to vector<128xf32>
    %32 = vector.shape_cast %31 : vector<128xf32> to vector<1x128xf32>
    %33 = arith.addf %25, %32 : vector<1x128xf32>
    %34 = arith.mulf %30, %30 : vector<16x128xf32>
    %cst_19 = arith.constant dense<0.000000e+00> : vector<128xf32>
    %35 = vector.multi_reduction <add>, %34, %cst_19 [0] : vector<16x128xf32> to vector<128xf32>
    %36 = vector.shape_cast %35 : vector<128xf32> to vector<1x128xf32>
    %37 = arith.addf %29, %36 : vector<1x128xf32>
    %c0_20 = arith.constant 0 : index
    %c512 = arith.constant 512 : index
    %38 = vector.load %arg6[%c0_20, %c512] : memref<16x2048xf32, #tpu.memory_space<vmem>>, vector<16x128xf32>
    %cst_21 = arith.constant dense<0.000000e+00> : vector<128xf32>
    %39 = vector.multi_reduction <add>, %38, %cst_21 [0] : vector<16x128xf32> to vector<128xf32>
    %40 = vector.shape_cast %39 : vector<128xf32> to vector<1x128xf32>
    %41 = arith.addf %33, %40 : vector<1x128xf32>
    %42 = arith.mulf %38, %38 : vector<16x128xf32>
    %cst_22 = arith.constant dense<0.000000e+00> : vector<128xf32>
    %43 = vector.multi_reduction <add>, %42, %cst_22 [0] : vector<16x128xf32> to vector<128xf32>
    %44 = vector.shape_cast %43 : vector<128xf32> to vector<1x128xf32>
    %45 = arith.addf %37, %44 : vector<1x128xf32>
    %c0_23 = arith.constant 0 : index
    %c640 = arith.constant 640 : index
    %46 = vector.load %arg6[%c0_23, %c640] : memref<16x2048xf32, #tpu.memory_space<vmem>>, vector<16x128xf32>
    %cst_24 = arith.constant dense<0.000000e+00> : vector<128xf32>
    %47 = vector.multi_reduction <add>, %46, %cst_24 [0] : vector<16x128xf32> to vector<128xf32>
    %48 = vector.shape_cast %47 : vector<128xf32> to vector<1x128xf32>
    %49 = arith.addf %41, %48 : vector<1x128xf32>
    %50 = arith.mulf %46, %46 : vector<16x128xf32>
    %cst_25 = arith.constant dense<0.000000e+00> : vector<128xf32>
    %51 = vector.multi_reduction <add>, %50, %cst_25 [0] : vector<16x128xf32> to vector<128xf32>
    %52 = vector.shape_cast %51 : vector<128xf32> to vector<1x128xf32>
    %53 = arith.addf %45, %52 : vector<1x128xf32>
    %c0_26 = arith.constant 0 : index
    %c768 = arith.constant 768 : index
    %54 = vector.load %arg6[%c0_26, %c768] : memref<16x2048xf32, #tpu.memory_space<vmem>>, vector<16x128xf32>
    %cst_27 = arith.constant dense<0.000000e+00> : vector<128xf32>
    %55 = vector.multi_reduction <add>, %54, %cst_27 [0] : vector<16x128xf32> to vector<128xf32>
    %56 = vector.shape_cast %55 : vector<128xf32> to vector<1x128xf32>
    %57 = arith.addf %49, %56 : vector<1x128xf32>
    %58 = arith.mulf %54, %54 : vector<16x128xf32>
    %cst_28 = arith.constant dense<0.000000e+00> : vector<128xf32>
    %59 = vector.multi_reduction <add>, %58, %cst_28 [0] : vector<16x128xf32> to vector<128xf32>
    %60 = vector.shape_cast %59 : vector<128xf32> to vector<1x128xf32>
    %61 = arith.addf %53, %60 : vector<1x128xf32>
    %c0_29 = arith.constant 0 : index
    %c896 = arith.constant 896 : index
    %62 = vector.load %arg6[%c0_29, %c896] : memref<16x2048xf32, #tpu.memory_space<vmem>>, vector<16x128xf32>
    %cst_30 = arith.constant dense<0.000000e+00> : vector<128xf32>
    %63 = vector.multi_reduction <add>, %62, %cst_30 [0] : vector<16x128xf32> to vector<128xf32>
    %64 = vector.shape_cast %63 : vector<128xf32> to vector<1x128xf32>
    %65 = arith.addf %57, %64 : vector<1x128xf32>
    %66 = arith.mulf %62, %62 : vector<16x128xf32>
    %cst_31 = arith.constant dense<0.000000e+00> : vector<128xf32>
    %67 = vector.multi_reduction <add>, %66, %cst_31 [0] : vector<16x128xf32> to vector<128xf32>
    %68 = vector.shape_cast %67 : vector<128xf32> to vector<1x128xf32>
    %69 = arith.addf %61, %68 : vector<1x128xf32>
    %c0_32 = arith.constant 0 : index
    %c1024 = arith.constant 1024 : index
    %70 = vector.load %arg6[%c0_32, %c1024] : memref<16x2048xf32, #tpu.memory_space<vmem>>, vector<16x128xf32>
    %cst_33 = arith.constant dense<0.000000e+00> : vector<128xf32>
    %71 = vector.multi_reduction <add>, %70, %cst_33 [0] : vector<16x128xf32> to vector<128xf32>
    %72 = vector.shape_cast %71 : vector<128xf32> to vector<1x128xf32>
    %73 = arith.addf %65, %72 : vector<1x128xf32>
    %74 = arith.mulf %70, %70 : vector<16x128xf32>
    %cst_34 = arith.constant dense<0.000000e+00> : vector<128xf32>
    %75 = vector.multi_reduction <add>, %74, %cst_34 [0] : vector<16x128xf32> to vector<128xf32>
    %76 = vector.shape_cast %75 : vector<128xf32> to vector<1x128xf32>
    %77 = arith.addf %69, %76 : vector<1x128xf32>
    %c0_35 = arith.constant 0 : index
    %c1152 = arith.constant 1152 : index
    %78 = vector.load %arg6[%c0_35, %c1152] : memref<16x2048xf32, #tpu.memory_space<vmem>>, vector<16x128xf32>
    %cst_36 = arith.constant dense<0.000000e+00> : vector<128xf32>
    %79 = vector.multi_reduction <add>, %78, %cst_36 [0] : vector<16x128xf32> to vector<128xf32>
    %80 = vector.shape_cast %79 : vector<128xf32> to vector<1x128xf32>
    %81 = arith.addf %73, %80 : vector<1x128xf32>
    %82 = arith.mulf %78, %78 : vector<16x128xf32>
    %cst_37 = arith.constant dense<0.000000e+00> : vector<128xf32>
    %83 = vector.multi_reduction <add>, %82, %cst_37 [0] : vector<16x128xf32> to vector<128xf32>
    %84 = vector.shape_cast %83 : vector<128xf32> to vector<1x128xf32>
    %85 = arith.addf %77, %84 : vector<1x128xf32>
    %c0_38 = arith.constant 0 : index
    %c1280 = arith.constant 1280 : index
    %86 = vector.load %arg6[%c0_38, %c1280] : memref<16x2048xf32, #tpu.memory_space<vmem>>, vector<16x128xf32>
    %cst_39 = arith.constant dense<0.000000e+00> : vector<128xf32>
    %87 = vector.multi_reduction <add>, %86, %cst_39 [0] : vector<16x128xf32> to vector<128xf32>
    %88 = vector.shape_cast %87 : vector<128xf32> to vector<1x128xf32>
    %89 = arith.addf %81, %88 : vector<1x128xf32>
    %90 = arith.mulf %86, %86 : vector<16x128xf32>
    %cst_40 = arith.constant dense<0.000000e+00> : vector<128xf32>
    %91 = vector.multi_reduction <add>, %90, %cst_40 [0] : vector<16x128xf32> to vector<128xf32>
    %92 = vector.shape_cast %91 : vector<128xf32> to vector<1x128xf32>
    %93 = arith.addf %85, %92 : vector<1x128xf32>
    %c0_41 = arith.constant 0 : index
    %c1408 = arith.constant 1408 : index
    %94 = vector.load %arg6[%c0_41, %c1408] : memref<16x2048xf32, #tpu.memory_space<vmem>>, vector<16x128xf32>
    %cst_42 = arith.constant dense<0.000000e+00> : vector<128xf32>
    %95 = vector.multi_reduction <add>, %94, %cst_42 [0] : vector<16x128xf32> to vector<128xf32>
    %96 = vector.shape_cast %95 : vector<128xf32> to vector<1x128xf32>
    %97 = arith.addf %89, %96 : vector<1x128xf32>
    %98 = arith.mulf %94, %94 : vector<16x128xf32>
    %cst_43 = arith.constant dense<0.000000e+00> : vector<128xf32>
    %99 = vector.multi_reduction <add>, %98, %cst_43 [0] : vector<16x128xf32> to vector<128xf32>
    %100 = vector.shape_cast %99 : vector<128xf32> to vector<1x128xf32>
    %101 = arith.addf %93, %100 : vector<1x128xf32>
    %c0_44 = arith.constant 0 : index
    %c1536 = arith.constant 1536 : index
    %102 = vector.load %arg6[%c0_44, %c1536] : memref<16x2048xf32, #tpu.memory_space<vmem>>, vector<16x128xf32>
    %cst_45 = arith.constant dense<0.000000e+00> : vector<128xf32>
    %103 = vector.multi_reduction <add>, %102, %cst_45 [0] : vector<16x128xf32> to vector<128xf32>
    %104 = vector.shape_cast %103 : vector<128xf32> to vector<1x128xf32>
    %105 = arith.addf %97, %104 : vector<1x128xf32>
    %106 = arith.mulf %102, %102 : vector<16x128xf32>
    %cst_46 = arith.constant dense<0.000000e+00> : vector<128xf32>
    %107 = vector.multi_reduction <add>, %106, %cst_46 [0] : vector<16x128xf32> to vector<128xf32>
    %108 = vector.shape_cast %107 : vector<128xf32> to vector<1x128xf32>
    %109 = arith.addf %101, %108 : vector<1x128xf32>
    %c0_47 = arith.constant 0 : index
    %c1664 = arith.constant 1664 : index
    %110 = vector.load %arg6[%c0_47, %c1664] : memref<16x2048xf32, #tpu.memory_space<vmem>>, vector<16x128xf32>
    %cst_48 = arith.constant dense<0.000000e+00> : vector<128xf32>
    %111 = vector.multi_reduction <add>, %110, %cst_48 [0] : vector<16x128xf32> to vector<128xf32>
    %112 = vector.shape_cast %111 : vector<128xf32> to vector<1x128xf32>
    %113 = arith.addf %105, %112 : vector<1x128xf32>
    %114 = arith.mulf %110, %110 : vector<16x128xf32>
    %cst_49 = arith.constant dense<0.000000e+00> : vector<128xf32>
    %115 = vector.multi_reduction <add>, %114, %cst_49 [0] : vector<16x128xf32> to vector<128xf32>
    %116 = vector.shape_cast %115 : vector<128xf32> to vector<1x128xf32>
    %117 = arith.addf %109, %116 : vector<1x128xf32>
    %c0_50 = arith.constant 0 : index
    %c1792 = arith.constant 1792 : index
    %118 = vector.load %arg6[%c0_50, %c1792] : memref<16x2048xf32, #tpu.memory_space<vmem>>, vector<16x128xf32>
    %cst_51 = arith.constant dense<0.000000e+00> : vector<128xf32>
    %119 = vector.multi_reduction <add>, %118, %cst_51 [0] : vector<16x128xf32> to vector<128xf32>
    %120 = vector.shape_cast %119 : vector<128xf32> to vector<1x128xf32>
    %121 = arith.addf %113, %120 : vector<1x128xf32>
    %122 = arith.mulf %118, %118 : vector<16x128xf32>
    %cst_52 = arith.constant dense<0.000000e+00> : vector<128xf32>
    %123 = vector.multi_reduction <add>, %122, %cst_52 [0] : vector<16x128xf32> to vector<128xf32>
    %124 = vector.shape_cast %123 : vector<128xf32> to vector<1x128xf32>
    %125 = arith.addf %117, %124 : vector<1x128xf32>
    %c0_53 = arith.constant 0 : index
    %c1920 = arith.constant 1920 : index
    %126 = vector.load %arg6[%c0_53, %c1920] : memref<16x2048xf32, #tpu.memory_space<vmem>>, vector<16x128xf32>
    %cst_54 = arith.constant dense<0.000000e+00> : vector<128xf32>
    %127 = vector.multi_reduction <add>, %126, %cst_54 [0] : vector<16x128xf32> to vector<128xf32>
    %128 = vector.shape_cast %127 : vector<128xf32> to vector<1x128xf32>
    %129 = arith.addf %121, %128 : vector<1x128xf32>
    %130 = arith.mulf %126, %126 : vector<16x128xf32>
    %cst_55 = arith.constant dense<0.000000e+00> : vector<128xf32>
    %131 = vector.multi_reduction <add>, %130, %cst_55 [0] : vector<16x128xf32> to vector<128xf32>
    %132 = vector.shape_cast %131 : vector<128xf32> to vector<1x128xf32>
    %133 = arith.addf %125, %132 : vector<1x128xf32>
    %cst_56 = arith.constant 3.125000e-02 : f32
    %134 = vector.broadcast %cst_56 : f32 to vector<1x128xf32>
    %135 = arith.mulf %129, %134 : vector<1x128xf32>
    %cst_57 = arith.constant 3.125000e-02 : f32
    %136 = vector.broadcast %cst_57 : f32 to vector<1x128xf32>
    %137 = arith.mulf %133, %136 : vector<1x128xf32>
    %138 = arith.mulf %135, %135 : vector<1x128xf32>
    %139 = arith.subf %137, %138 : vector<1x128xf32>
    %c0_58 = arith.constant 0 : index
    %c0_59 = arith.constant 0 : index
    %140 = vector.load %arg3[%c0_58, %c0_59] : memref<1x128xf32, #tpu.memory_space<vmem>>, vector<1x128xf32>
    %cst_60 = arith.constant 9.99999974E-6 : f32
    %141 = vector.broadcast %cst_60 : f32 to vector<1x128xf32>
    %142 = arith.addf %139, %141 : vector<1x128xf32>
    %143 = math.rsqrt %142 : vector<1x128xf32>
    %144 = arith.mulf %140, %143 : vector<1x128xf32>
    %c0_61 = arith.constant 0 : index
    %c0_62 = arith.constant 0 : index
    %145 = vector.load %arg4[%c0_61, %c0_62] : memref<1x128xf32, #tpu.memory_space<vmem>>, vector<1x128xf32>
    %146 = arith.mulf %135, %144 : vector<1x128xf32>
    %147 = arith.subf %145, %146 : vector<1x128xf32>
    %c0_63 = arith.constant 0 : index
    %c0_64 = arith.constant 0 : index
    %148 = vector.load %arg6[%c0_63, %c0_64] : memref<16x2048xf32, #tpu.memory_space<vmem>>, vector<16x128xf32>
    %149 = vector.broadcast %144 : vector<1x128xf32> to vector<16x128xf32>
    %150 = arith.mulf %148, %149 : vector<16x128xf32>
    %151 = vector.broadcast %147 : vector<1x128xf32> to vector<16x128xf32>
    %152 = arith.addf %150, %151 : vector<16x128xf32>
    %cst_65 = arith.constant 0.000000e+00 : f32
    %153 = vector.broadcast %cst_65 : f32 to vector<16x128xf32>
    %154 = arith.maximumf %152, %153 : vector<16x128xf32>
    %155 = arith.truncf %154 : vector<16x128xf32> to vector<16x128xbf16>
    %c0_66 = arith.constant 0 : index
    %c0_67 = arith.constant 0 : index
    %156 = vector.load %arg5[%c0_66, %c0_67] : memref<16x2048xbf16, #tpu.memory_space<vmem>>, vector<16x128xbf16>
    tpu.vector_store %arg5[%c0_66, %c0_67], %155 {strides = array<i32>} : memref<16x2048xbf16, #tpu.memory_space<vmem>>, vector<16x128xbf16>,
    %c0_68 = arith.constant 0 : index
    %c128_69 = arith.constant 128 : index
    %157 = vector.load %arg6[%c0_68, %c128_69] : memref<16x2048xf32, #tpu.memory_space<vmem>>, vector<16x128xf32>
    %158 = vector.broadcast %144 : vector<1x128xf32> to vector<16x128xf32>
    %159 = arith.mulf %157, %158 : vector<16x128xf32>
    %160 = vector.broadcast %147 : vector<1x128xf32> to vector<16x128xf32>
    %161 = arith.addf %159, %160 : vector<16x128xf32>
    %cst_70 = arith.constant 0.000000e+00 : f32
    %162 = vector.broadcast %cst_70 : f32 to vector<16x128xf32>
    %163 = arith.maximumf %161, %162 : vector<16x128xf32>
    %164 = arith.truncf %163 : vector<16x128xf32> to vector<16x128xbf16>
    %c0_71 = arith.constant 0 : index
    %c128_72 = arith.constant 128 : index
    %165 = vector.load %arg5[%c0_71, %c128_72] : memref<16x2048xbf16, #tpu.memory_space<vmem>>, vector<16x128xbf16>
    tpu.vector_store %arg5[%c0_71, %c128_72], %164 {strides = array<i32>} : memref<16x2048xbf16, #tpu.memory_space<vmem>>, vector<16x128xbf16>,
    %c0_73 = arith.constant 0 : index
    %c256_74 = arith.constant 256 : index
    %166 = vector.load %arg6[%c0_73, %c256_74] : memref<16x2048xf32, #tpu.memory_space<vmem>>, vector<16x128xf32>
    %167 = vector.broadcast %144 : vector<1x128xf32> to vector<16x128xf32>
    %168 = arith.mulf %166, %167 : vector<16x128xf32>
    %169 = vector.broadcast %147 : vector<1x128xf32> to vector<16x128xf32>
    %170 = arith.addf %168, %169 : vector<16x128xf32>
    %cst_75 = arith.constant 0.000000e+00 : f32
    %171 = vector.broadcast %cst_75 : f32 to vector<16x128xf32>
    %172 = arith.maximumf %170, %171 : vector<16x128xf32>
    %173 = arith.truncf %172 : vector<16x128xf32> to vector<16x128xbf16>
    %c0_76 = arith.constant 0 : index
    %c256_77 = arith.constant 256 : index
    %174 = vector.load %arg5[%c0_76, %c256_77] : memref<16x2048xbf16, #tpu.memory_space<vmem>>, vector<16x128xbf16>
    tpu.vector_store %arg5[%c0_76, %c256_77], %173 {strides = array<i32>} : memref<16x2048xbf16, #tpu.memory_space<vmem>>, vector<16x128xbf16>,
    %c0_78 = arith.constant 0 : index
    %c384_79 = arith.constant 384 : index
    %175 = vector.load %arg6[%c0_78, %c384_79] : memref<16x2048xf32, #tpu.memory_space<vmem>>, vector<16x128xf32>
    %176 = vector.broadcast %144 : vector<1x128xf32> to vector<16x128xf32>
    %177 = arith.mulf %175, %176 : vector<16x128xf32>
    %178 = vector.broadcast %147 : vector<1x128xf32> to vector<16x128xf32>
    %179 = arith.addf %177, %178 : vector<16x128xf32>
    %cst_80 = arith.constant 0.000000e+00 : f32
    %180 = vector.broadcast %cst_80 : f32 to vector<16x128xf32>
    %181 = arith.maximumf %179, %180 : vector<16x128xf32>
    %182 = arith.truncf %181 : vector<16x128xf32> to vector<16x128xbf16>
    %c0_81 = arith.constant 0 : index
    %c384_82 = arith.constant 384 : index
    %183 = vector.load %arg5[%c0_81, %c384_82] : memref<16x2048xbf16, #tpu.memory_space<vmem>>, vector<16x128xbf16>
    tpu.vector_store %arg5[%c0_81, %c384_82], %182 {strides = array<i32>} : memref<16x2048xbf16, #tpu.memory_space<vmem>>, vector<16x128xbf16>,
    %c0_83 = arith.constant 0 : index
    %c512_84 = arith.constant 512 : index
    %184 = vector.load %arg6[%c0_83, %c512_84] : memref<16x2048xf32, #tpu.memory_space<vmem>>, vector<16x128xf32>
    %185 = vector.broadcast %144 : vector<1x128xf32> to vector<16x128xf32>
    %186 = arith.mulf %184, %185 : vector<16x128xf32>
    %187 = vector.broadcast %147 : vector<1x128xf32> to vector<16x128xf32>
    %188 = arith.addf %186, %187 : vector<16x128xf32>
    %cst_85 = arith.constant 0.000000e+00 : f32
    %189 = vector.broadcast %cst_85 : f32 to vector<16x128xf32>
    %190 = arith.maximumf %188, %189 : vector<16x128xf32>
    %191 = arith.truncf %190 : vector<16x128xf32> to vector<16x128xbf16>
    %c0_86 = arith.constant 0 : index
    %c512_87 = arith.constant 512 : index
    %192 = vector.load %arg5[%c0_86, %c512_87] : memref<16x2048xbf16, #tpu.memory_space<vmem>>, vector<16x128xbf16>
    tpu.vector_store %arg5[%c0_86, %c512_87], %191 {strides = array<i32>} : memref<16x2048xbf16, #tpu.memory_space<vmem>>, vector<16x128xbf16>,
    %c0_88 = arith.constant 0 : index
    %c640_89 = arith.constant 640 : index
    %193 = vector.load %arg6[%c0_88, %c640_89] : memref<16x2048xf32, #tpu.memory_space<vmem>>, vector<16x128xf32>
    %194 = vector.broadcast %144 : vector<1x128xf32> to vector<16x128xf32>
    %195 = arith.mulf %193, %194 : vector<16x128xf32>
    %196 = vector.broadcast %147 : vector<1x128xf32> to vector<16x128xf32>
    %197 = arith.addf %195, %196 : vector<16x128xf32>
    %cst_90 = arith.constant 0.000000e+00 : f32
    %198 = vector.broadcast %cst_90 : f32 to vector<16x128xf32>
    %199 = arith.maximumf %197, %198 : vector<16x128xf32>
    %200 = arith.truncf %199 : vector<16x128xf32> to vector<16x128xbf16>
    %c0_91 = arith.constant 0 : index
    %c640_92 = arith.constant 640 : index
    %201 = vector.load %arg5[%c0_91, %c640_92] : memref<16x2048xbf16, #tpu.memory_space<vmem>>, vector<16x128xbf16>
    tpu.vector_store %arg5[%c0_91, %c640_92], %200 {strides = array<i32>} : memref<16x2048xbf16, #tpu.memory_space<vmem>>, vector<16x128xbf16>,
    %c0_93 = arith.constant 0 : index
    %c768_94 = arith.constant 768 : index
    %202 = vector.load %arg6[%c0_93, %c768_94] : memref<16x2048xf32, #tpu.memory_space<vmem>>, vector<16x128xf32>
    %203 = vector.broadcast %144 : vector<1x128xf32> to vector<16x128xf32>
    %204 = arith.mulf %202, %203 : vector<16x128xf32>
    %205 = vector.broadcast %147 : vector<1x128xf32> to vector<16x128xf32>
    %206 = arith.addf %204, %205 : vector<16x128xf32>
    %cst_95 = arith.constant 0.000000e+00 : f32
    %207 = vector.broadcast %cst_95 : f32 to vector<16x128xf32>
    %208 = arith.maximumf %206, %207 : vector<16x128xf32>
    %209 = arith.truncf %208 : vector<16x128xf32> to vector<16x128xbf16>
    %c0_96 = arith.constant 0 : index
    %c768_97 = arith.constant 768 : index
    %210 = vector.load %arg5[%c0_96, %c768_97] : memref<16x2048xbf16, #tpu.memory_space<vmem>>, vector<16x128xbf16>
    tpu.vector_store %arg5[%c0_96, %c768_97], %209 {strides = array<i32>} : memref<16x2048xbf16, #tpu.memory_space<vmem>>, vector<16x128xbf16>,
    %c0_98 = arith.constant 0 : index
    %c896_99 = arith.constant 896 : index
    %211 = vector.load %arg6[%c0_98, %c896_99] : memref<16x2048xf32, #tpu.memory_space<vmem>>, vector<16x128xf32>
    %212 = vector.broadcast %144 : vector<1x128xf32> to vector<16x128xf32>
    %213 = arith.mulf %211, %212 : vector<16x128xf32>
    %214 = vector.broadcast %147 : vector<1x128xf32> to vector<16x128xf32>
    %215 = arith.addf %213, %214 : vector<16x128xf32>
    %cst_100 = arith.constant 0.000000e+00 : f32
    %216 = vector.broadcast %cst_100 : f32 to vector<16x128xf32>
    %217 = arith.maximumf %215, %216 : vector<16x128xf32>
    %218 = arith.truncf %217 : vector<16x128xf32> to vector<16x128xbf16>
    %c0_101 = arith.constant 0 : index
    %c896_102 = arith.constant 896 : index
    %219 = vector.load %arg5[%c0_101, %c896_102] : memref<16x2048xbf16, #tpu.memory_space<vmem>>, vector<16x128xbf16>
    tpu.vector_store %arg5[%c0_101, %c896_102], %218 {strides = array<i32>} : memref<16x2048xbf16, #tpu.memory_space<vmem>>, vector<16x128xbf16>,
    %c0_103 = arith.constant 0 : index
    %c1024_104 = arith.constant 1024 : index
    %220 = vector.load %arg6[%c0_103, %c1024_104] : memref<16x2048xf32, #tpu.memory_space<vmem>>, vector<16x128xf32>
    %221 = vector.broadcast %144 : vector<1x128xf32> to vector<16x128xf32>
    %222 = arith.mulf %220, %221 : vector<16x128xf32>
    %223 = vector.broadcast %147 : vector<1x128xf32> to vector<16x128xf32>
    %224 = arith.addf %222, %223 : vector<16x128xf32>
    %cst_105 = arith.constant 0.000000e+00 : f32
    %225 = vector.broadcast %cst_105 : f32 to vector<16x128xf32>
    %226 = arith.maximumf %224, %225 : vector<16x128xf32>
    %227 = arith.truncf %226 : vector<16x128xf32> to vector<16x128xbf16>
    %c0_106 = arith.constant 0 : index
    %c1024_107 = arith.constant 1024 : index
    %228 = vector.load %arg5[%c0_106, %c1024_107] : memref<16x2048xbf16, #tpu.memory_space<vmem>>, vector<16x128xbf16>
    tpu.vector_store %arg5[%c0_106, %c1024_107], %227 {strides = array<i32>} : memref<16x2048xbf16, #tpu.memory_space<vmem>>, vector<16x128xbf16>,
    %c0_108 = arith.constant 0 : index
    %c1152_109 = arith.constant 1152 : index
    %229 = vector.load %arg6[%c0_108, %c1152_109] : memref<16x2048xf32, #tpu.memory_space<vmem>>, vector<16x128xf32>
    %230 = vector.broadcast %144 : vector<1x128xf32> to vector<16x128xf32>
    %231 = arith.mulf %229, %230 : vector<16x128xf32>
    %232 = vector.broadcast %147 : vector<1x128xf32> to vector<16x128xf32>
    %233 = arith.addf %231, %232 : vector<16x128xf32>
    %cst_110 = arith.constant 0.000000e+00 : f32
    %234 = vector.broadcast %cst_110 : f32 to vector<16x128xf32>
    %235 = arith.maximumf %233, %234 : vector<16x128xf32>
    %236 = arith.truncf %235 : vector<16x128xf32> to vector<16x128xbf16>
    %c0_111 = arith.constant 0 : index
    %c1152_112 = arith.constant 1152 : index
    %237 = vector.load %arg5[%c0_111, %c1152_112] : memref<16x2048xbf16, #tpu.memory_space<vmem>>, vector<16x128xbf16>
    tpu.vector_store %arg5[%c0_111, %c1152_112], %236 {strides = array<i32>} : memref<16x2048xbf16, #tpu.memory_space<vmem>>, vector<16x128xbf16>,
    %c0_113 = arith.constant 0 : index
    %c1280_114 = arith.constant 1280 : index
    %238 = vector.load %arg6[%c0_113, %c1280_114] : memref<16x2048xf32, #tpu.memory_space<vmem>>, vector<16x128xf32>
    %239 = vector.broadcast %144 : vector<1x128xf32> to vector<16x128xf32>
    %240 = arith.mulf %238, %239 : vector<16x128xf32>
    %241 = vector.broadcast %147 : vector<1x128xf32> to vector<16x128xf32>
    %242 = arith.addf %240, %241 : vector<16x128xf32>
    %cst_115 = arith.constant 0.000000e+00 : f32
    %243 = vector.broadcast %cst_115 : f32 to vector<16x128xf32>
    %244 = arith.maximumf %242, %243 : vector<16x128xf32>
    %245 = arith.truncf %244 : vector<16x128xf32> to vector<16x128xbf16>
    %c0_116 = arith.constant 0 : index
    %c1280_117 = arith.constant 1280 : index
    %246 = vector.load %arg5[%c0_116, %c1280_117] : memref<16x2048xbf16, #tpu.memory_space<vmem>>, vector<16x128xbf16>
    tpu.vector_store %arg5[%c0_116, %c1280_117], %245 {strides = array<i32>} : memref<16x2048xbf16, #tpu.memory_space<vmem>>, vector<16x128xbf16>,
    %c0_118 = arith.constant 0 : index
    %c1408_119 = arith.constant 1408 : index
    %247 = vector.load %arg6[%c0_118, %c1408_119] : memref<16x2048xf32, #tpu.memory_space<vmem>>, vector<16x128xf32>
    %248 = vector.broadcast %144 : vector<1x128xf32> to vector<16x128xf32>
    %249 = arith.mulf %247, %248 : vector<16x128xf32>
    %250 = vector.broadcast %147 : vector<1x128xf32> to vector<16x128xf32>
    %251 = arith.addf %249, %250 : vector<16x128xf32>
    %cst_120 = arith.constant 0.000000e+00 : f32
    %252 = vector.broadcast %cst_120 : f32 to vector<16x128xf32>
    %253 = arith.maximumf %251, %252 : vector<16x128xf32>
    %254 = arith.truncf %253 : vector<16x128xf32> to vector<16x128xbf16>
    %c0_121 = arith.constant 0 : index
    %c1408_122 = arith.constant 1408 : index
    %255 = vector.load %arg5[%c0_121, %c1408_122] : memref<16x2048xbf16, #tpu.memory_space<vmem>>, vector<16x128xbf16>
    tpu.vector_store %arg5[%c0_121, %c1408_122], %254 {strides = array<i32>} : memref<16x2048xbf16, #tpu.memory_space<vmem>>, vector<16x128xbf16>,
    %c0_123 = arith.constant 0 : index
    %c1536_124 = arith.constant 1536 : index
    %256 = vector.load %arg6[%c0_123, %c1536_124] : memref<16x2048xf32, #tpu.memory_space<vmem>>, vector<16x128xf32>
    %257 = vector.broadcast %144 : vector<1x128xf32> to vector<16x128xf32>
    %258 = arith.mulf %256, %257 : vector<16x128xf32>
    %259 = vector.broadcast %147 : vector<1x128xf32> to vector<16x128xf32>
    %260 = arith.addf %258, %259 : vector<16x128xf32>
    %cst_125 = arith.constant 0.000000e+00 : f32
    %261 = vector.broadcast %cst_125 : f32 to vector<16x128xf32>
    %262 = arith.maximumf %260, %261 : vector<16x128xf32>
    %263 = arith.truncf %262 : vector<16x128xf32> to vector<16x128xbf16>
    %c0_126 = arith.constant 0 : index
    %c1536_127 = arith.constant 1536 : index
    %264 = vector.load %arg5[%c0_126, %c1536_127] : memref<16x2048xbf16, #tpu.memory_space<vmem>>, vector<16x128xbf16>
    tpu.vector_store %arg5[%c0_126, %c1536_127], %263 {strides = array<i32>} : memref<16x2048xbf16, #tpu.memory_space<vmem>>, vector<16x128xbf16>,
    %c0_128 = arith.constant 0 : index
    %c1664_129 = arith.constant 1664 : index
    %265 = vector.load %arg6[%c0_128, %c1664_129] : memref<16x2048xf32, #tpu.memory_space<vmem>>, vector<16x128xf32>
    %266 = vector.broadcast %144 : vector<1x128xf32> to vector<16x128xf32>
    %267 = arith.mulf %265, %266 : vector<16x128xf32>
    %268 = vector.broadcast %147 : vector<1x128xf32> to vector<16x128xf32>
    %269 = arith.addf %267, %268 : vector<16x128xf32>
    %cst_130 = arith.constant 0.000000e+00 : f32
    %270 = vector.broadcast %cst_130 : f32 to vector<16x128xf32>
    %271 = arith.maximumf %269, %270 : vector<16x128xf32>
    %272 = arith.truncf %271 : vector<16x128xf32> to vector<16x128xbf16>
    %c0_131 = arith.constant 0 : index
    %c1664_132 = arith.constant 1664 : index
    %273 = vector.load %arg5[%c0_131, %c1664_132] : memref<16x2048xbf16, #tpu.memory_space<vmem>>, vector<16x128xbf16>
    tpu.vector_store %arg5[%c0_131, %c1664_132], %272 {strides = array<i32>} : memref<16x2048xbf16, #tpu.memory_space<vmem>>, vector<16x128xbf16>,
    %c0_133 = arith.constant 0 : index
    %c1792_134 = arith.constant 1792 : index
    %274 = vector.load %arg6[%c0_133, %c1792_134] : memref<16x2048xf32, #tpu.memory_space<vmem>>, vector<16x128xf32>
    %275 = vector.broadcast %144 : vector<1x128xf32> to vector<16x128xf32>
    %276 = arith.mulf %274, %275 : vector<16x128xf32>
    %277 = vector.broadcast %147 : vector<1x128xf32> to vector<16x128xf32>
    %278 = arith.addf %276, %277 : vector<16x128xf32>
    %cst_135 = arith.constant 0.000000e+00 : f32
    %279 = vector.broadcast %cst_135 : f32 to vector<16x128xf32>
    %280 = arith.maximumf %278, %279 : vector<16x128xf32>
    %281 = arith.truncf %280 : vector<16x128xf32> to vector<16x128xbf16>
    %c0_136 = arith.constant 0 : index
    %c1792_137 = arith.constant 1792 : index
    %282 = vector.load %arg5[%c0_136, %c1792_137] : memref<16x2048xbf16, #tpu.memory_space<vmem>>, vector<16x128xbf16>
    tpu.vector_store %arg5[%c0_136, %c1792_137], %281 {strides = array<i32>} : memref<16x2048xbf16, #tpu.memory_space<vmem>>, vector<16x128xbf16>,
    %c0_138 = arith.constant 0 : index
    %c1920_139 = arith.constant 1920 : index
    %283 = vector.load %arg6[%c0_138, %c1920_139] : memref<16x2048xf32, #tpu.memory_space<vmem>>, vector<16x128xf32>
    %284 = vector.broadcast %144 : vector<1x128xf32> to vector<16x128xf32>
    %285 = arith.mulf %283, %284 : vector<16x128xf32>
    %286 = vector.broadcast %147 : vector<1x128xf32> to vector<16x128xf32>
    %287 = arith.addf %285, %286 : vector<16x128xf32>
    %cst_140 = arith.constant 0.000000e+00 : f32
    %288 = vector.broadcast %cst_140 : f32 to vector<16x128xf32>
    %289 = arith.maximumf %287, %288 : vector<16x128xf32>
    %290 = arith.truncf %289 : vector<16x128xf32> to vector<16x128xbf16>
    %c0_141 = arith.constant 0 : index
    %c1920_142 = arith.constant 1920 : index
    %291 = vector.load %arg5[%c0_141, %c1920_142] : memref<16x2048xbf16, #tpu.memory_space<vmem>>, vector<16x128xbf16>
    tpu.vector_store %arg5[%c0_141, %c1920_142], %290 {strides = array<i32>} : memref<16x2048xbf16, #tpu.memory_space<vmem>>, vector<16x128xbf16>,
    return
  }
  func.func @transform_0(%arg0: i32) -> (i32, i32) {
    %c0_i32 = arith.constant 0 : i32
    %c0_i32_0 = arith.constant 0 : i32
    %c0_i32_1 = arith.constant 0 : i32
    return %c0_i32, %c0_i32_0 : i32, i32
  }
  func.func @transform_1(%arg0: i32) -> (i32, i32) {
    %c0_i32 = arith.constant 0 : i32
    %c0_i32_0 = arith.constant 0 : i32
    %c0_i32_1 = arith.constant 0 : i32
    return %c0_i32, %c0_i32_0 : i32, i32
  }
  func.func @transform_2(%arg0: i32) -> (i32, i32) {
    %c0_i32 = arith.constant 0 : i32
    %c0_i32_0 = arith.constant 0 : i32
    %c0_i32_1 = arith.constant 0 : i32
    return %c0_i32, %c0_i32_0 : i32, i32
  }
  func.func @transform_3(%arg0: i32) -> (i32, i32) {
    %c0_i32 = arith.constant 0 : i32
    %c0_i32_0 = arith.constant 0 : i32
    %c0_i32_1 = arith.constant 0 : i32
    return %c0_i32, %c0_i32_0 : i32, i32
  }
  func.func @transform_4(%arg0: i32) -> (i32, i32) {
    %c0_i32 = arith.constant 0 : i32
    %c0_i32_0 = arith.constant 0 : i32
    %c0_i32_1 = arith.constant 0 : i32
    return %c0_i32, %c0_i32_0 : i32, i32
  }
}

module attributes {stable_mosaic.version = 11 : i64} {
  func.func @_layer_kernel(%arg0: i32, %arg1: memref<32x1152xbf16, #tpu.memory_space<vmem>>, %arg2: memref<1152x512xbf16, #tpu.memory_space<vmem>>, %arg3: memref<1x128xf32, #tpu.memory_space<vmem>>, %arg4: memref<1x128xf32, #tpu.memory_space<vmem>>, %arg5: memref<32x512xbf16, #tpu.memory_space<vmem>>, %arg6: memref<32x512xf32, #tpu.memory_space<vmem>>) attributes {dimension_semantics = [#tpu.dimension_semantics<arbitrary>], iteration_bounds = array<i64: 1>, scalar_prefetch = 0 : i64, scratch_operands = 1 : i64, tpu.core_type = #tpu.core_type<tc>, window_params = [{pipeline_mode = #tpu.pipeline_mode<synchronous>, transform_indices = @transform_0, window_bounds = array<i64: 32, 1152>}, {pipeline_mode = #tpu.pipeline_mode<synchronous>, transform_indices = @transform_1, window_bounds = array<i64: 1152, 512>}, {pipeline_mode = #tpu.pipeline_mode<synchronous>, transform_indices = @transform_2, window_bounds = array<i64: 1, 128>}, {pipeline_mode = #tpu.pipeline_mode<synchronous>, transform_indices = @transform_3, window_bounds = array<i64: 1, 128>}, {pipeline_mode = #tpu.pipeline_mode<synchronous>, transform_indices = @transform_4, window_bounds = array<i64: 32, 512>}]} {
    %c0 = arith.constant 0 : index
    %c0_0 = arith.constant 0 : index
    %0 = vector.load %arg1[%c0, %c0_0] : memref<32x1152xbf16, #tpu.memory_space<vmem>>, vector<32x1152xbf16>
    %c0_1 = arith.constant 0 : index
    %c0_2 = arith.constant 0 : index
    %1 = vector.load %arg2[%c0_1, %c0_2] : memref<1152x512xbf16, #tpu.memory_space<vmem>>, vector<1152x512xbf16>
    %cst = arith.constant dense<0.000000e+00> : vector<32x512xf32>
    %2 = tpu.matmul %0, %1, %cst {dimension_numbers = #tpu.dot_dimension_numbers<[1], [0], [0], [1], [0, 0, 1, 1], [], []>} : vector<32x1152xbf16>, vector<1152x512xbf16>, vector<32x512xf32> -> vector<32x512xf32>
    %c0_3 = arith.constant 0 : index
    %c0_4 = arith.constant 0 : index
    %3 = vector.load %arg6[%c0_3, %c0_4] : memref<32x512xf32, #tpu.memory_space<vmem>>, vector<32x512xf32>
    tpu.vector_store %arg6[%c0_3, %c0_4], %2 {strides = array<i32>} : memref<32x512xf32, #tpu.memory_space<vmem>>, vector<32x512xf32>,
    %cst_5 = arith.constant 0.000000e+00 : f32
    %4 = vector.broadcast %cst_5 : f32 to vector<1x128xf32>
    %cst_6 = arith.constant 0.000000e+00 : f32
    %5 = vector.broadcast %cst_6 : f32 to vector<1x128xf32>
    %c0_7 = arith.constant 0 : index
    %c0_8 = arith.constant 0 : index
    %6 = vector.load %arg6[%c0_7, %c0_8] : memref<32x512xf32, #tpu.memory_space<vmem>>, vector<32x128xf32>
    %cst_9 = arith.constant dense<0.000000e+00> : vector<128xf32>
    %7 = vector.multi_reduction <add>, %6, %cst_9 [0] : vector<32x128xf32> to vector<128xf32>
    %8 = vector.shape_cast %7 : vector<128xf32> to vector<1x128xf32>
    %9 = arith.addf %4, %8 : vector<1x128xf32>
    %10 = arith.mulf %6, %6 : vector<32x128xf32>
    %cst_10 = arith.constant dense<0.000000e+00> : vector<128xf32>
    %11 = vector.multi_reduction <add>, %10, %cst_10 [0] : vector<32x128xf32> to vector<128xf32>
    %12 = vector.shape_cast %11 : vector<128xf32> to vector<1x128xf32>
    %13 = arith.addf %5, %12 : vector<1x128xf32>
    %c0_11 = arith.constant 0 : index
    %c128 = arith.constant 128 : index
    %14 = vector.load %arg6[%c0_11, %c128] : memref<32x512xf32, #tpu.memory_space<vmem>>, vector<32x128xf32>
    %cst_12 = arith.constant dense<0.000000e+00> : vector<128xf32>
    %15 = vector.multi_reduction <add>, %14, %cst_12 [0] : vector<32x128xf32> to vector<128xf32>
    %16 = vector.shape_cast %15 : vector<128xf32> to vector<1x128xf32>
    %17 = arith.addf %9, %16 : vector<1x128xf32>
    %18 = arith.mulf %14, %14 : vector<32x128xf32>
    %cst_13 = arith.constant dense<0.000000e+00> : vector<128xf32>
    %19 = vector.multi_reduction <add>, %18, %cst_13 [0] : vector<32x128xf32> to vector<128xf32>
    %20 = vector.shape_cast %19 : vector<128xf32> to vector<1x128xf32>
    %21 = arith.addf %13, %20 : vector<1x128xf32>
    %c0_14 = arith.constant 0 : index
    %c256 = arith.constant 256 : index
    %22 = vector.load %arg6[%c0_14, %c256] : memref<32x512xf32, #tpu.memory_space<vmem>>, vector<32x128xf32>
    %cst_15 = arith.constant dense<0.000000e+00> : vector<128xf32>
    %23 = vector.multi_reduction <add>, %22, %cst_15 [0] : vector<32x128xf32> to vector<128xf32>
    %24 = vector.shape_cast %23 : vector<128xf32> to vector<1x128xf32>
    %25 = arith.addf %17, %24 : vector<1x128xf32>
    %26 = arith.mulf %22, %22 : vector<32x128xf32>
    %cst_16 = arith.constant dense<0.000000e+00> : vector<128xf32>
    %27 = vector.multi_reduction <add>, %26, %cst_16 [0] : vector<32x128xf32> to vector<128xf32>
    %28 = vector.shape_cast %27 : vector<128xf32> to vector<1x128xf32>
    %29 = arith.addf %21, %28 : vector<1x128xf32>
    %c0_17 = arith.constant 0 : index
    %c384 = arith.constant 384 : index
    %30 = vector.load %arg6[%c0_17, %c384] : memref<32x512xf32, #tpu.memory_space<vmem>>, vector<32x128xf32>
    %cst_18 = arith.constant dense<0.000000e+00> : vector<128xf32>
    %31 = vector.multi_reduction <add>, %30, %cst_18 [0] : vector<32x128xf32> to vector<128xf32>
    %32 = vector.shape_cast %31 : vector<128xf32> to vector<1x128xf32>
    %33 = arith.addf %25, %32 : vector<1x128xf32>
    %34 = arith.mulf %30, %30 : vector<32x128xf32>
    %cst_19 = arith.constant dense<0.000000e+00> : vector<128xf32>
    %35 = vector.multi_reduction <add>, %34, %cst_19 [0] : vector<32x128xf32> to vector<128xf32>
    %36 = vector.shape_cast %35 : vector<128xf32> to vector<1x128xf32>
    %37 = arith.addf %29, %36 : vector<1x128xf32>
    %cst_20 = arith.constant 7.812500e-03 : f32
    %38 = vector.broadcast %cst_20 : f32 to vector<1x128xf32>
    %39 = arith.mulf %33, %38 : vector<1x128xf32>
    %cst_21 = arith.constant 7.812500e-03 : f32
    %40 = vector.broadcast %cst_21 : f32 to vector<1x128xf32>
    %41 = arith.mulf %37, %40 : vector<1x128xf32>
    %42 = arith.mulf %39, %39 : vector<1x128xf32>
    %43 = arith.subf %41, %42 : vector<1x128xf32>
    %c0_22 = arith.constant 0 : index
    %c0_23 = arith.constant 0 : index
    %44 = vector.load %arg3[%c0_22, %c0_23] : memref<1x128xf32, #tpu.memory_space<vmem>>, vector<1x128xf32>
    %cst_24 = arith.constant 9.99999974E-6 : f32
    %45 = vector.broadcast %cst_24 : f32 to vector<1x128xf32>
    %46 = arith.addf %43, %45 : vector<1x128xf32>
    %47 = math.rsqrt %46 : vector<1x128xf32>
    %48 = arith.mulf %44, %47 : vector<1x128xf32>
    %c0_25 = arith.constant 0 : index
    %c0_26 = arith.constant 0 : index
    %49 = vector.load %arg4[%c0_25, %c0_26] : memref<1x128xf32, #tpu.memory_space<vmem>>, vector<1x128xf32>
    %50 = arith.mulf %39, %48 : vector<1x128xf32>
    %51 = arith.subf %49, %50 : vector<1x128xf32>
    %c0_27 = arith.constant 0 : index
    %c0_28 = arith.constant 0 : index
    %52 = vector.load %arg6[%c0_27, %c0_28] : memref<32x512xf32, #tpu.memory_space<vmem>>, vector<32x128xf32>
    %53 = vector.broadcast %48 : vector<1x128xf32> to vector<32x128xf32>
    %54 = arith.mulf %52, %53 : vector<32x128xf32>
    %55 = vector.broadcast %51 : vector<1x128xf32> to vector<32x128xf32>
    %56 = arith.addf %54, %55 : vector<32x128xf32>
    %cst_29 = arith.constant 0.000000e+00 : f32
    %57 = vector.broadcast %cst_29 : f32 to vector<32x128xf32>
    %58 = arith.maximumf %56, %57 : vector<32x128xf32>
    %59 = arith.truncf %58 : vector<32x128xf32> to vector<32x128xbf16>
    %c0_30 = arith.constant 0 : index
    %c0_31 = arith.constant 0 : index
    %60 = vector.load %arg5[%c0_30, %c0_31] : memref<32x512xbf16, #tpu.memory_space<vmem>>, vector<32x128xbf16>
    tpu.vector_store %arg5[%c0_30, %c0_31], %59 {strides = array<i32>} : memref<32x512xbf16, #tpu.memory_space<vmem>>, vector<32x128xbf16>,
    %c0_32 = arith.constant 0 : index
    %c128_33 = arith.constant 128 : index
    %61 = vector.load %arg6[%c0_32, %c128_33] : memref<32x512xf32, #tpu.memory_space<vmem>>, vector<32x128xf32>
    %62 = vector.broadcast %48 : vector<1x128xf32> to vector<32x128xf32>
    %63 = arith.mulf %61, %62 : vector<32x128xf32>
    %64 = vector.broadcast %51 : vector<1x128xf32> to vector<32x128xf32>
    %65 = arith.addf %63, %64 : vector<32x128xf32>
    %cst_34 = arith.constant 0.000000e+00 : f32
    %66 = vector.broadcast %cst_34 : f32 to vector<32x128xf32>
    %67 = arith.maximumf %65, %66 : vector<32x128xf32>
    %68 = arith.truncf %67 : vector<32x128xf32> to vector<32x128xbf16>
    %c0_35 = arith.constant 0 : index
    %c128_36 = arith.constant 128 : index
    %69 = vector.load %arg5[%c0_35, %c128_36] : memref<32x512xbf16, #tpu.memory_space<vmem>>, vector<32x128xbf16>
    tpu.vector_store %arg5[%c0_35, %c128_36], %68 {strides = array<i32>} : memref<32x512xbf16, #tpu.memory_space<vmem>>, vector<32x128xbf16>,
    %c0_37 = arith.constant 0 : index
    %c256_38 = arith.constant 256 : index
    %70 = vector.load %arg6[%c0_37, %c256_38] : memref<32x512xf32, #tpu.memory_space<vmem>>, vector<32x128xf32>
    %71 = vector.broadcast %48 : vector<1x128xf32> to vector<32x128xf32>
    %72 = arith.mulf %70, %71 : vector<32x128xf32>
    %73 = vector.broadcast %51 : vector<1x128xf32> to vector<32x128xf32>
    %74 = arith.addf %72, %73 : vector<32x128xf32>
    %cst_39 = arith.constant 0.000000e+00 : f32
    %75 = vector.broadcast %cst_39 : f32 to vector<32x128xf32>
    %76 = arith.maximumf %74, %75 : vector<32x128xf32>
    %77 = arith.truncf %76 : vector<32x128xf32> to vector<32x128xbf16>
    %c0_40 = arith.constant 0 : index
    %c256_41 = arith.constant 256 : index
    %78 = vector.load %arg5[%c0_40, %c256_41] : memref<32x512xbf16, #tpu.memory_space<vmem>>, vector<32x128xbf16>
    tpu.vector_store %arg5[%c0_40, %c256_41], %77 {strides = array<i32>} : memref<32x512xbf16, #tpu.memory_space<vmem>>, vector<32x128xbf16>,
    %c0_42 = arith.constant 0 : index
    %c384_43 = arith.constant 384 : index
    %79 = vector.load %arg6[%c0_42, %c384_43] : memref<32x512xf32, #tpu.memory_space<vmem>>, vector<32x128xf32>
    %80 = vector.broadcast %48 : vector<1x128xf32> to vector<32x128xf32>
    %81 = arith.mulf %79, %80 : vector<32x128xf32>
    %82 = vector.broadcast %51 : vector<1x128xf32> to vector<32x128xf32>
    %83 = arith.addf %81, %82 : vector<32x128xf32>
    %cst_44 = arith.constant 0.000000e+00 : f32
    %84 = vector.broadcast %cst_44 : f32 to vector<32x128xf32>
    %85 = arith.maximumf %83, %84 : vector<32x128xf32>
    %86 = arith.truncf %85 : vector<32x128xf32> to vector<32x128xbf16>
    %c0_45 = arith.constant 0 : index
    %c384_46 = arith.constant 384 : index
    %87 = vector.load %arg5[%c0_45, %c384_46] : memref<32x512xbf16, #tpu.memory_space<vmem>>, vector<32x128xbf16>
    tpu.vector_store %arg5[%c0_45, %c384_46], %86 {strides = array<i32>} : memref<32x512xbf16, #tpu.memory_space<vmem>>, vector<32x128xbf16>,
    return
  }
  func.func @transform_0(%arg0: i32) -> (i32, i32) {
    %c0_i32 = arith.constant 0 : i32
    %c0_i32_0 = arith.constant 0 : i32
    %c0_i32_1 = arith.constant 0 : i32
    return %c0_i32, %c0_i32_0 : i32, i32
  }
  func.func @transform_1(%arg0: i32) -> (i32, i32) {
    %c0_i32 = arith.constant 0 : i32
    %c0_i32_0 = arith.constant 0 : i32
    %c0_i32_1 = arith.constant 0 : i32
    return %c0_i32, %c0_i32_0 : i32, i32
  }
  func.func @transform_2(%arg0: i32) -> (i32, i32) {
    %c0_i32 = arith.constant 0 : i32
    %c0_i32_0 = arith.constant 0 : i32
    %c0_i32_1 = arith.constant 0 : i32
    return %c0_i32, %c0_i32_0 : i32, i32
  }
  func.func @transform_3(%arg0: i32) -> (i32, i32) {
    %c0_i32 = arith.constant 0 : i32
    %c0_i32_0 = arith.constant 0 : i32
    %c0_i32_1 = arith.constant 0 : i32
    return %c0_i32, %c0_i32_0 : i32, i32
  }
  func.func @transform_4(%arg0: i32) -> (i32, i32) {
    %c0_i32 = arith.constant 0 : i32
    %c0_i32_0 = arith.constant 0 : i32
    %c0_i32_1 = arith.constant 0 : i32
    return %c0_i32, %c0_i32_0 : i32, i32
  }
}

module attributes {stable_mosaic.version = 11 : i64} {
  func.func @_layer_kernel(%arg0: i32, %arg1: memref<128x1152xbf16, #tpu.memory_space<vmem>>, %arg2: memref<1152x128xbf16, #tpu.memory_space<vmem>>, %arg3: memref<1x128xf32, #tpu.memory_space<vmem>>, %arg4: memref<1x128xf32, #tpu.memory_space<vmem>>, %arg5: memref<128x128xbf16, #tpu.memory_space<vmem>>, %arg6: memref<128x128xf32, #tpu.memory_space<vmem>>) attributes {dimension_semantics = [#tpu.dimension_semantics<arbitrary>], iteration_bounds = array<i64: 1>, scalar_prefetch = 0 : i64, scratch_operands = 1 : i64, tpu.core_type = #tpu.core_type<tc>, window_params = [{pipeline_mode = #tpu.pipeline_mode<synchronous>, transform_indices = @transform_0, window_bounds = array<i64: 128, 1152>}, {pipeline_mode = #tpu.pipeline_mode<synchronous>, transform_indices = @transform_1, window_bounds = array<i64: 1152, 128>}, {pipeline_mode = #tpu.pipeline_mode<synchronous>, transform_indices = @transform_2, window_bounds = array<i64: 1, 128>}, {pipeline_mode = #tpu.pipeline_mode<synchronous>, transform_indices = @transform_3, window_bounds = array<i64: 1, 128>}, {pipeline_mode = #tpu.pipeline_mode<synchronous>, transform_indices = @transform_4, window_bounds = array<i64: 128, 128>}]} {
    %c0 = arith.constant 0 : index
    %c0_0 = arith.constant 0 : index
    %0 = vector.load %arg1[%c0, %c0_0] : memref<128x1152xbf16, #tpu.memory_space<vmem>>, vector<128x1152xbf16>
    %c0_1 = arith.constant 0 : index
    %c0_2 = arith.constant 0 : index
    %1 = vector.load %arg2[%c0_1, %c0_2] : memref<1152x128xbf16, #tpu.memory_space<vmem>>, vector<1152x128xbf16>
    %cst = arith.constant dense<0.000000e+00> : vector<128x128xf32>
    %2 = tpu.matmul %0, %1, %cst {dimension_numbers = #tpu.dot_dimension_numbers<[1], [0], [0], [1], [0, 0, 1, 1], [], []>} : vector<128x1152xbf16>, vector<1152x128xbf16>, vector<128x128xf32> -> vector<128x128xf32>
    %c0_3 = arith.constant 0 : index
    %c0_4 = arith.constant 0 : index
    %3 = vector.load %arg6[%c0_3, %c0_4] : memref<128x128xf32, #tpu.memory_space<vmem>>, vector<128x128xf32>
    tpu.vector_store %arg6[%c0_3, %c0_4], %2 {strides = array<i32>} : memref<128x128xf32, #tpu.memory_space<vmem>>, vector<128x128xf32>,
    %cst_5 = arith.constant 0.000000e+00 : f32
    %4 = vector.broadcast %cst_5 : f32 to vector<1x128xf32>
    %cst_6 = arith.constant 0.000000e+00 : f32
    %5 = vector.broadcast %cst_6 : f32 to vector<1x128xf32>
    %c0_7 = arith.constant 0 : index
    %c0_8 = arith.constant 0 : index
    %6 = vector.load %arg6[%c0_7, %c0_8] : memref<128x128xf32, #tpu.memory_space<vmem>>, vector<128x128xf32>
    %cst_9 = arith.constant dense<0.000000e+00> : vector<128xf32>
    %7 = vector.multi_reduction <add>, %6, %cst_9 [0] : vector<128x128xf32> to vector<128xf32>
    %8 = vector.shape_cast %7 : vector<128xf32> to vector<1x128xf32>
    %9 = arith.addf %4, %8 : vector<1x128xf32>
    %10 = arith.mulf %6, %6 : vector<128x128xf32>
    %cst_10 = arith.constant dense<0.000000e+00> : vector<128xf32>
    %11 = vector.multi_reduction <add>, %10, %cst_10 [0] : vector<128x128xf32> to vector<128xf32>
    %12 = vector.shape_cast %11 : vector<128xf32> to vector<1x128xf32>
    %13 = arith.addf %5, %12 : vector<1x128xf32>
    %cst_11 = arith.constant 7.812500e-03 : f32
    %14 = vector.broadcast %cst_11 : f32 to vector<1x128xf32>
    %15 = arith.mulf %9, %14 : vector<1x128xf32>
    %cst_12 = arith.constant 7.812500e-03 : f32
    %16 = vector.broadcast %cst_12 : f32 to vector<1x128xf32>
    %17 = arith.mulf %13, %16 : vector<1x128xf32>
    %18 = arith.mulf %15, %15 : vector<1x128xf32>
    %19 = arith.subf %17, %18 : vector<1x128xf32>
    %c0_13 = arith.constant 0 : index
    %c0_14 = arith.constant 0 : index
    %20 = vector.load %arg3[%c0_13, %c0_14] : memref<1x128xf32, #tpu.memory_space<vmem>>, vector<1x128xf32>
    %cst_15 = arith.constant 9.99999974E-6 : f32
    %21 = vector.broadcast %cst_15 : f32 to vector<1x128xf32>
    %22 = arith.addf %19, %21 : vector<1x128xf32>
    %23 = math.rsqrt %22 : vector<1x128xf32>
    %24 = arith.mulf %20, %23 : vector<1x128xf32>
    %c0_16 = arith.constant 0 : index
    %c0_17 = arith.constant 0 : index
    %25 = vector.load %arg4[%c0_16, %c0_17] : memref<1x128xf32, #tpu.memory_space<vmem>>, vector<1x128xf32>
    %26 = arith.mulf %15, %24 : vector<1x128xf32>
    %27 = arith.subf %25, %26 : vector<1x128xf32>
    %c0_18 = arith.constant 0 : index
    %c0_19 = arith.constant 0 : index
    %28 = vector.load %arg6[%c0_18, %c0_19] : memref<128x128xf32, #tpu.memory_space<vmem>>, vector<128x128xf32>
    %29 = vector.broadcast %24 : vector<1x128xf32> to vector<128x128xf32>
    %30 = arith.mulf %28, %29 : vector<128x128xf32>
    %31 = vector.broadcast %27 : vector<1x128xf32> to vector<128x128xf32>
    %32 = arith.addf %30, %31 : vector<128x128xf32>
    %cst_20 = arith.constant 0.000000e+00 : f32
    %33 = vector.broadcast %cst_20 : f32 to vector<128x128xf32>
    %34 = arith.cmpf oge, %32, %33 : vector<128x128xf32>
    %cst_21 = arith.constant 2.000000e-01 : f32
    %35 = vector.broadcast %cst_21 : f32 to vector<128x128xf32>
    %36 = arith.mulf %35, %32 : vector<128x128xf32>
    %37 = arith.select %34, %32, %36 : vector<128x128xi1>, vector<128x128xf32>
    %38 = arith.truncf %37 : vector<128x128xf32> to vector<128x128xbf16>
    %c0_22 = arith.constant 0 : index
    %c0_23 = arith.constant 0 : index
    %39 = vector.load %arg5[%c0_22, %c0_23] : memref<128x128xbf16, #tpu.memory_space<vmem>>, vector<128x128xbf16>
    tpu.vector_store %arg5[%c0_22, %c0_23], %38 {strides = array<i32>} : memref<128x128xbf16, #tpu.memory_space<vmem>>, vector<128x128xbf16>,
    return
  }
  func.func @transform_0(%arg0: i32) -> (i32, i32) {
    %c0_i32 = arith.constant 0 : i32
    %c0_i32_0 = arith.constant 0 : i32
    %c0_i32_1 = arith.constant 0 : i32
    return %c0_i32, %c0_i32_0 : i32, i32
  }
  func.func @transform_1(%arg0: i32) -> (i32, i32) {
    %c0_i32 = arith.constant 0 : i32
    %c0_i32_0 = arith.constant 0 : i32
    %c0_i32_1 = arith.constant 0 : i32
    return %c0_i32, %c0_i32_0 : i32, i32
  }
  func.func @transform_2(%arg0: i32) -> (i32, i32) {
    %c0_i32 = arith.constant 0 : i32
    %c0_i32_0 = arith.constant 0 : i32
    %c0_i32_1 = arith.constant 0 : i32
    return %c0_i32, %c0_i32_0 : i32, i32
  }
  func.func @transform_3(%arg0: i32) -> (i32, i32) {
    %c0_i32 = arith.constant 0 : i32
    %c0_i32_0 = arith.constant 0 : i32
    %c0_i32_1 = arith.constant 0 : i32
    return %c0_i32, %c0_i32_0 : i32, i32
  }
  func.func @transform_4(%arg0: i32) -> (i32, i32) {
    %c0_i32 = arith.constant 0 : i32
    %c0_i32_0 = arith.constant 0 : i32
    %c0_i32_1 = arith.constant 0 : i32
    return %c0_i32, %c0_i32_0 : i32, i32
  }
}

module attributes {stable_mosaic.version = 11 : i64} {
  func.func @_layer_kernel(%arg0: i32, %arg1: memref<128x1152xbf16, #tpu.memory_space<vmem>>, %arg2: memref<1152x512xbf16, #tpu.memory_space<vmem>>, %arg3: memref<1x128xf32, #tpu.memory_space<vmem>>, %arg4: memref<1x128xf32, #tpu.memory_space<vmem>>, %arg5: memref<128x512xbf16, #tpu.memory_space<vmem>>, %arg6: memref<128x512xf32, #tpu.memory_space<vmem>>) attributes {dimension_semantics = [#tpu.dimension_semantics<arbitrary>], iteration_bounds = array<i64: 1>, scalar_prefetch = 0 : i64, scratch_operands = 1 : i64, tpu.core_type = #tpu.core_type<tc>, window_params = [{pipeline_mode = #tpu.pipeline_mode<synchronous>, transform_indices = @transform_0, window_bounds = array<i64: 128, 1152>}, {pipeline_mode = #tpu.pipeline_mode<synchronous>, transform_indices = @transform_1, window_bounds = array<i64: 1152, 512>}, {pipeline_mode = #tpu.pipeline_mode<synchronous>, transform_indices = @transform_2, window_bounds = array<i64: 1, 128>}, {pipeline_mode = #tpu.pipeline_mode<synchronous>, transform_indices = @transform_3, window_bounds = array<i64: 1, 128>}, {pipeline_mode = #tpu.pipeline_mode<synchronous>, transform_indices = @transform_4, window_bounds = array<i64: 128, 512>}]} {
    %c0 = arith.constant 0 : index
    %c0_0 = arith.constant 0 : index
    %0 = vector.load %arg1[%c0, %c0_0] : memref<128x1152xbf16, #tpu.memory_space<vmem>>, vector<128x1152xbf16>
    %c0_1 = arith.constant 0 : index
    %c0_2 = arith.constant 0 : index
    %1 = vector.load %arg2[%c0_1, %c0_2] : memref<1152x512xbf16, #tpu.memory_space<vmem>>, vector<1152x512xbf16>
    %cst = arith.constant dense<0.000000e+00> : vector<128x512xf32>
    %2 = tpu.matmul %0, %1, %cst {dimension_numbers = #tpu.dot_dimension_numbers<[1], [0], [0], [1], [0, 0, 1, 1], [], []>} : vector<128x1152xbf16>, vector<1152x512xbf16>, vector<128x512xf32> -> vector<128x512xf32>
    %c0_3 = arith.constant 0 : index
    %c0_4 = arith.constant 0 : index
    %3 = vector.load %arg6[%c0_3, %c0_4] : memref<128x512xf32, #tpu.memory_space<vmem>>, vector<128x512xf32>
    tpu.vector_store %arg6[%c0_3, %c0_4], %2 {strides = array<i32>} : memref<128x512xf32, #tpu.memory_space<vmem>>, vector<128x512xf32>,
    %c0_5 = arith.constant 0 : index
    %c0_6 = arith.constant 0 : index
    %4 = vector.load %arg6[%c0_5, %c0_6] : memref<128x512xf32, #tpu.memory_space<vmem>>, vector<128x128xf32>
    %5 = math.tanh %4 : vector<128x128xf32>
    %6 = arith.truncf %5 : vector<128x128xf32> to vector<128x128xbf16>
    %c0_7 = arith.constant 0 : index
    %c0_8 = arith.constant 0 : index
    %7 = vector.load %arg5[%c0_7, %c0_8] : memref<128x512xbf16, #tpu.memory_space<vmem>>, vector<128x128xbf16>
    tpu.vector_store %arg5[%c0_7, %c0_8], %6 {strides = array<i32>} : memref<128x512xbf16, #tpu.memory_space<vmem>>, vector<128x128xbf16>,
    %c0_9 = arith.constant 0 : index
    %c128 = arith.constant 128 : index
    %8 = vector.load %arg6[%c0_9, %c128] : memref<128x512xf32, #tpu.memory_space<vmem>>, vector<128x128xf32>
    %9 = math.tanh %8 : vector<128x128xf32>
    %10 = arith.truncf %9 : vector<128x128xf32> to vector<128x128xbf16>
    %c0_10 = arith.constant 0 : index
    %c128_11 = arith.constant 128 : index
    %11 = vector.load %arg5[%c0_10, %c128_11] : memref<128x512xbf16, #tpu.memory_space<vmem>>, vector<128x128xbf16>
    tpu.vector_store %arg5[%c0_10, %c128_11], %10 {strides = array<i32>} : memref<128x512xbf16, #tpu.memory_space<vmem>>, vector<128x128xbf16>,
    %c0_12 = arith.constant 0 : index
    %c256 = arith.constant 256 : index
    %12 = vector.load %arg6[%c0_12, %c256] : memref<128x512xf32, #tpu.memory_space<vmem>>, vector<128x128xf32>
    %13 = math.tanh %12 : vector<128x128xf32>
    %14 = arith.truncf %13 : vector<128x128xf32> to vector<128x128xbf16>
    %c0_13 = arith.constant 0 : index
    %c256_14 = arith.constant 256 : index
    %15 = vector.load %arg5[%c0_13, %c256_14] : memref<128x512xbf16, #tpu.memory_space<vmem>>, vector<128x128xbf16>
    tpu.vector_store %arg5[%c0_13, %c256_14], %14 {strides = array<i32>} : memref<128x512xbf16, #tpu.memory_space<vmem>>, vector<128x128xbf16>,
    %c0_15 = arith.constant 0 : index
    %c384 = arith.constant 384 : index
    %16 = vector.load %arg6[%c0_15, %c384] : memref<128x512xf32, #tpu.memory_space<vmem>>, vector<128x128xf32>
    %17 = math.tanh %16 : vector<128x128xf32>
    %18 = arith.truncf %17 : vector<128x128xf32> to vector<128x128xbf16>
    %c0_16 = arith.constant 0 : index
    %c384_17 = arith.constant 384 : index
    %19 = vector.load %arg5[%c0_16, %c384_17] : memref<128x512xbf16, #tpu.memory_space<vmem>>, vector<128x128xbf16>
    tpu.vector_store %arg5[%c0_16, %c384_17], %18 {strides = array<i32>} : memref<128x512xbf16, #tpu.memory_space<vmem>>, vector<128x128xbf16>,
    return
  }
  func.func @transform_0(%arg0: i32) -> (i32, i32) {
    %c0_i32 = arith.constant 0 : i32
    %c0_i32_0 = arith.constant 0 : i32
    %c0_i32_1 = arith.constant 0 : i32
    return %c0_i32, %c0_i32_0 : i32, i32
  }
  func.func @transform_1(%arg0: i32) -> (i32, i32) {
    %c0_i32 = arith.constant 0 : i32
    %c0_i32_0 = arith.constant 0 : i32
    %c0_i32_1 = arith.constant 0 : i32
    return %c0_i32, %c0_i32_0 : i32, i32
  }
  func.func @transform_2(%arg0: i32) -> (i32, i32) {
    %c0_i32 = arith.constant 0 : i32
    %c0_i32_0 = arith.constant 0 : i32
    %c0_i32_1 = arith.constant 0 : i32
    return %c0_i32, %c0_i32_0 : i32, i32
  }
  func.func @transform_3(%arg0: i32) -> (i32, i32) {
    %c0_i32 = arith.constant 0 : i32
    %c0_i32_0 = arith.constant 0 : i32
    %c0_i32_1 = arith.constant 0 : i32
    return %c0_i32, %c0_i32_0 : i32, i32
  }
  func.func @transform_4(%arg0: i32) -> (i32, i32) {
    %c0_i32 = arith.constant 0 : i32
    %c0_i32_0 = arith.constant 0 : i32
    %c0_i32_1 = arith.constant 0 : i32
    return %c0_i32, %c0_i32_0 : i32, i32
  }
}

</mosaic_0001>

<llo_original>
// kernel: forward.4
$region0: #{forward.4}
  #allocation0 [shape = 'u32[]', space=smem, size = 0x4, offset = 0x4, fixed_abs, tag = 'smem constant byte address 0x4 - core index']
  #allocation1 [shape = 'u32[144,128]{1,0:T(1,128)}', space=vmem, size = 0x12000, scoped, tag = 'internal scratch']
  #allocation2 [shape = 'f32[16,2048]{1,0:T(8,128)}', space=vmem, size = 0x20000, scoped, tag = 'scratch operand']
  %s0 = inlined_call_operand.vmem [shape: bf16[16,128], index: 0, kind: input, shape index: {}]
  %s1 = inlined_call_operand.vmem [shape: bf16[128,2048], index: 1, kind: input, shape index: {}]
  %s2 = inlined_call_operand.hbm [shape: f32[1,128], index: 2, kind: input, shape index: {}]
  %s3 = inlined_call_operand.hbm [shape: f32[1,128], index: 3, kind: input, shape index: {}]
  %s4 = inlined_call_operand.vmem [shape: bf16[16,2048], index: 4, kind: output, shape index: {}]
  %s5 = sld [smem:[#allocation0]]
  $region34: #{forward.4} parent=0
    _
  %s7 = ssub.s32 1, %s5
  %s8 = scalar_select 0, %s7, %s5
  $region1: #{forward.4} parent=0
    #allocation3 [shape = 'u8[512]{0}', space=vmem, size = 0x400, scoped, tag = 'input window, operand 2, single buffered']
    #allocation4 [shape = 's32[1]{0}', space=sflag, size = 0x4, scoped, tag = 'scoped memory for forward.4']
    #allocation5 [shape = 'u8[512]{0}', space=vmem, size = 0x400, scoped, tag = 'input window, operand 3, single buffered']
    #allocation6 [shape = 's32[1]{0}', space=sflag, size = 0x4, scoped, tag = 'scoped memory for forward.4']
    %9 = vsyncpa [#allocation4], 0
    %10 = vsyncpa [#allocation6], 0
    // Predicated region
    $region2: #{forward.4} parent=1 // pred_check
      _
    $region3: #{forward.4} parent=1 // pred_check_branch
      %12 = sbr.rel (0) target = $region5
    $region4: #{forward.4} parent=1 // pred_region
      _
    $region5: #{forward.4} parent=1 // pred_fallthru
      _
    // Predicated region
    $region6: #{forward.4} parent=1 // pred_check
      _
    $region7: #{forward.4} parent=1 // pred_check_branch
      %14 = sbr.rel (0) target = $region9
    $region8: #{forward.4} parent=1 // pred_region
      _
    $region9: #{forward.4} parent=1 // pred_fallthru
      _
    // Predicated region
    $region10: #{forward.4} parent=1 // pred_check
      _
    $region11: #{forward.4} parent=1 // pred_check_branch
      %16 = sbr.rel (0) target = $region13
    $region12: #{forward.4} parent=1 // pred_region
      %s18 = ssub.s32 16, 16
      %19 = vsyncadd [#allocation4], %s18
      %s21 = sshll.u32 [#allocation3], 4
      %s22 = int_to_ptr.vmem [resolvable:$true] %s21
      %24 = dma.hbm_to_vmem [thread:$0]  %s2, 16, %s22, [#allocation4]
    $region13: #{forward.4} parent=1 // pred_fallthru
      _
    // Predicated region
    $region14: #{forward.4} parent=1 // pred_check
      _
    $region15: #{forward.4} parent=1 // pred_check_branch
      %26 = sbr.rel (0) target = $region17
    $region16: #{forward.4} parent=1 // pred_region
      %s28 = ssub.s32 16, 16
      %29 = vsyncadd [#allocation6], %s28
      %s31 = sshll.u32 [#allocation5], 4
      %s32 = int_to_ptr.vmem [resolvable:$true] %s31
      %34 = dma.hbm_to_vmem [thread:$0]  %s3, 16, %s32, [#allocation6]
    $region17: #{forward.4} parent=1 // pred_fallthru
      _
    // Predicated region
    $region18: #{forward.4} parent=1 // pred_check
      _
    $region19: #{forward.4} parent=1 // pred_check_branch
      %36 = sbr.rel (0) target = $region21
    $region20: #{forward.4} parent=1 // pred_region
      %37 = dma.done [#allocation4], 16
    $region21: #{forward.4} parent=1 // pred_fallthru
      _
    // Predicated region
    $region22: #{forward.4} parent=1 // pred_check
      _
    $region23: #{forward.4} parent=1 // pred_check_branch
      %39 = sbr.rel (0) target = $region25
    $region24: #{forward.4} parent=1 // pred_region
      %40 = dma.done [#allocation6], 16
    $region25: #{forward.4} parent=1 // pred_fallthru
      _
    %v42 = vld [vmem:[%s0] sm:$0xf]
    %v43 = vld [vmem:[%s0 + $0x4] sm:$0xf]
    %v44 = vld [vmem:[%s1] sm:$0xff]
    %v45 = vld [vmem:[%s1 + $0x8] sm:$0xff]
    %v46 = vld [vmem:[%s1 + $0x10] sm:$0xff]
    %v47 = vld [vmem:[%s1 + $0x18] sm:$0xff]
    %v48 = vld [vmem:[%s1 + $0x20] sm:$0xff]
    %v49 = vld [vmem:[%s1 + $0x28] sm:$0xff]
    %v50 = vld [vmem:[%s1 + $0x30] sm:$0xff]
    %v51 = vld [vmem:[%s1 + $0x38] sm:$0xff]
    %v52 = vld [vmem:[%s1 + $0x40] sm:$0xff]
    %v53 = vld [vmem:[%s1 + $0x48] sm:$0xff]
    %v54 = vld [vmem:[%s1 + $0x50] sm:$0xff]
    %v55 = vld [vmem:[%s1 + $0x58] sm:$0xff]
    %v56 = vld [vmem:[%s1 + $0x60] sm:$0xff]
    %v57 = vld [vmem:[%s1 + $0x68] sm:$0xff]
    %v58 = vld [vmem:[%s1 + $0x70] sm:$0xff]
    %v59 = vld [vmem:[%s1 + $0x78] sm:$0xff]
    %v60 = vld [vmem:[%s1 + $0x80] sm:$0xff]
    %v61 = vld [vmem:[%s1 + $0x88] sm:$0xff]
    %v62 = vld [vmem:[%s1 + $0x90] sm:$0xff]
    %v63 = vld [vmem:[%s1 + $0x98] sm:$0xff]
    %v64 = vld [vmem:[%s1 + $0xa0] sm:$0xff]
    %v65 = vld [vmem:[%s1 + $0xa8] sm:$0xff]
    %v66 = vld [vmem:[%s1 + $0xb0] sm:$0xff]
    %v67 = vld [vmem:[%s1 + $0xb8] sm:$0xff]
    %v68 = vld [vmem:[%s1 + $0xc0] sm:$0xff]
    %v69 = vld [vmem:[%s1 + $0xc8] sm:$0xff]
    %v70 = vld [vmem:[%s1 + $0xd0] sm:$0xff]
    %v71 = vld [vmem:[%s1 + $0xd8] sm:$0xff]
    %v72 = vld [vmem:[%s1 + $0xe0] sm:$0xff]
    %v73 = vld [vmem:[%s1 + $0xe8] sm:$0xff]
    %v74 = vld [vmem:[%s1 + $0xf0] sm:$0xff]
    %v75 = vld [vmem:[%s1 + $0xf8] sm:$0xff]
    %v76 = vld [vmem:[%s1 + $0x100] sm:$0xff]
    %v77 = vld [vmem:[%s1 + $0x108] sm:$0xff]
    %v78 = vld [vmem:[%s1 + $0x110] sm:$0xff]
    %v79 = vld [vmem:[%s1 + $0x118] sm:$0xff]
    %v80 = vld [vmem:[%s1 + $0x120] sm:$0xff]
    %v81 = vld [vmem:[%s1 + $0x128] sm:$0xff]
    %v82 = vld [vmem:[%s1 + $0x130] sm:$0xff]
    %v83 = vld [vmem:[%s1 + $0x138] sm:$0xff]
    %v84 = vld [vmem:[%s1 + $0x140] sm:$0xff]
    %v85 = vld [vmem:[%s1 + $0x148] sm:$0xff]
    %v86 = vld [vmem:[%s1 + $0x150] sm:$0xff]
    %v87 = vld [vmem:[%s1 + $0x158] sm:$0xff]
    %v88 = vld [vmem:[%s1 + $0x160] sm:$0xff]
    %v89 = vld [vmem:[%s1 + $0x168] sm:$0xff]
    %v90 = vld [vmem:[%s1 + $0x170] sm:$0xff]
    %v91 = vld [vmem:[%s1 + $0x178] sm:$0xff]
    %v92 = vld [vmem:[%s1 + $0x180] sm:$0xff]
    %v93 = vld [vmem:[%s1 + $0x188] sm:$0xff]
    %v94 = vld [vmem:[%s1 + $0x190] sm:$0xff]
    %v95 = vld [vmem:[%s1 + $0x198] sm:$0xff]
    %v96 = vld [vmem:[%s1 + $0x1a0] sm:$0xff]
    %v97 = vld [vmem:[%s1 + $0x1a8] sm:$0xff]
    %v98 = vld [vmem:[%s1 + $0x1b0] sm:$0xff]
    %v99 = vld [vmem:[%s1 + $0x1b8] sm:$0xff]
    %v100 = vld [vmem:[%s1 + $0x1c0] sm:$0xff]
    %v101 = vld [vmem:[%s1 + $0x1c8] sm:$0xff]
    %v102 = vld [vmem:[%s1 + $0x1d0] sm:$0xff]
    %v103 = vld [vmem:[%s1 + $0x1d8] sm:$0xff]
    %v104 = vld [vmem:[%s1 + $0x1e0] sm:$0xff]
    %v105 = vld [vmem:[%s1 + $0x1e8] sm:$0xff]
    %v106 = vld [vmem:[%s1 + $0x1f0] sm:$0xff]
    %v107 = vld [vmem:[%s1 + $0x1f8] sm:$0xff]
    %v108 = vld [vmem:[%s1 + $0x200] sm:$0xff]
    %v109 = vld [vmem:[%s1 + $0x208] sm:$0xff]
    %v110 = vld [vmem:[%s1 + $0x210] sm:$0xff]
    %v111 = vld [vmem:[%s1 + $0x218] sm:$0xff]
    %v112 = vld [vmem:[%s1 + $0x220] sm:$0xff]
    %v113 = vld [vmem:[%s1 + $0x228] sm:$0xff]
    %v114 = vld [vmem:[%s1 + $0x230] sm:$0xff]
    %v115 = vld [vmem:[%s1 + $0x238] sm:$0xff]
    %v116 = vld [vmem:[%s1 + $0x240] sm:$0xff]
    %v117 = vld [vmem:[%s1 + $0x248] sm:$0xff]
    %v118 = vld [vmem:[%s1 + $0x250] sm:$0xff]
    %v119 = vld [vmem:[%s1 + $0x258] sm:$0xff]
    %v120 = vld [vmem:[%s1 + $0x260] sm:$0xff]
    %v121 = vld [vmem:[%s1 + $0x268] sm:$0xff]
    %v122 = vld [vmem:[%s1 + $0x270] sm:$0xff]
    %v123 = vld [vmem:[%s1 + $0x278] sm:$0xff]
    %v124 = vld [vmem:[%s1 + $0x280] sm:$0xff]
    %v125 = vld [vmem:[%s1 + $0x288] sm:$0xff]
    %v126 = vld [vmem:[%s1 + $0x290] sm:$0xff]
    %v127 = vld [vmem:[%s1 + $0x298] sm:$0xff]
    %v128 = vld [vmem:[%s1 + $0x2a0] sm:$0xff]
    %v129 = vld [vmem:[%s1 + $0x2a8] sm:$0xff]
    %v130 = vld [vmem:[%s1 + $0x2b0] sm:$0xff]
    %v131 = vld [vmem:[%s1 + $0x2b8] sm:$0xff]
    %v132 = vld [vmem:[%s1 + $0x2c0] sm:$0xff]
    %v133 = vld [vmem:[%s1 + $0x2c8] sm:$0xff]
    %v134 = vld [vmem:[%s1 + $0x2d0] sm:$0xff]
    %v135 = vld [vmem:[%s1 + $0x2d8] sm:$0xff]
    %v136 = vld [vmem:[%s1 + $0x2e0] sm:$0xff]
    %v137 = vld [vmem:[%s1 + $0x2e8] sm:$0xff]
    %v138 = vld [vmem:[%s1 + $0x2f0] sm:$0xff]
    %v139 = vld [vmem:[%s1 + $0x2f8] sm:$0xff]
    %v140 = vld [vmem:[%s1 + $0x300] sm:$0xff]
    %v141 = vld [vmem:[%s1 + $0x308] sm:$0xff]
    %v142 = vld [vmem:[%s1 + $0x310] sm:$0xff]
    %v143 = vld [vmem:[%s1 + $0x318] sm:$0xff]
    %v144 = vld [vmem:[%s1 + $0x320] sm:$0xff]
    %v145 = vld [vmem:[%s1 + $0x328] sm:$0xff]
    %v146 = vld [vmem:[%s1 + $0x330] sm:$0xff]
    %v147 = vld [vmem:[%s1 + $0x338] sm:$0xff]
    %v148 = vld [vmem:[%s1 + $0x340] sm:$0xff]
    %v149 = vld [vmem:[%s1 + $0x348] sm:$0xff]
    %v150 = vld [vmem:[%s1 + $0x350] sm:$0xff]
    %v151 = vld [vmem:[%s1 + $0x358] sm:$0xff]
    %v152 = vld [vmem:[%s1 + $0x360] sm:$0xff]
    %v153 = vld [vmem:[%s1 + $0x368] sm:$0xff]
    %v154 = vld [vmem:[%s1 + $0x370] sm:$0xff]
    %v155 = vld [vmem:[%s1 + $0x378] sm:$0xff]
    %v156 = vld [vmem:[%s1 + $0x380] sm:$0xff]
    %v157 = vld [vmem:[%s1 + $0x388] sm:$0xff]
    %v158 = vld [vmem:[%s1 + $0x390] sm:$0xff]
    %v159 = vld [vmem:[%s1 + $0x398] sm:$0xff]
    %v160 = vld [vmem:[%s1 + $0x3a0] sm:$0xff]
    %v161 = vld [vmem:[%s1 + $0x3a8] sm:$0xff]
    %v162 = vld [vmem:[%s1 + $0x3b0] sm:$0xff]
    %v163 = vld [vmem:[%s1 + $0x3b8] sm:$0xff]
    %v164 = vld [vmem:[%s1 + $0x3c0] sm:$0xff]
    %v165 = vld [vmem:[%s1 + $0x3c8] sm:$0xff]
    %v166 = vld [vmem:[%s1 + $0x3d0] sm:$0xff]
    %v167 = vld [vmem:[%s1 + $0x3d8] sm:$0xff]
    %v168 = vld [vmem:[%s1 + $0x3e0] sm:$0xff]
    %v169 = vld [vmem:[%s1 + $0x3e8] sm:$0xff]
    %v170 = vld [vmem:[%s1 + $0x3f0] sm:$0xff]
    %v171 = vld [vmem:[%s1 + $0x3f8] sm:$0xff]
    %v174 = vunpack.c.l.b16 %v42
    %v175 = vunpack.c.l.b16 %v43
    %v176 = vpack.c.b16 %v175, %v174
    %v306 = vunpack.c.l.b16 %v44
    %v307 = vunpack.c.h.b16 %v44
    %v308 = vunpack.c.l.b16 %v45
    %v309 = vunpack.c.h.b16 %v45
    %v310 = vunpack.c.l.b16 %v46
    %v311 = vunpack.c.h.b16 %v46
    %v312 = vunpack.c.l.b16 %v47
    %v313 = vunpack.c.h.b16 %v47
    %v314 = vunpack.c.l.b16 %v48
    %v315 = vunpack.c.h.b16 %v48
    %v316 = vunpack.c.l.b16 %v49
    %v317 = vunpack.c.h.b16 %v49
    %v318 = vunpack.c.l.b16 %v50
    %v319 = vunpack.c.h.b16 %v50
    %v320 = vunpack.c.l.b16 %v51
    %v321 = vunpack.c.h.b16 %v51
    %v322 = vunpack.c.l.b16 %v52
    %v323 = vunpack.c.h.b16 %v52
    %v324 = vunpack.c.l.b16 %v53
    %v325 = vunpack.c.h.b16 %v53
    %v326 = vunpack.c.l.b16 %v54
    %v327 = vunpack.c.h.b16 %v54
    %v328 = vunpack.c.l.b16 %v55
    %v329 = vunpack.c.h.b16 %v55
    %v330 = vunpack.c.l.b16 %v56
    %v331 = vunpack.c.h.b16 %v56
    %v332 = vunpack.c.l.b16 %v57
    %v333 = vunpack.c.h.b16 %v57
    %v334 = vunpack.c.l.b16 %v58
    %v335 = vunpack.c.h.b16 %v58
    %v336 = vunpack.c.l.b16 %v59
    %v337 = vunpack.c.h.b16 %v59
    %v338 = vunpack.c.l.b16 %v60
    %v339 = vunpack.c.h.b16 %v60
    %v340 = vunpack.c.l.b16 %v61
    %v341 = vunpack.c.h.b16 %v61
    %v342 = vunpack.c.l.b16 %v62
    %v343 = vunpack.c.h.b16 %v62
    %v344 = vunpack.c.l.b16 %v63
    %v345 = vunpack.c.h.b16 %v63
    %v346 = vunpack.c.l.b16 %v64
    %v347 = vunpack.c.h.b16 %v64
    %v348 = vunpack.c.l.b16 %v65
    %v349 = vunpack.c.h.b16 %v65
    %v350 = vunpack.c.l.b16 %v66
    %v351 = vunpack.c.h.b16 %v66
    %v352 = vunpack.c.l.b16 %v67
    %v353 = vunpack.c.h.b16 %v67
    %v354 = vunpack.c.l.b16 %v68
    %v355 = vunpack.c.h.b16 %v68
    %v356 = vunpack.c.l.b16 %v69
    %v357 = vunpack.c.h.b16 %v69
    %v358 = vunpack.c.l.b16 %v70
    %v359 = vunpack.c.h.b16 %v70
    %v360 = vunpack.c.l.b16 %v71
    %v361 = vunpack.c.h.b16 %v71
    %v362 = vunpack.c.l.b16 %v72
    %v363 = vunpack.c.h.b16 %v72
    %v364 = vunpack.c.l.b16 %v73
    %v365 = vunpack.c.h.b16 %v73
    %v366 = vunpack.c.l.b16 %v74
    %v367 = vunpack.c.h.b16 %v74
    %v368 = vunpack.c.l.b16 %v75
    %v369 = vunpack.c.h.b16 %v75
    %v370 = vunpack.c.l.b16 %v76
    %v371 = vunpack.c.h.b16 %v76
    %v372 = vunpack.c.l.b16 %v77
    %v373 = vunpack.c.h.b16 %v77
    %v374 = vunpack.c.l.b16 %v78
    %v375 = vunpack.c.h.b16 %v78
    %v376 = vunpack.c.l.b16 %v79
    %v377 = vunpack.c.h.b16 %v79
    %v378 = vunpack.c.l.b16 %v80
    %v379 = vunpack.c.h.b16 %v80
    %v380 = vunpack.c.l.b16 %v81
    %v381 = vunpack.c.h.b16 %v81
    %v382 = vunpack.c.l.b16 %v82
    %v383 = vunpack.c.h.b16 %v82
    %v384 = vunpack.c.l.b16 %v83
    %v385 = vunpack.c.h.b16 %v83
    %v386 = vunpack.c.l.b16 %v84
    %v387 = vunpack.c.h.b16 %v84
    %v388 = vunpack.c.l.b16 %v85
    %v389 = vunpack.c.h.b16 %v85
    %v390 = vunpack.c.l.b16 %v86
    %v391 = vunpack.c.h.b16 %v86
    %v392 = vunpack.c.l.b16 %v87
    %v393 = vunpack.c.h.b16 %v87
    %v394 = vunpack.c.l.b16 %v88
    %v395 = vunpack.c.h.b16 %v88
    %v396 = vunpack.c.l.b16 %v89
    %v397 = vunpack.c.h.b16 %v89
    %v398 = vunpack.c.l.b16 %v90
    %v399 = vunpack.c.h.b16 %v90
    %v400 = vunpack.c.l.b16 %v91
    %v401 = vunpack.c.h.b16 %v91
    %v402 = vunpack.c.l.b16 %v92
    %v403 = vunpack.c.h.b16 %v92
    %v404 = vunpack.c.l.b16 %v93
    %v405 = vunpack.c.h.b16 %v93
    %v406 = vunpack.c.l.b16 %v94
    %v407 = vunpack.c.h.b16 %v94
    %v408 = vunpack.c.l.b16 %v95
    %v409 = vunpack.c.h.b16 %v95
    %v410 = vunpack.c.l.b16 %v96
    %v411 = vunpack.c.h.b16 %v96
    %v412 = vunpack.c.l.b16 %v97
    %v413 = vunpack.c.h.b16 %v97
    %v414 = vunpack.c.l.b16 %v98
    %v415 = vunpack.c.h.b16 %v98
    %v416 = vunpack.c.l.b16 %v99
    %v417 = vunpack.c.h.b16 %v99
    %v418 = vunpack.c.l.b16 %v100
    %v419 = vunpack.c.h.b16 %v100
    %v420 = vunpack.c.l.b16 %v101
    %v421 = vunpack.c.h.b16 %v101
    %v422 = vunpack.c.l.b16 %v102
    %v423 = vunpack.c.h.b16 %v102
    %v424 = vunpack.c.l.b16 %v103
    %v425 = vunpack.c.h.b16 %v103
    %v426 = vunpack.c.l.b16 %v104
    %v427 = vunpack.c.h.b16 %v104
    %v428 = vunpack.c.l.b16 %v105
    %v429 = vunpack.c.h.b16 %v105
    %v430 = vunpack.c.l.b16 %v106
    %v431 = vunpack.c.h.b16 %v106
    %v432 = vunpack.c.l.b16 %v107
    %v433 = vunpack.c.h.b16 %v107
    %v434 = vunpack.c.l.b16 %v108
    %v435 = vunpack.c.h.b16 %v108
    %v436 = vunpack.c.l.b16 %v109
    %v437 = vunpack.c.h.b16 %v109
    %v438 = vunpack.c.l.b16 %v110
    %v439 = vunpack.c.h.b16 %v110
    %v440 = vunpack.c.l.b16 %v111
    %v441 = vunpack.c.h.b16 %v111
    %v442 = vunpack.c.l.b16 %v112
    %v443 = vunpack.c.h.b16 %v112
    %v444 = vunpack.c.l.b16 %v113
    %v445 = vunpack.c.h.b16 %v113
    %v446 = vunpack.c.l.b16 %v114
    %v447 = vunpack.c.h.b16 %v114
    %v448 = vunpack.c.l.b16 %v115
    %v449 = vunpack.c.h.b16 %v115
    %v450 = vunpack.c.l.b16 %v116
    %v451 = vunpack.c.h.b16 %v116
    %v452 = vunpack.c.l.b16 %v117
    %v453 = vunpack.c.h.b16 %v117
    %v454 = vunpack.c.l.b16 %v118
    %v455 = vunpack.c.h.b16 %v118
    %v456 = vunpack.c.l.b16 %v119
    %v457 = vunpack.c.h.b16 %v119
    %v458 = vunpack.c.l.b16 %v120
    %v459 = vunpack.c.h.b16 %v120
    %v460 = vunpack.c.l.b16 %v121
    %v461 = vunpack.c.h.b16 %v121
    %v462 = vunpack.c.l.b16 %v122
    %v463 = vunpack.c.h.b16 %v122
    %v464 = vunpack.c.l.b16 %v123
    %v465 = vunpack.c.h.b16 %v123
    %v466 = vunpack.c.l.b16 %v124
    %v467 = vunpack.c.h.b16 %v124
    %v468 = vunpack.c.l.b16 %v125
    %v469 = vunpack.c.h.b16 %v125
    %v470 = vunpack.c.l.b16 %v126
    %v471 = vunpack.c.h.b16 %v126
    %v472 = vunpack.c.l.b16 %v127
    %v473 = vunpack.c.h.b16 %v127
    %v474 = vunpack.c.l.b16 %v128
    %v475 = vunpack.c.h.b16 %v128
    %v476 = vunpack.c.l.b16 %v129
    %v477 = vunpack.c.h.b16 %v129
    %v478 = vunpack.c.l.b16 %v130
    %v479 = vunpack.c.h.b16 %v130
    %v480 = vunpack.c.l.b16 %v131
    %v481 = vunpack.c.h.b16 %v131
    %v482 = vunpack.c.l.b16 %v132
    %v483 = vunpack.c.h.b16 %v132
    %v484 = vunpack.c.l.b16 %v133
    %v485 = vunpack.c.h.b16 %v133
    %v486 = vunpack.c.l.b16 %v134
    %v487 = vunpack.c.h.b16 %v134
    %v488 = vunpack.c.l.b16 %v135
    %v489 = vunpack.c.h.b16 %v135
    %v490 = vunpack.c.l.b16 %v136
    %v491 = vunpack.c.h.b16 %v136
    %v492 = vunpack.c.l.b16 %v137
    %v493 = vunpack.c.h.b16 %v137
    %v494 = vunpack.c.l.b16 %v138
    %v495 = vunpack.c.h.b16 %v138
    %v496 = vunpack.c.l.b16 %v139
    %v497 = vunpack.c.h.b16 %v139
    %v498 = vunpack.c.l.b16 %v140
    %v499 = vunpack.c.h.b16 %v140
    %v500 = vunpack.c.l.b16 %v141
    %v501 = vunpack.c.h.b16 %v141
    %v502 = vunpack.c.l.b16 %v142
    %v503 = vunpack.c.h.b16 %v142
    %v504 = vunpack.c.l.b16 %v143
    %v505 = vunpack.c.h.b16 %v143
    %v506 = vunpack.c.l.b16 %v144
    %v507 = vunpack.c.h.b16 %v144
    %v508 = vunpack.c.l.b16 %v145
    %v509 = vunpack.c.h.b16 %v145
    %v510 = vunpack.c.l.b16 %v146
    %v511 = vunpack.c.h.b16 %v146
    %v512 = vunpack.c.l.b16 %v147
    %v513 = vunpack.c.h.b16 %v147
    %v514 = vunpack.c.l.b16 %v148
    %v515 = vunpack.c.h.b16 %v148
    %v516 = vunpack.c.l.b16 %v149
    %v517 = vunpack.c.h.b16 %v149
    %v518 = vunpack.c.l.b16 %v150
    %v519 = vunpack.c.h.b16 %v150
    %v520 = vunpack.c.l.b16 %v151
    %v521 = vunpack.c.h.b16 %v151
    %v522 = vunpack.c.l.b16 %v152
    %v523 = vunpack.c.h.b16 %v152
    %v524 = vunpack.c.l.b16 %v153
    %v525 = vunpack.c.h.b16 %v153
    %v526 = vunpack.c.l.b16 %v154
    %v527 = vunpack.c.h.b16 %v154
    %v528 = vunpack.c.l.b16 %v155
    %v529 = vunpack.c.h.b16 %v155
    %v530 = vunpack.c.l.b16 %v156
    %v531 = vunpack.c.h.b16 %v156
    %v532 = vunpack.c.l.b16 %v157
    %v533 = vunpack.c.h.b16 %v157
    %v534 = vunpack.c.l.b16 %v158
    %v535 = vunpack.c.h.b16 %v158
    %v536 = vunpack.c.l.b16 %v159
    %v537 = vunpack.c.h.b16 %v159
    %v538 = vunpack.c.l.b16 %v160
    %v539 = vunpack.c.h.b16 %v160
    %v540 = vunpack.c.l.b16 %v161
    %v541 = vunpack.c.h.b16 %v161
    %v542 = vunpack.c.l.b16 %v162
    %v543 = vunpack.c.h.b16 %v162
    %v544 = vunpack.c.l.b16 %v163
    %v545 = vunpack.c.h.b16 %v163
    %v546 = vunpack.c.l.b16 %v164
    %v547 = vunpack.c.h.b16 %v164
    %v548 = vunpack.c.l.b16 %v165
    %v549 = vunpack.c.h.b16 %v165
    %v550 = vunpack.c.l.b16 %v166
    %v551 = vunpack.c.h.b16 %v166
    %v552 = vunpack.c.l.b16 %v167
    %v553 = vunpack.c.h.b16 %v167
    %v554 = vunpack.c.l.b16 %v168
    %v555 = vunpack.c.h.b16 %v168
    %v556 = vunpack.c.l.b16 %v169
    %v557 = vunpack.c.h.b16 %v169
    %v558 = vunpack.c.l.b16 %v170
    %v559 = vunpack.c.h.b16 %v170
    %v560 = vunpack.c.l.b16 %v171
    %v561 = vunpack.c.h.b16 %v171
    %v562 = vpack.c.b16 %v322, %v306
    %v563 = vpack.c.b16 %v323, %v307
    %v564 = vpack.c.b16 %v324, %v308
    %v565 = vpack.c.b16 %v325, %v309
    %v566 = vpack.c.b16 %v326, %v310
    %v567 = vpack.c.b16 %v327, %v311
    %v568 = vpack.c.b16 %v328, %v312
    %v569 = vpack.c.b16 %v329, %v313
    %v570 = vpack.c.b16 %v330, %v314
    %v571 = vpack.c.b16 %v331, %v315
    %v572 = vpack.c.b16 %v332, %v316
    %v573 = vpack.c.b16 %v333, %v317
    %v574 = vpack.c.b16 %v334, %v318
    %v575 = vpack.c.b16 %v335, %v319
    %v576 = vpack.c.b16 %v336, %v320
    %v577 = vpack.c.b16 %v337, %v321
    %v578 = vpack.c.b16 %v354, %v338
    %v579 = vpack.c.b16 %v355, %v339
    %v580 = vpack.c.b16 %v356, %v340
    %v581 = vpack.c.b16 %v357, %v341
    %v582 = vpack.c.b16 %v358, %v342
    %v583 = vpack.c.b16 %v359, %v343
    %v584 = vpack.c.b16 %v360, %v344
    %v585 = vpack.c.b16 %v361, %v345
    %v586 = vpack.c.b16 %v362, %v346
    %v587 = vpack.c.b16 %v363, %v347
    %v588 = vpack.c.b16 %v364, %v348
    %v589 = vpack.c.b16 %v365, %v349
    %v590 = vpack.c.b16 %v366, %v350
    %v591 = vpack.c.b16 %v367, %v351
    %v592 = vpack.c.b16 %v368, %v352
    %v593 = vpack.c.b16 %v369, %v353
    %v594 = vpack.c.b16 %v386, %v370
    %v595 = vpack.c.b16 %v387, %v371
    %v596 = vpack.c.b16 %v388, %v372
    %v597 = vpack.c.b16 %v389, %v373
    %v598 = vpack.c.b16 %v390, %v374
    %v599 = vpack.c.b16 %v391, %v375
    %v600 = vpack.c.b16 %v392, %v376
    %v601 = vpack.c.b16 %v393, %v377
    %v602 = vpack.c.b16 %v394, %v378
    %v603 = vpack.c.b16 %v395, %v379
    %v604 = vpack.c.b16 %v396, %v380
    %v605 = vpack.c.b16 %v397, %v381
    %v606 = vpack.c.b16 %v398, %v382
    %v607 = vpack.c.b16 %v399, %v383
    %v608 = vpack.c.b16 %v400, %v384
    %v609 = vpack.c.b16 %v401, %v385
    %v610 = vpack.c.b16 %v418, %v402
    %v611 = vpack.c.b16 %v419, %v403
    %v612 = vpack.c.b16 %v420, %v404
    %v613 = vpack.c.b16 %v421, %v405
    %v614 = vpack.c.b16 %v422, %v406
    %v615 = vpack.c.b16 %v423, %v407
    %v616 = vpack.c.b16 %v424, %v408
    %v617 = vpack.c.b16 %v425, %v409
    %v618 = vpack.c.b16 %v426, %v410
    %v619 = vpack.c.b16 %v427, %v411
    %v620 = vpack.c.b16 %v428, %v412
    %v621 = vpack.c.b16 %v429, %v413
    %v622 = vpack.c.b16 %v430, %v414
    %v623 = vpack.c.b16 %v431, %v415
    %v624 = vpack.c.b16 %v432, %v416
    %v625 = vpack.c.b16 %v433, %v417
    %v626 = vpack.c.b16 %v450, %v434
    %v627 = vpack.c.b16 %v451, %v435
    %v628 = vpack.c.b16 %v452, %v436
    %v629 = vpack.c.b16 %v453, %v437
    %v630 = vpack.c.b16 %v454, %v438
    %v631 = vpack.c.b16 %v455, %v439
    %v632 = vpack.c.b16 %v456, %v440
    %v633 = vpack.c.b16 %v457, %v441
    %v634 = vpack.c.b16 %v458, %v442
    %v635 = vpack.c.b16 %v459, %v443
    %v636 = vpack.c.b16 %v460, %v444
    %v637 = vpack.c.b16 %v461, %v445
    %v638 = vpack.c.b16 %v462, %v446
    %v639 = vpack.c.b16 %v463, %v447
    %v640 = vpack.c.b16 %v464, %v448
    %v641 = vpack.c.b16 %v465, %v449
    %v642 = vpack.c.b16 %v482, %v466
    %v643 = vpack.c.b16 %v483, %v467
    %v644 = vpack.c.b16 %v484, %v468
    %v645 = vpack.c.b16 %v485, %v469
    %v646 = vpack.c.b16 %v486, %v470
    %v647 = vpack.c.b16 %v487, %v471
    %v648 = vpack.c.b16 %v488, %v472
    %v649 = vpack.c.b16 %v489, %v473
    %v650 = vpack.c.b16 %v490, %v474
    %v651 = vpack.c.b16 %v491, %v475
    %v652 = vpack.c.b16 %v492, %v476
    %v653 = vpack.c.b16 %v493, %v477
    %v654 = vpack.c.b16 %v494, %v478
    %v655 = vpack.c.b16 %v495, %v479
    %v656 = vpack.c.b16 %v496, %v480
    %v657 = vpack.c.b16 %v497, %v481
    %v658 = vpack.c.b16 %v514, %v498
    %v659 = vpack.c.b16 %v515, %v499
    %v660 = vpack.c.b16 %v516, %v500
    %v661 = vpack.c.b16 %v517, %v501
    %v662 = vpack.c.b16 %v518, %v502
    %v663 = vpack.c.b16 %v519, %v503
    %v664 = vpack.c.b16 %v520, %v504
    %v665 = vpack.c.b16 %v521, %v505
    %v666 = vpack.c.b16 %v522, %v506
    %v667 = vpack.c.b16 %v523, %v507
    %v668 = vpack.c.b16 %v524, %v508
    %v669 = vpack.c.b16 %v525, %v509
    %v670 = vpack.c.b16 %v526, %v510
    %v671 = vpack.c.b16 %v527, %v511
    %v672 = vpack.c.b16 %v528, %v512
    %v673 = vpack.c.b16 %v529, %v513
    %v674 = vpack.c.b16 %v546, %v530
    %v675 = vpack.c.b16 %v547, %v531
    %v676 = vpack.c.b16 %v548, %v532
    %v677 = vpack.c.b16 %v549, %v533
    %v678 = vpack.c.b16 %v550, %v534
    %v679 = vpack.c.b16 %v551, %v535
    %v680 = vpack.c.b16 %v552, %v536
    %v681 = vpack.c.b16 %v553, %v537
    %v682 = vpack.c.b16 %v554, %v538
    %v683 = vpack.c.b16 %v555, %v539
    %v684 = vpack.c.b16 %v556, %v540
    %v685 = vpack.c.b16 %v557, %v541
    %v686 = vpack.c.b16 %v558, %v542
    %v687 = vpack.c.b16 %v559, %v543
    %v688 = vpack.c.b16 %v560, %v544
    %v689 = vpack.c.b16 %v561, %v545
    %818 = vmatprep.subr.bf16.mxu0 %v563
    %819 = vmatpush1.bf16.msra.mxu0 %v562
    %820 = vmatprep.subr.bf16.mxu0 %v579
    %821 = vmatpush1.bf16.msra.mxu0 %v578
    %822 = vmatprep.subr.bf16.mxu0 %v595
    %823 = vmatpush1.bf16.msra.mxu0 %v594
    %824 = vmatprep.subr.bf16.mxu0 %v611
    %825 = vmatpush1.bf16.msra.mxu0 %v610
    %826 = vmatprep.subr.bf16.mxu0 %v627
    %827 = vmatpush1.bf16.msra.mxu0 %v626
    %828 = vmatprep.subr.bf16.mxu0 %v643
    %829 = vmatpush1.bf16.msra.mxu0 %v642
    %830 = vmatprep.subr.bf16.mxu0 %v659
    %831 = vmatpush1.bf16.msra.mxu0 %v658
    %832 = vmatprep.subr.bf16.mxu0 %v675
    %833 = vmatpush1.bf16.msra.mxu0 %v674
    %834 = vmatprep.subr.bf16.mxu0 0
    %835 = vmatpush1.bf16.msra.mxu0 0
    %836 = vmatprep.subr.bf16.mxu0 0
    %837 = vmatpush1.bf16.msra.mxu0 0
    %838 = vmatprep.subr.bf16.mxu0 0
    %839 = vmatpush1.bf16.msra.mxu0 0
    %840 = vmatprep.subr.bf16.mxu0 0
    %841 = vmatpush1.bf16.msra.mxu0 0
    %842 = vmatprep.subr.bf16.mxu0 0
    %843 = vmatpush1.bf16.msra.mxu0 0
    %844 = vmatprep.subr.bf16.mxu0 0
    %845 = vmatpush1.bf16.msra.mxu0 0
    %846 = vmatprep.subr.bf16.mxu0 0
    %847 = vmatpush1.bf16.msra.mxu0 0
    %848 = vmatprep.subr.bf16.mxu0 0
    %849 = vmatpush1.bf16.msra.mxu0 0
    %850 = vmatprep.mubr.bf16.mxu0 0
    %851 = vmatmul.mubr.bf16.gmra.mrb[0].mxu0 %v176
    %v852 = vpop.f32.mrb[0].mxu0
    %v853 = vadd.f32 0.0, %v852
    %v854 = vpop.f32.mrb[0].mxu0
    %v855 = vadd.f32 0.0, %v854
    %v856 = vpop.f32.mrb[0].mxu0
    %v857 = vadd.f32 0.0, %v856
    %v858 = vpop.f32.mrb[0].mxu0
    %v859 = vadd.f32 0.0, %v858
    %860 = vdwg.mxu0
    %861 = vmatprep.subr.bf16.mxu0 %v565
    %862 = vmatpush1.bf16.msra.mxu0 %v564
    %863 = vmatprep.subr.bf16.mxu0 %v581
    %864 = vmatpush1.bf16.msra.mxu0 %v580
    %865 = vmatprep.subr.bf16.mxu0 %v597
    %866 = vmatpush1.bf16.msra.mxu0 %v596
    %867 = vmatprep.subr.bf16.mxu0 %v613
    %868 = vmatpush1.bf16.msra.mxu0 %v612
    %869 = vmatprep.subr.bf16.mxu0 %v629
    %870 = vmatpush1.bf16.msra.mxu0 %v628
    %871 = vmatprep.subr.bf16.mxu0 %v645
    %872 = vmatpush1.bf16.msra.mxu0 %v644
    %873 = vmatprep.subr.bf16.mxu0 %v661
    %874 = vmatpush1.bf16.msra.mxu0 %v660
    %875 = vmatprep.subr.bf16.mxu0 %v677
    %876 = vmatpush1.bf16.msra.mxu0 %v676
    %877 = vmatprep.subr.bf16.mxu0 0
    %878 = vmatpush1.bf16.msra.mxu0 0
    %879 = vmatprep.subr.bf16.mxu0 0
    %880 = vmatpush1.bf16.msra.mxu0 0
    %881 = vmatprep.subr.bf16.mxu0 0
    %882 = vmatpush1.bf16.msra.mxu0 0
    %883 = vmatprep.subr.bf16.mxu0 0
    %884 = vmatpush1.bf16.msra.mxu0 0
    %885 = vmatprep.subr.bf16.mxu0 0
    %886 = vmatpush1.bf16.msra.mxu0 0
    %887 = vmatprep.subr.bf16.mxu0 0
    %888 = vmatpush1.bf16.msra.mxu0 0
    %889 = vmatprep.subr.bf16.mxu0 0
    %890 = vmatpush1.bf16.msra.mxu0 0
    %891 = vmatprep.subr.bf16.mxu0 0
    %892 = vmatpush1.bf16.msra.mxu0 0
    %893 = vmatprep.mubr.bf16.mxu0 0
    %894 = vmatmul.mubr.bf16.gmra.mrb[0].mxu0 %v176
    %v895 = vpop.f32.mrb[0].mxu0
    %v896 = vadd.f32 0.0, %v895
    %v897 = vpop.f32.mrb[0].mxu0
    %v898 = vadd.f32 0.0, %v897
    %v899 = vpop.f32.mrb[0].mxu0
    %v900 = vadd.f32 0.0, %v899
    %v901 = vpop.f32.mrb[0].mxu0
    %v902 = vadd.f32 0.0, %v901
    %903 = vdwg.mxu0
    %904 = vmatprep.subr.bf16.mxu0 %v567
    %905 = vmatpush1.bf16.msra.mxu0 %v566
    %906 = vmatprep.subr.bf16.mxu0 %v583
    %907 = vmatpush1.bf16.msra.mxu0 %v582
    %908 = vmatprep.subr.bf16.mxu0 %v599
    %909 = vmatpush1.bf16.msra.mxu0 %v598
    %910 = vmatprep.subr.bf16.mxu0 %v615
    %911 = vmatpush1.bf16.msra.mxu0 %v614
    %912 = vmatprep.subr.bf16.mxu0 %v631
    %913 = vmatpush1.bf16.msra.mxu0 %v630
    %914 = vmatprep.subr.bf16.mxu0 %v647
    %915 = vmatpush1.bf16.msra.mxu0 %v646
    %916 = vmatprep.subr.bf16.mxu0 %v663
    %917 = vmatpush1.bf16.msra.mxu0 %v662
    %918 = vmatprep.subr.bf16.mxu0 %v679
    %919 = vmatpush1.bf16.msra.mxu0 %v678
    %920 = vmatprep.subr.bf16.mxu0 0
    %921 = vmatpush1.bf16.msra.mxu0 0
    %922 = vmatprep.subr.bf16.mxu0 0
    %923 = vmatpush1.bf16.msra.mxu0 0
    %924 = vmatprep.subr.bf16.mxu0 0
    %925 = vmatpush1.bf16.msra.mxu0 0
    %926 = vmatprep.subr.bf16.mxu0 0
    %927 = vmatpush1.bf16.msra.mxu0 0
    %928 = vmatprep.subr.bf16.mxu0 0
    %929 = vmatpush1.bf16.msra.mxu0 0
    %930 = vmatprep.subr.bf16.mxu0 0
    %931 = vmatpush1.bf16.msra.mxu0 0
    %932 = vmatprep.subr.bf16.mxu0 0
    %933 = vmatpush1.bf16.msra.mxu0 0
    %934 = vmatprep.subr.bf16.mxu0 0
    %935 = vmatpush1.bf16.msra.mxu0 0
    %936 = vmatprep.mubr.bf16.mxu0 0
    %937 = vmatmul.mubr.bf16.gmra.mrb[0].mxu0 %v176
    %v938 = vpop.f32.mrb[0].mxu0
    %v939 = vadd.f32 0.0, %v938
    %v940 = vpop.f32.mrb[0].mxu0
    %v941 = vadd.f32 0.0, %v940
    %v942 = vpop.f32.mrb[0].mxu0
    %v943 = vadd.f32 0.0, %v942
    %v944 = vpop.f32.mrb[0].mxu0
    %v945 = vadd.f32 0.0, %v944
    %946 = vdwg.mxu0
    %947 = vmatprep.subr.bf16.mxu0 %v569
    %948 = vmatpush1.bf16.msra.mxu0 %v568
    %949 = vmatprep.subr.bf16.mxu0 %v585
    %950 = vmatpush1.bf16.msra.mxu0 %v584
    %951 = vmatprep.subr.bf16.mxu0 %v601
    %952 = vmatpush1.bf16.msra.mxu0 %v600
    %953 = vmatprep.subr.bf16.mxu0 %v617
    %954 = vmatpush1.bf16.msra.mxu0 %v616
    %955 = vmatprep.subr.bf16.mxu0 %v633
    %956 = vmatpush1.bf16.msra.mxu0 %v632
    %957 = vmatprep.subr.bf16.mxu0 %v649
    %958 = vmatpush1.bf16.msra.mxu0 %v648
    %959 = vmatprep.subr.bf16.mxu0 %v665
    %960 = vmatpush1.bf16.msra.mxu0 %v664
    %961 = vmatprep.subr.bf16.mxu0 %v681
    %962 = vmatpush1.bf16.msra.mxu0 %v680
    %963 = vmatprep.subr.bf16.mxu0 0
    %964 = vmatpush1.bf16.msra.mxu0 0
    %965 = vmatprep.subr.bf16.mxu0 0
    %966 = vmatpush1.bf16.msra.mxu0 0
    %967 = vmatprep.subr.bf16.mxu0 0
    %968 = vmatpush1.bf16.msra.mxu0 0
    %969 = vmatprep.subr.bf16.mxu0 0
    %970 = vmatpush1.bf16.msra.mxu0 0
    %971 = vmatprep.subr.bf16.mxu0 0
    %972 = vmatpush1.bf16.msra.mxu0 0
    %973 = vmatprep.subr.bf16.mxu0 0
    %974 = vmatpush1.bf16.msra.mxu0 0
    %975 = vmatprep.subr.bf16.mxu0 0
    %976 = vmatpush1.bf16.msra.mxu0 0
    %977 = vmatprep.subr.bf16.mxu0 0
    %978 = vmatpush1.bf16.msra.mxu0 0
    %979 = vmatprep.mubr.bf16.mxu0 0
    %980 = vmatmul.mubr.bf16.gmra.mrb[0].mxu0 %v176
    %v981 = vpop.f32.mrb[0].mxu0
    %v982 = vadd.f32 0.0, %v981
    %v983 = vpop.f32.mrb[0].mxu0
    %v984 = vadd.f32 0.0, %v983
    %v985 = vpop.f32.mrb[0].mxu0
    %v986 = vadd.f32 0.0, %v985
    %v987 = vpop.f32.mrb[0].mxu0
    %v988 = vadd.f32 0.0, %v987
    %989 = vdwg.mxu0
    %990 = vmatprep.subr.bf16.mxu0 %v571
    %991 = vmatpush1.bf16.msra.mxu0 %v570
    %992 = vmatprep.subr.bf16.mxu0 %v587
    %993 = vmatpush1.bf16.msra.mxu0 %v586
    %994 = vmatprep.subr.bf16.mxu0 %v603
    %995 = vmatpush1.bf16.msra.mxu0 %v602
    %996 = vmatprep.subr.bf16.mxu0 %v619
    %997 = vmatpush1.bf16.msra.mxu0 %v618
    %998 = vmatprep.subr.bf16.mxu0 %v635
    %999 = vmatpush1.bf16.msra.mxu0 %v634
    %1000 = vmatprep.subr.bf16.mxu0 %v651
    %1001 = vmatpush1.bf16.msra.mxu0 %v650
    %1002 = vmatprep.subr.bf16.mxu0 %v667
    %1003 = vmatpush1.bf16.msra.mxu0 %v666
    %1004 = vmatprep.subr.bf16.mxu0 %v683
    %1005 = vmatpush1.bf16.msra.mxu0 %v682
    %1006 = vmatprep.subr.bf16.mxu0 0
    %1007 = vmatpush1.bf16.msra.mxu0 0
    %1008 = vmatprep.subr.bf16.mxu0 0
    %1009 = vmatpush1.bf16.msra.mxu0 0
    %1010 = vmatprep.subr.bf16.mxu0 0
    %1011 = vmatpush1.bf16.msra.mxu0 0
    %1012 = vmatprep.subr.bf16.mxu0 0
    %1013 = vmatpush1.bf16.msra.mxu0 0
    %1014 = vmatprep.subr.bf16.mxu0 0
    %1015 = vmatpush1.bf16.msra.mxu0 0
    %1016 = vmatprep.subr.bf16.mxu0 0
    %1017 = vmatpush1.bf16.msra.mxu0 0
    %1018 = vmatprep.subr.bf16.mxu0 0
    %1019 = vmatpush1.bf16.msra.mxu0 0
    %1020 = vmatprep.subr.bf16.mxu0 0
    %1021 = vmatpush1.bf16.msra.mxu0 0
    %1022 = vmatprep.mubr.bf16.mxu0 0
    %1023 = vmatmul.mubr.bf16.gmra.mrb[0].mxu0 %v176
    %v1024 = vpop.f32.mrb[0].mxu0
    %v1025 = vadd.f32 0.0, %v1024
    %v1026 = vpop.f32.mrb[0].mxu0
    %v1027 = vadd.f32 0.0, %v1026
    %v1028 = vpop.f32.mrb[0].mxu0
    %v1029 = vadd.f32 0.0, %v1028
    %v1030 = vpop.f32.mrb[0].mxu0
    %v1031 = vadd.f32 0.0, %v1030
    %1032 = vdwg.mxu0
    %1033 = vmatprep.subr.bf16.mxu0 %v573
    %1034 = vmatpush1.bf16.msra.mxu0 %v572
    %1035 = vmatprep.subr.bf16.mxu0 %v589
    %1036 = vmatpush1.bf16.msra.mxu0 %v588
    %1037 = vmatprep.subr.bf16.mxu0 %v605
    %1038 = vmatpush1.bf16.msra.mxu0 %v604
    %1039 = vmatprep.subr.bf16.mxu0 %v621
    %1040 = vmatpush1.bf16.msra.mxu0 %v620
    %1041 = vmatprep.subr.bf16.mxu0 %v637
    %1042 = vmatpush1.bf16.msra.mxu0 %v636
    %1043 = vmatprep.subr.bf16.mxu0 %v653
    %1044 = vmatpush1.bf16.msra.mxu0 %v652
    %1045 = vmatprep.subr.bf16.mxu0 %v669
    %1046 = vmatpush1.bf16.msra.mxu0 %v668
    %1047 = vmatprep.subr.bf16.mxu0 %v685
    %1048 = vmatpush1.bf16.msra.mxu0 %v684
    %1049 = vmatprep.subr.bf16.mxu0 0
    %1050 = vmatpush1.bf16.msra.mxu0 0
    %1051 = vmatprep.subr.bf16.mxu0 0
    %1052 = vmatpush1.bf16.msra.mxu0 0
    %1053 = vmatprep.subr.bf16.mxu0 0
    %1054 = vmatpush1.bf16.msra.mxu0 0
    %1055 = vmatprep.subr.bf16.mxu0 0
    %1056 = vmatpush1.bf16.msra.mxu0 0
    %1057 = vmatprep.subr.bf16.mxu0 0
    %1058 = vmatpush1.bf16.msra.mxu0 0
    %1059 = vmatprep.subr.bf16.mxu0 0
    %1060 = vmatpush1.bf16.msra.mxu0 0
    %1061 = vmatprep.subr.bf16.mxu0 0
    %1062 = vmatpush1.bf16.msra.mxu0 0
    %1063 = vmatprep.subr.bf16.mxu0 0
    %1064 = vmatpush1.bf16.msra.mxu0 0
    %1065 = vmatprep.mubr.bf16.mxu0 0
    %1066 = vmatmul.mubr.bf16.gmra.mrb[0].mxu0 %v176
    %v1067 = vpop.f32.mrb[0].mxu0
    %v1068 = vadd.f32 0.0, %v1067
    %v1069 = vpop.f32.mrb[0].mxu0
    %v1070 = vadd.f32 0.0, %v1069
    %v1071 = vpop.f32.mrb[0].mxu0
    %v1072 = vadd.f32 0.0, %v1071
    %v1073 = vpop.f32.mrb[0].mxu0
    %v1074 = vadd.f32 0.0, %v1073
    %1075 = vdwg.mxu0
    %1076 = vmatprep.subr.bf16.mxu0 %v575
    %1077 = vmatpush1.bf16.msra.mxu0 %v574
    %1078 = vmatprep.subr.bf16.mxu0 %v591
    %1079 = vmatpush1.bf16.msra.mxu0 %v590
    %1080 = vmatprep.subr.bf16.mxu0 %v607
    %1081 = vmatpush1.bf16.msra.mxu0 %v606
    %1082 = vmatprep.subr.bf16.mxu0 %v623
    %1083 = vmatpush1.bf16.msra.mxu0 %v622
    %1084 = vmatprep.subr.bf16.mxu0 %v639
    %1085 = vmatpush1.bf16.msra.mxu0 %v638
    %1086 = vmatprep.subr.bf16.mxu0 %v655
    %1087 = vmatpush1.bf16.msra.mxu0 %v654
    %1088 = vmatprep.subr.bf16.mxu0 %v671
    %1089 = vmatpush1.bf16.msra.mxu0 %v670
    %1090 = vmatprep.subr.bf16.mxu0 %v687
    %1091 = vmatpush1.bf16.msra.mxu0 %v686
    %1092 = vmatprep.subr.bf16.mxu0 0
    %1093 = vmatpush1.bf16.msra.mxu0 0
    %1094 = vmatprep.subr.bf16.mxu0 0
    %1095 = vmatpush1.bf16.msra.mxu0 0
    %1096 = vmatprep.subr.bf16.mxu0 0
    %1097 = vmatpush1.bf16.msra.mxu0 0
    %1098 = vmatprep.subr.bf16.mxu0 0
    %1099 = vmatpush1.bf16.msra.mxu0 0
    %1100 = vmatprep.subr.bf16.mxu0 0
    %1101 = vmatpush1.bf16.msra.mxu0 0
    %1102 = vmatprep.subr.bf16.mxu0 0
    %1103 = vmatpush1.bf16.msra.mxu0 0
    %1104 = vmatprep.subr.bf16.mxu0 0
    %1105 = vmatpush1.bf16.msra.mxu0 0
    %1106 = vmatprep.subr.bf16.mxu0 0
    %1107 = vmatpush1.bf16.msra.mxu0 0
    %1108 = vmatprep.mubr.bf16.mxu0 0
    %1109 = vmatmul.mubr.bf16.gmra.mrb[0].mxu0 %v176
    %v1110 = vpop.f32.mrb[0].mxu0
    %v1111 = vadd.f32 0.0, %v1110
    %v1112 = vpop.f32.mrb[0].mxu0
    %v1113 = vadd.f32 0.0, %v1112
    %v1114 = vpop.f32.mrb[0].mxu0
    %v1115 = vadd.f32 0.0, %v1114
    %v1116 = vpop.f32.mrb[0].mxu0
    %v1117 = vadd.f32 0.0, %v1116
    %1118 = vdwg.mxu0
    %1119 = vmatprep.subr.bf16.mxu0 %v577
    %1120 = vmatpush1.bf16.msra.mxu0 %v576
    %1121 = vmatprep.subr.bf16.mxu0 %v593
    %1122 = vmatpush1.bf16.msra.mxu0 %v592
    %1123 = vmatprep.subr.bf16.mxu0 %v609
    %1124 = vmatpush1.bf16.msra.mxu0 %v608
    %1125 = vmatprep.subr.bf16.mxu0 %v625
    %1126 = vmatpush1.bf16.msra.mxu0 %v624
    %1127 = vmatprep.subr.bf16.mxu0 %v641
    %1128 = vmatpush1.bf16.msra.mxu0 %v640
    %1129 = vmatprep.subr.bf16.mxu0 %v657
    %1130 = vmatpush1.bf16.msra.mxu0 %v656
    %1131 = vmatprep.subr.bf16.mxu0 %v673
    %1132 = vmatpush1.bf16.msra.mxu0 %v672
    %1133 = vmatprep.subr.bf16.mxu0 %v689
    %1134 = vmatpush1.bf16.msra.mxu0 %v688
    %1135 = vmatprep.subr.bf16.mxu0 0
    %1136 = vmatpush1.bf16.msra.mxu0 0
    %1137 = vmatprep.subr.bf16.mxu0 0
    %1138 = vmatpush1.bf16.msra.mxu0 0
    %1139 = vmatprep.subr.bf16.mxu0 0
    %1140 = vmatpush1.bf16.msra.mxu0 0
    %1141 = vmatprep.subr.bf16.mxu0 0
    %1142 = vmatpush1.bf16.msra.mxu0 0
    %1143 = vmatprep.subr.bf16.mxu0 0
    %1144 = vmatpush1.bf16.msra.mxu0 0
    %1145 = vmatprep.subr.bf16.mxu0 0
    %1146 = vmatpush1.bf16.msra.mxu0 0
    %1147 = vmatprep.subr.bf16.mxu0 0
    %1148 = vmatpush1.bf16.msra.mxu0 0
    %1149 = vmatprep.subr.bf16.mxu0 0
    %1150 = vmatpush1.bf16.msra.mxu0 0
    %1151 = vmatprep.mubr.bf16.mxu0 0
    %1152 = vmatmul.mubr.bf16.gmra.mrb[0].mxu0 %v176
    %v1153 = vpop.f32.mrb[0].mxu0
    %v1154 = vadd.f32 0.0, %v1153
    %v1155 = vpop.f32.mrb[0].mxu0
    %v1156 = vadd.f32 0.0, %v1155
    %v1157 = vpop.f32.mrb[0].mxu0
    %v1158 = vadd.f32 0.0, %v1157
    %v1159 = vpop.f32.mrb[0].mxu0
    %v1160 = vadd.f32 0.0, %v1159
    %1161 = vdwg.mxu0
    %1162 = vst [vmem:[#allocation2] sm:$0xff] %v853
    %1163 = vst [vmem:[#allocation2 + $0x8] sm:$0xff] %v855
    %1164 = vst [vmem:[#allocation2 + $0x10] sm:$0xff] %v896
    %1165 = vst [vmem:[#allocation2 + $0x18] sm:$0xff] %v898
    %1166 = vst [vmem:[#allocation2 + $0x20] sm:$0xff] %v939
    %1167 = vst [vmem:[#allocation2 + $0x28] sm:$0xff] %v941
    %1168 = vst [vmem:[#allocation2 + $0x30] sm:$0xff] %v982
    %1169 = vst [vmem:[#allocation2 + $0x38] sm:$0xff] %v984
    %1170 = vst [vmem:[#allocation2 + $0x40] sm:$0xff] %v1025
    %1171 = vst [vmem:[#allocation2 + $0x48] sm:$0xff] %v1027
    %1172 = vst [vmem:[#allocation2 + $0x50] sm:$0xff] %v1068
    %1173 = vst [vmem:[#allocation2 + $0x58] sm:$0xff] %v1070
    %1174 = vst [vmem:[#allocation2 + $0x60] sm:$0xff] %v1111
    %1175 = vst [vmem:[#allocation2 + $0x68] sm:$0xff] %v1113
    %1176 = vst [vmem:[#allocation2 + $0x70] sm:$0xff] %v1154
    %1177 = vst [vmem:[#allocation2 + $0x78] sm:$0xff] %v1156
    %1178 = vst [vmem:[#allocation2 + $0x80] sm:$0xff] %v857
    %1179 = vst [vmem:[#allocation2 + $0x88] sm:$0xff] %v859
    %1180 = vst [vmem:[#allocation2 + $0x90] sm:$0xff] %v900
    %1181 = vst [vmem:[#allocation2 + $0x98] sm:$0xff] %v902
    %1182 = vst [vmem:[#allocation2 + $0xa0] sm:$0xff] %v943
    %1183 = vst [vmem:[#allocation2 + $0xa8] sm:$0xff] %v945
    %1184 = vst [vmem:[#allocation2 + $0xb0] sm:$0xff] %v986
    %1185 = vst [vmem:[#allocation2 + $0xb8] sm:$0xff] %v988
    %1186 = vst [vmem:[#allocation2 + $0xc0] sm:$0xff] %v1029
    %1187 = vst [vmem:[#allocation2 + $0xc8] sm:$0xff] %v1031
    %1188 = vst [vmem:[#allocation2 + $0xd0] sm:$0xff] %v1072
    %1189 = vst [vmem:[#allocation2 + $0xd8] sm:$0xff] %v1074
    %1190 = vst [vmem:[#allocation2 + $0xe0] sm:$0xff] %v1115
    %1191 = vst [vmem:[#allocation2 + $0xe8] sm:$0xff] %v1117
    %1192 = vst [vmem:[#allocation2 + $0xf0] sm:$0xff] %v1158
    %1193 = vst [vmem:[#allocation2 + $0xf8] sm:$0xff] %v1160
    %v1194 = vld [vmem:[#allocation2] sm:$0xff]
    %v1195 = vld [vmem:[#allocation2 + $0x80] sm:$0xff]
    %v1196 = vadd.f32 %v1194, %v1195
    %v1197 = vrot.slane %v1196, 4
    %v1198 = vadd.f32 %v1196, %v1197
    %v1199 = vrot.slane %v1198, 2
    %v1200 = vadd.f32 %v1198, %v1199
    %v1201 = vrot.slane %v1200, 1
    %v1202 = vadd.f32 %v1200, %v1201
    %v1203 = vadd.f32 %v1202, 0.0
    %v1204 = vmul.f32 %v1194, %v1194
    %v1205 = vmul.f32 %v1195, %v1195
    %v1206 = vadd.f32 %v1204, %v1205
    %v1207 = vrot.slane %v1206, 4
    %v1208 = vadd.f32 %v1206, %v1207
    %v1209 = vrot.slane %v1208, 2
    %v1210 = vadd.f32 %v1208, %v1209
    %v1211 = vrot.slane %v1210, 1
    %v1212 = vadd.f32 %v1210, %v1211
    %v1213 = vadd.f32 %v1212, 0.0
    %v1214 = vld [vmem:[#allocation2 + $0x8] sm:$0xff]
    %v1215 = vld [vmem:[#allocation2 + $0x88] sm:$0xff]
    %v1216 = vadd.f32 %v1214, %v1215
    %v1217 = vrot.slane %v1216, 4
    %v1218 = vadd.f32 %v1216, %v1217
    %v1219 = vrot.slane %v1218, 2
    %v1220 = vadd.f32 %v1218, %v1219
    %v1221 = vrot.slane %v1220, 1
    %v1222 = vadd.f32 %v1220, %v1221
    %v1223 = vadd.f32 %v1203, %v1222
    %v1224 = vmul.f32 %v1214, %v1214
    %v1225 = vmul.f32 %v1215, %v1215
    %v1226 = vadd.f32 %v1224, %v1225
    %v1227 = vrot.slane %v1226, 4
    %v1228 = vadd.f32 %v1226, %v1227
    %v1229 = vrot.slane %v1228, 2
    %v1230 = vadd.f32 %v1228, %v1229
    %v1231 = vrot.slane %v1230, 1
    %v1232 = vadd.f32 %v1230, %v1231
    %v1233 = vadd.f32 %v1213, %v1232
    %v1234 = vld [vmem:[#allocation2 + $0x10] sm:$0xff]
    %v1235 = vld [vmem:[#allocation2 + $0x90] sm:$0xff]
    %v1236 = vadd.f32 %v1234, %v1235
    %v1237 = vrot.slane %v1236, 4
    %v1238 = vadd.f32 %v1236, %v1237
    %v1239 = vrot.slane %v1238, 2
    %v1240 = vadd.f32 %v1238, %v1239
    %v1241 = vrot.slane %v1240, 1
    %v1242 = vadd.f32 %v1240, %v1241
    %v1243 = vadd.f32 %v1223, %v1242
    %v1244 = vmul.f32 %v1234, %v1234
    %v1245 = vmul.f32 %v1235, %v1235
    %v1246 = vadd.f32 %v1244, %v1245
    %v1247 = vrot.slane %v1246, 4
    %v1248 = vadd.f32 %v1246, %v1247
    %v1249 = vrot.slane %v1248, 2
    %v1250 = vadd.f32 %v1248, %v1249
    %v1251 = vrot.slane %v1250, 1
    %v1252 = vadd.f32 %v1250, %v1251
    %v1253 = vadd.f32 %v1233, %v1252
    %v1254 = vld [vmem:[#allocation2 + $0x18] sm:$0xff]
    %v1255 = vld [vmem:[#allocation2 + $0x98] sm:$0xff]
    %v1256 = vadd.f32 %v1254, %v1255
    %v1257 = vrot.slane %v1256, 4
    %v1258 = vadd.f32 %v1256, %v1257
    %v1259 = vrot.slane %v1258, 2
    %v1260 = vadd.f32 %v1258, %v1259
    %v1261 = vrot.slane %v1260, 1
    %v1262 = vadd.f32 %v1260, %v1261
    %v1263 = vadd.f32 %v1243, %v1262
    %v1264 = vmul.f32 %v1254, %v1254
    %v1265 = vmul.f32 %v1255, %v1255
    %v1266 = vadd.f32 %v1264, %v1265
    %v1267 = vrot.slane %v1266, 4
    %v1268 = vadd.f32 %v1266, %v1267
    %v1269 = vrot.slane %v1268, 2
    %v1270 = vadd.f32 %v1268, %v1269
    %v1271 = vrot.slane %v1270, 1
    %v1272 = vadd.f32 %v1270, %v1271
    %v1273 = vadd.f32 %v1253, %v1272
    %v1274 = vld [vmem:[#allocation2 + $0x20] sm:$0xff]
    %v1275 = vld [vmem:[#allocation2 + $0xa0] sm:$0xff]
    %v1276 = vadd.f32 %v1274, %v1275
    %v1277 = vrot.slane %v1276, 4
    %v1278 = vadd.f32 %v1276, %v1277
    %v1279 = vrot.slane %v1278, 2
    %v1280 = vadd.f32 %v1278, %v1279
    %v1281 = vrot.slane %v1280, 1
    %v1282 = vadd.f32 %v1280, %v1281
    %v1283 = vadd.f32 %v1263, %v1282
    %v1284 = vmul.f32 %v1274, %v1274
    %v1285 = vmul.f32 %v1275, %v1275
    %v1286 = vadd.f32 %v1284, %v1285
    %v1287 = vrot.slane %v1286, 4
    %v1288 = vadd.f32 %v1286, %v1287
    %v1289 = vrot.slane %v1288, 2
    %v1290 = vadd.f32 %v1288, %v1289
    %v1291 = vrot.slane %v1290, 1
    %v1292 = vadd.f32 %v1290, %v1291
    %v1293 = vadd.f32 %v1273, %v1292
    %v1294 = vld [vmem:[#allocation2 + $0x28] sm:$0xff]
    %v1295 = vld [vmem:[#allocation2 + $0xa8] sm:$0xff]
    %v1296 = vadd.f32 %v1294, %v1295
    %v1297 = vrot.slane %v1296, 4
    %v1298 = vadd.f32 %v1296, %v1297
    %v1299 = vrot.slane %v1298, 2
    %v1300 = vadd.f32 %v1298, %v1299
    %v1301 = vrot.slane %v1300, 1
    %v1302 = vadd.f32 %v1300, %v1301
    %v1303 = vadd.f32 %v1283, %v1302
    %v1304 = vmul.f32 %v1294, %v1294
    %v1305 = vmul.f32 %v1295, %v1295
    %v1306 = vadd.f32 %v1304, %v1305
    %v1307 = vrot.slane %v1306, 4
    %v1308 = vadd.f32 %v1306, %v1307
    %v1309 = vrot.slane %v1308, 2
    %v1310 = vadd.f32 %v1308, %v1309
    %v1311 = vrot.slane %v1310, 1
    %v1312 = vadd.f32 %v1310, %v1311
    %v1313 = vadd.f32 %v1293, %v1312
    %v1314 = vld [vmem:[#allocation2 + $0x30] sm:$0xff]
    %v1315 = vld [vmem:[#allocation2 + $0xb0] sm:$0xff]
    %v1316 = vadd.f32 %v1314, %v1315
    %v1317 = vrot.slane %v1316, 4
    %v1318 = vadd.f32 %v1316, %v1317
    %v1319 = vrot.slane %v1318, 2
    %v1320 = vadd.f32 %v1318, %v1319
    %v1321 = vrot.slane %v1320, 1
    %v1322 = vadd.f32 %v1320, %v1321
    %v1323 = vadd.f32 %v1303, %v1322
    %v1324 = vmul.f32 %v1314, %v1314
    %v1325 = vmul.f32 %v1315, %v1315
    %v1326 = vadd.f32 %v1324, %v1325
    %v1327 = vrot.slane %v1326, 4
    %v1328 = vadd.f32 %v1326, %v1327
    %v1329 = vrot.slane %v1328, 2
    %v1330 = vadd.f32 %v1328, %v1329
    %v1331 = vrot.slane %v1330, 1
    %v1332 = vadd.f32 %v1330, %v1331
    %v1333 = vadd.f32 %v1313, %v1332
    %v1334 = vld [vmem:[#allocation2 + $0x38] sm:$0xff]
    %v1335 = vld [vmem:[#allocation2 + $0xb8] sm:$0xff]
    %v1336 = vadd.f32 %v1334, %v1335
    %v1337 = vrot.slane %v1336, 4
    %v1338 = vadd.f32 %v1336, %v1337
    %v1339 = vrot.slane %v1338, 2
    %v1340 = vadd.f32 %v1338, %v1339
    %v1341 = vrot.slane %v1340, 1
    %v1342 = vadd.f32 %v1340, %v1341
    %v1343 = vadd.f32 %v1323, %v1342
    %v1344 = vmul.f32 %v1334, %v1334
    %v1345 = vmul.f32 %v1335, %v1335
    %v1346 = vadd.f32 %v1344, %v1345
    %v1347 = vrot.slane %v1346, 4
    %v1348 = vadd.f32 %v1346, %v1347
    %v1349 = vrot.slane %v1348, 2
    %v1350 = vadd.f32 %v1348, %v1349
    %v1351 = vrot.slane %v1350, 1
    %v1352 = vadd.f32 %v1350, %v1351
    %v1353 = vadd.f32 %v1333, %v1352
    %v1354 = vld [vmem:[#allocation2 + $0x40] sm:$0xff]
    %v1355 = vld [vmem:[#allocation2 + $0xc0] sm:$0xff]
    %v1356 = vadd.f32 %v1354, %v1355
    %v1357 = vrot.slane %v1356, 4
    %v1358 = vadd.f32 %v1356, %v1357
    %v1359 = vrot.slane %v1358, 2
    %v1360 = vadd.f32 %v1358, %v1359
    %v1361 = vrot.slane %v1360, 1
    %v1362 = vadd.f32 %v1360, %v1361
    %v1363 = vadd.f32 %v1343, %v1362
    %v1364 = vmul.f32 %v1354, %v1354
    %v1365 = vmul.f32 %v1355, %v1355
    %v1366 = vadd.f32 %v1364, %v1365
    %v1367 = vrot.slane %v1366, 4
    %v1368 = vadd.f32 %v1366, %v1367
    %v1369 = vrot.slane %v1368, 2
    %v1370 = vadd.f32 %v1368, %v1369
    %v1371 = vrot.slane %v1370, 1
    %v1372 = vadd.f32 %v1370, %v1371
    %v1373 = vadd.f32 %v1353, %v1372
    %v1374 = vld [vmem:[#allocation2 + $0x48] sm:$0xff]
    %v1375 = vld [vmem:[#allocation2 + $0xc8] sm:$0xff]
    %v1376 = vadd.f32 %v1374, %v1375
    %v1377 = vrot.slane %v1376, 4
    %v1378 = vadd.f32 %v1376, %v1377
    %v1379 = vrot.slane %v1378, 2
    %v1380 = vadd.f32 %v1378, %v1379
    %v1381 = vrot.slane %v1380, 1
    %v1382 = vadd.f32 %v1380, %v1381
    %v1383 = vadd.f32 %v1363, %v1382
    %v1384 = vmul.f32 %v1374, %v1374
    %v1385 = vmul.f32 %v1375, %v1375
    %v1386 = vadd.f32 %v1384, %v1385
    %v1387 = vrot.slane %v1386, 4
    %v1388 = vadd.f32 %v1386, %v1387
    %v1389 = vrot.slane %v1388, 2
    %v1390 = vadd.f32 %v1388, %v1389
    %v1391 = vrot.slane %v1390, 1
    %v1392 = vadd.f32 %v1390, %v1391
    %v1393 = vadd.f32 %v1373, %v1392
    %v1394 = vld [vmem:[#allocation2 + $0x50] sm:$0xff]
    %v1395 = vld [vmem:[#allocation2 + $0xd0] sm:$0xff]
    %v1396 = vadd.f32 %v1394, %v1395
    %v1397 = vrot.slane %v1396, 4
    %v1398 = vadd.f32 %v1396, %v1397
    %v1399 = vrot.slane %v1398, 2
    %v1400 = vadd.f32 %v1398, %v1399
    %v1401 = vrot.slane %v1400, 1
    %v1402 = vadd.f32 %v1400, %v1401
    %v1403 = vadd.f32 %v1383, %v1402
    %v1404 = vmul.f32 %v1394, %v1394
    %v1405 = vmul.f32 %v1395, %v1395
    %v1406 = vadd.f32 %v1404, %v1405
    %v1407 = vrot.slane %v1406, 4
    %v1408 = vadd.f32 %v1406, %v1407
    %v1409 = vrot.slane %v1408, 2
    %v1410 = vadd.f32 %v1408, %v1409
    %v1411 = vrot.slane %v1410, 1
    %v1412 = vadd.f32 %v1410, %v1411
    %v1413 = vadd.f32 %v1393, %v1412
    %v1414 = vld [vmem:[#allocation2 + $0x58] sm:$0xff]
    %v1415 = vld [vmem:[#allocation2 + $0xd8] sm:$0xff]
    %v1416 = vadd.f32 %v1414, %v1415
    %v1417 = vrot.slane %v1416, 4
    %v1418 = vadd.f32 %v1416, %v1417
    %v1419 = vrot.slane %v1418, 2
    %v1420 = vadd.f32 %v1418, %v1419
    %v1421 = vrot.slane %v1420, 1
    %v1422 = vadd.f32 %v1420, %v1421
    %v1423 = vadd.f32 %v1403, %v1422
    %v1424 = vmul.f32 %v1414, %v1414
    %v1425 = vmul.f32 %v1415, %v1415
    %v1426 = vadd.f32 %v1424, %v1425
    %v1427 = vrot.slane %v1426, 4
    %v1428 = vadd.f32 %v1426, %v1427
    %v1429 = vrot.slane %v1428, 2
    %v1430 = vadd.f32 %v1428, %v1429
    %v1431 = vrot.slane %v1430, 1
    %v1432 = vadd.f32 %v1430, %v1431
    %v1433 = vadd.f32 %v1413, %v1432
    %v1434 = vld [vmem:[#allocation2 + $0x60] sm:$0xff]
    %v1435 = vld [vmem:[#allocation2 + $0xe0] sm:$0xff]
    %v1436 = vadd.f32 %v1434, %v1435
    %v1437 = vrot.slane %v1436, 4
    %v1438 = vadd.f32 %v1436, %v1437
    %v1439 = vrot.slane %v1438, 2
    %v1440 = vadd.f32 %v1438, %v1439
    %v1441 = vrot.slane %v1440, 1
    %v1442 = vadd.f32 %v1440, %v1441
    %v1443 = vadd.f32 %v1423, %v1442
    %v1444 = vmul.f32 %v1434, %v1434
    %v1445 = vmul.f32 %v1435, %v1435
    %v1446 = vadd.f32 %v1444, %v1445
    %v1447 = vrot.slane %v1446, 4
    %v1448 = vadd.f32 %v1446, %v1447
    %v1449 = vrot.slane %v1448, 2
    %v1450 = vadd.f32 %v1448, %v1449
    %v1451 = vrot.slane %v1450, 1
    %v1452 = vadd.f32 %v1450, %v1451
    %v1453 = vadd.f32 %v1433, %v1452
    %v1454 = vld [vmem:[#allocation2 + $0x68] sm:$0xff]
    %v1455 = vld [vmem:[#allocation2 + $0xe8] sm:$0xff]
    %v1456 = vadd.f32 %v1454, %v1455
    %v1457 = vrot.slane %v1456, 4
    %v1458 = vadd.f32 %v1456, %v1457
    %v1459 = vrot.slane %v1458, 2
    %v1460 = vadd.f32 %v1458, %v1459
    %v1461 = vrot.slane %v1460, 1
    %v1462 = vadd.f32 %v1460, %v1461
    %v1463 = vadd.f32 %v1443, %v1462
    %v1464 = vmul.f32 %v1454, %v1454
    %v1465 = vmul.f32 %v1455, %v1455
    %v1466 = vadd.f32 %v1464, %v1465
    %v1467 = vrot.slane %v1466, 4
    %v1468 = vadd.f32 %v1466, %v1467
    %v1469 = vrot.slane %v1468, 2
    %v1470 = vadd.f32 %v1468, %v1469
    %v1471 = vrot.slane %v1470, 1
    %v1472 = vadd.f32 %v1470, %v1471
    %v1473 = vadd.f32 %v1453, %v1472
    %v1474 = vld [vmem:[#allocation2 + $0x70] sm:$0xff]
    %v1475 = vld [vmem:[#allocation2 + $0xf0] sm:$0xff]
    %v1476 = vadd.f32 %v1474, %v1475
    %v1477 = vrot.slane %v1476, 4
    %v1478 = vadd.f32 %v1476, %v1477
    %v1479 = vrot.slane %v1478, 2
    %v1480 = vadd.f32 %v1478, %v1479
    %v1481 = vrot.slane %v1480, 1
    %v1482 = vadd.f32 %v1480, %v1481
    %v1483 = vadd.f32 %v1463, %v1482
    %v1484 = vmul.f32 %v1474, %v1474
    %v1485 = vmul.f32 %v1475, %v1475
    %v1486 = vadd.f32 %v1484, %v1485
    %v1487 = vrot.slane %v1486, 4
    %v1488 = vadd.f32 %v1486, %v1487
    %v1489 = vrot.slane %v1488, 2
    %v1490 = vadd.f32 %v1488, %v1489
    %v1491 = vrot.slane %v1490, 1
    %v1492 = vadd.f32 %v1490, %v1491
    %v1493 = vadd.f32 %v1473, %v1492
    %v1494 = vld [vmem:[#allocation2 + $0x78] sm:$0xff]
    %v1495 = vld [vmem:[#allocation2 + $0xf8] sm:$0xff]
    %v1496 = vadd.f32 %v1494, %v1495
    %v1497 = vrot.slane %v1496, 4
    %v1498 = vadd.f32 %v1496, %v1497
    %v1499 = vrot.slane %v1498, 2
    %v1500 = vadd.f32 %v1498, %v1499
    %v1501 = vrot.slane %v1500, 1
    %v1502 = vadd.f32 %v1500, %v1501
    %v1503 = vadd.f32 %v1483, %v1502
    %v1504 = vmul.f32 %v1494, %v1494
    %v1505 = vmul.f32 %v1495, %v1495
    %v1506 = vadd.f32 %v1504, %v1505
    %v1507 = vrot.slane %v1506, 4
    %v1508 = vadd.f32 %v1506, %v1507
    %v1509 = vrot.slane %v1508, 2
    %v1510 = vadd.f32 %v1508, %v1509
    %v1511 = vrot.slane %v1510, 1
    %v1512 = vadd.f32 %v1510, %v1511
    %v1513 = vadd.f32 %v1493, %v1512
    %v1514 = vmul.f32 %v1503, 0.03125
    %v1515 = vmul.f32 %v1513, 0.03125
    %v1516 = vmul.f32 %v1514, %v1514
    %v1517 = vsub.f32 %v1515, %v1516
    %v1518 = vld [vmem:[#allocation3] sm:$0x1]
    %v1519 = vadd.f32 %v1517, 1e-05
    %v1520 = vrsqrt.pop %v1519
    %v1521 = vmul.f32 %v1518, %v1520
    %v1522 = vld [vmem:[#allocation5] sm:$0x1]
    %v1523 = vmul.f32 %v1514, %v1521
    %v1524 = vsub.f32 %v1522, %v1523
    %v1526 = vlaneseq
    %v1527 = vshrl.u32 %v1526, 7
    %v1528 = vsub.s32 0, %v1527
    %v1529 = vrot.slane %v1521, %v1528
    %v1531 = vmul.f32 %v1194, %v1529
    %v1532 = vmul.f32 %v1195, %v1529
    %v1534 = vlaneseq
    %v1535 = vshrl.u32 %v1534, 7
    %v1536 = vsub.s32 0, %v1535
    %v1537 = vrot.slane %v1524, %v1536
    %v1539 = vadd.f32 %v1531, %v1537
    %v1540 = vadd.f32 %v1532, %v1537
    %v1541 = vmax.f32 %v1539, 0.0
    %v1542 = vmax.f32 %v1540, 0.0
    %v1543 = vpack.c.bf16 %v1542, %v1541
    %v1545 = vunpack.c.l.b16 %v1543
    %v1546 = vunpack.c.h.b16 %v1543
    %v1547 = vpack.c.b16 %v1545, %v1545
    %v1548 = vpack.c.b16 %v1546, %v1546
    %1551 = vst [vmem:[%s4] sm:$0xf] %v1547
    %1552 = vst [vmem:[%s4 + $0x40] sm:$0xf] %v1548
    %v1553 = vld [vmem:[#allocation2 + $0x8] sm:$0xff]
    %v1554 = vld [vmem:[#allocation2 + $0x88] sm:$0xff]
    %v1555 = vmul.f32 %v1553, %v1529
    %v1556 = vmul.f32 %v1554, %v1529
    %v1557 = vadd.f32 %v1555, %v1537
    %v1558 = vadd.f32 %v1556, %v1537
    %v1559 = vmax.f32 %v1557, 0.0
    %v1560 = vmax.f32 %v1558, 0.0
    %v1561 = vpack.c.bf16 %v1560, %v1559
    %v1563 = vunpack.c.l.b16 %v1561
    %v1564 = vunpack.c.h.b16 %v1561
    %v1565 = vpack.c.b16 %v1563, %v1563
    %v1566 = vpack.c.b16 %v1564, %v1564
    %1569 = vst [vmem:[%s4 + $0x4] sm:$0xf] %v1565
    %1570 = vst [vmem:[%s4 + $0x44] sm:$0xf] %v1566
    %v1571 = vld [vmem:[#allocation2 + $0x10] sm:$0xff]
    %v1572 = vld [vmem:[#allocation2 + $0x90] sm:$0xff]
    %v1573 = vmul.f32 %v1571, %v1529
    %v1574 = vmul.f32 %v1572, %v1529
    %v1575 = vadd.f32 %v1573, %v1537
    %v1576 = vadd.f32 %v1574, %v1537
    %v1577 = vmax.f32 %v1575, 0.0
    %v1578 = vmax.f32 %v1576, 0.0
    %v1579 = vpack.c.bf16 %v1578, %v1577
    %v1581 = vunpack.c.l.b16 %v1579
    %v1582 = vunpack.c.h.b16 %v1579
    %v1583 = vpack.c.b16 %v1581, %v1581
    %v1584 = vpack.c.b16 %v1582, %v1582
    %1587 = vst [vmem:[%s4 + $0x8] sm:$0xf] %v1583
    %1588 = vst [vmem:[%s4 + $0x48] sm:$0xf] %v1584
    %v1589 = vld [vmem:[#allocation2 + $0x18] sm:$0xff]
    %v1590 = vld [vmem:[#allocation2 + $0x98] sm:$0xff]
    %v1591 = vmul.f32 %v1589, %v1529
    %v1592 = vmul.f32 %v1590, %v1529
    %v1593 = vadd.f32 %v1591, %v1537
    %v1594 = vadd.f32 %v1592, %v1537
    %v1595 = vmax.f32 %v1593, 0.0
    %v1596 = vmax.f32 %v1594, 0.0
    %v1597 = vpack.c.bf16 %v1596, %v1595
    %v1599 = vunpack.c.l.b16 %v1597
    %v1600 = vunpack.c.h.b16 %v1597
    %v1601 = vpack.c.b16 %v1599, %v1599
    %v1602 = vpack.c.b16 %v1600, %v1600
    %1605 = vst [vmem:[%s4 + $0xc] sm:$0xf] %v1601
    %1606 = vst [vmem:[%s4 + $0x4c] sm:$0xf] %v1602
    %v1607 = vld [vmem:[#allocation2 + $0x20] sm:$0xff]
    %v1608 = vld [vmem:[#allocation2 + $0xa0] sm:$0xff]
    %v1609 = vmul.f32 %v1607, %v1529
    %v1610 = vmul.f32 %v1608, %v1529
    %v1611 = vadd.f32 %v1609, %v1537
    %v1612 = vadd.f32 %v1610, %v1537
    %v1613 = vmax.f32 %v1611, 0.0
    %v1614 = vmax.f32 %v1612, 0.0
    %v1615 = vpack.c.bf16 %v1614, %v1613
    %v1617 = vunpack.c.l.b16 %v1615
    %v1618 = vunpack.c.h.b16 %v1615
    %v1619 = vpack.c.b16 %v1617, %v1617
    %v1620 = vpack.c.b16 %v1618, %v1618
    %1623 = vst [vmem:[%s4 + $0x10] sm:$0xf] %v1619
    %1624 = vst [vmem:[%s4 + $0x50] sm:$0xf] %v1620
    %v1625 = vld [vmem:[#allocation2 + $0x28] sm:$0xff]
    %v1626 = vld [vmem:[#allocation2 + $0xa8] sm:$0xff]
    %v1627 = vmul.f32 %v1625, %v1529
    %v1628 = vmul.f32 %v1626, %v1529
    %v1629 = vadd.f32 %v1627, %v1537
    %v1630 = vadd.f32 %v1628, %v1537
    %v1631 = vmax.f32 %v1629, 0.0
    %v1632 = vmax.f32 %v1630, 0.0
    %v1633 = vpack.c.bf16 %v1632, %v1631
    %v1635 = vunpack.c.l.b16 %v1633
    %v1636 = vunpack.c.h.b16 %v1633
    %v1637 = vpack.c.b16 %v1635, %v1635
    %v1638 = vpack.c.b16 %v1636, %v1636
    %1641 = vst [vmem:[%s4 + $0x14] sm:$0xf] %v1637
    %1642 = vst [vmem:[%s4 + $0x54] sm:$0xf] %v1638
    %v1643 = vld [vmem:[#allocation2 + $0x30] sm:$0xff]
    %v1644 = vld [vmem:[#allocation2 + $0xb0] sm:$0xff]
    %v1645 = vmul.f32 %v1643, %v1529
    %v1646 = vmul.f32 %v1644, %v1529
    %v1647 = vadd.f32 %v1645, %v1537
    %v1648 = vadd.f32 %v1646, %v1537
    %v1649 = vmax.f32 %v1647, 0.0
    %v1650 = vmax.f32 %v1648, 0.0
    %v1651 = vpack.c.bf16 %v1650, %v1649
    %v1653 = vunpack.c.l.b16 %v1651
    %v1654 = vunpack.c.h.b16 %v1651
    %v1655 = vpack.c.b16 %v1653, %v1653
    %v1656 = vpack.c.b16 %v1654, %v1654
    %1659 = vst [vmem:[%s4 + $0x18] sm:$0xf] %v1655
    %1660 = vst [vmem:[%s4 + $0x58] sm:$0xf] %v1656
    %v1661 = vld [vmem:[#allocation2 + $0x38] sm:$0xff]
    %v1662 = vld [vmem:[#allocation2 + $0xb8] sm:$0xff]
    %v1663 = vmul.f32 %v1661, %v1529
    %v1664 = vmul.f32 %v1662, %v1529
    %v1665 = vadd.f32 %v1663, %v1537
    %v1666 = vadd.f32 %v1664, %v1537
    %v1667 = vmax.f32 %v1665, 0.0
    %v1668 = vmax.f32 %v1666, 0.0
    %v1669 = vpack.c.bf16 %v1668, %v1667
    %v1671 = vunpack.c.l.b16 %v1669
    %v1672 = vunpack.c.h.b16 %v1669
    %v1673 = vpack.c.b16 %v1671, %v1671
    %v1674 = vpack.c.b16 %v1672, %v1672
    %1677 = vst [vmem:[%s4 + $0x1c] sm:$0xf] %v1673
    %1678 = vst [vmem:[%s4 + $0x5c] sm:$0xf] %v1674
    %v1679 = vld [vmem:[#allocation2 + $0x40] sm:$0xff]
    %v1680 = vld [vmem:[#allocation2 + $0xc0] sm:$0xff]
    %v1681 = vmul.f32 %v1679, %v1529
    %v1682 = vmul.f32 %v1680, %v1529
    %v1683 = vadd.f32 %v1681, %v1537
    %v1684 = vadd.f32 %v1682, %v1537
    %v1685 = vmax.f32 %v1683, 0.0
    %v1686 = vmax.f32 %v1684, 0.0
    %v1687 = vpack.c.bf16 %v1686, %v1685
    %v1689 = vunpack.c.l.b16 %v1687
    %v1690 = vunpack.c.h.b16 %v1687
    %v1691 = vpack.c.b16 %v1689, %v1689
    %v1692 = vpack.c.b16 %v1690, %v1690
    %1695 = vst [vmem:[%s4 + $0x20] sm:$0xf] %v1691
    %1696 = vst [vmem:[%s4 + $0x60] sm:$0xf] %v1692
    %v1697 = vld [vmem:[#allocation2 + $0x48] sm:$0xff]
    %v1698 = vld [vmem:[#allocation2 + $0xc8] sm:$0xff]
    %v1699 = vmul.f32 %v1697, %v1529
    %v1700 = vmul.f32 %v1698, %v1529
    %v1701 = vadd.f32 %v1699, %v1537
    %v1702 = vadd.f32 %v1700, %v1537
    %v1703 = vmax.f32 %v1701, 0.0
    %v1704 = vmax.f32 %v1702, 0.0
    %v1705 = vpack.c.bf16 %v1704, %v1703
    %v1707 = vunpack.c.l.b16 %v1705
    %v1708 = vunpack.c.h.b16 %v1705
    %v1709 = vpack.c.b16 %v1707, %v1707
    %v1710 = vpack.c.b16 %v1708, %v1708
    %1713 = vst [vmem:[%s4 + $0x24] sm:$0xf] %v1709
    %1714 = vst [vmem:[%s4 + $0x64] sm:$0xf] %v1710
    %v1715 = vld [vmem:[#allocation2 + $0x50] sm:$0xff]
    %v1716 = vld [vmem:[#allocation2 + $0xd0] sm:$0xff]
    %v1717 = vmul.f32 %v1715, %v1529
    %v1718 = vmul.f32 %v1716, %v1529
    %v1719 = vadd.f32 %v1717, %v1537
    %v1720 = vadd.f32 %v1718, %v1537
    %v1721 = vmax.f32 %v1719, 0.0
    %v1722 = vmax.f32 %v1720, 0.0
    %v1723 = vpack.c.bf16 %v1722, %v1721
    %v1725 = vunpack.c.l.b16 %v1723
    %v1726 = vunpack.c.h.b16 %v1723
    %v1727 = vpack.c.b16 %v1725, %v1725
    %v1728 = vpack.c.b16 %v1726, %v1726
    %1731 = vst [vmem:[%s4 + $0x28] sm:$0xf] %v1727
    %1732 = vst [vmem:[%s4 + $0x68] sm:$0xf] %v1728
    %v1733 = vld [vmem:[#allocation2 + $0x58] sm:$0xff]
    %v1734 = vld [vmem:[#allocation2 + $0xd8] sm:$0xff]
    %v1735 = vmul.f32 %v1733, %v1529
    %v1736 = vmul.f32 %v1734, %v1529
    %v1737 = vadd.f32 %v1735, %v1537
    %v1738 = vadd.f32 %v1736, %v1537
    %v1739 = vmax.f32 %v1737, 0.0
    %v1740 = vmax.f32 %v1738, 0.0
    %v1741 = vpack.c.bf16 %v1740, %v1739
    %v1743 = vunpack.c.l.b16 %v1741
    %v1744 = vunpack.c.h.b16 %v1741
    %v1745 = vpack.c.b16 %v1743, %v1743
    %v1746 = vpack.c.b16 %v1744, %v1744
    %1749 = vst [vmem:[%s4 + $0x2c] sm:$0xf] %v1745
    %1750 = vst [vmem:[%s4 + $0x6c] sm:$0xf] %v1746
    %v1751 = vld [vmem:[#allocation2 + $0x60] sm:$0xff]
    %v1752 = vld [vmem:[#allocation2 + $0xe0] sm:$0xff]
    %v1753 = vmul.f32 %v1751, %v1529
    %v1754 = vmul.f32 %v1752, %v1529
    %v1755 = vadd.f32 %v1753, %v1537
    %v1756 = vadd.f32 %v1754, %v1537
    %v1757 = vmax.f32 %v1755, 0.0
    %v1758 = vmax.f32 %v1756, 0.0
    %v1759 = vpack.c.bf16 %v1758, %v1757
    %v1761 = vunpack.c.l.b16 %v1759
    %v1762 = vunpack.c.h.b16 %v1759
    %v1763 = vpack.c.b16 %v1761, %v1761
    %v1764 = vpack.c.b16 %v1762, %v1762
    %1767 = vst [vmem:[%s4 + $0x30] sm:$0xf] %v1763
    %1768 = vst [vmem:[%s4 + $0x70] sm:$0xf] %v1764
    %v1769 = vld [vmem:[#allocation2 + $0x68] sm:$0xff]
    %v1770 = vld [vmem:[#allocation2 + $0xe8] sm:$0xff]
    %v1771 = vmul.f32 %v1769, %v1529
    %v1772 = vmul.f32 %v1770, %v1529
    %v1773 = vadd.f32 %v1771, %v1537
    %v1774 = vadd.f32 %v1772, %v1537
    %v1775 = vmax.f32 %v1773, 0.0
    %v1776 = vmax.f32 %v1774, 0.0
    %v1777 = vpack.c.bf16 %v1776, %v1775
    %v1779 = vunpack.c.l.b16 %v1777
    %v1780 = vunpack.c.h.b16 %v1777
    %v1781 = vpack.c.b16 %v1779, %v1779
    %v1782 = vpack.c.b16 %v1780, %v1780
    %1785 = vst [vmem:[%s4 + $0x34] sm:$0xf] %v1781
    %1786 = vst [vmem:[%s4 + $0x74] sm:$0xf] %v1782
    %v1787 = vld [vmem:[#allocation2 + $0x70] sm:$0xff]
    %v1788 = vld [vmem:[#allocation2 + $0xf0] sm:$0xff]
    %v1789 = vmul.f32 %v1787, %v1529
    %v1790 = vmul.f32 %v1788, %v1529
    %v1791 = vadd.f32 %v1789, %v1537
    %v1792 = vadd.f32 %v1790, %v1537
    %v1793 = vmax.f32 %v1791, 0.0
    %v1794 = vmax.f32 %v1792, 0.0
    %v1795 = vpack.c.bf16 %v1794, %v1793
    %v1797 = vunpack.c.l.b16 %v1795
    %v1798 = vunpack.c.h.b16 %v1795
    %v1799 = vpack.c.b16 %v1797, %v1797
    %v1800 = vpack.c.b16 %v1798, %v1798
    %1803 = vst [vmem:[%s4 + $0x38] sm:$0xf] %v1799
    %1804 = vst [vmem:[%s4 + $0x78] sm:$0xf] %v1800
    %v1805 = vld [vmem:[#allocation2 + $0x78] sm:$0xff]
    %v1806 = vld [vmem:[#allocation2 + $0xf8] sm:$0xff]
    %v1807 = vmul.f32 %v1805, %v1529
    %v1808 = vmul.f32 %v1806, %v1529
    %v1809 = vadd.f32 %v1807, %v1537
    %v1810 = vadd.f32 %v1808, %v1537
    %v1811 = vmax.f32 %v1809, 0.0
    %v1812 = vmax.f32 %v1810, 0.0
    %v1813 = vpack.c.bf16 %v1812, %v1811
    %v1815 = vunpack.c.l.b16 %v1813
    %v1816 = vunpack.c.h.b16 %v1813
    %v1817 = vpack.c.b16 %v1815, %v1815
    %v1818 = vpack.c.b16 %v1816, %v1816
    %1821 = vst [vmem:[%s4 + $0x3c] sm:$0xf] %v1817
    %1822 = vst [vmem:[%s4 + $0x7c] sm:$0xf] %v1818
    // Predicated region
    $region26: #{forward.4} parent=1 // pred_check
      _
    $region27: #{forward.4} parent=1 // pred_check_branch
      %1824 = sbr.rel (0) target = $region29
    $region28: #{forward.4} parent=1 // pred_region
      _
    $region29: #{forward.4} parent=1 // pred_fallthru
      _
    // Predicated region
    $region30: #{forward.4} parent=1 // pred_check
      _
    $region31: #{forward.4} parent=1 // pred_check_branch
      %1826 = sbr.rel (0) target = $region33
    $region32: #{forward.4} parent=1 // pred_region
      _
    $region33: #{forward.4} parent=1 // pred_fallthru
      _
    %1827 = vsyncpa [#allocation4], 1
    %1828 = vsyncpa [#allocation6], 1

// kernel: forward.5
$region0: #{forward.5}
  #allocation0 [shape = 'u32[]', space=smem, size = 0x4, offset = 0x4, fixed_abs, tag = 'smem constant byte address 0x4 - core index']
  #allocation1 [shape = 'u32[144,128]{1,0:T(1,128)}', space=vmem, size = 0x12000, scoped, tag = 'internal scratch']
  #allocation2 [shape = 'f32[32,512]{1,0:T(8,128)}', space=vmem, size = 0x10000, scoped, tag = 'scratch operand']
  %s0 = inlined_call_operand.vmem [shape: bf16[32,1152], index: 0, kind: input, shape index: {}]
  %s1 = inlined_call_operand.vmem [shape: bf16[1152,512], index: 1, kind: input, shape index: {}]
  %s2 = inlined_call_operand.vmem [shape: f32[1,128], index: 2, kind: input, shape index: {}]
  %s3 = inlined_call_operand.vmem [shape: f32[1,128], index: 3, kind: input, shape index: {}]
  %s4 = inlined_call_operand.vmem [shape: bf16[32,512], index: 4, kind: output, shape index: {}]
  %s5 = sld [smem:[#allocation0]]
  $region26: #{forward.5} parent=0
    _
  %s7 = ssub.s32 1, %s5
  %s8 = scalar_select 0, %s7, %s5
  // Predicated region
  $region2: #{forward.5} parent=0 // pred_check
    _
  $region3: #{forward.5} parent=0 // pred_check_branch
    %10 = sbr.rel (0) target = $region5
  $region4: #{forward.5} parent=0 // pred_region
    _
  $region5: #{forward.5} parent=0 // pred_fallthru
    _
  // Predicated region
  $region6: #{forward.5} parent=0 // pred_check
    _
  $region7: #{forward.5} parent=0 // pred_check_branch
    %12 = sbr.rel (0) target = $region9
  $region8: #{forward.5} parent=0 // pred_region
    _
  $region9: #{forward.5} parent=0 // pred_fallthru
    _
  // Predicated region
  $region10: #{forward.5} parent=0 // pred_check
    _
  $region11: #{forward.5} parent=0 // pred_check_branch
    %14 = sbr.rel (0) target = $region13
  $region12: #{forward.5} parent=0 // pred_region
    _
  $region13: #{forward.5} parent=0 // pred_fallthru
    _
  // Predicated region
  $region14: #{forward.5} parent=0 // pred_check
    _
  $region15: #{forward.5} parent=0 // pred_check_branch
    %16 = sbr.rel (0) target = $region17
  $region16: #{forward.5} parent=0 // pred_region
    _
  $region17: #{forward.5} parent=0 // pred_fallthru
    _
  %v18 = vld [vmem:[%s0] sm:$0xff]
  %v19 = vld [vmem:[%s0 + $0x8] sm:$0xff]
  %v20 = vld [vmem:[%s0 + $0x10] sm:$0xff]
  %v21 = vld [vmem:[%s0 + $0x18] sm:$0xff]
  %v22 = vld [vmem:[%s0 + $0x20] sm:$0xf]
  %v23 = vld [vmem:[%s0 + $0x24] sm:$0xff]
  %v24 = vld [vmem:[%s0 + $0x2c] sm:$0xff]
  %v25 = vld [vmem:[%s0 + $0x34] sm:$0xff]
  %v26 = vld [vmem:[%s0 + $0x3c] sm:$0xff]
  %v27 = vld [vmem:[%s0 + $0x44] sm:$0xf]
  %v28 = vld [vmem:[%s0 + $0x48] sm:$0xff]
  %v29 = vld [vmem:[%s0 + $0x50] sm:$0xff]
  %v30 = vld [vmem:[%s0 + $0x58] sm:$0xff]
  %v31 = vld [vmem:[%s0 + $0x60] sm:$0xff]
  %v32 = vld [vmem:[%s0 + $0x68] sm:$0xf]
  %v33 = vld [vmem:[%s0 + $0x6c] sm:$0xff]
  %v34 = vld [vmem:[%s0 + $0x74] sm:$0xff]
  %v35 = vld [vmem:[%s0 + $0x7c] sm:$0xff]
  %v36 = vld [vmem:[%s0 + $0x84] sm:$0xff]
  %v37 = vld [vmem:[%s0 + $0x8c] sm:$0xf]
  %v38 = vld [vmem:[%s1] sm:$0xff]
  %v39 = vld [vmem:[%s1 + $0x8] sm:$0xff]
  %v40 = vld [vmem:[%s1 + $0x10] sm:$0xff]
  %v41 = vld [vmem:[%s1 + $0x18] sm:$0xff]
  %v42 = vld [vmem:[%s1 + $0x20] sm:$0xff]
  %v43 = vld [vmem:[%s1 + $0x28] sm:$0xff]
  %v44 = vld [vmem:[%s1 + $0x30] sm:$0xff]
  %v45 = vld [vmem:[%s1 + $0x38] sm:$0xff]
  %v46 = vld [vmem:[%s1 + $0x40] sm:$0xff]
  %v47 = vld [vmem:[%s1 + $0x48] sm:$0xff]
  %v48 = vld [vmem:[%s1 + $0x50] sm:$0xff]
  %v49 = vld [vmem:[%s1 + $0x58] sm:$0xff]
  %v50 = vld [vmem:[%s1 + $0x60] sm:$0xff]
  %v51 = vld [vmem:[%s1 + $0x68] sm:$0xff]
  %v52 = vld [vmem:[%s1 + $0x70] sm:$0xff]
  %v53 = vld [vmem:[%s1 + $0x78] sm:$0xff]
  %v54 = vld [vmem:[%s1 + $0x80] sm:$0xff]
  %v55 = vld [vmem:[%s1 + $0x88] sm:$0xff]
  %v56 = vld [vmem:[%s1 + $0x90] sm:$0xff]
  %v57 = vld [vmem:[%s1 + $0x98] sm:$0xff]
  %v58 = vld [vmem:[%s1 + $0xa0] sm:$0xff]
  %v59 = vld [vmem:[%s1 + $0xa8] sm:$0xff]
  %v60 = vld [vmem:[%s1 + $0xb0] sm:$0xff]
  %v61 = vld [vmem:[%s1 + $0xb8] sm:$0xff]
  %v62 = vld [vmem:[%s1 + $0xc0] sm:$0xff]
  %v63 = vld [vmem:[%s1 + $0xc8] sm:$0xff]
  %v64 = vld [vmem:[%s1 + $0xd0] sm:$0xff]
  %v65 = vld [vmem:[%s1 + $0xd8] sm:$0xff]
  %v66 = vld [vmem:[%s1 + $0xe0] sm:$0xff]
  %v67 = vld [vmem:[%s1 + $0xe8] sm:$0xff]
  %v68 = vld [vmem:[%s1 + $0xf0] sm:$0xff]
  %v69 = vld [vmem:[%s1 + $0xf8] sm:$0xff]
  %v70 = vld [vmem:[%s1 + $0x100] sm:$0xff]
  %v71 = vld [vmem:[%s1 + $0x108] sm:$0xff]
  %v72 = vld [vmem:[%s1 + $0x110] sm:$0xff]
  %v73 = vld [vmem:[%s1 + $0x118] sm:$0xff]
  %v74 = vld [vmem:[%s1 + $0x120] sm:$0xff]
  %v75 = vld [vmem:[%s1 + $0x128] sm:$0xff]
  %v76 = vld [vmem:[%s1 + $0x130] sm:$0xff]
  %v77 = vld [vmem:[%s1 + $0x138] sm:$0xff]
  %v78 = vld [vmem:[%s1 + $0x140] sm:$0xff]
  %v79 = vld [vmem:[%s1 + $0x148] sm:$0xff]
  %v80 = vld [vmem:[%s1 + $0x150] sm:$0xff]
  %v81 = vld [vmem:[%s1 + $0x158] sm:$0xff]
  %v82 = vld [vmem:[%s1 + $0x160] sm:$0xff]
  %v83 = vld [vmem:[%s1 + $0x168] sm:$0xff]
  %v84 = vld [vmem:[%s1 + $0x170] sm:$0xff]
  %v85 = vld [vmem:[%s1 + $0x178] sm:$0xff]
  %v86 = vld [vmem:[%s1 + $0x180] sm:$0xff]
  %v87 = vld [vmem:[%s1 + $0x188] sm:$0xff]
  %v88 = vld [vmem:[%s1 + $0x190] sm:$0xff]
  %v89 = vld [vmem:[%s1 + $0x198] sm:$0xff]
  %v90 = vld [vmem:[%s1 + $0x1a0] sm:$0xff]
  %v91 = vld [vmem:[%s1 + $0x1a8] sm:$0xff]
  %v92 = vld [vmem:[%s1 + $0x1b0] sm:$0xff]
  %v93 = vld [vmem:[%s1 + $0x1b8] sm:$0xff]
  %v94 = vld [vmem:[%s1 + $0x1c0] sm:$0xff]
  %v95 = vld [vmem:[%s1 + $0x1c8] sm:$0xff]
  %v96 = vld [vmem:[%s1 + $0x1d0] sm:$0xff]
  %v97 = vld [vmem:[%s1 + $0x1d8] sm:$0xff]
  %v98 = vld [vmem:[%s1 + $0x1e0] sm:$0xff]
  %v99 = vld [vmem:[%s1 + $0x1e8] sm:$0xff]
  %v100 = vld [vmem:[%s1 + $0x1f0] sm:$0xff]
  %v101 = vld [vmem:[%s1 + $0x1f8] sm:$0xff]
  %v102 = vld [vmem:[%s1 + $0x200] sm:$0xff]
  %v103 = vld [vmem:[%s1 + $0x208] sm:$0xff]
  %v104 = vld [vmem:[%s1 + $0x210] sm:$0xff]
  %v105 = vld [vmem:[%s1 + $0x218] sm:$0xff]
  %v106 = vld [vmem:[%s1 + $0x220] sm:$0xff]
  %v107 = vld [vmem:[%s1 + $0x228] sm:$0xff]
  %v108 = vld [vmem:[%s1 + $0x230] sm:$0xff]
  %v109 = vld [vmem:[%s1 + $0x238] sm:$0xff]
  %v110 = vld [vmem:[%s1 + $0x240] sm:$0xff]
  %v111 = vld [vmem:[%s1 + $0x248] sm:$0xff]
  %v112 = vld [vmem:[%s1 + $0x250] sm:$0xff]
  %v113 = vld [vmem:[%s1 + $0x258] sm:$0xff]
  %v114 = vld [vmem:[%s1 + $0x260] sm:$0xff]
  %v115 = vld [vmem:[%s1 + $0x268] sm:$0xff]
  %v116 = vld [vmem:[%s1 + $0x270] sm:$0xff]
  %v117 = vld [vmem:[%s1 + $0x278] sm:$0xff]
  %v118 = vld [vmem:[%s1 + $0x280] sm:$0xff]
  %v119 = vld [vmem:[%s1 + $0x288] sm:$0xff]
  %v120 = vld [vmem:[%s1 + $0x290] sm:$0xff]
  %v121 = vld [vmem:[%s1 + $0x298] sm:$0xff]
  %v122 = vld [vmem:[%s1 + $0x2a0] sm:$0xff]
  %v123 = vld [vmem:[%s1 + $0x2a8] sm:$0xff]
  %v124 = vld [vmem:[%s1 + $0x2b0] sm:$0xff]
  %v125 = vld [vmem:[%s1 + $0x2b8] sm:$0xff]
  %v126 = vld [vmem:[%s1 + $0x2c0] sm:$0xff]
  %v127 = vld [vmem:[%s1 + $0x2c8] sm:$0xff]
  %v128 = vld [vmem:[%s1 + $0x2d0] sm:$0xff]
  %v129 = vld [vmem:[%s1 + $0x2d8] sm:$0xff]
  %v130 = vld [vmem:[%s1 + $0x2e0] sm:$0xff]
  %v131 = vld [vmem:[%s1 + $0x2e8] sm:$0xff]
  %v132 = vld [vmem:[%s1 + $0x2f0] sm:$0xff]
  %v133 = vld [vmem:[%s1 + $0x2f8] sm:$0xff]
  %v134 = vld [vmem:[%s1 + $0x300] sm:$0xff]
  %v135 = vld [vmem:[%s1 + $0x308] sm:$0xff]
  %v136 = vld [vmem:[%s1 + $0x310] sm:$0xff]
  %v137 = vld [vmem:[%s1 + $0x318] sm:$0xff]
  %v138 = vld [vmem:[%s1 + $0x320] sm:$0xff]
  %v139 = vld [vmem:[%s1 + $0x328] sm:$0xff]
  %v140 = vld [vmem:[%s1 + $0x330] sm:$0xff]
  %v141 = vld [vmem:[%s1 + $0x338] sm:$0xff]
  %v142 = vld [vmem:[%s1 + $0x340] sm:$0xff]
  %v143 = vld [vmem:[%s1 + $0x348] sm:$0xff]
  %v144 = vld [vmem:[%s1 + $0x350] sm:$0xff]
  %v145 = vld [vmem:[%s1 + $0x358] sm:$0xff]
  %v146 = vld [vmem:[%s1 + $0x360] sm:$0xff]
  %v147 = vld [vmem:[%s1 + $0x368] sm:$0xff]
  %v148 = vld [vmem:[%s1 + $0x370] sm:$0xff]
  %v149 = vld [vmem:[%s1 + $0x378] sm:$0xff]
  %v150 = vld [vmem:[%s1 + $0x380] sm:$0xff]
  %v151 = vld [vmem:[%s1 + $0x388] sm:$0xff]
  %v152 = vld [vmem:[%s1 + $0x390] sm:$0xff]
  %v153 = vld [vmem:[%s1 + $0x398] sm:$0xff]
  %v154 = vld [vmem:[%s1 + $0x3a0] sm:$0xff]
  %v155 = vld [vmem:[%s1 + $0x3a8] sm:$0xff]
  %v156 = vld [vmem:[%s1 + $0x3b0] sm:$0xff]
  %v157 = vld [vmem:[%s1 + $0x3b8] sm:$0xff]
  %v158 = vld [vmem:[%s1 + $0x3c0] sm:$0xff]
  %v159 = vld [vmem:[%s1 + $0x3c8] sm:$0xff]
  %v160 = vld [vmem:[%s1 + $0x3d0] sm:$0xff]
  %v161 = vld [vmem:[%s1 + $0x3d8] sm:$0xff]
  %v162 = vld [vmem:[%s1 + $0x3e0] sm:$0xff]
  %v163 = vld [vmem:[%s1 + $0x3e8] sm:$0xff]
  %v164 = vld [vmem:[%s1 + $0x3f0] sm:$0xff]
  %v165 = vld [vmem:[%s1 + $0x3f8] sm:$0xff]
  %v166 = vld [vmem:[%s1 + $0x400] sm:$0xff]
  %v167 = vld [vmem:[%s1 + $0x408] sm:$0xff]
  %v168 = vld [vmem:[%s1 + $0x410] sm:$0xff]
  %v169 = vld [vmem:[%s1 + $0x418] sm:$0xff]
  %v170 = vld [vmem:[%s1 + $0x420] sm:$0xff]
  %v171 = vld [vmem:[%s1 + $0x428] sm:$0xff]
  %v172 = vld [vmem:[%s1 + $0x430] sm:$0xff]
  %v173 = vld [vmem:[%s1 + $0x438] sm:$0xff]
  %v174 = vld [vmem:[%s1 + $0x440] sm:$0xff]
  %v175 = vld [vmem:[%s1 + $0x448] sm:$0xff]
  %v176 = vld [vmem:[%s1 + $0x450] sm:$0xff]
  %v177 = vld [vmem:[%s1 + $0x458] sm:$0xff]
  %v178 = vld [vmem:[%s1 + $0x460] sm:$0xff]
  %v179 = vld [vmem:[%s1 + $0x468] sm:$0xff]
  %v180 = vld [vmem:[%s1 + $0x470] sm:$0xff]
  %v181 = vld [vmem:[%s1 + $0x478] sm:$0xff]
  %v182 = vld [vmem:[%s1 + $0x480] sm:$0xff]
  %v183 = vld [vmem:[%s1 + $0x488] sm:$0xff]
  %v184 = vld [vmem:[%s1 + $0x490] sm:$0xff]
  %v185 = vld [vmem:[%s1 + $0x498] sm:$0xff]
  %v186 = vld [vmem:[%s1 + $0x4a0] sm:$0xff]
  %v187 = vld [vmem:[%s1 + $0x4a8] sm:$0xff]
  %v188 = vld [vmem:[%s1 + $0x4b0] sm:$0xff]
  %v189 = vld [vmem:[%s1 + $0x4b8] sm:$0xff]
  %v190 = vld [vmem:[%s1 + $0x4c0] sm:$0xff]
  %v191 = vld [vmem:[%s1 + $0x4c8] sm:$0xff]
  %v192 = vld [vmem:[%s1 + $0x4d0] sm:$0xff]
  %v193 = vld [vmem:[%s1 + $0x4d8] sm:$0xff]
  %v194 = vld [vmem:[%s1 + $0x4e0] sm:$0xff]
  %v195 = vld [vmem:[%s1 + $0x4e8] sm:$0xff]
  %v196 = vld [vmem:[%s1 + $0x4f0] sm:$0xff]
  %v197 = vld [vmem:[%s1 + $0x4f8] sm:$0xff]
  %v198 = vld [vmem:[%s1 + $0x500] sm:$0xff]
  %v199 = vld [vmem:[%s1 + $0x508] sm:$0xff]
  %v200 = vld [vmem:[%s1 + $0x510] sm:$0xff]
  %v201 = vld [vmem:[%s1 + $0x518] sm:$0xff]
  %v202 = vld [vmem:[%s1 + $0x520] sm:$0xff]
  %v203 = vld [vmem:[%s1 + $0x528] sm:$0xff]
  %v204 = vld [vmem:[%s1 + $0x530] sm:$0xff]
  %v205 = vld [vmem:[%s1 + $0x538] sm:$0xff]
  %v206 = vld [vmem:[%s1 + $0x540] sm:$0xff]
  %v207 = vld [vmem:[%s1 + $0x548] sm:$0xff]
  %v208 = vld [vmem:[%s1 + $0x550] sm:$0xff]
  %v209 = vld [vmem:[%s1 + $0x558] sm:$0xff]
  %v210 = vld [vmem:[%s1 + $0x560] sm:$0xff]
  %v211 = vld [vmem:[%s1 + $0x568] sm:$0xff]
  %v212 = vld [vmem:[%s1 + $0x570] sm:$0xff]
  %v213 = vld [vmem:[%s1 + $0x578] sm:$0xff]
  %v214 = vld [vmem:[%s1 + $0x580] sm:$0xff]
  %v215 = vld [vmem:[%s1 + $0x588] sm:$0xff]
  %v216 = vld [vmem:[%s1 + $0x590] sm:$0xff]
  %v217 = vld [vmem:[%s1 + $0x598] sm:$0xff]
  %v218 = vld [vmem:[%s1 + $0x5a0] sm:$0xff]
  %v219 = vld [vmem:[%s1 + $0x5a8] sm:$0xff]
  %v220 = vld [vmem:[%s1 + $0x5b0] sm:$0xff]
  %v221 = vld [vmem:[%s1 + $0x5b8] sm:$0xff]
  %v222 = vld [vmem:[%s1 + $0x5c0] sm:$0xff]
  %v223 = vld [vmem:[%s1 + $0x5c8] sm:$0xff]
  %v224 = vld [vmem:[%s1 + $0x5d0] sm:$0xff]
  %v225 = vld [vmem:[%s1 + $0x5d8] sm:$0xff]
  %v226 = vld [vmem:[%s1 + $0x5e0] sm:$0xff]
  %v227 = vld [vmem:[%s1 + $0x5e8] sm:$0xff]
  %v228 = vld [vmem:[%s1 + $0x5f0] sm:$0xff]
  %v229 = vld [vmem:[%s1 + $0x5f8] sm:$0xff]
  %v230 = vld [vmem:[%s1 + $0x600] sm:$0xff]
  %v231 = vld [vmem:[%s1 + $0x608] sm:$0xff]
  %v232 = vld [vmem:[%s1 + $0x610] sm:$0xff]
  %v233 = vld [vmem:[%s1 + $0x618] sm:$0xff]
  %v234 = vld [vmem:[%s1 + $0x620] sm:$0xff]
  %v235 = vld [vmem:[%s1 + $0x628] sm:$0xff]
  %v236 = vld [vmem:[%s1 + $0x630] sm:$0xff]
  %v237 = vld [vmem:[%s1 + $0x638] sm:$0xff]
  %v238 = vld [vmem:[%s1 + $0x640] sm:$0xff]
  %v239 = vld [vmem:[%s1 + $0x648] sm:$0xff]
  %v240 = vld [vmem:[%s1 + $0x650] sm:$0xff]
  %v241 = vld [vmem:[%s1 + $0x658] sm:$0xff]
  %v242 = vld [vmem:[%s1 + $0x660] sm:$0xff]
  %v243 = vld [vmem:[%s1 + $0x668] sm:$0xff]
  %v244 = vld [vmem:[%s1 + $0x670] sm:$0xff]
  %v245 = vld [vmem:[%s1 + $0x678] sm:$0xff]
  %v246 = vld [vmem:[%s1 + $0x680] sm:$0xff]
  %v247 = vld [vmem:[%s1 + $0x688] sm:$0xff]
  %v248 = vld [vmem:[%s1 + $0x690] sm:$0xff]
  %v249 = vld [vmem:[%s1 + $0x698] sm:$0xff]
  %v250 = vld [vmem:[%s1 + $0x6a0] sm:$0xff]
  %v251 = vld [vmem:[%s1 + $0x6a8] sm:$0xff]
  %v252 = vld [vmem:[%s1 + $0x6b0] sm:$0xff]
  %v253 = vld [vmem:[%s1 + $0x6b8] sm:$0xff]
  %v254 = vld [vmem:[%s1 + $0x6c0] sm:$0xff]
  %v255 = vld [vmem:[%s1 + $0x6c8] sm:$0xff]
  %v256 = vld [vmem:[%s1 + $0x6d0] sm:$0xff]
  %v257 = vld [vmem:[%s1 + $0x6d8] sm:$0xff]
  %v258 = vld [vmem:[%s1 + $0x6e0] sm:$0xff]
  %v259 = vld [vmem:[%s1 + $0x6e8] sm:$0xff]
  %v260 = vld [vmem:[%s1 + $0x6f0] sm:$0xff]
  %v261 = vld [vmem:[%s1 + $0x6f8] sm:$0xff]
  %v262 = vld [vmem:[%s1 + $0x700] sm:$0xff]
  %v263 = vld [vmem:[%s1 + $0x708] sm:$0xff]
  %v264 = vld [vmem:[%s1 + $0x710] sm:$0xff]
  %v265 = vld [vmem:[%s1 + $0x718] sm:$0xff]
  %v266 = vld [vmem:[%s1 + $0x720] sm:$0xff]
  %v267 = vld [vmem:[%s1 + $0x728] sm:$0xff]
  %v268 = vld [vmem:[%s1 + $0x730] sm:$0xff]
  %v269 = vld [vmem:[%s1 + $0x738] sm:$0xff]
  %v270 = vld [vmem:[%s1 + $0x740] sm:$0xff]
  %v271 = vld [vmem:[%s1 + $0x748] sm:$0xff]
  %v272 = vld [vmem:[%s1 + $0x750] sm:$0xff]
  %v273 = vld [vmem:[%s1 + $0x758] sm:$0xff]
  %v274 = vld [vmem:[%s1 + $0x760] sm:$0xff]
  %v275 = vld [vmem:[%s1 + $0x768] sm:$0xff]
  %v276 = vld [vmem:[%s1 + $0x770] sm:$0xff]
  %v277 = vld [vmem:[%s1 + $0x778] sm:$0xff]
  %v278 = vld [vmem:[%s1 + $0x780] sm:$0xff]
  %v279 = vld [vmem:[%s1 + $0x788] sm:$0xff]
  %v280 = vld [vmem:[%s1 + $0x790] sm:$0xff]
  %v281 = vld [vmem:[%s1 + $0x798] sm:$0xff]
  %v282 = vld [vmem:[%s1 + $0x7a0] sm:$0xff]
  %v283 = vld [vmem:[%s1 + $0x7a8] sm:$0xff]
  %v284 = vld [vmem:[%s1 + $0x7b0] sm:$0xff]
  %v285 = vld [vmem:[%s1 + $0x7b8] sm:$0xff]
  %v286 = vld [vmem:[%s1 + $0x7c0] sm:$0xff]
  %v287 = vld [vmem:[%s1 + $0x7c8] sm:$0xff]
  %v288 = vld [vmem:[%s1 + $0x7d0] sm:$0xff]
  %v289 = vld [vmem:[%s1 + $0x7d8] sm:$0xff]
  %v290 = vld [vmem:[%s1 + $0x7e0] sm:$0xff]
  %v291 = vld [vmem:[%s1 + $0x7e8] sm:$0xff]
  %v292 = vld [vmem:[%s1 + $0x7f0] sm:$0xff]
  %v293 = vld [vmem:[%s1 + $0x7f8] sm:$0xff]
  %v294 = vld [vmem:[%s1 + $0x800] sm:$0xff]
  %v295 = vld [vmem:[%s1 + $0x808] sm:$0xff]
  %v296 = vld [vmem:[%s1 + $0x810] sm:$0xff]
  %v297 = vld [vmem:[%s1 + $0x818] sm:$0xff]
  %v298 = vld [vmem:[%s1 + $0x820] sm:$0xff]
  %v299 = vld [vmem:[%s1 + $0x828] sm:$0xff]
  %v300 = vld [vmem:[%s1 + $0x830] sm:$0xff]
  %v301 = vld [vmem:[%s1 + $0x838] sm:$0xff]
  %v302 = vld [vmem:[%s1 + $0x840] sm:$0xff]
  %v303 = vld [vmem:[%s1 + $0x848] sm:$0xff]
  %v304 = vld [vmem:[%s1 + $0x850] sm:$0xff]
  %v305 = vld [vmem:[%s1 + $0x858] sm:$0xff]
  %v306 = vld [vmem:[%s1 + $0x860] sm:$0xff]
  %v307 = vld [vmem:[%s1 + $0x868] sm:$0xff]
  %v308 = vld [vmem:[%s1 + $0x870] sm:$0xff]
  %v309 = vld [vmem:[%s1 + $0x878] sm:$0xff]
  %v310 = vld [vmem:[%s1 + $0x880] sm:$0xff]
  %v311 = vld [vmem:[%s1 + $0x888] sm:$0xff]
  %v312 = vld [vmem:[%s1 + $0x890] sm:$0xff]
  %v313 = vld [vmem:[%s1 + $0x898] sm:$0xff]
  %v314 = vld [vmem:[%s1 + $0x8a0] sm:$0xff]
  %v315 = vld [vmem:[%s1 + $0x8a8] sm:$0xff]
  %v316 = vld [vmem:[%s1 + $0x8b0] sm:$0xff]
  %v317 = vld [vmem:[%s1 + $0x8b8] sm:$0xff]
  %v318 = vld [vmem:[%s1 + $0x8c0] sm:$0xff]
  %v319 = vld [vmem:[%s1 + $0x8c8] sm:$0xff]
  %v320 = vld [vmem:[%s1 + $0x8d0] sm:$0xff]
  %v321 = vld [vmem:[%s1 + $0x8d8] sm:$0xff]
  %v322 = vld [vmem:[%s1 + $0x8e0] sm:$0xff]
  %v323 = vld [vmem:[%s1 + $0x8e8] sm:$0xff]
  %v324 = vld [vmem:[%s1 + $0x8f0] sm:$0xff]
  %v325 = vld [vmem:[%s1 + $0x8f8] sm:$0xff]
  %v346 = vunpack.c.l.b16 %v18
  %v347 = vunpack.c.h.b16 %v18
  %v348 = vunpack.c.l.b16 %v19
  %v349 = vunpack.c.h.b16 %v19
  %v350 = vunpack.c.l.b16 %v20
  %v351 = vunpack.c.h.b16 %v20
  %v352 = vunpack.c.l.b16 %v21
  %v353 = vunpack.c.h.b16 %v21
  %v354 = vunpack.c.l.b16 %v22
  %v355 = vunpack.c.l.b16 %v23
  %v356 = vunpack.c.h.b16 %v23
  %v357 = vunpack.c.l.b16 %v24
  %v358 = vunpack.c.h.b16 %v24
  %v359 = vunpack.c.l.b16 %v25
  %v360 = vunpack.c.h.b16 %v25
  %v361 = vunpack.c.l.b16 %v26
  %v362 = vunpack.c.h.b16 %v26
  %v363 = vunpack.c.l.b16 %v27
  %v364 = vunpack.c.l.b16 %v28
  %v365 = vunpack.c.h.b16 %v28
  %v366 = vunpack.c.l.b16 %v29
  %v367 = vunpack.c.h.b16 %v29
  %v368 = vunpack.c.l.b16 %v30
  %v369 = vunpack.c.h.b16 %v30
  %v370 = vunpack.c.l.b16 %v31
  %v371 = vunpack.c.h.b16 %v31
  %v372 = vunpack.c.l.b16 %v32
  %v373 = vunpack.c.l.b16 %v33
  %v374 = vunpack.c.h.b16 %v33
  %v375 = vunpack.c.l.b16 %v34
  %v376 = vunpack.c.h.b16 %v34
  %v377 = vunpack.c.l.b16 %v35
  %v378 = vunpack.c.h.b16 %v35
  %v379 = vunpack.c.l.b16 %v36
  %v380 = vunpack.c.h.b16 %v36
  %v381 = vunpack.c.l.b16 %v37
  %v382 = vpack.c.b16 %v355, %v346
  %v383 = vpack.c.b16 %v356, %v347
  %v384 = vpack.c.b16 %v357, %v348
  %v385 = vpack.c.b16 %v358, %v349
  %v386 = vpack.c.b16 %v359, %v350
  %v387 = vpack.c.b16 %v360, %v351
  %v388 = vpack.c.b16 %v361, %v352
  %v389 = vpack.c.b16 %v362, %v353
  %v390 = vpack.c.b16 %v363, %v354
  %v391 = vpack.c.b16 %v373, %v364
  %v392 = vpack.c.b16 %v374, %v365
  %v393 = vpack.c.b16 %v375, %v366
  %v394 = vpack.c.b16 %v376, %v367
  %v395 = vpack.c.b16 %v377, %v368
  %v396 = vpack.c.b16 %v378, %v369
  %v397 = vpack.c.b16 %v379, %v370
  %v398 = vpack.c.b16 %v380, %v371
  %v399 = vpack.c.b16 %v381, %v372
  %v706 = vunpack.c.l.b16 %v38
  %v707 = vunpack.c.h.b16 %v38
  %v708 = vunpack.c.l.b16 %v39
  %v709 = vunpack.c.h.b16 %v39
  %v710 = vunpack.c.l.b16 %v40
  %v711 = vunpack.c.h.b16 %v40
  %v712 = vunpack.c.l.b16 %v41
  %v713 = vunpack.c.h.b16 %v41
  %v714 = vunpack.c.l.b16 %v42
  %v715 = vunpack.c.h.b16 %v42
  %v716 = vunpack.c.l.b16 %v43
  %v717 = vunpack.c.h.b16 %v43
  %v718 = vunpack.c.l.b16 %v44
  %v719 = vunpack.c.h.b16 %v44
  %v720 = vunpack.c.l.b16 %v45
  %v721 = vunpack.c.h.b16 %v45
  %v722 = vunpack.c.l.b16 %v46
  %v723 = vunpack.c.h.b16 %v46
  %v724 = vunpack.c.l.b16 %v47
  %v725 = vunpack.c.h.b16 %v47
  %v726 = vunpack.c.l.b16 %v48
  %v727 = vunpack.c.h.b16 %v48
  %v728 = vunpack.c.l.b16 %v49
  %v729 = vunpack.c.h.b16 %v49
  %v730 = vunpack.c.l.b16 %v50
  %v731 = vunpack.c.h.b16 %v50
  %v732 = vunpack.c.l.b16 %v51
  %v733 = vunpack.c.h.b16 %v51
  %v734 = vunpack.c.l.b16 %v52
  %v735 = vunpack.c.h.b16 %v52
  %v736 = vunpack.c.l.b16 %v53
  %v737 = vunpack.c.h.b16 %v53
  %v738 = vunpack.c.l.b16 %v54
  %v739 = vunpack.c.h.b16 %v54
  %v740 = vunpack.c.l.b16 %v55
  %v741 = vunpack.c.h.b16 %v55
  %v742 = vunpack.c.l.b16 %v56
  %v743 = vunpack.c.h.b16 %v56
  %v744 = vunpack.c.l.b16 %v57
  %v745 = vunpack.c.h.b16 %v57
  %v746 = vunpack.c.l.b16 %v58
  %v747 = vunpack.c.h.b16 %v58
  %v748 = vunpack.c.l.b16 %v59
  %v749 = vunpack.c.h.b16 %v59
  %v750 = vunpack.c.l.b16 %v60
  %v751 = vunpack.c.h.b16 %v60
  %v752 = vunpack.c.l.b16 %v61
  %v753 = vunpack.c.h.b16 %v61
  %v754 = vunpack.c.l.b16 %v62
  %v755 = vunpack.c.h.b16 %v62
  %v756 = vunpack.c.l.b16 %v63
  %v757 = vunpack.c.h.b16 %v63
  %v758 = vunpack.c.l.b16 %v64
  %v759 = vunpack.c.h.b16 %v64
  %v760 = vunpack.c.l.b16 %v65
  %v761 = vunpack.c.h.b16 %v65
  %v762 = vunpack.c.l.b16 %v66
  %v763 = vunpack.c.h.b16 %v66
  %v764 = vunpack.c.l.b16 %v67
  %v765 = vunpack.c.h.b16 %v67
  %v766 = vunpack.c.l.b16 %v68
  %v767 = vunpack.c.h.b16 %v68
  %v768 = vunpack.c.l.b16 %v69
  %v769 = vunpack.c.h.b16 %v69
  %v770 = vunpack.c.l.b16 %v70
  %v771 = vunpack.c.h.b16 %v70
  %v772 = vunpack.c.l.b16 %v71
  %v773 = vunpack.c.h.b16 %v71
  %v774 = vunpack.c.l.b16 %v72
  %v775 = vunpack.c.h.b16 %v72
  %v776 = vunpack.c.l.b16 %v73
  %v777 = vunpack.c.h.b16 %v73
  %v778 = vunpack.c.l.b16 %v74
  %v779 = vunpack.c.h.b16 %v74
  %v780 = vunpack.c.l.b16 %v75
  %v781 = vunpack.c.h.b16 %v75
  %v782 = vunpack.c.l.b16 %v76
  %v783 = vunpack.c.h.b16 %v76
  %v784 = vunpack.c.l.b16 %v77
  %v785 = vunpack.c.h.b16 %v77
  %v786 = vunpack.c.l.b16 %v78
  %v787 = vunpack.c.h.b16 %v78
  %v788 = vunpack.c.l.b16 %v79
  %v789 = vunpack.c.h.b16 %v79
  %v790 = vunpack.c.l.b16 %v80
  %v791 = vunpack.c.h.b16 %v80
  %v792 = vunpack.c.l.b16 %v81
  %v793 = vunpack.c.h.b16 %v81
  %v794 = vunpack.c.l.b16 %v82
  %v795 = vunpack.c.h.b16 %v82
  %v796 = vunpack.c.l.b16 %v83
  %v797 = vunpack.c.h.b16 %v83
  %v798 = vunpack.c.l.b16 %v84
  %v799 = vunpack.c.h.b16 %v84
  %v800 = vunpack.c.l.b16 %v85
  %v801 = vunpack.c.h.b16 %v85
  %v802 = vunpack.c.l.b16 %v86
  %v803 = vunpack.c.h.b16 %v86
  %v804 = vunpack.c.l.b16 %v87
  %v805 = vunpack.c.h.b16 %v87
  %v806 = vunpack.c.l.b16 %v88
  %v807 = vunpack.c.h.b16 %v88
  %v808 = vunpack.c.l.b16 %v89
  %v809 = vunpack.c.h.b16 %v89
  %v810 = vunpack.c.l.b16 %v90
  %v811 = vunpack.c.h.b16 %v90
  %v812 = vunpack.c.l.b16 %v91
  %v813 = vunpack.c.h.b16 %v91
  %v814 = vunpack.c.l.b16 %v92
  %v815 = vunpack.c.h.b16 %v92
  %v816 = vunpack.c.l.b16 %v93
  %v817 = vunpack.c.h.b16 %v93
  %v818 = vunpack.c.l.b16 %v94
  %v819 = vunpack.c.h.b16 %v94
  %v820 = vunpack.c.l.b16 %v95
  %v821 = vunpack.c.h.b16 %v95
  %v822 = vunpack.c.l.b16 %v96
  %v823 = vunpack.c.h.b16 %v96
  %v824 = vunpack.c.l.b16 %v97
  %v825 = vunpack.c.h.b16 %v97
  %v826 = vunpack.c.l.b16 %v98
  %v827 = vunpack.c.h.b16 %v98
  %v828 = vunpack.c.l.b16 %v99
  %v829 = vunpack.c.h.b16 %v99
  %v830 = vunpack.c.l.b16 %v100
  %v831 = vunpack.c.h.b16 %v100
  %v832 = vunpack.c.l.b16 %v101
  %v833 = vunpack.c.h.b16 %v101
  %v834 = vunpack.c.l.b16 %v102
  %v835 = vunpack.c.h.b16 %v102
  %v836 = vunpack.c.l.b16 %v103
  %v837 = vunpack.c.h.b16 %v103
  %v838 = vunpack.c.l.b16 %v104
  %v839 = vunpack.c.h.b16 %v104
  %v840 = vunpack.c.l.b16 %v105
  %v841 = vunpack.c.h.b16 %v105
  %v842 = vunpack.c.l.b16 %v106
  %v843 = vunpack.c.h.b16 %v106
  %v844 = vunpack.c.l.b16 %v107
  %v845 = vunpack.c.h.b16 %v107
  %v846 = vunpack.c.l.b16 %v108
  %v847 = vunpack.c.h.b16 %v108
  %v848 = vunpack.c.l.b16 %v109
  %v849 = vunpack.c.h.b16 %v109
  %v850 = vunpack.c.l.b16 %v110
  %v851 = vunpack.c.h.b16 %v110
  %v852 = vunpack.c.l.b16 %v111
  %v853 = vunpack.c.h.b16 %v111
  %v854 = vunpack.c.l.b16 %v112
  %v855 = vunpack.c.h.b16 %v112
  %v856 = vunpack.c.l.b16 %v113
  %v857 = vunpack.c.h.b16 %v113
  %v858 = vunpack.c.l.b16 %v114
  %v859 = vunpack.c.h.b16 %v114
  %v860 = vunpack.c.l.b16 %v115
  %v861 = vunpack.c.h.b16 %v115
  %v862 = vunpack.c.l.b16 %v116
  %v863 = vunpack.c.h.b16 %v116
  %v864 = vunpack.c.l.b16 %v117
  %v865 = vunpack.c.h.b16 %v117
  %v866 = vunpack.c.l.b16 %v118
  %v867 = vunpack.c.h.b16 %v118
  %v868 = vunpack.c.l.b16 %v119
  %v869 = vunpack.c.h.b16 %v119
  %v870 = vunpack.c.l.b16 %v120
  %v871 = vunpack.c.h.b16 %v120
  %v872 = vunpack.c.l.b16 %v121
  %v873 = vunpack.c.h.b16 %v121
  %v874 = vunpack.c.l.b16 %v122
  %v875 = vunpack.c.h.b16 %v122
  %v876 = vunpack.c.l.b16 %v123
  %v877 = vunpack.c.h.b16 %v123
  %v878 = vunpack.c.l.b16 %v124
  %v879 = vunpack.c.h.b16 %v124
  %v880 = vunpack.c.l.b16 %v125
  %v881 = vunpack.c.h.b16 %v125
  %v882 = vunpack.c.l.b16 %v126
  %v883 = vunpack.c.h.b16 %v126
  %v884 = vunpack.c.l.b16 %v127
  %v885 = vunpack.c.h.b16 %v127
  %v886 = vunpack.c.l.b16 %v128
  %v887 = vunpack.c.h.b16 %v128
  %v888 = vunpack.c.l.b16 %v129
  %v889 = vunpack.c.h.b16 %v129
  %v890 = vunpack.c.l.b16 %v130
  %v891 = vunpack.c.h.b16 %v130
  %v892 = vunpack.c.l.b16 %v131
  %v893 = vunpack.c.h.b16 %v131
  %v894 = vunpack.c.l.b16 %v132
  %v895 = vunpack.c.h.b16 %v132
  %v896 = vunpack.c.l.b16 %v133
  %v897 = vunpack.c.h.b16 %v133
  %v898 = vunpack.c.l.b16 %v134
  %v899 = vunpack.c.h.b16 %v134
  %v900 = vunpack.c.l.b16 %v135
  %v901 = vunpack.c.h.b16 %v135
  %v902 = vunpack.c.l.b16 %v136
  %v903 = vunpack.c.h.b16 %v136
  %v904 = vunpack.c.l.b16 %v137
  %v905 = vunpack.c.h.b16 %v137
  %v906 = vunpack.c.l.b16 %v138
  %v907 = vunpack.c.h.b16 %v138
  %v908 = vunpack.c.l.b16 %v139
  %v909 = vunpack.c.h.b16 %v139
  %v910 = vunpack.c.l.b16 %v140
  %v911 = vunpack.c.h.b16 %v140
  %v912 = vunpack.c.l.b16 %v141
  %v913 = vunpack.c.h.b16 %v141
  %v914 = vunpack.c.l.b16 %v142
  %v915 = vunpack.c.h.b16 %v142
  %v916 = vunpack.c.l.b16 %v143
  %v917 = vunpack.c.h.b16 %v143
  %v918 = vunpack.c.l.b16 %v144
  %v919 = vunpack.c.h.b16 %v144
  %v920 = vunpack.c.l.b16 %v145
  %v921 = vunpack.c.h.b16 %v145
  %v922 = vunpack.c.l.b16 %v146
  %v923 = vunpack.c.h.b16 %v146
  %v924 = vunpack.c.l.b16 %v147
  %v925 = vunpack.c.h.b16 %v147
  %v926 = vunpack.c.l.b16 %v148
  %v927 = vunpack.c.h.b16 %v148
  %v928 = vunpack.c.l.b16 %v149
  %v929 = vunpack.c.h.b16 %v149
  %v930 = vunpack.c.l.b16 %v150
  %v931 = vunpack.c.h.b16 %v150
  %v932 = vunpack.c.l.b16 %v151
  %v933 = vunpack.c.h.b16 %v151
  %v934 = vunpack.c.l.b16 %v152
  %v935 = vunpack.c.h.b16 %v152
  %v936 = vunpack.c.l.b16 %v153
  %v937 = vunpack.c.h.b16 %v153
  %v938 = vunpack.c.l.b16 %v154
  %v939 = vunpack.c.h.b16 %v154
  %v940 = vunpack.c.l.b16 %v155
  %v941 = vunpack.c.h.b16 %v155
  %v942 = vunpack.c.l.b16 %v156
  %v943 = vunpack.c.h.b16 %v156
  %v944 = vunpack.c.l.b16 %v157
  %v945 = vunpack.c.h.b16 %v157
  %v946 = vunpack.c.l.b16 %v158
  %v947 = vunpack.c.h.b16 %v158
  %v948 = vunpack.c.l.b16 %v159
  %v949 = vunpack.c.h.b16 %v159
  %v950 = vunpack.c.l.b16 %v160
  %v951 = vunpack.c.h.b16 %v160
  %v952 = vunpack.c.l.b16 %v161
  %v953 = vunpack.c.h.b16 %v161
  %v954 = vunpack.c.l.b16 %v162
  %v955 = vunpack.c.h.b16 %v162
  %v956 = vunpack.c.l.b16 %v163
  %v957 = vunpack.c.h.b16 %v163
  %v958 = vunpack.c.l.b16 %v164
  %v959 = vunpack.c.h.b16 %v164
  %v960 = vunpack.c.l.b16 %v165
  %v961 = vunpack.c.h.b16 %v165
  %v962 = vunpack.c.l.b16 %v166
  %v963 = vunpack.c.h.b16 %v166
  %v964 = vunpack.c.l.b16 %v167
  %v965 = vunpack.c.h.b16 %v167
  %v966 = vunpack.c.l.b16 %v168
  %v967 = vunpack.c.h.b16 %v168
  %v968 = vunpack.c.l.b16 %v169
  %v969 = vunpack.c.h.b16 %v169
  %v970 = vunpack.c.l.b16 %v170
  %v971 = vunpack.c.h.b16 %v170
  %v972 = vunpack.c.l.b16 %v171
  %v973 = vunpack.c.h.b16 %v171
  %v974 = vunpack.c.l.b16 %v172
  %v975 = vunpack.c.h.b16 %v172
  %v976 = vunpack.c.l.b16 %v173
  %v977 = vunpack.c.h.b16 %v173
  %v978 = vunpack.c.l.b16 %v174
  %v979 = vunpack.c.h.b16 %v174
  %v980 = vunpack.c.l.b16 %v175
  %v981 = vunpack.c.h.b16 %v175
  %v982 = vunpack.c.l.b16 %v176
  %v983 = vunpack.c.h.b16 %v176
  %v984 = vunpack.c.l.b16 %v177
  %v985 = vunpack.c.h.b16 %v177
  %v986 = vunpack.c.l.b16 %v178
  %v987 = vunpack.c.h.b16 %v178
  %v988 = vunpack.c.l.b16 %v179
  %v989 = vunpack.c.h.b16 %v179
  %v990 = vunpack.c.l.b16 %v180
  %v991 = vunpack.c.h.b16 %v180
  %v992 = vunpack.c.l.b16 %v181
  %v993 = vunpack.c.h.b16 %v181
  %v994 = vunpack.c.l.b16 %v182
  %v995 = vunpack.c.h.b16 %v182
  %v996 = vunpack.c.l.b16 %v183
  %v997 = vunpack.c.h.b16 %v183
  %v998 = vunpack.c.l.b16 %v184
  %v999 = vunpack.c.h.b16 %v184
  %v1000 = vunpack.c.l.b16 %v185
  %v1001 = vunpack.c.h.b16 %v185
  %v1002 = vunpack.c.l.b16 %v186
  %v1003 = vunpack.c.h.b16 %v186
  %v1004 = vunpack.c.l.b16 %v187
  %v1005 = vunpack.c.h.b16 %v187
  %v1006 = vunpack.c.l.b16 %v188
  %v1007 = vunpack.c.h.b16 %v188
  %v1008 = vunpack.c.l.b16 %v189
  %v1009 = vunpack.c.h.b16 %v189
  %v1010 = vunpack.c.l.b16 %v190
  %v1011 = vunpack.c.h.b16 %v190
  %v1012 = vunpack.c.l.b16 %v191
  %v1013 = vunpack.c.h.b16 %v191
  %v1014 = vunpack.c.l.b16 %v192
  %v1015 = vunpack.c.h.b16 %v192
  %v1016 = vunpack.c.l.b16 %v193
  %v1017 = vunpack.c.h.b16 %v193
  %v1018 = vunpack.c.l.b16 %v194
  %v1019 = vunpack.c.h.b16 %v194
  %v1020 = vunpack.c.l.b16 %v195
  %v1021 = vunpack.c.h.b16 %v195
  %v1022 = vunpack.c.l.b16 %v196
  %v1023 = vunpack.c.h.b16 %v196
  %v1024 = vunpack.c.l.b16 %v197
  %v1025 = vunpack.c.h.b16 %v197
  %v1026 = vunpack.c.l.b16 %v198
  %v1027 = vunpack.c.h.b16 %v198
  %v1028 = vunpack.c.l.b16 %v199
  %v1029 = vunpack.c.h.b16 %v199
  %v1030 = vunpack.c.l.b16 %v200
  %v1031 = vunpack.c.h.b16 %v200
  %v1032 = vunpack.c.l.b16 %v201
  %v1033 = vunpack.c.h.b16 %v201
  %v1034 = vunpack.c.l.b16 %v202
  %v1035 = vunpack.c.h.b16 %v202
  %v1036 = vunpack.c.l.b16 %v203
  %v1037 = vunpack.c.h.b16 %v203
  %v1038 = vunpack.c.l.b16 %v204
  %v1039 = vunpack.c.h.b16 %v204
  %v1040 = vunpack.c.l.b16 %v205
  %v1041 = vunpack.c.h.b16 %v205
  %v1042 = vunpack.c.l.b16 %v206
  %v1043 = vunpack.c.h.b16 %v206
  %v1044 = vunpack.c.l.b16 %v207
  %v1045 = vunpack.c.h.b16 %v207
  %v1046 = vunpack.c.l.b16 %v208
  %v1047 = vunpack.c.h.b16 %v208
  %v1048 = vunpack.c.l.b16 %v209
  %v1049 = vunpack.c.h.b16 %v209
  %v1050 = vunpack.c.l.b16 %v210
  %v1051 = vunpack.c.h.b16 %v210
  %v1052 = vunpack.c.l.b16 %v211
  %v1053 = vunpack.c.h.b16 %v211
  %v1054 = vunpack.c.l.b16 %v212
  %v1055 = vunpack.c.h.b16 %v212
  %v1056 = vunpack.c.l.b16 %v213
  %v1057 = vunpack.c.h.b16 %v213
  %v1058 = vunpack.c.l.b16 %v214
  %v1059 = vunpack.c.h.b16 %v214
  %v1060 = vunpack.c.l.b16 %v215
  %v1061 = vunpack.c.h.b16 %v215
  %v1062 = vunpack.c.l.b16 %v216
  %v1063 = vunpack.c.h.b16 %v216
  %v1064 = vunpack.c.l.b16 %v217
  %v1065 = vunpack.c.h.b16 %v217
  %v1066 = vunpack.c.l.b16 %v218
  %v1067 = vunpack.c.h.b16 %v218
  %v1068 = vunpack.c.l.b16 %v219
  %v1069 = vunpack.c.h.b16 %v219
  %v1070 = vunpack.c.l.b16 %v220
  %v1071 = vunpack.c.h.b16 %v220
  %v1072 = vunpack.c.l.b16 %v221
  %v1073 = vunpack.c.h.b16 %v221
  %v1074 = vunpack.c.l.b16 %v222
  %v1075 = vunpack.c.h.b16 %v222
  %v1076 = vunpack.c.l.b16 %v223
  %v1077 = vunpack.c.h.b16 %v223
  %v1078 = vunpack.c.l.b16 %v224
  %v1079 = vunpack.c.h.b16 %v224
  %v1080 = vunpack.c.l.b16 %v225
  %v1081 = vunpack.c.h.b16 %v225
  %v1082 = vunpack.c.l.b16 %v226
  %v1083 = vunpack.c.h.b16 %v226
  %v1084 = vunpack.c.l.b16 %v227
  %v1085 = vunpack.c.h.b16 %v227
  %v1086 = vunpack.c.l.b16 %v228
  %v1087 = vunpack.c.h.b16 %v228
  %v1088 = vunpack.c.l.b16 %v229
  %v1089 = vunpack.c.h.b16 %v229
  %v1090 = vunpack.c.l.b16 %v230
  %v1091 = vunpack.c.h.b16 %v230
  %v1092 = vunpack.c.l.b16 %v231
  %v1093 = vunpack.c.h.b16 %v231
  %v1094 = vunpack.c.l.b16 %v232
  %v1095 = vunpack.c.h.b16 %v232
  %v1096 = vunpack.c.l.b16 %v233
  %v1097 = vunpack.c.h.b16 %v233
  %v1098 = vunpack.c.l.b16 %v234
  %v1099 = vunpack.c.h.b16 %v234
  %v1100 = vunpack.c.l.b16 %v235
  %v1101 = vunpack.c.h.b16 %v235
  %v1102 = vunpack.c.l.b16 %v236
  %v1103 = vunpack.c.h.b16 %v236
  %v1104 = vunpack.c.l.b16 %v237
  %v1105 = vunpack.c.h.b16 %v237
  %v1106 = vunpack.c.l.b16 %v238
  %v1107 = vunpack.c.h.b16 %v238
  %v1108 = vunpack.c.l.b16 %v239
  %v1109 = vunpack.c.h.b16 %v239
  %v1110 = vunpack.c.l.b16 %v240
  %v1111 = vunpack.c.h.b16 %v240
  %v1112 = vunpack.c.l.b16 %v241
  %v1113 = vunpack.c.h.b16 %v241
  %v1114 = vunpack.c.l.b16 %v242
  %v1115 = vunpack.c.h.b16 %v242
  %v1116 = vunpack.c.l.b16 %v243
  %v1117 = vunpack.c.h.b16 %v243
  %v1118 = vunpack.c.l.b16 %v244
  %v1119 = vunpack.c.h.b16 %v244
  %v1120 = vunpack.c.l.b16 %v245
  %v1121 = vunpack.c.h.b16 %v245
  %v1122 = vunpack.c.l.b16 %v246
  %v1123 = vunpack.c.h.b16 %v246
  %v1124 = vunpack.c.l.b16 %v247
  %v1125 = vunpack.c.h.b16 %v247
  %v1126 = vunpack.c.l.b16 %v248
  %v1127 = vunpack.c.h.b16 %v248
  %v1128 = vunpack.c.l.b16 %v249
  %v1129 = vunpack.c.h.b16 %v249
  %v1130 = vunpack.c.l.b16 %v250
  %v1131 = vunpack.c.h.b16 %v250
  %v1132 = vunpack.c.l.b16 %v251
  %v1133 = vunpack.c.h.b16 %v251
  %v1134 = vunpack.c.l.b16 %v252
  %v1135 = vunpack.c.h.b16 %v252
  %v1136 = vunpack.c.l.b16 %v253
  %v1137 = vunpack.c.h.b16 %v253
  %v1138 = vunpack.c.l.b16 %v254
  %v1139 = vunpack.c.h.b16 %v254
  %v1140 = vunpack.c.l.b16 %v255
  %v1141 = vunpack.c.h.b16 %v255
  %v1142 = vunpack.c.l.b16 %v256
  %v1143 = vunpack.c.h.b16 %v256
  %v1144 = vunpack.c.l.b16 %v257
  %v1145 = vunpack.c.h.b16 %v257
  %v1146 = vunpack.c.l.b16 %v258
  %v1147 = vunpack.c.h.b16 %v258
  %v1148 = vunpack.c.l.b16 %v259
  %v1149 = vunpack.c.h.b16 %v259
  %v1150 = vunpack.c.l.b16 %v260
  %v1151 = vunpack.c.h.b16 %v260
  %v1152 = vunpack.c.l.b16 %v261
  %v1153 = vunpack.c.h.b16 %v261
  %v1154 = vunpack.c.l.b16 %v262
  %v1155 = vunpack.c.h.b16 %v262
  %v1156 = vunpack.c.l.b16 %v263
  %v1157 = vunpack.c.h.b16 %v263
  %v1158 = vunpack.c.l.b16 %v264
  %v1159 = vunpack.c.h.b16 %v264
  %v1160 = vunpack.c.l.b16 %v265
  %v1161 = vunpack.c.h.b16 %v265
  %v1162 = vunpack.c.l.b16 %v266
  %v1163 = vunpack.c.h.b16 %v266
  %v1164 = vunpack.c.l.b16 %v267
  %v1165 = vunpack.c.h.b16 %v267
  %v1166 = vunpack.c.l.b16 %v268
  %v1167 = vunpack.c.h.b16 %v268
  %v1168 = vunpack.c.l.b16 %v269
  %v1169 = vunpack.c.h.b16 %v269
  %v1170 = vunpack.c.l.b16 %v270
  %v1171 = vunpack.c.h.b16 %v270
  %v1172 = vunpack.c.l.b16 %v271
  %v1173 = vunpack.c.h.b16 %v271
  %v1174 = vunpack.c.l.b16 %v272
  %v1175 = vunpack.c.h.b16 %v272
  %v1176 = vunpack.c.l.b16 %v273
  %v1177 = vunpack.c.h.b16 %v273
  %v1178 = vunpack.c.l.b16 %v274
  %v1179 = vunpack.c.h.b16 %v274
  %v1180 = vunpack.c.l.b16 %v275
  %v1181 = vunpack.c.h.b16 %v275
  %v1182 = vunpack.c.l.b16 %v276
  %v1183 = vunpack.c.h.b16 %v276
  %v1184 = vunpack.c.l.b16 %v277
  %v1185 = vunpack.c.h.b16 %v277
  %v1186 = vunpack.c.l.b16 %v278
  %v1187 = vunpack.c.h.b16 %v278
  %v1188 = vunpack.c.l.b16 %v279
  %v1189 = vunpack.c.h.b16 %v279
  %v1190 = vunpack.c.l.b16 %v280
  %v1191 = vunpack.c.h.b16 %v280
  %v1192 = vunpack.c.l.b16 %v281
  %v1193 = vunpack.c.h.b16 %v281
  %v1194 = vunpack.c.l.b16 %v282
  %v1195 = vunpack.c.h.b16 %v282
  %v1196 = vunpack.c.l.b16 %v283
  %v1197 = vunpack.c.h.b16 %v283
  %v1198 = vunpack.c.l.b16 %v284
  %v1199 = vunpack.c.h.b16 %v284
  %v1200 = vunpack.c.l.b16 %v285
  %v1201 = vunpack.c.h.b16 %v285
  %v1202 = vunpack.c.l.b16 %v286
  %v1203 = vunpack.c.h.b16 %v286
  %v1204 = vunpack.c.l.b16 %v287
  %v1205 = vunpack.c.h.b16 %v287
  %v1206 = vunpack.c.l.b16 %v288
  %v1207 = vunpack.c.h.b16 %v288
  %v1208 = vunpack.c.l.b16 %v289
  %v1209 = vunpack.c.h.b16 %v289
  %v1210 = vunpack.c.l.b16 %v290
  %v1211 = vunpack.c.h.b16 %v290
  %v1212 = vunpack.c.l.b16 %v291
  %v1213 = vunpack.c.h.b16 %v291
  %v1214 = vunpack.c.l.b16 %v292
  %v1215 = vunpack.c.h.b16 %v292
  %v1216 = vunpack.c.l.b16 %v293
  %v1217 = vunpack.c.h.b16 %v293
  %v1218 = vunpack.c.l.b16 %v294
  %v1219 = vunpack.c.h.b16 %v294
  %v1220 = vunpack.c.l.b16 %v295
  %v1221 = vunpack.c.h.b16 %v295
  %v1222 = vunpack.c.l.b16 %v296
  %v1223 = vunpack.c.h.b16 %v296
  %v1224 = vunpack.c.l.b16 %v297
  %v1225 = vunpack.c.h.b16 %v297
  %v1226 = vunpack.c.l.b16 %v298
  %v1227 = vunpack.c.h.b16 %v298
  %v1228 = vunpack.c.l.b16 %v299
  %v1229 = vunpack.c.h.b16 %v299
  %v1230 = vunpack.c.l.b16 %v300
  %v1231 = vunpack.c.h.b16 %v300
  %v1232 = vunpack.c.l.b16 %v301
  %v1233 = vunpack.c.h.b16 %v301
  %v1234 = vunpack.c.l.b16 %v302
  %v1235 = vunpack.c.h.b16 %v302
  %v1236 = vunpack.c.l.b16 %v303
  %v1237 = vunpack.c.h.b16 %v303
  %v1238 = vunpack.c.l.b16 %v304
  %v1239 = vunpack.c.h.b16 %v304
  %v1240 = vunpack.c.l.b16 %v305
  %v1241 = vunpack.c.h.b16 %v305
  %v1242 = vunpack.c.l.b16 %v306
  %v1243 = vunpack.c.h.b16 %v306
  %v1244 = vunpack.c.l.b16 %v307
  %v1245 = vunpack.c.h.b16 %v307
  %v1246 = vunpack.c.l.b16 %v308
  %v1247 = vunpack.c.h.b16 %v308
  %v1248 = vunpack.c.l.b16 %v309
  %v1249 = vunpack.c.h.b16 %v309
  %v1250 = vunpack.c.l.b16 %v310
  %v1251 = vunpack.c.h.b16 %v310
  %v1252 = vunpack.c.l.b16 %v311
  %v1253 = vunpack.c.h.b16 %v311
  %v1254 = vunpack.c.l.b16 %v312
  %v1255 = vunpack.c.h.b16 %v312
  %v1256 = vunpack.c.l.b16 %v313
  %v1257 = vunpack.c.h.b16 %v313
  %v1258 = vunpack.c.l.b16 %v314
  %v1259 = vunpack.c.h.b16 %v314
  %v1260 = vunpack.c.l.b16 %v315
  %v1261 = vunpack.c.h.b16 %v315
  %v1262 = vunpack.c.l.b16 %v316
  %v1263 = vunpack.c.h.b16 %v316
  %v1264 = vunpack.c.l.b16 %v317
  %v1265 = vunpack.c.h.b16 %v317
  %v1266 = vunpack.c.l.b16 %v318
  %v1267 = vunpack.c.h.b16 %v318
  %v1268 = vunpack.c.l.b16 %v319
  %v1269 = vunpack.c.h.b16 %v319
  %v1270 = vunpack.c.l.b16 %v320
  %v1271 = vunpack.c.h.b16 %v320
  %v1272 = vunpack.c.l.b16 %v321
  %v1273 = vunpack.c.h.b16 %v321
  %v1274 = vunpack.c.l.b16 %v322
  %v1275 = vunpack.c.h.b16 %v322
  %v1276 = vunpack.c.l.b16 %v323
  %v1277 = vunpack.c.h.b16 %v323
  %v1278 = vunpack.c.l.b16 %v324
  %v1279 = vunpack.c.h.b16 %v324
  %v1280 = vunpack.c.l.b16 %v325
  %v1281 = vunpack.c.h.b16 %v325
  %v1282 = vpack.c.b16 %v710, %v706
  %v1283 = vpack.c.b16 %v711, %v707
  %v1284 = vpack.c.b16 %v712, %v708
  %v1285 = vpack.c.b16 %v713, %v709
  %v1286 = vpack.c.b16 %v718, %v714
  %v1287 = vpack.c.b16 %v719, %v715
  %v1288 = vpack.c.b16 %v720, %v716
  %v1289 = vpack.c.b16 %v721, %v717
  %v1290 = vpack.c.b16 %v726, %v722
  %v1291 = vpack.c.b16 %v727, %v723
  %v1292 = vpack.c.b16 %v728, %v724
  %v1293 = vpack.c.b16 %v729, %v725
  %v1294 = vpack.c.b16 %v734, %v730
  %v1295 = vpack.c.b16 %v735, %v731
  %v1296 = vpack.c.b16 %v736, %v732
  %v1297 = vpack.c.b16 %v737, %v733
  %v1298 = vpack.c.b16 %v742, %v738
  %v1299 = vpack.c.b16 %v743, %v739
  %v1300 = vpack.c.b16 %v744, %v740
  %v1301 = vpack.c.b16 %v745, %v741
  %v1302 = vpack.c.b16 %v750, %v746
  %v1303 = vpack.c.b16 %v751, %v747
  %v1304 = vpack.c.b16 %v752, %v748
  %v1305 = vpack.c.b16 %v753, %v749
  %v1306 = vpack.c.b16 %v758, %v754
  %v1307 = vpack.c.b16 %v759, %v755
  %v1308 = vpack.c.b16 %v760, %v756
  %v1309 = vpack.c.b16 %v761, %v757
  %v1310 = vpack.c.b16 %v766, %v762
  %v1311 = vpack.c.b16 %v767, %v763
  %v1312 = vpack.c.b16 %v768, %v764
  %v1313 = vpack.c.b16 %v769, %v765
  %v1314 = vpack.c.b16 %v774, %v770
  %v1315 = vpack.c.b16 %v775, %v771
  %v1316 = vpack.c.b16 %v776, %v772
  %v1317 = vpack.c.b16 %v777, %v773
  %v1318 = vpack.c.b16 %v782, %v778
  %v1319 = vpack.c.b16 %v783, %v779
  %v1320 = vpack.c.b16 %v784, %v780
  %v1321 = vpack.c.b16 %v785, %v781
  %v1322 = vpack.c.b16 %v790, %v786
  %v1323 = vpack.c.b16 %v791, %v787
  %v1324 = vpack.c.b16 %v792, %v788
  %v1325 = vpack.c.b16 %v793, %v789
  %v1326 = vpack.c.b16 %v798, %v794
  %v1327 = vpack.c.b16 %v799, %v795
  %v1328 = vpack.c.b16 %v800, %v796
  %v1329 = vpack.c.b16 %v801, %v797
  %v1330 = vpack.c.b16 %v806, %v802
  %v1331 = vpack.c.b16 %v807, %v803
  %v1332 = vpack.c.b16 %v808, %v804
  %v1333 = vpack.c.b16 %v809, %v805
  %v1334 = vpack.c.b16 %v814, %v810
  %v1335 = vpack.c.b16 %v815, %v811
  %v1336 = vpack.c.b16 %v816, %v812
  %v1337 = vpack.c.b16 %v817, %v813
  %v1338 = vpack.c.b16 %v822, %v818
  %v1339 = vpack.c.b16 %v823, %v819
  %v1340 = vpack.c.b16 %v824, %v820
  %v1341 = vpack.c.b16 %v825, %v821
  %v1342 = vpack.c.b16 %v830, %v826
  %v1343 = vpack.c.b16 %v831, %v827
  %v1344 = vpack.c.b16 %v832, %v828
  %v1345 = vpack.c.b16 %v833, %v829
  %v1346 = vpack.c.b16 %v838, %v834
  %v1347 = vpack.c.b16 %v839, %v835
  %v1348 = vpack.c.b16 %v840, %v836
  %v1349 = vpack.c.b16 %v841, %v837
  %v1350 = vpack.c.b16 %v846, %v842
  %v1351 = vpack.c.b16 %v847, %v843
  %v1352 = vpack.c.b16 %v848, %v844
  %v1353 = vpack.c.b16 %v849, %v845
  %v1354 = vpack.c.b16 %v854, %v850
  %v1355 = vpack.c.b16 %v855, %v851
  %v1356 = vpack.c.b16 %v856, %v852
  %v1357 = vpack.c.b16 %v857, %v853
  %v1358 = vpack.c.b16 %v862, %v858
  %v1359 = vpack.c.b16 %v863, %v859
  %v1360 = vpack.c.b16 %v864, %v860
  %v1361 = vpack.c.b16 %v865, %v861
  %v1362 = vpack.c.b16 %v870, %v866
  %v1363 = vpack.c.b16 %v871, %v867
  %v1364 = vpack.c.b16 %v872, %v868
  %v1365 = vpack.c.b16 %v873, %v869
  %v1366 = vpack.c.b16 %v878, %v874
  %v1367 = vpack.c.b16 %v879, %v875
  %v1368 = vpack.c.b16 %v880, %v876
  %v1369 = vpack.c.b16 %v881, %v877
  %v1370 = vpack.c.b16 %v886, %v882
  %v1371 = vpack.c.b16 %v887, %v883
  %v1372 = vpack.c.b16 %v888, %v884
  %v1373 = vpack.c.b16 %v889, %v885
  %v1374 = vpack.c.b16 %v894, %v890
  %v1375 = vpack.c.b16 %v895, %v891
  %v1376 = vpack.c.b16 %v896, %v892
  %v1377 = vpack.c.b16 %v897, %v893
  %v1378 = vpack.c.b16 %v902, %v898
  %v1379 = vpack.c.b16 %v903, %v899
  %v1380 = vpack.c.b16 %v904, %v900
  %v1381 = vpack.c.b16 %v905, %v901
  %v1382 = vpack.c.b16 %v910, %v906
  %v1383 = vpack.c.b16 %v911, %v907
  %v1384 = vpack.c.b16 %v912, %v908
  %v1385 = vpack.c.b16 %v913, %v909
  %v1386 = vpack.c.b16 %v918, %v914
  %v1387 = vpack.c.b16 %v919, %v915
  %v1388 = vpack.c.b16 %v920, %v916
  %v1389 = vpack.c.b16 %v921, %v917
  %v1390 = vpack.c.b16 %v926, %v922
  %v1391 = vpack.c.b16 %v927, %v923
  %v1392 = vpack.c.b16 %v928, %v924
  %v1393 = vpack.c.b16 %v929, %v925
  %v1394 = vpack.c.b16 %v934, %v930
  %v1395 = vpack.c.b16 %v935, %v931
  %v1396 = vpack.c.b16 %v936, %v932
  %v1397 = vpack.c.b16 %v937, %v933
  %v1398 = vpack.c.b16 %v942, %v938
  %v1399 = vpack.c.b16 %v943, %v939
  %v1400 = vpack.c.b16 %v944, %v940
  %v1401 = vpack.c.b16 %v945, %v941
  %v1402 = vpack.c.b16 %v950, %v946
  %v1403 = vpack.c.b16 %v951, %v947
  %v1404 = vpack.c.b16 %v952, %v948
  %v1405 = vpack.c.b16 %v953, %v949
  %v1406 = vpack.c.b16 %v958, %v954
  %v1407 = vpack.c.b16 %v959, %v955
  %v1408 = vpack.c.b16 %v960, %v956
  %v1409 = vpack.c.b16 %v961, %v957
  %v1410 = vpack.c.b16 %v966, %v962
  %v1411 = vpack.c.b16 %v967, %v963
  %v1412 = vpack.c.b16 %v968, %v964
  %v1413 = vpack.c.b16 %v969, %v965
  %v1414 = vpack.c.b16 %v974, %v970
  %v1415 = vpack.c.b16 %v975, %v971
  %v1416 = vpack.c.b16 %v976, %v972
  %v1417 = vpack.c.b16 %v977, %v973
  %v1418 = vpack.c.b16 %v982, %v978
  %v1419 = vpack.c.b16 %v983, %v979
  %v1420 = vpack.c.b16 %v984, %v980
  %v1421 = vpack.c.b16 %v985, %v981
  %v1422 = vpack.c.b16 %v990, %v986
  %v1423 = vpack.c.b16 %v991, %v987
  %v1424 = vpack.c.b16 %v992, %v988
  %v1425 = vpack.c.b16 %v993, %v989
  %v1426 = vpack.c.b16 %v998, %v994
  %v1427 = vpack.c.b16 %v999, %v995
  %v1428 = vpack.c.b16 %v1000, %v996
  %v1429 = vpack.c.b16 %v1001, %v997
  %v1430 = vpack.c.b16 %v1006, %v1002
  %v1431 = vpack.c.b16 %v1007, %v1003
  %v1432 = vpack.c.b16 %v1008, %v1004
  %v1433 = vpack.c.b16 %v1009, %v1005
  %v1434 = vpack.c.b16 %v1014, %v1010
  %v1435 = vpack.c.b16 %v1015, %v1011
  %v1436 = vpack.c.b16 %v1016, %v1012
  %v1437 = vpack.c.b16 %v1017, %v1013
  %v1438 = vpack.c.b16 %v1022, %v1018
  %v1439 = vpack.c.b16 %v1023, %v1019
  %v1440 = vpack.c.b16 %v1024, %v1020
  %v1441 = vpack.c.b16 %v1025, %v1021
  %v1442 = vpack.c.b16 %v1030, %v1026
  %v1443 = vpack.c.b16 %v1031, %v1027
  %v1444 = vpack.c.b16 %v1032, %v1028
  %v1445 = vpack.c.b16 %v1033, %v1029
  %v1446 = vpack.c.b16 %v1038, %v1034
  %v1447 = vpack.c.b16 %v1039, %v1035
  %v1448 = vpack.c.b16 %v1040, %v1036
  %v1449 = vpack.c.b16 %v1041, %v1037
  %v1450 = vpack.c.b16 %v1046, %v1042
  %v1451 = vpack.c.b16 %v1047, %v1043
  %v1452 = vpack.c.b16 %v1048, %v1044
  %v1453 = vpack.c.b16 %v1049, %v1045
  %v1454 = vpack.c.b16 %v1054, %v1050
  %v1455 = vpack.c.b16 %v1055, %v1051
  %v1456 = vpack.c.b16 %v1056, %v1052
  %v1457 = vpack.c.b16 %v1057, %v1053
  %v1458 = vpack.c.b16 %v1062, %v1058
  %v1459 = vpack.c.b16 %v1063, %v1059
  %v1460 = vpack.c.b16 %v1064, %v1060
  %v1461 = vpack.c.b16 %v1065, %v1061
  %v1462 = vpack.c.b16 %v1070, %v1066
  %v1463 = vpack.c.b16 %v1071, %v1067
  %v1464 = vpack.c.b16 %v1072, %v1068
  %v1465 = vpack.c.b16 %v1073, %v1069
  %v1466 = vpack.c.b16 %v1078, %v1074
  %v1467 = vpack.c.b16 %v1079, %v1075
  %v1468 = vpack.c.b16 %v1080, %v1076
  %v1469 = vpack.c.b16 %v1081, %v1077
  %v1470 = vpack.c.b16 %v1086, %v1082
  %v1471 = vpack.c.b16 %v1087, %v1083
  %v1472 = vpack.c.b16 %v1088, %v1084
  %v1473 = vpack.c.b16 %v1089, %v1085
  %v1474 = vpack.c.b16 %v1094, %v1090
  %v1475 = vpack.c.b16 %v1095, %v1091
  %v1476 = vpack.c.b16 %v1096, %v1092
  %v1477 = vpack.c.b16 %v1097, %v1093
  %v1478 = vpack.c.b16 %v1102, %v1098
  %v1479 = vpack.c.b16 %v1103, %v1099
  %v1480 = vpack.c.b16 %v1104, %v1100
  %v1481 = vpack.c.b16 %v1105, %v1101
  %v1482 = vpack.c.b16 %v1110, %v1106
  %v1483 = vpack.c.b16 %v1111, %v1107
  %v1484 = vpack.c.b16 %v1112, %v1108
  %v1485 = vpack.c.b16 %v1113, %v1109
  %v1486 = vpack.c.b16 %v1118, %v1114
  %v1487 = vpack.c.b16 %v1119, %v1115
  %v1488 = vpack.c.b16 %v1120, %v1116
  %v1489 = vpack.c.b16 %v1121, %v1117
  %v1490 = vpack.c.b16 %v1126, %v1122
  %v1491 = vpack.c.b16 %v1127, %v1123
  %v1492 = vpack.c.b16 %v1128, %v1124
  %v1493 = vpack.c.b16 %v1129, %v1125
  %v1494 = vpack.c.b16 %v1134, %v1130
  %v1495 = vpack.c.b16 %v1135, %v1131
  %v1496 = vpack.c.b16 %v1136, %v1132
  %v1497 = vpack.c.b16 %v1137, %v1133
  %v1498 = vpack.c.b16 %v1142, %v1138
  %v1499 = vpack.c.b16 %v1143, %v1139
  %v1500 = vpack.c.b16 %v1144, %v1140
  %v1501 = vpack.c.b16 %v1145, %v1141
  %v1502 = vpack.c.b16 %v1150, %v1146
  %v1503 = vpack.c.b16 %v1151, %v1147
  %v1504 = vpack.c.b16 %v1152, %v1148
  %v1505 = vpack.c.b16 %v1153, %v1149
  %v1506 = vpack.c.b16 %v1158, %v1154
  %v1507 = vpack.c.b16 %v1159, %v1155
  %v1508 = vpack.c.b16 %v1160, %v1156
  %v1509 = vpack.c.b16 %v1161, %v1157
  %v1510 = vpack.c.b16 %v1166, %v1162
  %v1511 = vpack.c.b16 %v1167, %v1163
  %v1512 = vpack.c.b16 %v1168, %v1164
  %v1513 = vpack.c.b16 %v1169, %v1165
  %v1514 = vpack.c.b16 %v1174, %v1170
  %v1515 = vpack.c.b16 %v1175, %v1171
  %v1516 = vpack.c.b16 %v1176, %v1172
  %v1517 = vpack.c.b16 %v1177, %v1173
  %v1518 = vpack.c.b16 %v1182, %v1178
  %v1519 = vpack.c.b16 %v1183, %v1179
  %v1520 = vpack.c.b16 %v1184, %v1180
  %v1521 = vpack.c.b16 %v1185, %v1181
  %v1522 = vpack.c.b16 %v1190, %v1186
  %v1523 = vpack.c.b16 %v1191, %v1187
  %v1524 = vpack.c.b16 %v1192, %v1188
  %v1525 = vpack.c.b16 %v1193, %v1189
  %v1526 = vpack.c.b16 %v1198, %v1194
  %v1527 = vpack.c.b16 %v1199, %v1195
  %v1528 = vpack.c.b16 %v1200, %v1196
  %v1529 = vpack.c.b16 %v1201, %v1197
  %v1530 = vpack.c.b16 %v1206, %v1202
  %v1531 = vpack.c.b16 %v1207, %v1203
  %v1532 = vpack.c.b16 %v1208, %v1204
  %v1533 = vpack.c.b16 %v1209, %v1205
  %v1534 = vpack.c.b16 %v1214, %v1210
  %v1535 = vpack.c.b16 %v1215, %v1211
  %v1536 = vpack.c.b16 %v1216, %v1212
  %v1537 = vpack.c.b16 %v1217, %v1213
  %v1538 = vpack.c.b16 %v1222, %v1218
  %v1539 = vpack.c.b16 %v1223, %v1219
  %v1540 = vpack.c.b16 %v1224, %v1220
  %v1541 = vpack.c.b16 %v1225, %v1221
  %v1542 = vpack.c.b16 %v1230, %v1226
  %v1543 = vpack.c.b16 %v1231, %v1227
  %v1544 = vpack.c.b16 %v1232, %v1228
  %v1545 = vpack.c.b16 %v1233, %v1229
  %v1546 = vpack.c.b16 %v1238, %v1234
  %v1547 = vpack.c.b16 %v1239, %v1235
  %v1548 = vpack.c.b16 %v1240, %v1236
  %v1549 = vpack.c.b16 %v1241, %v1237
  %v1550 = vpack.c.b16 %v1246, %v1242
  %v1551 = vpack.c.b16 %v1247, %v1243
  %v1552 = vpack.c.b16 %v1248, %v1244
  %v1553 = vpack.c.b16 %v1249, %v1245
  %v1554 = vpack.c.b16 %v1254, %v1250
  %v1555 = vpack.c.b16 %v1255, %v1251
  %v1556 = vpack.c.b16 %v1256, %v1252
  %v1557 = vpack.c.b16 %v1257, %v1253
  %v1558 = vpack.c.b16 %v1262, %v1258
  %v1559 = vpack.c.b16 %v1263, %v1259
  %v1560 = vpack.c.b16 %v1264, %v1260
  %v1561 = vpack.c.b16 %v1265, %v1261
  %v1562 = vpack.c.b16 %v1270, %v1266
  %v1563 = vpack.c.b16 %v1271, %v1267
  %v1564 = vpack.c.b16 %v1272, %v1268
  %v1565 = vpack.c.b16 %v1273, %v1269
  %v1566 = vpack.c.b16 %v1278, %v1274
  %v1567 = vpack.c.b16 %v1279, %v1275
  %v1568 = vpack.c.b16 %v1280, %v1276
  %v1569 = vpack.c.b16 %v1281, %v1277
  %1858 = vmatprep.subr.bf16.mxu0 %v1283
  %1859 = vmatpush1.bf16.msra.mxu0 %v1282
  %1860 = vmatprep.subr.bf16.mxu0 %v1287
  %1861 = vmatpush1.bf16.msra.mxu0 %v1286
  %1862 = vmatprep.subr.bf16.mxu0 %v1291
  %1863 = vmatpush1.bf16.msra.mxu0 %v1290
  %1864 = vmatprep.subr.bf16.mxu0 %v1295
  %1865 = vmatpush1.bf16.msra.mxu0 %v1294
  %1866 = vmatprep.subr.bf16.mxu0 %v1299
  %1867 = vmatpush1.bf16.msra.mxu0 %v1298
  %1868 = vmatprep.subr.bf16.mxu0 %v1303
  %1869 = vmatpush1.bf16.msra.mxu0 %v1302
  %1870 = vmatprep.subr.bf16.mxu0 %v1307
  %1871 = vmatpush1.bf16.msra.mxu0 %v1306
  %1872 = vmatprep.subr.bf16.mxu0 %v1311
  %1873 = vmatpush1.bf16.msra.mxu0 %v1310
  %1874 = vmatprep.subr.bf16.mxu0 %v1315
  %1875 = vmatpush1.bf16.msra.mxu0 %v1314
  %1876 = vmatprep.subr.bf16.mxu0 %v1319
  %1877 = vmatpush1.bf16.msra.mxu0 %v1318
  %1878 = vmatprep.subr.bf16.mxu0 %v1323
  %1879 = vmatpush1.bf16.msra.mxu0 %v1322
  %1880 = vmatprep.subr.bf16.mxu0 %v1327
  %1881 = vmatpush1.bf16.msra.mxu0 %v1326
  %1882 = vmatprep.subr.bf16.mxu0 %v1331
  %1883 = vmatpush1.bf16.msra.mxu0 %v1330
  %1884 = vmatprep.subr.bf16.mxu0 %v1335
  %1885 = vmatpush1.bf16.msra.mxu0 %v1334
  %1886 = vmatprep.subr.bf16.mxu0 %v1339
  %1887 = vmatpush1.bf16.msra.mxu0 %v1338
  %1888 = vmatprep.subr.bf16.mxu0 %v1343
  %1889 = vmatpush1.bf16.msra.mxu0 %v1342
  %1890 = vmatprep.mubr.bf16.mxu0 %v383
  %1891 = vmatmul.mubr.bf16.gmra.mrb[0].mxu0 %v382
  %v1892 = vpop.f32.mrb[0].mxu0
  %v1893 = vadd.f32 0.0, %v1892
  %v1894 = vpop.f32.mrb[0].mxu0
  %v1895 = vadd.f32 0.0, %v1894
  %v1896 = vpop.f32.mrb[0].mxu0
  %v1897 = vadd.f32 0.0, %v1896
  %v1898 = vpop.f32.mrb[0].mxu0
  %v1899 = vadd.f32 0.0, %v1898
  %1900 = vmatprep.mubr.bf16.mxu0 %v392
  %1901 = vmatmul.mubr.bf16.gmra.mrb[0].mxu0 %v391
  %v1902 = vpop.f32.mrb[0].mxu0
  %v1903 = vadd.f32 0.0, %v1902
  %v1904 = vpop.f32.mrb[0].mxu0
  %v1905 = vadd.f32 0.0, %v1904
  %v1906 = vpop.f32.mrb[0].mxu0
  %v1907 = vadd.f32 0.0, %v1906
  %v1908 = vpop.f32.mrb[0].mxu0
  %v1909 = vadd.f32 0.0, %v1908
  %1910 = vdwg.mxu0
  %1911 = vmatprep.subr.bf16.mxu0 %v1347
  %1912 = vmatpush1.bf16.msra.mxu0 %v1346
  %1913 = vmatprep.subr.bf16.mxu0 %v1351
  %1914 = vmatpush1.bf16.msra.mxu0 %v1350
  %1915 = vmatprep.subr.bf16.mxu0 %v1355
  %1916 = vmatpush1.bf16.msra.mxu0 %v1354
  %1917 = vmatprep.subr.bf16.mxu0 %v1359
  %1918 = vmatpush1.bf16.msra.mxu0 %v1358
  %1919 = vmatprep.subr.bf16.mxu0 %v1363
  %1920 = vmatpush1.bf16.msra.mxu0 %v1362
  %1921 = vmatprep.subr.bf16.mxu0 %v1367
  %1922 = vmatpush1.bf16.msra.mxu0 %v1366
  %1923 = vmatprep.subr.bf16.mxu0 %v1371
  %1924 = vmatpush1.bf16.msra.mxu0 %v1370
  %1925 = vmatprep.subr.bf16.mxu0 %v1375
  %1926 = vmatpush1.bf16.msra.mxu0 %v1374
  %1927 = vmatprep.subr.bf16.mxu0 %v1379
  %1928 = vmatpush1.bf16.msra.mxu0 %v1378
  %1929 = vmatprep.subr.bf16.mxu0 %v1383
  %1930 = vmatpush1.bf16.msra.mxu0 %v1382
  %1931 = vmatprep.subr.bf16.mxu0 %v1387
  %1932 = vmatpush1.bf16.msra.mxu0 %v1386
  %1933 = vmatprep.subr.bf16.mxu0 %v1391
  %1934 = vmatpush1.bf16.msra.mxu0 %v1390
  %1935 = vmatprep.subr.bf16.mxu0 %v1395
  %1936 = vmatpush1.bf16.msra.mxu0 %v1394
  %1937 = vmatprep.subr.bf16.mxu0 %v1399
  %1938 = vmatpush1.bf16.msra.mxu0 %v1398
  %1939 = vmatprep.subr.bf16.mxu0 %v1403
  %1940 = vmatpush1.bf16.msra.mxu0 %v1402
  %1941 = vmatprep.subr.bf16.mxu0 %v1407
  %1942 = vmatpush1.bf16.msra.mxu0 %v1406
  %1943 = vmatprep.mubr.bf16.mxu0 %v385
  %1944 = vmatmul.mubr.bf16.gmra.mrb[0].mxu0 %v384
  %v1945 = vpop.f32.mrb[0].mxu0
  %v1946 = vadd.f32 %v1893, %v1945
  %v1947 = vpop.f32.mrb[0].mxu0
  %v1948 = vadd.f32 %v1895, %v1947
  %v1949 = vpop.f32.mrb[0].mxu0
  %v1950 = vadd.f32 %v1897, %v1949
  %v1951 = vpop.f32.mrb[0].mxu0
  %v1952 = vadd.f32 %v1899, %v1951
  %1953 = vmatprep.mubr.bf16.mxu0 %v394
  %1954 = vmatmul.mubr.bf16.gmra.mrb[0].mxu0 %v393
  %v1955 = vpop.f32.mrb[0].mxu0
  %v1956 = vadd.f32 %v1903, %v1955
  %v1957 = vpop.f32.mrb[0].mxu0
  %v1958 = vadd.f32 %v1905, %v1957
  %v1959 = vpop.f32.mrb[0].mxu0
  %v1960 = vadd.f32 %v1907, %v1959
  %v1961 = vpop.f32.mrb[0].mxu0
  %v1962 = vadd.f32 %v1909, %v1961
  %1963 = vdwg.mxu0
  %1964 = vmatprep.subr.bf16.mxu0 %v1411
  %1965 = vmatpush1.bf16.msra.mxu0 %v1410
  %1966 = vmatprep.subr.bf16.mxu0 %v1415
  %1967 = vmatpush1.bf16.msra.mxu0 %v1414
  %1968 = vmatprep.subr.bf16.mxu0 %v1419
  %1969 = vmatpush1.bf16.msra.mxu0 %v1418
  %1970 = vmatprep.subr.bf16.mxu0 %v1423
  %1971 = vmatpush1.bf16.msra.mxu0 %v1422
  %1972 = vmatprep.subr.bf16.mxu0 %v1427
  %1973 = vmatpush1.bf16.msra.mxu0 %v1426
  %1974 = vmatprep.subr.bf16.mxu0 %v1431
  %1975 = vmatpush1.bf16.msra.mxu0 %v1430
  %1976 = vmatprep.subr.bf16.mxu0 %v1435
  %1977 = vmatpush1.bf16.msra.mxu0 %v1434
  %1978 = vmatprep.subr.bf16.mxu0 %v1439
  %1979 = vmatpush1.bf16.msra.mxu0 %v1438
  %1980 = vmatprep.subr.bf16.mxu0 %v1443
  %1981 = vmatpush1.bf16.msra.mxu0 %v1442
  %1982 = vmatprep.subr.bf16.mxu0 %v1447
  %1983 = vmatpush1.bf16.msra.mxu0 %v1446
  %1984 = vmatprep.subr.bf16.mxu0 %v1451
  %1985 = vmatpush1.bf16.msra.mxu0 %v1450
  %1986 = vmatprep.subr.bf16.mxu0 %v1455
  %1987 = vmatpush1.bf16.msra.mxu0 %v1454
  %1988 = vmatprep.subr.bf16.mxu0 %v1459
  %1989 = vmatpush1.bf16.msra.mxu0 %v1458
  %1990 = vmatprep.subr.bf16.mxu0 %v1463
  %1991 = vmatpush1.bf16.msra.mxu0 %v1462
  %1992 = vmatprep.subr.bf16.mxu0 %v1467
  %1993 = vmatpush1.bf16.msra.mxu0 %v1466
  %1994 = vmatprep.subr.bf16.mxu0 %v1471
  %1995 = vmatpush1.bf16.msra.mxu0 %v1470
  %1996 = vmatprep.mubr.bf16.mxu0 %v387
  %1997 = vmatmul.mubr.bf16.gmra.mrb[0].mxu0 %v386
  %v1998 = vpop.f32.mrb[0].mxu0
  %v1999 = vadd.f32 %v1946, %v1998
  %v2000 = vpop.f32.mrb[0].mxu0
  %v2001 = vadd.f32 %v1948, %v2000
  %v2002 = vpop.f32.mrb[0].mxu0
  %v2003 = vadd.f32 %v1950, %v2002
  %v2004 = vpop.f32.mrb[0].mxu0
  %v2005 = vadd.f32 %v1952, %v2004
  %2006 = vmatprep.mubr.bf16.mxu0 %v396
  %2007 = vmatmul.mubr.bf16.gmra.mrb[0].mxu0 %v395
  %v2008 = vpop.f32.mrb[0].mxu0
  %v2009 = vadd.f32 %v1956, %v2008
  %v2010 = vpop.f32.mrb[0].mxu0
  %v2011 = vadd.f32 %v1958, %v2010
  %v2012 = vpop.f32.mrb[0].mxu0
  %v2013 = vadd.f32 %v1960, %v2012
  %v2014 = vpop.f32.mrb[0].mxu0
  %v2015 = vadd.f32 %v1962, %v2014
  %2016 = vdwg.mxu0
  %2017 = vmatprep.subr.bf16.mxu0 %v1475
  %2018 = vmatpush1.bf16.msra.mxu0 %v1474
  %2019 = vmatprep.subr.bf16.mxu0 %v1479
  %2020 = vmatpush1.bf16.msra.mxu0 %v1478
  %2021 = vmatprep.subr.bf16.mxu0 %v1483
  %2022 = vmatpush1.bf16.msra.mxu0 %v1482
  %2023 = vmatprep.subr.bf16.mxu0 %v1487
  %2024 = vmatpush1.bf16.msra.mxu0 %v1486
  %2025 = vmatprep.subr.bf16.mxu0 %v1491
  %2026 = vmatpush1.bf16.msra.mxu0 %v1490
  %2027 = vmatprep.subr.bf16.mxu0 %v1495
  %2028 = vmatpush1.bf16.msra.mxu0 %v1494
  %2029 = vmatprep.subr.bf16.mxu0 %v1499
  %2030 = vmatpush1.bf16.msra.mxu0 %v1498
  %2031 = vmatprep.subr.bf16.mxu0 %v1503
  %2032 = vmatpush1.bf16.msra.mxu0 %v1502
  %2033 = vmatprep.subr.bf16.mxu0 %v1507
  %2034 = vmatpush1.bf16.msra.mxu0 %v1506
  %2035 = vmatprep.subr.bf16.mxu0 %v1511
  %2036 = vmatpush1.bf16.msra.mxu0 %v1510
  %2037 = vmatprep.subr.bf16.mxu0 %v1515
  %2038 = vmatpush1.bf16.msra.mxu0 %v1514
  %2039 = vmatprep.subr.bf16.mxu0 %v1519
  %2040 = vmatpush1.bf16.msra.mxu0 %v1518
  %2041 = vmatprep.subr.bf16.mxu0 %v1523
  %2042 = vmatpush1.bf16.msra.mxu0 %v1522
  %2043 = vmatprep.subr.bf16.mxu0 %v1527
  %2044 = vmatpush1.bf16.msra.mxu0 %v1526
  %2045 = vmatprep.subr.bf16.mxu0 %v1531
  %2046 = vmatpush1.bf16.msra.mxu0 %v1530
  %2047 = vmatprep.subr.bf16.mxu0 %v1535
  %2048 = vmatpush1.bf16.msra.mxu0 %v1534
  %2049 = vmatprep.mubr.bf16.mxu0 %v389
  %2050 = vmatmul.mubr.bf16.gmra.mrb[0].mxu0 %v388
  %v2051 = vpop.f32.mrb[0].mxu0
  %v2052 = vadd.f32 %v1999, %v2051
  %v2053 = vpop.f32.mrb[0].mxu0
  %v2054 = vadd.f32 %v2001, %v2053
  %v2055 = vpop.f32.mrb[0].mxu0
  %v2056 = vadd.f32 %v2003, %v2055
  %v2057 = vpop.f32.mrb[0].mxu0
  %v2058 = vadd.f32 %v2005, %v2057
  %2059 = vmatprep.mubr.bf16.mxu0 %v398
  %2060 = vmatmul.mubr.bf16.gmra.mrb[0].mxu0 %v397
  %v2061 = vpop.f32.mrb[0].mxu0
  %v2062 = vadd.f32 %v2009, %v2061
  %v2063 = vpop.f32.mrb[0].mxu0
  %v2064 = vadd.f32 %v2011, %v2063
  %v2065 = vpop.f32.mrb[0].mxu0
  %v2066 = vadd.f32 %v2013, %v2065
  %v2067 = vpop.f32.mrb[0].mxu0
  %v2068 = vadd.f32 %v2015, %v2067
  %2069 = vdwg.mxu0
  %2070 = vmatprep.subr.bf16.mxu0 %v1539
  %2071 = vmatpush1.bf16.msra.mxu0 %v1538
  %2072 = vmatprep.subr.bf16.mxu0 %v1543
  %2073 = vmatpush1.bf16.msra.mxu0 %v1542
  %2074 = vmatprep.subr.bf16.mxu0 %v1547
  %2075 = vmatpush1.bf16.msra.mxu0 %v1546
  %2076 = vmatprep.subr.bf16.mxu0 %v1551
  %2077 = vmatpush1.bf16.msra.mxu0 %v1550
  %2078 = vmatprep.subr.bf16.mxu0 %v1555
  %2079 = vmatpush1.bf16.msra.mxu0 %v1554
  %2080 = vmatprep.subr.bf16.mxu0 %v1559
  %2081 = vmatpush1.bf16.msra.mxu0 %v1558
  %2082 = vmatprep.subr.bf16.mxu0 %v1563
  %2083 = vmatpush1.bf16.msra.mxu0 %v1562
  %2084 = vmatprep.subr.bf16.mxu0 %v1567
  %2085 = vmatpush1.bf16.msra.mxu0 %v1566
  %2086 = vmatprep.subr.bf16.mxu0 0
  %2087 = vmatpush1.bf16.msra.mxu0 0
  %2088 = vmatprep.subr.bf16.mxu0 0
  %2089 = vmatpush1.bf16.msra.mxu0 0
  %2090 = vmatprep.subr.bf16.mxu0 0
  %2091 = vmatpush1.bf16.msra.mxu0 0
  %2092 = vmatprep.subr.bf16.mxu0 0
  %2093 = vmatpush1.bf16.msra.mxu0 0
  %2094 = vmatprep.subr.bf16.mxu0 0
  %2095 = vmatpush1.bf16.msra.mxu0 0
  %2096 = vmatprep.subr.bf16.mxu0 0
  %2097 = vmatpush1.bf16.msra.mxu0 0
  %2098 = vmatprep.subr.bf16.mxu0 0
  %2099 = vmatpush1.bf16.msra.mxu0 0
  %2100 = vmatprep.subr.bf16.mxu0 0
  %2101 = vmatpush1.bf16.msra.mxu0 0
  %2102 = vmatprep.mubr.bf16.mxu0 0
  %2103 = vmatmul.mubr.bf16.gmra.mrb[0].mxu0 %v390
  %v2104 = vpop.f32.mrb[0].mxu0
  %v2105 = vadd.f32 %v2052, %v2104
  %v2106 = vpop.f32.mrb[0].mxu0
  %v2107 = vadd.f32 %v2054, %v2106
  %v2108 = vpop.f32.mrb[0].mxu0
  %v2109 = vadd.f32 %v2056, %v2108
  %v2110 = vpop.f32.mrb[0].mxu0
  %v2111 = vadd.f32 %v2058, %v2110
  %2112 = vmatprep.mubr.bf16.mxu0 0
  %2113 = vmatmul.mubr.bf16.gmra.mrb[0].mxu0 %v399
  %v2114 = vpop.f32.mrb[0].mxu0
  %v2115 = vadd.f32 %v2062, %v2114
  %v2116 = vpop.f32.mrb[0].mxu0
  %v2117 = vadd.f32 %v2064, %v2116
  %v2118 = vpop.f32.mrb[0].mxu0
  %v2119 = vadd.f32 %v2066, %v2118
  %v2120 = vpop.f32.mrb[0].mxu0
  %v2121 = vadd.f32 %v2068, %v2120
  %2122 = vdwg.mxu0
  %2123 = vmatprep.subr.bf16.mxu0 %v1285
  %2124 = vmatpush1.bf16.msra.mxu0 %v1284
  %2125 = vmatprep.subr.bf16.mxu0 %v1289
  %2126 = vmatpush1.bf16.msra.mxu0 %v1288
  %2127 = vmatprep.subr.bf16.mxu0 %v1293
  %2128 = vmatpush1.bf16.msra.mxu0 %v1292
  %2129 = vmatprep.subr.bf16.mxu0 %v1297
  %2130 = vmatpush1.bf16.msra.mxu0 %v1296
  %2131 = vmatprep.subr.bf16.mxu0 %v1301
  %2132 = vmatpush1.bf16.msra.mxu0 %v1300
  %2133 = vmatprep.subr.bf16.mxu0 %v1305
  %2134 = vmatpush1.bf16.msra.mxu0 %v1304
  %2135 = vmatprep.subr.bf16.mxu0 %v1309
  %2136 = vmatpush1.bf16.msra.mxu0 %v1308
  %2137 = vmatprep.subr.bf16.mxu0 %v1313
  %2138 = vmatpush1.bf16.msra.mxu0 %v1312
  %2139 = vmatprep.subr.bf16.mxu0 %v1317
  %2140 = vmatpush1.bf16.msra.mxu0 %v1316
  %2141 = vmatprep.subr.bf16.mxu0 %v1321
  %2142 = vmatpush1.bf16.msra.mxu0 %v1320
  %2143 = vmatprep.subr.bf16.mxu0 %v1325
  %2144 = vmatpush1.bf16.msra.mxu0 %v1324
  %2145 = vmatprep.subr.bf16.mxu0 %v1329
  %2146 = vmatpush1.bf16.msra.mxu0 %v1328
  %2147 = vmatprep.subr.bf16.mxu0 %v1333
  %2148 = vmatpush1.bf16.msra.mxu0 %v1332
  %2149 = vmatprep.subr.bf16.mxu0 %v1337
  %2150 = vmatpush1.bf16.msra.mxu0 %v1336
  %2151 = vmatprep.subr.bf16.mxu0 %v1341
  %2152 = vmatpush1.bf16.msra.mxu0 %v1340
  %2153 = vmatprep.subr.bf16.mxu0 %v1345
  %2154 = vmatpush1.bf16.msra.mxu0 %v1344
  %2155 = vmatprep.mubr.bf16.mxu0 %v383
  %2156 = vmatmul.mubr.bf16.gmra.mrb[0].mxu0 %v382
  %v2157 = vpop.f32.mrb[0].mxu0
  %v2158 = vadd.f32 0.0, %v2157
  %v2159 = vpop.f32.mrb[0].mxu0
  %v2160 = vadd.f32 0.0, %v2159
  %v2161 = vpop.f32.mrb[0].mxu0
  %v2162 = vadd.f32 0.0, %v2161
  %v2163 = vpop.f32.mrb[0].mxu0
  %v2164 = vadd.f32 0.0, %v2163
  %2165 = vmatprep.mubr.bf16.mxu0 %v392
  %2166 = vmatmul.mubr.bf16.gmra.mrb[0].mxu0 %v391
  %v2167 = vpop.f32.mrb[0].mxu0
  %v2168 = vadd.f32 0.0, %v2167
  %v2169 = vpop.f32.mrb[0].mxu0
  %v2170 = vadd.f32 0.0, %v2169
  %v2171 = vpop.f32.mrb[0].mxu0
  %v2172 = vadd.f32 0.0, %v2171
  %v2173 = vpop.f32.mrb[0].mxu0
  %v2174 = vadd.f32 0.0, %v2173
  %2175 = vdwg.mxu0
  %2176 = vmatprep.subr.bf16.mxu0 %v1349
  %2177 = vmatpush1.bf16.msra.mxu0 %v1348
  %2178 = vmatprep.subr.bf16.mxu0 %v1353
  %2179 = vmatpush1.bf16.msra.mxu0 %v1352
  %2180 = vmatprep.subr.bf16.mxu0 %v1357
  %2181 = vmatpush1.bf16.msra.mxu0 %v1356
  %2182 = vmatprep.subr.bf16.mxu0 %v1361
  %2183 = vmatpush1.bf16.msra.mxu0 %v1360
  %2184 = vmatprep.subr.bf16.mxu0 %v1365
  %2185 = vmatpush1.bf16.msra.mxu0 %v1364
  %2186 = vmatprep.subr.bf16.mxu0 %v1369
  %2187 = vmatpush1.bf16.msra.mxu0 %v1368
  %2188 = vmatprep.subr.bf16.mxu0 %v1373
  %2189 = vmatpush1.bf16.msra.mxu0 %v1372
  %2190 = vmatprep.subr.bf16.mxu0 %v1377
  %2191 = vmatpush1.bf16.msra.mxu0 %v1376
  %2192 = vmatprep.subr.bf16.mxu0 %v1381
  %2193 = vmatpush1.bf16.msra.mxu0 %v1380
  %2194 = vmatprep.subr.bf16.mxu0 %v1385
  %2195 = vmatpush1.bf16.msra.mxu0 %v1384
  %2196 = vmatprep.subr.bf16.mxu0 %v1389
  %2197 = vmatpush1.bf16.msra.mxu0 %v1388
  %2198 = vmatprep.subr.bf16.mxu0 %v1393
  %2199 = vmatpush1.bf16.msra.mxu0 %v1392
  %2200 = vmatprep.subr.bf16.mxu0 %v1397
  %2201 = vmatpush1.bf16.msra.mxu0 %v1396
  %2202 = vmatprep.subr.bf16.mxu0 %v1401
  %2203 = vmatpush1.bf16.msra.mxu0 %v1400
  %2204 = vmatprep.subr.bf16.mxu0 %v1405
  %2205 = vmatpush1.bf16.msra.mxu0 %v1404
  %2206 = vmatprep.subr.bf16.mxu0 %v1409
  %2207 = vmatpush1.bf16.msra.mxu0 %v1408
  %2208 = vmatprep.mubr.bf16.mxu0 %v385
  %2209 = vmatmul.mubr.bf16.gmra.mrb[0].mxu0 %v384
  %v2210 = vpop.f32.mrb[0].mxu0
  %v2211 = vadd.f32 %v2158, %v2210
  %v2212 = vpop.f32.mrb[0].mxu0
  %v2213 = vadd.f32 %v2160, %v2212
  %v2214 = vpop.f32.mrb[0].mxu0
  %v2215 = vadd.f32 %v2162, %v2214
  %v2216 = vpop.f32.mrb[0].mxu0
  %v2217 = vadd.f32 %v2164, %v2216
  %2218 = vmatprep.mubr.bf16.mxu0 %v394
  %2219 = vmatmul.mubr.bf16.gmra.mrb[0].mxu0 %v393
  %v2220 = vpop.f32.mrb[0].mxu0
  %v2221 = vadd.f32 %v2168, %v2220
  %v2222 = vpop.f32.mrb[0].mxu0
  %v2223 = vadd.f32 %v2170, %v2222
  %v2224 = vpop.f32.mrb[0].mxu0
  %v2225 = vadd.f32 %v2172, %v2224
  %v2226 = vpop.f32.mrb[0].mxu0
  %v2227 = vadd.f32 %v2174, %v2226
  %2228 = vdwg.mxu0
  %2229 = vmatprep.subr.bf16.mxu0 %v1413
  %2230 = vmatpush1.bf16.msra.mxu0 %v1412
  %2231 = vmatprep.subr.bf16.mxu0 %v1417
  %2232 = vmatpush1.bf16.msra.mxu0 %v1416
  %2233 = vmatprep.subr.bf16.mxu0 %v1421
  %2234 = vmatpush1.bf16.msra.mxu0 %v1420
  %2235 = vmatprep.subr.bf16.mxu0 %v1425
  %2236 = vmatpush1.bf16.msra.mxu0 %v1424
  %2237 = vmatprep.subr.bf16.mxu0 %v1429
  %2238 = vmatpush1.bf16.msra.mxu0 %v1428
  %2239 = vmatprep.subr.bf16.mxu0 %v1433
  %2240 = vmatpush1.bf16.msra.mxu0 %v1432
  %2241 = vmatprep.subr.bf16.mxu0 %v1437
  %2242 = vmatpush1.bf16.msra.mxu0 %v1436
  %2243 = vmatprep.subr.bf16.mxu0 %v1441
  %2244 = vmatpush1.bf16.msra.mxu0 %v1440
  %2245 = vmatprep.subr.bf16.mxu0 %v1445
  %2246 = vmatpush1.bf16.msra.mxu0 %v1444
  %2247 = vmatprep.subr.bf16.mxu0 %v1449
  %2248 = vmatpush1.bf16.msra.mxu0 %v1448
  %2249 = vmatprep.subr.bf16.mxu0 %v1453
  %2250 = vmatpush1.bf16.msra.mxu0 %v1452
  %2251 = vmatprep.subr.bf16.mxu0 %v1457
  %2252 = vmatpush1.bf16.msra.mxu0 %v1456
  %2253 = vmatprep.subr.bf16.mxu0 %v1461
  %2254 = vmatpush1.bf16.msra.mxu0 %v1460
  %2255 = vmatprep.subr.bf16.mxu0 %v1465
  %2256 = vmatpush1.bf16.msra.mxu0 %v1464
  %2257 = vmatprep.subr.bf16.mxu0 %v1469
  %2258 = vmatpush1.bf16.msra.mxu0 %v1468
  %2259 = vmatprep.subr.bf16.mxu0 %v1473
  %2260 = vmatpush1.bf16.msra.mxu0 %v1472
  %2261 = vmatprep.mubr.bf16.mxu0 %v387
  %2262 = vmatmul.mubr.bf16.gmra.mrb[0].mxu0 %v386
  %v2263 = vpop.f32.mrb[0].mxu0
  %v2264 = vadd.f32 %v2211, %v2263
  %v2265 = vpop.f32.mrb[0].mxu0
  %v2266 = vadd.f32 %v2213, %v2265
  %v2267 = vpop.f32.mrb[0].mxu0
  %v2268 = vadd.f32 %v2215, %v2267
  %v2269 = vpop.f32.mrb[0].mxu0
  %v2270 = vadd.f32 %v2217, %v2269
  %2271 = vmatprep.mubr.bf16.mxu0 %v396
  %2272 = vmatmul.mubr.bf16.gmra.mrb[0].mxu0 %v395
  %v2273 = vpop.f32.mrb[0].mxu0
  %v2274 = vadd.f32 %v2221, %v2273
  %v2275 = vpop.f32.mrb[0].mxu0
  %v2276 = vadd.f32 %v2223, %v2275
  %v2277 = vpop.f32.mrb[0].mxu0
  %v2278 = vadd.f32 %v2225, %v2277
  %v2279 = vpop.f32.mrb[0].mxu0
  %v2280 = vadd.f32 %v2227, %v2279
  %2281 = vdwg.mxu0
  %2282 = vmatprep.subr.bf16.mxu0 %v1477
  %2283 = vmatpush1.bf16.msra.mxu0 %v1476
  %2284 = vmatprep.subr.bf16.mxu0 %v1481
  %2285 = vmatpush1.bf16.msra.mxu0 %v1480
  %2286 = vmatprep.subr.bf16.mxu0 %v1485
  %2287 = vmatpush1.bf16.msra.mxu0 %v1484
  %2288 = vmatprep.subr.bf16.mxu0 %v1489
  %2289 = vmatpush1.bf16.msra.mxu0 %v1488
  %2290 = vmatprep.subr.bf16.mxu0 %v1493
  %2291 = vmatpush1.bf16.msra.mxu0 %v1492
  %2292 = vmatprep.subr.bf16.mxu0 %v1497
  %2293 = vmatpush1.bf16.msra.mxu0 %v1496
  %2294 = vmatprep.subr.bf16.mxu0 %v1501
  %2295 = vmatpush1.bf16.msra.mxu0 %v1500
  %2296 = vmatprep.subr.bf16.mxu0 %v1505
  %2297 = vmatpush1.bf16.msra.mxu0 %v1504
  %2298 = vmatprep.subr.bf16.mxu0 %v1509
  %2299 = vmatpush1.bf16.msra.mxu0 %v1508
  %2300 = vmatprep.subr.bf16.mxu0 %v1513
  %2301 = vmatpush1.bf16.msra.mxu0 %v1512
  %2302 = vmatprep.subr.bf16.mxu0 %v1517
  %2303 = vmatpush1.bf16.msra.mxu0 %v1516
  %2304 = vmatprep.subr.bf16.mxu0 %v1521
  %2305 = vmatpush1.bf16.msra.mxu0 %v1520
  %2306 = vmatprep.subr.bf16.mxu0 %v1525
  %2307 = vmatpush1.bf16.msra.mxu0 %v1524
  %2308 = vmatprep.subr.bf16.mxu0 %v1529
  %2309 = vmatpush1.bf16.msra.mxu0 %v1528
  %2310 = vmatprep.subr.bf16.mxu0 %v1533
  %2311 = vmatpush1.bf16.msra.mxu0 %v1532
  %2312 = vmatprep.subr.bf16.mxu0 %v1537
  %2313 = vmatpush1.bf16.msra.mxu0 %v1536
  %2314 = vmatprep.mubr.bf16.mxu0 %v389
  %2315 = vmatmul.mubr.bf16.gmra.mrb[0].mxu0 %v388
  %v2316 = vpop.f32.mrb[0].mxu0
  %v2317 = vadd.f32 %v2264, %v2316
  %v2318 = vpop.f32.mrb[0].mxu0
  %v2319 = vadd.f32 %v2266, %v2318
  %v2320 = vpop.f32.mrb[0].mxu0
  %v2321 = vadd.f32 %v2268, %v2320
  %v2322 = vpop.f32.mrb[0].mxu0
  %v2323 = vadd.f32 %v2270, %v2322
  %2324 = vmatprep.mubr.bf16.mxu0 %v398
  %2325 = vmatmul.mubr.bf16.gmra.mrb[0].mxu0 %v397
  %v2326 = vpop.f32.mrb[0].mxu0
  %v2327 = vadd.f32 %v2274, %v2326
  %v2328 = vpop.f32.mrb[0].mxu0
  %v2329 = vadd.f32 %v2276, %v2328
  %v2330 = vpop.f32.mrb[0].mxu0
  %v2331 = vadd.f32 %v2278, %v2330
  %v2332 = vpop.f32.mrb[0].mxu0
  %v2333 = vadd.f32 %v2280, %v2332
  %2334 = vdwg.mxu0
  %2335 = vmatprep.subr.bf16.mxu0 %v1541
  %2336 = vmatpush1.bf16.msra.mxu0 %v1540
  %2337 = vmatprep.subr.bf16.mxu0 %v1545
  %2338 = vmatpush1.bf16.msra.mxu0 %v1544
  %2339 = vmatprep.subr.bf16.mxu0 %v1549
  %2340 = vmatpush1.bf16.msra.mxu0 %v1548
  %2341 = vmatprep.subr.bf16.mxu0 %v1553
  %2342 = vmatpush1.bf16.msra.mxu0 %v1552
  %2343 = vmatprep.subr.bf16.mxu0 %v1557
  %2344 = vmatpush1.bf16.msra.mxu0 %v1556
  %2345 = vmatprep.subr.bf16.mxu0 %v1561
  %2346 = vmatpush1.bf16.msra.mxu0 %v1560
  %2347 = vmatprep.subr.bf16.mxu0 %v1565
  %2348 = vmatpush1.bf16.msra.mxu0 %v1564
  %2349 = vmatprep.subr.bf16.mxu0 %v1569
  %2350 = vmatpush1.bf16.msra.mxu0 %v1568
  %2351 = vmatprep.subr.bf16.mxu0 0
  %2352 = vmatpush1.bf16.msra.mxu0 0
  %2353 = vmatprep.subr.bf16.mxu0 0
  %2354 = vmatpush1.bf16.msra.mxu0 0
  %2355 = vmatprep.subr.bf16.mxu0 0
  %2356 = vmatpush1.bf16.msra.mxu0 0
  %2357 = vmatprep.subr.bf16.mxu0 0
  %2358 = vmatpush1.bf16.msra.mxu0 0
  %2359 = vmatprep.subr.bf16.mxu0 0
  %2360 = vmatpush1.bf16.msra.mxu0 0
  %2361 = vmatprep.subr.bf16.mxu0 0
  %2362 = vmatpush1.bf16.msra.mxu0 0
  %2363 = vmatprep.subr.bf16.mxu0 0
  %2364 = vmatpush1.bf16.msra.mxu0 0
  %2365 = vmatprep.subr.bf16.mxu0 0
  %2366 = vmatpush1.bf16.msra.mxu0 0
  %2367 = vmatprep.mubr.bf16.mxu0 0
  %2368 = vmatmul.mubr.bf16.gmra.mrb[0].mxu0 %v390
  %v2369 = vpop.f32.mrb[0].mxu0
  %v2370 = vadd.f32 %v2317, %v2369
  %v2371 = vpop.f32.mrb[0].mxu0
  %v2372 = vadd.f32 %v2319, %v2371
  %v2373 = vpop.f32.mrb[0].mxu0
  %v2374 = vadd.f32 %v2321, %v2373
  %v2375 = vpop.f32.mrb[0].mxu0
  %v2376 = vadd.f32 %v2323, %v2375
  %2377 = vmatprep.mubr.bf16.mxu0 0
  %2378 = vmatmul.mubr.bf16.gmra.mrb[0].mxu0 %v399
  %v2379 = vpop.f32.mrb[0].mxu0
  %v2380 = vadd.f32 %v2327, %v2379
  %v2381 = vpop.f32.mrb[0].mxu0
  %v2382 = vadd.f32 %v2329, %v2381
  %v2383 = vpop.f32.mrb[0].mxu0
  %v2384 = vadd.f32 %v2331, %v2383
  %v2385 = vpop.f32.mrb[0].mxu0
  %v2386 = vadd.f32 %v2333, %v2385
  %2387 = vdwg.mxu0
  %2388 = vst [vmem:[#allocation2] sm:$0xff] %v2105
  %2389 = vst [vmem:[#allocation2 + $0x8] sm:$0xff] %v2107
  %2390 = vst [vmem:[#allocation2 + $0x10] sm:$0xff] %v2370
  %2391 = vst [vmem:[#allocation2 + $0x18] sm:$0xff] %v2372
  %2392 = vst [vmem:[#allocation2 + $0x20] sm:$0xff] %v2109
  %2393 = vst [vmem:[#allocation2 + $0x28] sm:$0xff] %v2111
  %2394 = vst [vmem:[#allocation2 + $0x30] sm:$0xff] %v2374
  %2395 = vst [vmem:[#allocation2 + $0x38] sm:$0xff] %v2376
  %2396 = vst [vmem:[#allocation2 + $0x40] sm:$0xff] %v2115
  %2397 = vst [vmem:[#allocation2 + $0x48] sm:$0xff] %v2117
  %2398 = vst [vmem:[#allocation2 + $0x50] sm:$0xff] %v2380
  %2399 = vst [vmem:[#allocation2 + $0x58] sm:$0xff] %v2382
  %2400 = vst [vmem:[#allocation2 + $0x60] sm:$0xff] %v2119
  %2401 = vst [vmem:[#allocation2 + $0x68] sm:$0xff] %v2121
  %2402 = vst [vmem:[#allocation2 + $0x70] sm:$0xff] %v2384
  %2403 = vst [vmem:[#allocation2 + $0x78] sm:$0xff] %v2386
  %v2404 = vld [vmem:[#allocation2] sm:$0xff]
  %v2405 = vld [vmem:[#allocation2 + $0x20] sm:$0xff]
  %v2406 = vld [vmem:[#allocation2 + $0x40] sm:$0xff]
  %v2407 = vld [vmem:[#allocation2 + $0x60] sm:$0xff]
  %v2408 = vadd.f32 %v2404, %v2405
  %v2409 = vadd.f32 %v2408, %v2406
  %v2410 = vadd.f32 %v2409, %v2407
  %v2411 = vrot.slane %v2410, 4
  %v2412 = vadd.f32 %v2410, %v2411
  %v2413 = vrot.slane %v2412, 2
  %v2414 = vadd.f32 %v2412, %v2413
  %v2415 = vrot.slane %v2414, 1
  %v2416 = vadd.f32 %v2414, %v2415
  %v2417 = vadd.f32 %v2416, 0.0
  %v2418 = vmul.f32 %v2404, %v2404
  %v2419 = vmul.f32 %v2405, %v2405
  %v2420 = vmul.f32 %v2406, %v2406
  %v2421 = vmul.f32 %v2407, %v2407
  %v2422 = vadd.f32 %v2418, %v2419
  %v2423 = vadd.f32 %v2422, %v2420
  %v2424 = vadd.f32 %v2423, %v2421
  %v2425 = vrot.slane %v2424, 4
  %v2426 = vadd.f32 %v2424, %v2425
  %v2427 = vrot.slane %v2426, 2
  %v2428 = vadd.f32 %v2426, %v2427
  %v2429 = vrot.slane %v2428, 1
  %v2430 = vadd.f32 %v2428, %v2429
  %v2431 = vadd.f32 %v2430, 0.0
  %v2432 = vld [vmem:[#allocation2 + $0x8] sm:$0xff]
  %v2433 = vld [vmem:[#allocation2 + $0x28] sm:$0xff]
  %v2434 = vld [vmem:[#allocation2 + $0x48] sm:$0xff]
  %v2435 = vld [vmem:[#allocation2 + $0x68] sm:$0xff]
  %v2436 = vadd.f32 %v2432, %v2433
  %v2437 = vadd.f32 %v2436, %v2434
  %v2438 = vadd.f32 %v2437, %v2435
  %v2439 = vrot.slane %v2438, 4
  %v2440 = vadd.f32 %v2438, %v2439
  %v2441 = vrot.slane %v2440, 2
  %v2442 = vadd.f32 %v2440, %v2441
  %v2443 = vrot.slane %v2442, 1
  %v2444 = vadd.f32 %v2442, %v2443
  %v2445 = vadd.f32 %v2417, %v2444
  %v2446 = vmul.f32 %v2432, %v2432
  %v2447 = vmul.f32 %v2433, %v2433
  %v2448 = vmul.f32 %v2434, %v2434
  %v2449 = vmul.f32 %v2435, %v2435
  %v2450 = vadd.f32 %v2446, %v2447
  %v2451 = vadd.f32 %v2450, %v2448
  %v2452 = vadd.f32 %v2451, %v2449
  %v2453 = vrot.slane %v2452, 4
  %v2454 = vadd.f32 %v2452, %v2453
  %v2455 = vrot.slane %v2454, 2
  %v2456 = vadd.f32 %v2454, %v2455
  %v2457 = vrot.slane %v2456, 1
  %v2458 = vadd.f32 %v2456, %v2457
  %v2459 = vadd.f32 %v2431, %v2458
  %v2460 = vld [vmem:[#allocation2 + $0x10] sm:$0xff]
  %v2461 = vld [vmem:[#allocation2 + $0x30] sm:$0xff]
  %v2462 = vld [vmem:[#allocation2 + $0x50] sm:$0xff]
  %v2463 = vld [vmem:[#allocation2 + $0x70] sm:$0xff]
  %v2464 = vadd.f32 %v2460, %v2461
  %v2465 = vadd.f32 %v2464, %v2462
  %v2466 = vadd.f32 %v2465, %v2463
  %v2467 = vrot.slane %v2466, 4
  %v2468 = vadd.f32 %v2466, %v2467
  %v2469 = vrot.slane %v2468, 2
  %v2470 = vadd.f32 %v2468, %v2469
  %v2471 = vrot.slane %v2470, 1
  %v2472 = vadd.f32 %v2470, %v2471
  %v2473 = vadd.f32 %v2445, %v2472
  %v2474 = vmul.f32 %v2460, %v2460
  %v2475 = vmul.f32 %v2461, %v2461
  %v2476 = vmul.f32 %v2462, %v2462
  %v2477 = vmul.f32 %v2463, %v2463
  %v2478 = vadd.f32 %v2474, %v2475
  %v2479 = vadd.f32 %v2478, %v2476
  %v2480 = vadd.f32 %v2479, %v2477
  %v2481 = vrot.slane %v2480, 4
  %v2482 = vadd.f32 %v2480, %v2481
  %v2483 = vrot.slane %v2482, 2
  %v2484 = vadd.f32 %v2482, %v2483
  %v2485 = vrot.slane %v2484, 1
  %v2486 = vadd.f32 %v2484, %v2485
  %v2487 = vadd.f32 %v2459, %v2486
  %v2488 = vld [vmem:[#allocation2 + $0x18] sm:$0xff]
  %v2489 = vld [vmem:[#allocation2 + $0x38] sm:$0xff]
  %v2490 = vld [vmem:[#allocation2 + $0x58] sm:$0xff]
  %v2491 = vld [vmem:[#allocation2 + $0x78] sm:$0xff]
  %v2492 = vadd.f32 %v2488, %v2489
  %v2493 = vadd.f32 %v2492, %v2490
  %v2494 = vadd.f32 %v2493, %v2491
  %v2495 = vrot.slane %v2494, 4
  %v2496 = vadd.f32 %v2494, %v2495
  %v2497 = vrot.slane %v2496, 2
  %v2498 = vadd.f32 %v2496, %v2497
  %v2499 = vrot.slane %v2498, 1
  %v2500 = vadd.f32 %v2498, %v2499
  %v2501 = vadd.f32 %v2473, %v2500
  %v2502 = vmul.f32 %v2488, %v2488
  %v2503 = vmul.f32 %v2489, %v2489
  %v2504 = vmul.f32 %v2490, %v2490
  %v2505 = vmul.f32 %v2491, %v2491
  %v2506 = vadd.f32 %v2502, %v2503
  %v2507 = vadd.f32 %v2506, %v2504
  %v2508 = vadd.f32 %v2507, %v2505
  %v2509 = vrot.slane %v2508, 4
  %v2510 = vadd.f32 %v2508, %v2509
  %v2511 = vrot.slane %v2510, 2
  %v2512 = vadd.f32 %v2510, %v2511
  %v2513 = vrot.slane %v2512, 1
  %v2514 = vadd.f32 %v2512, %v2513
  %v2515 = vadd.f32 %v2487, %v2514
  %v2516 = vmul.f32 %v2501, 0.0078125
  %v2517 = vmul.f32 %v2515, 0.0078125
  %v2518 = vmul.f32 %v2516, %v2516
  %v2519 = vsub.f32 %v2517, %v2518
  %v2520 = vld [vmem:[%s2] sm:$0x1]
  %v2521 = vadd.f32 %v2519, 1e-05
  %v2522 = vrsqrt.pop %v2521
  %v2523 = vmul.f32 %v2520, %v2522
  %v2524 = vld [vmem:[%s3] sm:$0x1]
  %v2525 = vmul.f32 %v2516, %v2523
  %v2526 = vsub.f32 %v2524, %v2525
  %v2528 = vlaneseq
  %v2529 = vshrl.u32 %v2528, 7
  %v2530 = vsub.s32 0, %v2529
  %v2531 = vrot.slane %v2523, %v2530
  %v2533 = vmul.f32 %v2404, %v2531
  %v2534 = vmul.f32 %v2405, %v2531
  %v2535 = vmul.f32 %v2406, %v2531
  %v2536 = vmul.f32 %v2407, %v2531
  %v2538 = vlaneseq
  %v2539 = vshrl.u32 %v2538, 7
  %v2540 = vsub.s32 0, %v2539
  %v2541 = vrot.slane %v2526, %v2540
  %v2543 = vadd.f32 %v2533, %v2541
  %v2544 = vadd.f32 %v2534, %v2541
  %v2545 = vadd.f32 %v2535, %v2541
  %v2546 = vadd.f32 %v2536, %v2541
  %v2547 = vmax.f32 %v2543, 0.0
  %v2548 = vmax.f32 %v2544, 0.0
  %v2549 = vmax.f32 %v2545, 0.0
  %v2550 = vmax.f32 %v2546, 0.0
  %v2551 = vpack.c.bf16 %v2548, %v2547
  %v2552 = vpack.c.bf16 %v2550, %v2549
  %v2555 = vunpack.c.l.b16 %v2551
  %v2556 = vunpack.c.h.b16 %v2551
  %v2557 = vunpack.c.l.b16 %v2552
  %v2558 = vunpack.c.h.b16 %v2552
  %v2559 = vpack.c.b16 %v2555, %v2555
  %v2560 = vpack.c.b16 %v2556, %v2556
  %v2561 = vpack.c.b16 %v2557, %v2557
  %v2562 = vpack.c.b16 %v2558, %v2558
  %2567 = vst [vmem:[%s4] sm:$0xf] %v2559
  %2568 = vst [vmem:[%s4 + $0x10] sm:$0xf] %v2560
  %2569 = vst [vmem:[%s4 + $0x20] sm:$0xf] %v2561
  %2570 = vst [vmem:[%s4 + $0x30] sm:$0xf] %v2562
  %v2571 = vld [vmem:[#allocation2 + $0x8] sm:$0xff]
  %v2572 = vld [vmem:[#allocation2 + $0x28] sm:$0xff]
  %v2573 = vld [vmem:[#allocation2 + $0x48] sm:$0xff]
  %v2574 = vld [vmem:[#allocation2 + $0x68] sm:$0xff]
  %v2575 = vmul.f32 %v2571, %v2531
  %v2576 = vmul.f32 %v2572, %v2531
  %v2577 = vmul.f32 %v2573, %v2531
  %v2578 = vmul.f32 %v2574, %v2531
  %v2579 = vadd.f32 %v2575, %v2541
  %v2580 = vadd.f32 %v2576, %v2541
  %v2581 = vadd.f32 %v2577, %v2541
  %v2582 = vadd.f32 %v2578, %v2541
  %v2583 = vmax.f32 %v2579, 0.0
  %v2584 = vmax.f32 %v2580, 0.0
  %v2585 = vmax.f32 %v2581, 0.0
  %v2586 = vmax.f32 %v2582, 0.0
  %v2587 = vpack.c.bf16 %v2584, %v2583
  %v2588 = vpack.c.bf16 %v2586, %v2585
  %v2591 = vunpack.c.l.b16 %v2587
  %v2592 = vunpack.c.h.b16 %v2587
  %v2593 = vunpack.c.l.b16 %v2588
  %v2594 = vunpack.c.h.b16 %v2588
  %v2595 = vpack.c.b16 %v2591, %v2591
  %v2596 = vpack.c.b16 %v2592, %v2592
  %v2597 = vpack.c.b16 %v2593, %v2593
  %v2598 = vpack.c.b16 %v2594, %v2594
  %2603 = vst [vmem:[%s4 + $0x4] sm:$0xf] %v2595
  %2604 = vst [vmem:[%s4 + $0x14] sm:$0xf] %v2596
  %2605 = vst [vmem:[%s4 + $0x24] sm:$0xf] %v2597
  %2606 = vst [vmem:[%s4 + $0x34] sm:$0xf] %v2598
  %v2607 = vld [vmem:[#allocation2 + $0x10] sm:$0xff]
  %v2608 = vld [vmem:[#allocation2 + $0x30] sm:$0xff]
  %v2609 = vld [vmem:[#allocation2 + $0x50] sm:$0xff]
  %v2610 = vld [vmem:[#allocation2 + $0x70] sm:$0xff]
  %v2611 = vmul.f32 %v2607, %v2531
  %v2612 = vmul.f32 %v2608, %v2531
  %v2613 = vmul.f32 %v2609, %v2531
  %v2614 = vmul.f32 %v2610, %v2531
  %v2615 = vadd.f32 %v2611, %v2541
  %v2616 = vadd.f32 %v2612, %v2541
  %v2617 = vadd.f32 %v2613, %v2541
  %v2618 = vadd.f32 %v2614, %v2541
  %v2619 = vmax.f32 %v2615, 0.0
  %v2620 = vmax.f32 %v2616, 0.0
  %v2621 = vmax.f32 %v2617, 0.0
  %v2622 = vmax.f32 %v2618, 0.0
  %v2623 = vpack.c.bf16 %v2620, %v2619
  %v2624 = vpack.c.bf16 %v2622, %v2621
  %v2627 = vunpack.c.l.b16 %v2623
  %v2628 = vunpack.c.h.b16 %v2623
  %v2629 = vunpack.c.l.b16 %v2624
  %v2630 = vunpack.c.h.b16 %v2624
  %v2631 = vpack.c.b16 %v2627, %v2627
  %v2632 = vpack.c.b16 %v2628, %v2628
  %v2633 = vpack.c.b16 %v2629, %v2629
  %v2634 = vpack.c.b16 %v2630, %v2630
  %2639 = vst [vmem:[%s4 + $0x8] sm:$0xf] %v2631
  %2640 = vst [vmem:[%s4 + $0x18] sm:$0xf] %v2632
  %2641 = vst [vmem:[%s4 + $0x28] sm:$0xf] %v2633
  %2642 = vst [vmem:[%s4 + $0x38] sm:$0xf] %v2634
  %v2643 = vld [vmem:[#allocation2 + $0x18] sm:$0xff]
  %v2644 = vld [vmem:[#allocation2 + $0x38] sm:$0xff]
  %v2645 = vld [vmem:[#allocation2 + $0x58] sm:$0xff]
  %v2646 = vld [vmem:[#allocation2 + $0x78] sm:$0xff]
  %v2647 = vmul.f32 %v2643, %v2531
  %v2648 = vmul.f32 %v2644, %v2531
  %v2649 = vmul.f32 %v2645, %v2531
  %v2650 = vmul.f32 %v2646, %v2531
  %v2651 = vadd.f32 %v2647, %v2541
  %v2652 = vadd.f32 %v2648, %v2541
  %v2653 = vadd.f32 %v2649, %v2541
  %v2654 = vadd.f32 %v2650, %v2541
  %v2655 = vmax.f32 %v2651, 0.0
  %v2656 = vmax.f32 %v2652, 0.0
  %v2657 = vmax.f32 %v2653, 0.0
  %v2658 = vmax.f32 %v2654, 0.0
  %v2659 = vpack.c.bf16 %v2656, %v2655
  %v2660 = vpack.c.bf16 %v2658, %v2657
  %v2663 = vunpack.c.l.b16 %v2659
  %v2664 = vunpack.c.h.b16 %v2659
  %v2665 = vunpack.c.l.b16 %v2660
  %v2666 = vunpack.c.h.b16 %v2660
  %v2667 = vpack.c.b16 %v2663, %v2663
  %v2668 = vpack.c.b16 %v2664, %v2664
  %v2669 = vpack.c.b16 %v2665, %v2665
  %v2670 = vpack.c.b16 %v2666, %v2666
  %2675 = vst [vmem:[%s4 + $0xc] sm:$0xf] %v2667
  %2676 = vst [vmem:[%s4 + $0x1c] sm:$0xf] %v2668
  %2677 = vst [vmem:[%s4 + $0x2c] sm:$0xf] %v2669
  %2678 = vst [vmem:[%s4 + $0x3c] sm:$0xf] %v2670
  // Predicated region
  $region18: #{forward.5} parent=0 // pred_check
    _
  $region19: #{forward.5} parent=0 // pred_check_branch
    %2680 = sbr.rel (0) target = $region21
  $region20: #{forward.5} parent=0 // pred_region
    _
  $region21: #{forward.5} parent=0 // pred_fallthru
    _
  // Predicated region
  $region22: #{forward.5} parent=0 // pred_check
    _
  $region23: #{forward.5} parent=0 // pred_check_branch
    %2682 = sbr.rel (0) target = $region25
  $region24: #{forward.5} parent=0 // pred_region
    _
  $region25: #{forward.5} parent=0 // pred_fallthru
    _

// kernel: forward.6
$region0: #{forward.6}
  #allocation0 [shape = 'u32[]', space=smem, size = 0x4, offset = 0x4, fixed_abs, tag = 'smem constant byte address 0x4 - core index']
  #allocation1 [shape = 'u32[144,128]{1,0:T(1,128)}', space=vmem, size = 0x12000, scoped, tag = 'internal scratch']
  #allocation2 [shape = 'f32[128,128]{1,0:T(8,128)}', space=vmem, size = 0x10000, scoped, tag = 'scratch operand']
  %s0 = inlined_call_operand.vmem [shape: bf16[128,1152], index: 0, kind: input, shape index: {}]
  %s1 = inlined_call_operand.vmem [shape: bf16[1152,128], index: 1, kind: input, shape index: {}]
  %s2 = inlined_call_operand.vmem [shape: f32[1,128], index: 2, kind: input, shape index: {}]
  %s3 = inlined_call_operand.vmem [shape: f32[1,128], index: 3, kind: input, shape index: {}]
  %s4 = inlined_call_operand.vmem [shape: bf16[128,128], index: 4, kind: output, shape index: {}]
  %s5 = sld [smem:[#allocation0]]
  $region26: #{forward.6} parent=0
    _
  %s7 = ssub.s32 1, %s5
  %s8 = scalar_select 0, %s7, %s5
  // Predicated region
  $region2: #{forward.6} parent=0 // pred_check
    _
  $region3: #{forward.6} parent=0 // pred_check_branch
    %10 = sbr.rel (0) target = $region5
  $region4: #{forward.6} parent=0 // pred_region
    _
  $region5: #{forward.6} parent=0 // pred_fallthru
    _
  // Predicated region
  $region6: #{forward.6} parent=0 // pred_check
    _
  $region7: #{forward.6} parent=0 // pred_check_branch
    %12 = sbr.rel (0) target = $region9
  $region8: #{forward.6} parent=0 // pred_region
    _
  $region9: #{forward.6} parent=0 // pred_fallthru
    _
  // Predicated region
  $region10: #{forward.6} parent=0 // pred_check
    _
  $region11: #{forward.6} parent=0 // pred_check_branch
    %14 = sbr.rel (0) target = $region13
  $region12: #{forward.6} parent=0 // pred_region
    _
  $region13: #{forward.6} parent=0 // pred_fallthru
    _
  // Predicated region
  $region14: #{forward.6} parent=0 // pred_check
    _
  $region15: #{forward.6} parent=0 // pred_check_branch
    %16 = sbr.rel (0) target = $region17
  $region16: #{forward.6} parent=0 // pred_region
    _
  $region17: #{forward.6} parent=0 // pred_fallthru
    _
  %v18 = vld [vmem:[%s0] sm:$0xff]
  %v19 = vld [vmem:[%s0 + $0x8] sm:$0xff]
  %v20 = vld [vmem:[%s0 + $0x10] sm:$0xff]
  %v21 = vld [vmem:[%s0 + $0x18] sm:$0xff]
  %v22 = vld [vmem:[%s0 + $0x20] sm:$0xf]
  %v23 = vld [vmem:[%s0 + $0x24] sm:$0xff]
  %v24 = vld [vmem:[%s0 + $0x2c] sm:$0xff]
  %v25 = vld [vmem:[%s0 + $0x34] sm:$0xff]
  %v26 = vld [vmem:[%s0 + $0x3c] sm:$0xff]
  %v27 = vld [vmem:[%s0 + $0x44] sm:$0xf]
  %v28 = vld [vmem:[%s0 + $0x48] sm:$0xff]
  %v29 = vld [vmem:[%s0 + $0x50] sm:$0xff]
  %v30 = vld [vmem:[%s0 + $0x58] sm:$0xff]
  %v31 = vld [vmem:[%s0 + $0x60] sm:$0xff]
  %v32 = vld [vmem:[%s0 + $0x68] sm:$0xf]
  %v33 = vld [vmem:[%s0 + $0x6c] sm:$0xff]
  %v34 = vld [vmem:[%s0 + $0x74] sm:$0xff]
  %v35 = vld [vmem:[%s0 + $0x7c] sm:$0xff]
  %v36 = vld [vmem:[%s0 + $0x84] sm:$0xff]
  %v37 = vld [vmem:[%s0 + $0x8c] sm:$0xf]
  %v38 = vld [vmem:[%s0 + $0x90] sm:$0xff]
  %v39 = vld [vmem:[%s0 + $0x98] sm:$0xff]
  %v40 = vld [vmem:[%s0 + $0xa0] sm:$0xff]
  %v41 = vld [vmem:[%s0 + $0xa8] sm:$0xff]
  %v42 = vld [vmem:[%s0 + $0xb0] sm:$0xf]
  %v43 = vld [vmem:[%s0 + $0xb4] sm:$0xff]
  %v44 = vld [vmem:[%s0 + $0xbc] sm:$0xff]
  %v45 = vld [vmem:[%s0 + $0xc4] sm:$0xff]
  %v46 = vld [vmem:[%s0 + $0xcc] sm:$0xff]
  %v47 = vld [vmem:[%s0 + $0xd4] sm:$0xf]
  %v48 = vld [vmem:[%s0 + $0xd8] sm:$0xff]
  %v49 = vld [vmem:[%s0 + $0xe0] sm:$0xff]
  %v50 = vld [vmem:[%s0 + $0xe8] sm:$0xff]
  %v51 = vld [vmem:[%s0 + $0xf0] sm:$0xff]
  %v52 = vld [vmem:[%s0 + $0xf8] sm:$0xf]
  %v53 = vld [vmem:[%s0 + $0xfc] sm:$0xff]
  %v54 = vld [vmem:[%s0 + $0x104] sm:$0xff]
  %v55 = vld [vmem:[%s0 + $0x10c] sm:$0xff]
  %v56 = vld [vmem:[%s0 + $0x114] sm:$0xff]
  %v57 = vld [vmem:[%s0 + $0x11c] sm:$0xf]
  %v58 = vld [vmem:[%s0 + $0x120] sm:$0xff]
  %v59 = vld [vmem:[%s0 + $0x128] sm:$0xff]
  %v60 = vld [vmem:[%s0 + $0x130] sm:$0xff]
  %v61 = vld [vmem:[%s0 + $0x138] sm:$0xff]
  %v62 = vld [vmem:[%s0 + $0x140] sm:$0xf]
  %v63 = vld [vmem:[%s0 + $0x144] sm:$0xff]
  %v64 = vld [vmem:[%s0 + $0x14c] sm:$0xff]
  %v65 = vld [vmem:[%s0 + $0x154] sm:$0xff]
  %v66 = vld [vmem:[%s0 + $0x15c] sm:$0xff]
  %v67 = vld [vmem:[%s0 + $0x164] sm:$0xf]
  %v68 = vld [vmem:[%s0 + $0x168] sm:$0xff]
  %v69 = vld [vmem:[%s0 + $0x170] sm:$0xff]
  %v70 = vld [vmem:[%s0 + $0x178] sm:$0xff]
  %v71 = vld [vmem:[%s0 + $0x180] sm:$0xff]
  %v72 = vld [vmem:[%s0 + $0x188] sm:$0xf]
  %v73 = vld [vmem:[%s0 + $0x18c] sm:$0xff]
  %v74 = vld [vmem:[%s0 + $0x194] sm:$0xff]
  %v75 = vld [vmem:[%s0 + $0x19c] sm:$0xff]
  %v76 = vld [vmem:[%s0 + $0x1a4] sm:$0xff]
  %v77 = vld [vmem:[%s0 + $0x1ac] sm:$0xf]
  %v78 = vld [vmem:[%s0 + $0x1b0] sm:$0xff]
  %v79 = vld [vmem:[%s0 + $0x1b8] sm:$0xff]
  %v80 = vld [vmem:[%s0 + $0x1c0] sm:$0xff]
  %v81 = vld [vmem:[%s0 + $0x1c8] sm:$0xff]
  %v82 = vld [vmem:[%s0 + $0x1d0] sm:$0xf]
  %v83 = vld [vmem:[%s0 + $0x1d4] sm:$0xff]
  %v84 = vld [vmem:[%s0 + $0x1dc] sm:$0xff]
  %v85 = vld [vmem:[%s0 + $0x1e4] sm:$0xff]
  %v86 = vld [vmem:[%s0 + $0x1ec] sm:$0xff]
  %v87 = vld [vmem:[%s0 + $0x1f4] sm:$0xf]
  %v88 = vld [vmem:[%s0 + $0x1f8] sm:$0xff]
  %v89 = vld [vmem:[%s0 + $0x200] sm:$0xff]
  %v90 = vld [vmem:[%s0 + $0x208] sm:$0xff]
  %v91 = vld [vmem:[%s0 + $0x210] sm:$0xff]
  %v92 = vld [vmem:[%s0 + $0x218] sm:$0xf]
  %v93 = vld [vmem:[%s0 + $0x21c] sm:$0xff]
  %v94 = vld [vmem:[%s0 + $0x224] sm:$0xff]
  %v95 = vld [vmem:[%s0 + $0x22c] sm:$0xff]
  %v96 = vld [vmem:[%s0 + $0x234] sm:$0xff]
  %v97 = vld [vmem:[%s0 + $0x23c] sm:$0xf]
  %v98 = vld [vmem:[%s1] sm:$0xf]
  %v99 = vld [vmem:[%s1 + $0x4] sm:$0xf]
  %v100 = vld [vmem:[%s1 + $0x8] sm:$0xf]
  %v101 = vld [vmem:[%s1 + $0xc] sm:$0xf]
  %v102 = vld [vmem:[%s1 + $0x10] sm:$0xf]
  %v103 = vld [vmem:[%s1 + $0x14] sm:$0xf]
  %v104 = vld [vmem:[%s1 + $0x18] sm:$0xf]
  %v105 = vld [vmem:[%s1 + $0x1c] sm:$0xf]
  %v106 = vld [vmem:[%s1 + $0x20] sm:$0xf]
  %v107 = vld [vmem:[%s1 + $0x24] sm:$0xf]
  %v108 = vld [vmem:[%s1 + $0x28] sm:$0xf]
  %v109 = vld [vmem:[%s1 + $0x2c] sm:$0xf]
  %v110 = vld [vmem:[%s1 + $0x30] sm:$0xf]
  %v111 = vld [vmem:[%s1 + $0x34] sm:$0xf]
  %v112 = vld [vmem:[%s1 + $0x38] sm:$0xf]
  %v113 = vld [vmem:[%s1 + $0x3c] sm:$0xf]
  %v114 = vld [vmem:[%s1 + $0x40] sm:$0xf]
  %v115 = vld [vmem:[%s1 + $0x44] sm:$0xf]
  %v116 = vld [vmem:[%s1 + $0x48] sm:$0xf]
  %v117 = vld [vmem:[%s1 + $0x4c] sm:$0xf]
  %v118 = vld [vmem:[%s1 + $0x50] sm:$0xf]
  %v119 = vld [vmem:[%s1 + $0x54] sm:$0xf]
  %v120 = vld [vmem:[%s1 + $0x58] sm:$0xf]
  %v121 = vld [vmem:[%s1 + $0x5c] sm:$0xf]
  %v122 = vld [vmem:[%s1 + $0x60] sm:$0xf]
  %v123 = vld [vmem:[%s1 + $0x64] sm:$0xf]
  %v124 = vld [vmem:[%s1 + $0x68] sm:$0xf]
  %v125 = vld [vmem:[%s1 + $0x6c] sm:$0xf]
  %v126 = vld [vmem:[%s1 + $0x70] sm:$0xf]
  %v127 = vld [vmem:[%s1 + $0x74] sm:$0xf]
  %v128 = vld [vmem:[%s1 + $0x78] sm:$0xf]
  %v129 = vld [vmem:[%s1 + $0x7c] sm:$0xf]
  %v130 = vld [vmem:[%s1 + $0x80] sm:$0xf]
  %v131 = vld [vmem:[%s1 + $0x84] sm:$0xf]
  %v132 = vld [vmem:[%s1 + $0x88] sm:$0xf]
  %v133 = vld [vmem:[%s1 + $0x8c] sm:$0xf]
  %v134 = vld [vmem:[%s1 + $0x90] sm:$0xf]
  %v135 = vld [vmem:[%s1 + $0x94] sm:$0xf]
  %v136 = vld [vmem:[%s1 + $0x98] sm:$0xf]
  %v137 = vld [vmem:[%s1 + $0x9c] sm:$0xf]
  %v138 = vld [vmem:[%s1 + $0xa0] sm:$0xf]
  %v139 = vld [vmem:[%s1 + $0xa4] sm:$0xf]
  %v140 = vld [vmem:[%s1 + $0xa8] sm:$0xf]
  %v141 = vld [vmem:[%s1 + $0xac] sm:$0xf]
  %v142 = vld [vmem:[%s1 + $0xb0] sm:$0xf]
  %v143 = vld [vmem:[%s1 + $0xb4] sm:$0xf]
  %v144 = vld [vmem:[%s1 + $0xb8] sm:$0xf]
  %v145 = vld [vmem:[%s1 + $0xbc] sm:$0xf]
  %v146 = vld [vmem:[%s1 + $0xc0] sm:$0xf]
  %v147 = vld [vmem:[%s1 + $0xc4] sm:$0xf]
  %v148 = vld [vmem:[%s1 + $0xc8] sm:$0xf]
  %v149 = vld [vmem:[%s1 + $0xcc] sm:$0xf]
  %v150 = vld [vmem:[%s1 + $0xd0] sm:$0xf]
  %v151 = vld [vmem:[%s1 + $0xd4] sm:$0xf]
  %v152 = vld [vmem:[%s1 + $0xd8] sm:$0xf]
  %v153 = vld [vmem:[%s1 + $0xdc] sm:$0xf]
  %v154 = vld [vmem:[%s1 + $0xe0] sm:$0xf]
  %v155 = vld [vmem:[%s1 + $0xe4] sm:$0xf]
  %v156 = vld [vmem:[%s1 + $0xe8] sm:$0xf]
  %v157 = vld [vmem:[%s1 + $0xec] sm:$0xf]
  %v158 = vld [vmem:[%s1 + $0xf0] sm:$0xf]
  %v159 = vld [vmem:[%s1 + $0xf4] sm:$0xf]
  %v160 = vld [vmem:[%s1 + $0xf8] sm:$0xf]
  %v161 = vld [vmem:[%s1 + $0xfc] sm:$0xf]
  %v162 = vld [vmem:[%s1 + $0x100] sm:$0xf]
  %v163 = vld [vmem:[%s1 + $0x104] sm:$0xf]
  %v164 = vld [vmem:[%s1 + $0x108] sm:$0xf]
  %v165 = vld [vmem:[%s1 + $0x10c] sm:$0xf]
  %v166 = vld [vmem:[%s1 + $0x110] sm:$0xf]
  %v167 = vld [vmem:[%s1 + $0x114] sm:$0xf]
  %v168 = vld [vmem:[%s1 + $0x118] sm:$0xf]
  %v169 = vld [vmem:[%s1 + $0x11c] sm:$0xf]
  %v170 = vld [vmem:[%s1 + $0x120] sm:$0xf]
  %v171 = vld [vmem:[%s1 + $0x124] sm:$0xf]
  %v172 = vld [vmem:[%s1 + $0x128] sm:$0xf]
  %v173 = vld [vmem:[%s1 + $0x12c] sm:$0xf]
  %v174 = vld [vmem:[%s1 + $0x130] sm:$0xf]
  %v175 = vld [vmem:[%s1 + $0x134] sm:$0xf]
  %v176 = vld [vmem:[%s1 + $0x138] sm:$0xf]
  %v177 = vld [vmem:[%s1 + $0x13c] sm:$0xf]
  %v178 = vld [vmem:[%s1 + $0x140] sm:$0xf]
  %v179 = vld [vmem:[%s1 + $0x144] sm:$0xf]
  %v180 = vld [vmem:[%s1 + $0x148] sm:$0xf]
  %v181 = vld [vmem:[%s1 + $0x14c] sm:$0xf]
  %v182 = vld [vmem:[%s1 + $0x150] sm:$0xf]
  %v183 = vld [vmem:[%s1 + $0x154] sm:$0xf]
  %v184 = vld [vmem:[%s1 + $0x158] sm:$0xf]
  %v185 = vld [vmem:[%s1 + $0x15c] sm:$0xf]
  %v186 = vld [vmem:[%s1 + $0x160] sm:$0xf]
  %v187 = vld [vmem:[%s1 + $0x164] sm:$0xf]
  %v188 = vld [vmem:[%s1 + $0x168] sm:$0xf]
  %v189 = vld [vmem:[%s1 + $0x16c] sm:$0xf]
  %v190 = vld [vmem:[%s1 + $0x170] sm:$0xf]
  %v191 = vld [vmem:[%s1 + $0x174] sm:$0xf]
  %v192 = vld [vmem:[%s1 + $0x178] sm:$0xf]
  %v193 = vld [vmem:[%s1 + $0x17c] sm:$0xf]
  %v194 = vld [vmem:[%s1 + $0x180] sm:$0xf]
  %v195 = vld [vmem:[%s1 + $0x184] sm:$0xf]
  %v196 = vld [vmem:[%s1 + $0x188] sm:$0xf]
  %v197 = vld [vmem:[%s1 + $0x18c] sm:$0xf]
  %v198 = vld [vmem:[%s1 + $0x190] sm:$0xf]
  %v199 = vld [vmem:[%s1 + $0x194] sm:$0xf]
  %v200 = vld [vmem:[%s1 + $0x198] sm:$0xf]
  %v201 = vld [vmem:[%s1 + $0x19c] sm:$0xf]
  %v202 = vld [vmem:[%s1 + $0x1a0] sm:$0xf]
  %v203 = vld [vmem:[%s1 + $0x1a4] sm:$0xf]
  %v204 = vld [vmem:[%s1 + $0x1a8] sm:$0xf]
  %v205 = vld [vmem:[%s1 + $0x1ac] sm:$0xf]
  %v206 = vld [vmem:[%s1 + $0x1b0] sm:$0xf]
  %v207 = vld [vmem:[%s1 + $0x1b4] sm:$0xf]
  %v208 = vld [vmem:[%s1 + $0x1b8] sm:$0xf]
  %v209 = vld [vmem:[%s1 + $0x1bc] sm:$0xf]
  %v210 = vld [vmem:[%s1 + $0x1c0] sm:$0xf]
  %v211 = vld [vmem:[%s1 + $0x1c4] sm:$0xf]
  %v212 = vld [vmem:[%s1 + $0x1c8] sm:$0xf]
  %v213 = vld [vmem:[%s1 + $0x1cc] sm:$0xf]
  %v214 = vld [vmem:[%s1 + $0x1d0] sm:$0xf]
  %v215 = vld [vmem:[%s1 + $0x1d4] sm:$0xf]
  %v216 = vld [vmem:[%s1 + $0x1d8] sm:$0xf]
  %v217 = vld [vmem:[%s1 + $0x1dc] sm:$0xf]
  %v218 = vld [vmem:[%s1 + $0x1e0] sm:$0xf]
  %v219 = vld [vmem:[%s1 + $0x1e4] sm:$0xf]
  %v220 = vld [vmem:[%s1 + $0x1e8] sm:$0xf]
  %v221 = vld [vmem:[%s1 + $0x1ec] sm:$0xf]
  %v222 = vld [vmem:[%s1 + $0x1f0] sm:$0xf]
  %v223 = vld [vmem:[%s1 + $0x1f4] sm:$0xf]
  %v224 = vld [vmem:[%s1 + $0x1f8] sm:$0xf]
  %v225 = vld [vmem:[%s1 + $0x1fc] sm:$0xf]
  %v226 = vld [vmem:[%s1 + $0x200] sm:$0xf]
  %v227 = vld [vmem:[%s1 + $0x204] sm:$0xf]
  %v228 = vld [vmem:[%s1 + $0x208] sm:$0xf]
  %v229 = vld [vmem:[%s1 + $0x20c] sm:$0xf]
  %v230 = vld [vmem:[%s1 + $0x210] sm:$0xf]
  %v231 = vld [vmem:[%s1 + $0x214] sm:$0xf]
  %v232 = vld [vmem:[%s1 + $0x218] sm:$0xf]
  %v233 = vld [vmem:[%s1 + $0x21c] sm:$0xf]
  %v234 = vld [vmem:[%s1 + $0x220] sm:$0xf]
  %v235 = vld [vmem:[%s1 + $0x224] sm:$0xf]
  %v236 = vld [vmem:[%s1 + $0x228] sm:$0xf]
  %v237 = vld [vmem:[%s1 + $0x22c] sm:$0xf]
  %v238 = vld [vmem:[%s1 + $0x230] sm:$0xf]
  %v239 = vld [vmem:[%s1 + $0x234] sm:$0xf]
  %v240 = vld [vmem:[%s1 + $0x238] sm:$0xf]
  %v241 = vld [vmem:[%s1 + $0x23c] sm:$0xf]
  %v322 = vunpack.c.l.b16 %v18
  %v323 = vunpack.c.h.b16 %v18
  %v324 = vunpack.c.l.b16 %v19
  %v325 = vunpack.c.h.b16 %v19
  %v326 = vunpack.c.l.b16 %v20
  %v327 = vunpack.c.h.b16 %v20
  %v328 = vunpack.c.l.b16 %v21
  %v329 = vunpack.c.h.b16 %v21
  %v330 = vunpack.c.l.b16 %v22
  %v331 = vunpack.c.l.b16 %v23
  %v332 = vunpack.c.h.b16 %v23
  %v333 = vunpack.c.l.b16 %v24
  %v334 = vunpack.c.h.b16 %v24
  %v335 = vunpack.c.l.b16 %v25
  %v336 = vunpack.c.h.b16 %v25
  %v337 = vunpack.c.l.b16 %v26
  %v338 = vunpack.c.h.b16 %v26
  %v339 = vunpack.c.l.b16 %v27
  %v340 = vunpack.c.l.b16 %v28
  %v341 = vunpack.c.h.b16 %v28
  %v342 = vunpack.c.l.b16 %v29
  %v343 = vunpack.c.h.b16 %v29
  %v344 = vunpack.c.l.b16 %v30
  %v345 = vunpack.c.h.b16 %v30
  %v346 = vunpack.c.l.b16 %v31
  %v347 = vunpack.c.h.b16 %v31
  %v348 = vunpack.c.l.b16 %v32
  %v349 = vunpack.c.l.b16 %v33
  %v350 = vunpack.c.h.b16 %v33
  %v351 = vunpack.c.l.b16 %v34
  %v352 = vunpack.c.h.b16 %v34
  %v353 = vunpack.c.l.b16 %v35
  %v354 = vunpack.c.h.b16 %v35
  %v355 = vunpack.c.l.b16 %v36
  %v356 = vunpack.c.h.b16 %v36
  %v357 = vunpack.c.l.b16 %v37
  %v358 = vunpack.c.l.b16 %v38
  %v359 = vunpack.c.h.b16 %v38
  %v360 = vunpack.c.l.b16 %v39
  %v361 = vunpack.c.h.b16 %v39
  %v362 = vunpack.c.l.b16 %v40
  %v363 = vunpack.c.h.b16 %v40
  %v364 = vunpack.c.l.b16 %v41
  %v365 = vunpack.c.h.b16 %v41
  %v366 = vunpack.c.l.b16 %v42
  %v367 = vunpack.c.l.b16 %v43
  %v368 = vunpack.c.h.b16 %v43
  %v369 = vunpack.c.l.b16 %v44
  %v370 = vunpack.c.h.b16 %v44
  %v371 = vunpack.c.l.b16 %v45
  %v372 = vunpack.c.h.b16 %v45
  %v373 = vunpack.c.l.b16 %v46
  %v374 = vunpack.c.h.b16 %v46
  %v375 = vunpack.c.l.b16 %v47
  %v376 = vunpack.c.l.b16 %v48
  %v377 = vunpack.c.h.b16 %v48
  %v378 = vunpack.c.l.b16 %v49
  %v379 = vunpack.c.h.b16 %v49
  %v380 = vunpack.c.l.b16 %v50
  %v381 = vunpack.c.h.b16 %v50
  %v382 = vunpack.c.l.b16 %v51
  %v383 = vunpack.c.h.b16 %v51
  %v384 = vunpack.c.l.b16 %v52
  %v385 = vunpack.c.l.b16 %v53
  %v386 = vunpack.c.h.b16 %v53
  %v387 = vunpack.c.l.b16 %v54
  %v388 = vunpack.c.h.b16 %v54
  %v389 = vunpack.c.l.b16 %v55
  %v390 = vunpack.c.h.b16 %v55
  %v391 = vunpack.c.l.b16 %v56
  %v392 = vunpack.c.h.b16 %v56
  %v393 = vunpack.c.l.b16 %v57
  %v394 = vunpack.c.l.b16 %v58
  %v395 = vunpack.c.h.b16 %v58
  %v396 = vunpack.c.l.b16 %v59
  %v397 = vunpack.c.h.b16 %v59
  %v398 = vunpack.c.l.b16 %v60
  %v399 = vunpack.c.h.b16 %v60
  %v400 = vunpack.c.l.b16 %v61
  %v401 = vunpack.c.h.b16 %v61
  %v402 = vunpack.c.l.b16 %v62
  %v403 = vunpack.c.l.b16 %v63
  %v404 = vunpack.c.h.b16 %v63
  %v405 = vunpack.c.l.b16 %v64
  %v406 = vunpack.c.h.b16 %v64
  %v407 = vunpack.c.l.b16 %v65
  %v408 = vunpack.c.h.b16 %v65
  %v409 = vunpack.c.l.b16 %v66
  %v410 = vunpack.c.h.b16 %v66
  %v411 = vunpack.c.l.b16 %v67
  %v412 = vunpack.c.l.b16 %v68
  %v413 = vunpack.c.h.b16 %v68
  %v414 = vunpack.c.l.b16 %v69
  %v415 = vunpack.c.h.b16 %v69
  %v416 = vunpack.c.l.b16 %v70
  %v417 = vunpack.c.h.b16 %v70
  %v418 = vunpack.c.l.b16 %v71
  %v419 = vunpack.c.h.b16 %v71
  %v420 = vunpack.c.l.b16 %v72
  %v421 = vunpack.c.l.b16 %v73
  %v422 = vunpack.c.h.b16 %v73
  %v423 = vunpack.c.l.b16 %v74
  %v424 = vunpack.c.h.b16 %v74
  %v425 = vunpack.c.l.b16 %v75
  %v426 = vunpack.c.h.b16 %v75
  %v427 = vunpack.c.l.b16 %v76
  %v428 = vunpack.c.h.b16 %v76
  %v429 = vunpack.c.l.b16 %v77
  %v430 = vunpack.c.l.b16 %v78
  %v431 = vunpack.c.h.b16 %v78
  %v432 = vunpack.c.l.b16 %v79
  %v433 = vunpack.c.h.b16 %v79
  %v434 = vunpack.c.l.b16 %v80
  %v435 = vunpack.c.h.b16 %v80
  %v436 = vunpack.c.l.b16 %v81
  %v437 = vunpack.c.h.b16 %v81
  %v438 = vunpack.c.l.b16 %v82
  %v439 = vunpack.c.l.b16 %v83
  %v440 = vunpack.c.h.b16 %v83
  %v441 = vunpack.c.l.b16 %v84
  %v442 = vunpack.c.h.b16 %v84
  %v443 = vunpack.c.l.b16 %v85
  %v444 = vunpack.c.h.b16 %v85
  %v445 = vunpack.c.l.b16 %v86
  %v446 = vunpack.c.h.b16 %v86
  %v447 = vunpack.c.l.b16 %v87
  %v448 = vunpack.c.l.b16 %v88
  %v449 = vunpack.c.h.b16 %v88
  %v450 = vunpack.c.l.b16 %v89
  %v451 = vunpack.c.h.b16 %v89
  %v452 = vunpack.c.l.b16 %v90
  %v453 = vunpack.c.h.b16 %v90
  %v454 = vunpack.c.l.b16 %v91
  %v455 = vunpack.c.h.b16 %v91
  %v456 = vunpack.c.l.b16 %v92
  %v457 = vunpack.c.l.b16 %v93
  %v458 = vunpack.c.h.b16 %v93
  %v459 = vunpack.c.l.b16 %v94
  %v460 = vunpack.c.h.b16 %v94
  %v461 = vunpack.c.l.b16 %v95
  %v462 = vunpack.c.h.b16 %v95
  %v463 = vunpack.c.l.b16 %v96
  %v464 = vunpack.c.h.b16 %v96
  %v465 = vunpack.c.l.b16 %v97
  %v466 = vpack.c.b16 %v331, %v322
  %v467 = vpack.c.b16 %v332, %v323
  %v468 = vpack.c.b16 %v333, %v324
  %v469 = vpack.c.b16 %v334, %v325
  %v470 = vpack.c.b16 %v335, %v326
  %v471 = vpack.c.b16 %v336, %v327
  %v472 = vpack.c.b16 %v337, %v328
  %v473 = vpack.c.b16 %v338, %v329
  %v474 = vpack.c.b16 %v339, %v330
  %v475 = vpack.c.b16 %v349, %v340
  %v476 = vpack.c.b16 %v350, %v341
  %v477 = vpack.c.b16 %v351, %v342
  %v478 = vpack.c.b16 %v352, %v343
  %v479 = vpack.c.b16 %v353, %v344
  %v480 = vpack.c.b16 %v354, %v345
  %v481 = vpack.c.b16 %v355, %v346
  %v482 = vpack.c.b16 %v356, %v347
  %v483 = vpack.c.b16 %v357, %v348
  %v484 = vpack.c.b16 %v367, %v358
  %v485 = vpack.c.b16 %v368, %v359
  %v486 = vpack.c.b16 %v369, %v360
  %v487 = vpack.c.b16 %v370, %v361
  %v488 = vpack.c.b16 %v371, %v362
  %v489 = vpack.c.b16 %v372, %v363
  %v490 = vpack.c.b16 %v373, %v364
  %v491 = vpack.c.b16 %v374, %v365
  %v492 = vpack.c.b16 %v375, %v366
  %v493 = vpack.c.b16 %v385, %v376
  %v494 = vpack.c.b16 %v386, %v377
  %v495 = vpack.c.b16 %v387, %v378
  %v496 = vpack.c.b16 %v388, %v379
  %v497 = vpack.c.b16 %v389, %v380
  %v498 = vpack.c.b16 %v390, %v381
  %v499 = vpack.c.b16 %v391, %v382
  %v500 = vpack.c.b16 %v392, %v383
  %v501 = vpack.c.b16 %v393, %v384
  %v502 = vpack.c.b16 %v403, %v394
  %v503 = vpack.c.b16 %v404, %v395
  %v504 = vpack.c.b16 %v405, %v396
  %v505 = vpack.c.b16 %v406, %v397
  %v506 = vpack.c.b16 %v407, %v398
  %v507 = vpack.c.b16 %v408, %v399
  %v508 = vpack.c.b16 %v409, %v400
  %v509 = vpack.c.b16 %v410, %v401
  %v510 = vpack.c.b16 %v411, %v402
  %v511 = vpack.c.b16 %v421, %v412
  %v512 = vpack.c.b16 %v422, %v413
  %v513 = vpack.c.b16 %v423, %v414
  %v514 = vpack.c.b16 %v424, %v415
  %v515 = vpack.c.b16 %v425, %v416
  %v516 = vpack.c.b16 %v426, %v417
  %v517 = vpack.c.b16 %v427, %v418
  %v518 = vpack.c.b16 %v428, %v419
  %v519 = vpack.c.b16 %v429, %v420
  %v520 = vpack.c.b16 %v439, %v430
  %v521 = vpack.c.b16 %v440, %v431
  %v522 = vpack.c.b16 %v441, %v432
  %v523 = vpack.c.b16 %v442, %v433
  %v524 = vpack.c.b16 %v443, %v434
  %v525 = vpack.c.b16 %v444, %v435
  %v526 = vpack.c.b16 %v445, %v436
  %v527 = vpack.c.b16 %v446, %v437
  %v528 = vpack.c.b16 %v447, %v438
  %v529 = vpack.c.b16 %v457, %v448
  %v530 = vpack.c.b16 %v458, %v449
  %v531 = vpack.c.b16 %v459, %v450
  %v532 = vpack.c.b16 %v460, %v451
  %v533 = vpack.c.b16 %v461, %v452
  %v534 = vpack.c.b16 %v462, %v453
  %v535 = vpack.c.b16 %v463, %v454
  %v536 = vpack.c.b16 %v464, %v455
  %v537 = vpack.c.b16 %v465, %v456
  %v754 = vunpack.c.l.b16 %v98
  %v755 = vunpack.c.l.b16 %v99
  %v756 = vunpack.c.l.b16 %v100
  %v757 = vunpack.c.l.b16 %v101
  %v758 = vunpack.c.l.b16 %v102
  %v759 = vunpack.c.l.b16 %v103
  %v760 = vunpack.c.l.b16 %v104
  %v761 = vunpack.c.l.b16 %v105
  %v762 = vunpack.c.l.b16 %v106
  %v763 = vunpack.c.l.b16 %v107
  %v764 = vunpack.c.l.b16 %v108
  %v765 = vunpack.c.l.b16 %v109
  %v766 = vunpack.c.l.b16 %v110
  %v767 = vunpack.c.l.b16 %v111
  %v768 = vunpack.c.l.b16 %v112
  %v769 = vunpack.c.l.b16 %v113
  %v770 = vunpack.c.l.b16 %v114
  %v771 = vunpack.c.l.b16 %v115
  %v772 = vunpack.c.l.b16 %v116
  %v773 = vunpack.c.l.b16 %v117
  %v774 = vunpack.c.l.b16 %v118
  %v775 = vunpack.c.l.b16 %v119
  %v776 = vunpack.c.l.b16 %v120
  %v777 = vunpack.c.l.b16 %v121
  %v778 = vunpack.c.l.b16 %v122
  %v779 = vunpack.c.l.b16 %v123
  %v780 = vunpack.c.l.b16 %v124
  %v781 = vunpack.c.l.b16 %v125
  %v782 = vunpack.c.l.b16 %v126
  %v783 = vunpack.c.l.b16 %v127
  %v784 = vunpack.c.l.b16 %v128
  %v785 = vunpack.c.l.b16 %v129
  %v786 = vunpack.c.l.b16 %v130
  %v787 = vunpack.c.l.b16 %v131
  %v788 = vunpack.c.l.b16 %v132
  %v789 = vunpack.c.l.b16 %v133
  %v790 = vunpack.c.l.b16 %v134
  %v791 = vunpack.c.l.b16 %v135
  %v792 = vunpack.c.l.b16 %v136
  %v793 = vunpack.c.l.b16 %v137
  %v794 = vunpack.c.l.b16 %v138
  %v795 = vunpack.c.l.b16 %v139
  %v796 = vunpack.c.l.b16 %v140
  %v797 = vunpack.c.l.b16 %v141
  %v798 = vunpack.c.l.b16 %v142
  %v799 = vunpack.c.l.b16 %v143
  %v800 = vunpack.c.l.b16 %v144
  %v801 = vunpack.c.l.b16 %v145
  %v802 = vunpack.c.l.b16 %v146
  %v803 = vunpack.c.l.b16 %v147
  %v804 = vunpack.c.l.b16 %v148
  %v805 = vunpack.c.l.b16 %v149
  %v806 = vunpack.c.l.b16 %v150
  %v807 = vunpack.c.l.b16 %v151
  %v808 = vunpack.c.l.b16 %v152
  %v809 = vunpack.c.l.b16 %v153
  %v810 = vunpack.c.l.b16 %v154
  %v811 = vunpack.c.l.b16 %v155
  %v812 = vunpack.c.l.b16 %v156
  %v813 = vunpack.c.l.b16 %v157
  %v814 = vunpack.c.l.b16 %v158
  %v815 = vunpack.c.l.b16 %v159
  %v816 = vunpack.c.l.b16 %v160
  %v817 = vunpack.c.l.b16 %v161
  %v818 = vunpack.c.l.b16 %v162
  %v819 = vunpack.c.l.b16 %v163
  %v820 = vunpack.c.l.b16 %v164
  %v821 = vunpack.c.l.b16 %v165
  %v822 = vunpack.c.l.b16 %v166
  %v823 = vunpack.c.l.b16 %v167
  %v824 = vunpack.c.l.b16 %v168
  %v825 = vunpack.c.l.b16 %v169
  %v826 = vunpack.c.l.b16 %v170
  %v827 = vunpack.c.l.b16 %v171
  %v828 = vunpack.c.l.b16 %v172
  %v829 = vunpack.c.l.b16 %v173
  %v830 = vunpack.c.l.b16 %v174
  %v831 = vunpack.c.l.b16 %v175
  %v832 = vunpack.c.l.b16 %v176
  %v833 = vunpack.c.l.b16 %v177
  %v834 = vunpack.c.l.b16 %v178
  %v835 = vunpack.c.l.b16 %v179
  %v836 = vunpack.c.l.b16 %v180
  %v837 = vunpack.c.l.b16 %v181
  %v838 = vunpack.c.l.b16 %v182
  %v839 = vunpack.c.l.b16 %v183
  %v840 = vunpack.c.l.b16 %v184
  %v841 = vunpack.c.l.b16 %v185
  %v842 = vunpack.c.l.b16 %v186
  %v843 = vunpack.c.l.b16 %v187
  %v844 = vunpack.c.l.b16 %v188
  %v845 = vunpack.c.l.b16 %v189
  %v846 = vunpack.c.l.b16 %v190
  %v847 = vunpack.c.l.b16 %v191
  %v848 = vunpack.c.l.b16 %v192
  %v849 = vunpack.c.l.b16 %v193
  %v850 = vunpack.c.l.b16 %v194
  %v851 = vunpack.c.l.b16 %v195
  %v852 = vunpack.c.l.b16 %v196
  %v853 = vunpack.c.l.b16 %v197
  %v854 = vunpack.c.l.b16 %v198
  %v855 = vunpack.c.l.b16 %v199
  %v856 = vunpack.c.l.b16 %v200
  %v857 = vunpack.c.l.b16 %v201
  %v858 = vunpack.c.l.b16 %v202
  %v859 = vunpack.c.l.b16 %v203
  %v860 = vunpack.c.l.b16 %v204
  %v861 = vunpack.c.l.b16 %v205
  %v862 = vunpack.c.l.b16 %v206
  %v863 = vunpack.c.l.b16 %v207
  %v864 = vunpack.c.l.b16 %v208
  %v865 = vunpack.c.l.b16 %v209
  %v866 = vunpack.c.l.b16 %v210
  %v867 = vunpack.c.l.b16 %v211
  %v868 = vunpack.c.l.b16 %v212
  %v869 = vunpack.c.l.b16 %v213
  %v870 = vunpack.c.l.b16 %v214
  %v871 = vunpack.c.l.b16 %v215
  %v872 = vunpack.c.l.b16 %v216
  %v873 = vunpack.c.l.b16 %v217
  %v874 = vunpack.c.l.b16 %v218
  %v875 = vunpack.c.l.b16 %v219
  %v876 = vunpack.c.l.b16 %v220
  %v877 = vunpack.c.l.b16 %v221
  %v878 = vunpack.c.l.b16 %v222
  %v879 = vunpack.c.l.b16 %v223
  %v880 = vunpack.c.l.b16 %v224
  %v881 = vunpack.c.l.b16 %v225
  %v882 = vunpack.c.l.b16 %v226
  %v883 = vunpack.c.l.b16 %v227
  %v884 = vunpack.c.l.b16 %v228
  %v885 = vunpack.c.l.b16 %v229
  %v886 = vunpack.c.l.b16 %v230
  %v887 = vunpack.c.l.b16 %v231
  %v888 = vunpack.c.l.b16 %v232
  %v889 = vunpack.c.l.b16 %v233
  %v890 = vunpack.c.l.b16 %v234
  %v891 = vunpack.c.l.b16 %v235
  %v892 = vunpack.c.l.b16 %v236
  %v893 = vunpack.c.l.b16 %v237
  %v894 = vunpack.c.l.b16 %v238
  %v895 = vunpack.c.l.b16 %v239
  %v896 = vunpack.c.l.b16 %v240
  %v897 = vunpack.c.l.b16 %v241
  %v898 = vpack.c.b16 %v755, %v754
  %v899 = vpack.c.b16 %v757, %v756
  %v900 = vpack.c.b16 %v759, %v758
  %v901 = vpack.c.b16 %v761, %v760
  %v902 = vpack.c.b16 %v763, %v762
  %v903 = vpack.c.b16 %v765, %v764
  %v904 = vpack.c.b16 %v767, %v766
  %v905 = vpack.c.b16 %v769, %v768
  %v906 = vpack.c.b16 %v771, %v770
  %v907 = vpack.c.b16 %v773, %v772
  %v908 = vpack.c.b16 %v775, %v774
  %v909 = vpack.c.b16 %v777, %v776
  %v910 = vpack.c.b16 %v779, %v778
  %v911 = vpack.c.b16 %v781, %v780
  %v912 = vpack.c.b16 %v783, %v782
  %v913 = vpack.c.b16 %v785, %v784
  %v914 = vpack.c.b16 %v787, %v786
  %v915 = vpack.c.b16 %v789, %v788
  %v916 = vpack.c.b16 %v791, %v790
  %v917 = vpack.c.b16 %v793, %v792
  %v918 = vpack.c.b16 %v795, %v794
  %v919 = vpack.c.b16 %v797, %v796
  %v920 = vpack.c.b16 %v799, %v798
  %v921 = vpack.c.b16 %v801, %v800
  %v922 = vpack.c.b16 %v803, %v802
  %v923 = vpack.c.b16 %v805, %v804
  %v924 = vpack.c.b16 %v807, %v806
  %v925 = vpack.c.b16 %v809, %v808
  %v926 = vpack.c.b16 %v811, %v810
  %v927 = vpack.c.b16 %v813, %v812
  %v928 = vpack.c.b16 %v815, %v814
  %v929 = vpack.c.b16 %v817, %v816
  %v930 = vpack.c.b16 %v819, %v818
  %v931 = vpack.c.b16 %v821, %v820
  %v932 = vpack.c.b16 %v823, %v822
  %v933 = vpack.c.b16 %v825, %v824
  %v934 = vpack.c.b16 %v827, %v826
  %v935 = vpack.c.b16 %v829, %v828
  %v936 = vpack.c.b16 %v831, %v830
  %v937 = vpack.c.b16 %v833, %v832
  %v938 = vpack.c.b16 %v835, %v834
  %v939 = vpack.c.b16 %v837, %v836
  %v940 = vpack.c.b16 %v839, %v838
  %v941 = vpack.c.b16 %v841, %v840
  %v942 = vpack.c.b16 %v843, %v842
  %v943 = vpack.c.b16 %v845, %v844
  %v944 = vpack.c.b16 %v847, %v846
  %v945 = vpack.c.b16 %v849, %v848
  %v946 = vpack.c.b16 %v851, %v850
  %v947 = vpack.c.b16 %v853, %v852
  %v948 = vpack.c.b16 %v855, %v854
  %v949 = vpack.c.b16 %v857, %v856
  %v950 = vpack.c.b16 %v859, %v858
  %v951 = vpack.c.b16 %v861, %v860
  %v952 = vpack.c.b16 %v863, %v862
  %v953 = vpack.c.b16 %v865, %v864
  %v954 = vpack.c.b16 %v867, %v866
  %v955 = vpack.c.b16 %v869, %v868
  %v956 = vpack.c.b16 %v871, %v870
  %v957 = vpack.c.b16 %v873, %v872
  %v958 = vpack.c.b16 %v875, %v874
  %v959 = vpack.c.b16 %v877, %v876
  %v960 = vpack.c.b16 %v879, %v878
  %v961 = vpack.c.b16 %v881, %v880
  %v962 = vpack.c.b16 %v883, %v882
  %v963 = vpack.c.b16 %v885, %v884
  %v964 = vpack.c.b16 %v887, %v886
  %v965 = vpack.c.b16 %v889, %v888
  %v966 = vpack.c.b16 %v891, %v890
  %v967 = vpack.c.b16 %v893, %v892
  %v968 = vpack.c.b16 %v895, %v894
  %v969 = vpack.c.b16 %v897, %v896
  %1042 = vmatprep.subr.bf16.mxu0 0
  %1043 = vmatpush1.bf16.msra.mxu0 %v898
  %1044 = vmatprep.subr.bf16.mxu0 0
  %1045 = vmatpush1.bf16.msra.mxu0 %v899
  %1046 = vmatprep.subr.bf16.mxu0 0
  %1047 = vmatpush1.bf16.msra.mxu0 %v900
  %1048 = vmatprep.subr.bf16.mxu0 0
  %1049 = vmatpush1.bf16.msra.mxu0 %v901
  %1050 = vmatprep.subr.bf16.mxu0 0
  %1051 = vmatpush1.bf16.msra.mxu0 %v902
  %1052 = vmatprep.subr.bf16.mxu0 0
  %1053 = vmatpush1.bf16.msra.mxu0 %v903
  %1054 = vmatprep.subr.bf16.mxu0 0
  %1055 = vmatpush1.bf16.msra.mxu0 %v904
  %1056 = vmatprep.subr.bf16.mxu0 0
  %1057 = vmatpush1.bf16.msra.mxu0 %v905
  %1058 = vmatprep.subr.bf16.mxu0 0
  %1059 = vmatpush1.bf16.msra.mxu0 %v906
  %1060 = vmatprep.subr.bf16.mxu0 0
  %1061 = vmatpush1.bf16.msra.mxu0 %v907
  %1062 = vmatprep.subr.bf16.mxu0 0
  %1063 = vmatpush1.bf16.msra.mxu0 %v908
  %1064 = vmatprep.subr.bf16.mxu0 0
  %1065 = vmatpush1.bf16.msra.mxu0 %v909
  %1066 = vmatprep.subr.bf16.mxu0 0
  %1067 = vmatpush1.bf16.msra.mxu0 %v910
  %1068 = vmatprep.subr.bf16.mxu0 0
  %1069 = vmatpush1.bf16.msra.mxu0 %v911
  %1070 = vmatprep.subr.bf16.mxu0 0
  %1071 = vmatpush1.bf16.msra.mxu0 %v912
  %1072 = vmatprep.subr.bf16.mxu0 0
  %1073 = vmatpush1.bf16.msra.mxu0 %v913
  %1074 = vmatprep.mubr.bf16.mxu0 %v467
  %1075 = vmatmul.mubr.bf16.gmra.mrb[0].mxu0 %v466
  %v1076 = vpop.f32.mrb[0].mxu0
  %v1077 = vadd.f32 0.0, %v1076
  %v1078 = vpop.f32.mrb[0].mxu0
  %v1079 = vpop.f32.mrb[0].mxu0
  %v1080 = vadd.f32 0.0, %v1079
  %v1081 = vpop.f32.mrb[0].mxu0
  %1082 = vmatprep.mubr.bf16.mxu0 %v476
  %1083 = vmatmul.mubr.bf16.gmra.mrb[0].mxu0 %v475
  %v1084 = vpop.f32.mrb[0].mxu0
  %v1085 = vadd.f32 0.0, %v1084
  %v1086 = vpop.f32.mrb[0].mxu0
  %v1087 = vpop.f32.mrb[0].mxu0
  %v1088 = vadd.f32 0.0, %v1087
  %v1089 = vpop.f32.mrb[0].mxu0
  %1090 = vmatprep.mubr.bf16.mxu0 %v485
  %1091 = vmatmul.mubr.bf16.gmra.mrb[0].mxu0 %v484
  %v1092 = vpop.f32.mrb[0].mxu0
  %v1093 = vadd.f32 0.0, %v1092
  %v1094 = vpop.f32.mrb[0].mxu0
  %v1095 = vpop.f32.mrb[0].mxu0
  %v1096 = vadd.f32 0.0, %v1095
  %v1097 = vpop.f32.mrb[0].mxu0
  %1098 = vmatprep.mubr.bf16.mxu0 %v494
  %1099 = vmatmul.mubr.bf16.gmra.mrb[0].mxu0 %v493
  %v1100 = vpop.f32.mrb[0].mxu0
  %v1101 = vadd.f32 0.0, %v1100
  %v1102 = vpop.f32.mrb[0].mxu0
  %v1103 = vpop.f32.mrb[0].mxu0
  %v1104 = vadd.f32 0.0, %v1103
  %v1105 = vpop.f32.mrb[0].mxu0
  %1106 = vmatprep.mubr.bf16.mxu0 %v503
  %1107 = vmatmul.mubr.bf16.gmra.mrb[0].mxu0 %v502
  %v1108 = vpop.f32.mrb[0].mxu0
  %v1109 = vadd.f32 0.0, %v1108
  %v1110 = vpop.f32.mrb[0].mxu0
  %v1111 = vpop.f32.mrb[0].mxu0
  %v1112 = vadd.f32 0.0, %v1111
  %v1113 = vpop.f32.mrb[0].mxu0
  %1114 = vmatprep.mubr.bf16.mxu0 %v512
  %1115 = vmatmul.mubr.bf16.gmra.mrb[0].mxu0 %v511
  %v1116 = vpop.f32.mrb[0].mxu0
  %v1117 = vadd.f32 0.0, %v1116
  %v1118 = vpop.f32.mrb[0].mxu0
  %v1119 = vpop.f32.mrb[0].mxu0
  %v1120 = vadd.f32 0.0, %v1119
  %v1121 = vpop.f32.mrb[0].mxu0
  %1122 = vmatprep.mubr.bf16.mxu0 %v521
  %1123 = vmatmul.mubr.bf16.gmra.mrb[0].mxu0 %v520
  %v1124 = vpop.f32.mrb[0].mxu0
  %v1125 = vadd.f32 0.0, %v1124
  %v1126 = vpop.f32.mrb[0].mxu0
  %v1127 = vpop.f32.mrb[0].mxu0
  %v1128 = vadd.f32 0.0, %v1127
  %v1129 = vpop.f32.mrb[0].mxu0
  %1130 = vmatprep.mubr.bf16.mxu0 %v530
  %1131 = vmatmul.mubr.bf16.gmra.mrb[0].mxu0 %v529
  %v1132 = vpop.f32.mrb[0].mxu0
  %v1133 = vadd.f32 0.0, %v1132
  %v1134 = vpop.f32.mrb[0].mxu0
  %v1135 = vpop.f32.mrb[0].mxu0
  %v1136 = vadd.f32 0.0, %v1135
  %v1137 = vpop.f32.mrb[0].mxu0
  %1138 = vdwg.mxu0
  %1139 = vmatprep.subr.bf16.mxu0 0
  %1140 = vmatpush1.bf16.msra.mxu0 %v914
  %1141 = vmatprep.subr.bf16.mxu0 0
  %1142 = vmatpush1.bf16.msra.mxu0 %v915
  %1143 = vmatprep.subr.bf16.mxu0 0
  %1144 = vmatpush1.bf16.msra.mxu0 %v916
  %1145 = vmatprep.subr.bf16.mxu0 0
  %1146 = vmatpush1.bf16.msra.mxu0 %v917
  %1147 = vmatprep.subr.bf16.mxu0 0
  %1148 = vmatpush1.bf16.msra.mxu0 %v918
  %1149 = vmatprep.subr.bf16.mxu0 0
  %1150 = vmatpush1.bf16.msra.mxu0 %v919
  %1151 = vmatprep.subr.bf16.mxu0 0
  %1152 = vmatpush1.bf16.msra.mxu0 %v920
  %1153 = vmatprep.subr.bf16.mxu0 0
  %1154 = vmatpush1.bf16.msra.mxu0 %v921
  %1155 = vmatprep.subr.bf16.mxu0 0
  %1156 = vmatpush1.bf16.msra.mxu0 %v922
  %1157 = vmatprep.subr.bf16.mxu0 0
  %1158 = vmatpush1.bf16.msra.mxu0 %v923
  %1159 = vmatprep.subr.bf16.mxu0 0
  %1160 = vmatpush1.bf16.msra.mxu0 %v924
  %1161 = vmatprep.subr.bf16.mxu0 0
  %1162 = vmatpush1.bf16.msra.mxu0 %v925
  %1163 = vmatprep.subr.bf16.mxu0 0
  %1164 = vmatpush1.bf16.msra.mxu0 %v926
  %1165 = vmatprep.subr.bf16.mxu0 0
  %1166 = vmatpush1.bf16.msra.mxu0 %v927
  %1167 = vmatprep.subr.bf16.mxu0 0
  %1168 = vmatpush1.bf16.msra.mxu0 %v928
  %1169 = vmatprep.subr.bf16.mxu0 0
  %1170 = vmatpush1.bf16.msra.mxu0 %v929
  %1171 = vmatprep.mubr.bf16.mxu0 %v469
  %1172 = vmatmul.mubr.bf16.gmra.mrb[0].mxu0 %v468
  %v1173 = vpop.f32.mrb[0].mxu0
  %v1174 = vadd.f32 %v1077, %v1173
  %v1175 = vpop.f32.mrb[0].mxu0
  %v1176 = vpop.f32.mrb[0].mxu0
  %v1177 = vadd.f32 %v1080, %v1176
  %v1178 = vpop.f32.mrb[0].mxu0
  %1179 = vmatprep.mubr.bf16.mxu0 %v478
  %1180 = vmatmul.mubr.bf16.gmra.mrb[0].mxu0 %v477
  %v1181 = vpop.f32.mrb[0].mxu0
  %v1182 = vadd.f32 %v1085, %v1181
  %v1183 = vpop.f32.mrb[0].mxu0
  %v1184 = vpop.f32.mrb[0].mxu0
  %v1185 = vadd.f32 %v1088, %v1184
  %v1186 = vpop.f32.mrb[0].mxu0
  %1187 = vmatprep.mubr.bf16.mxu0 %v487
  %1188 = vmatmul.mubr.bf16.gmra.mrb[0].mxu0 %v486
  %v1189 = vpop.f32.mrb[0].mxu0
  %v1190 = vadd.f32 %v1093, %v1189
  %v1191 = vpop.f32.mrb[0].mxu0
  %v1192 = vpop.f32.mrb[0].mxu0
  %v1193 = vadd.f32 %v1096, %v1192
  %v1194 = vpop.f32.mrb[0].mxu0
  %1195 = vmatprep.mubr.bf16.mxu0 %v496
  %1196 = vmatmul.mubr.bf16.gmra.mrb[0].mxu0 %v495
  %v1197 = vpop.f32.mrb[0].mxu0
  %v1198 = vadd.f32 %v1101, %v1197
  %v1199 = vpop.f32.mrb[0].mxu0
  %v1200 = vpop.f32.mrb[0].mxu0
  %v1201 = vadd.f32 %v1104, %v1200
  %v1202 = vpop.f32.mrb[0].mxu0
  %1203 = vmatprep.mubr.bf16.mxu0 %v505
  %1204 = vmatmul.mubr.bf16.gmra.mrb[0].mxu0 %v504
  %v1205 = vpop.f32.mrb[0].mxu0
  %v1206 = vadd.f32 %v1109, %v1205
  %v1207 = vpop.f32.mrb[0].mxu0
  %v1208 = vpop.f32.mrb[0].mxu0
  %v1209 = vadd.f32 %v1112, %v1208
  %v1210 = vpop.f32.mrb[0].mxu0
  %1211 = vmatprep.mubr.bf16.mxu0 %v514
  %1212 = vmatmul.mubr.bf16.gmra.mrb[0].mxu0 %v513
  %v1213 = vpop.f32.mrb[0].mxu0
  %v1214 = vadd.f32 %v1117, %v1213
  %v1215 = vpop.f32.mrb[0].mxu0
  %v1216 = vpop.f32.mrb[0].mxu0
  %v1217 = vadd.f32 %v1120, %v1216
  %v1218 = vpop.f32.mrb[0].mxu0
  %1219 = vmatprep.mubr.bf16.mxu0 %v523
  %1220 = vmatmul.mubr.bf16.gmra.mrb[0].mxu0 %v522
  %v1221 = vpop.f32.mrb[0].mxu0
  %v1222 = vadd.f32 %v1125, %v1221
  %v1223 = vpop.f32.mrb[0].mxu0
  %v1224 = vpop.f32.mrb[0].mxu0
  %v1225 = vadd.f32 %v1128, %v1224
  %v1226 = vpop.f32.mrb[0].mxu0
  %1227 = vmatprep.mubr.bf16.mxu0 %v532
  %1228 = vmatmul.mubr.bf16.gmra.mrb[0].mxu0 %v531
  %v1229 = vpop.f32.mrb[0].mxu0
  %v1230 = vadd.f32 %v1133, %v1229
  %v1231 = vpop.f32.mrb[0].mxu0
  %v1232 = vpop.f32.mrb[0].mxu0
  %v1233 = vadd.f32 %v1136, %v1232
  %v1234 = vpop.f32.mrb[0].mxu0
  %1235 = vdwg.mxu0
  %1236 = vmatprep.subr.bf16.mxu0 0
  %1237 = vmatpush1.bf16.msra.mxu0 %v930
  %1238 = vmatprep.subr.bf16.mxu0 0
  %1239 = vmatpush1.bf16.msra.mxu0 %v931
  %1240 = vmatprep.subr.bf16.mxu0 0
  %1241 = vmatpush1.bf16.msra.mxu0 %v932
  %1242 = vmatprep.subr.bf16.mxu0 0
  %1243 = vmatpush1.bf16.msra.mxu0 %v933
  %1244 = vmatprep.subr.bf16.mxu0 0
  %1245 = vmatpush1.bf16.msra.mxu0 %v934
  %1246 = vmatprep.subr.bf16.mxu0 0
  %1247 = vmatpush1.bf16.msra.mxu0 %v935
  %1248 = vmatprep.subr.bf16.mxu0 0
  %1249 = vmatpush1.bf16.msra.mxu0 %v936
  %1250 = vmatprep.subr.bf16.mxu0 0
  %1251 = vmatpush1.bf16.msra.mxu0 %v937
  %1252 = vmatprep.subr.bf16.mxu0 0
  %1253 = vmatpush1.bf16.msra.mxu0 %v938
  %1254 = vmatprep.subr.bf16.mxu0 0
  %1255 = vmatpush1.bf16.msra.mxu0 %v939
  %1256 = vmatprep.subr.bf16.mxu0 0
  %1257 = vmatpush1.bf16.msra.mxu0 %v940
  %1258 = vmatprep.subr.bf16.mxu0 0
  %1259 = vmatpush1.bf16.msra.mxu0 %v941
  %1260 = vmatprep.subr.bf16.mxu0 0
  %1261 = vmatpush1.bf16.msra.mxu0 %v942
  %1262 = vmatprep.subr.bf16.mxu0 0
  %1263 = vmatpush1.bf16.msra.mxu0 %v943
  %1264 = vmatprep.subr.bf16.mxu0 0
  %1265 = vmatpush1.bf16.msra.mxu0 %v944
  %1266 = vmatprep.subr.bf16.mxu0 0
  %1267 = vmatpush1.bf16.msra.mxu0 %v945
  %1268 = vmatprep.mubr.bf16.mxu0 %v471
  %1269 = vmatmul.mubr.bf16.gmra.mrb[0].mxu0 %v470
  %v1270 = vpop.f32.mrb[0].mxu0
  %v1271 = vadd.f32 %v1174, %v1270
  %v1272 = vpop.f32.mrb[0].mxu0
  %v1273 = vpop.f32.mrb[0].mxu0
  %v1274 = vadd.f32 %v1177, %v1273
  %v1275 = vpop.f32.mrb[0].mxu0
  %1276 = vmatprep.mubr.bf16.mxu0 %v480
  %1277 = vmatmul.mubr.bf16.gmra.mrb[0].mxu0 %v479
  %v1278 = vpop.f32.mrb[0].mxu0
  %v1279 = vadd.f32 %v1182, %v1278
  %v1280 = vpop.f32.mrb[0].mxu0
  %v1281 = vpop.f32.mrb[0].mxu0
  %v1282 = vadd.f32 %v1185, %v1281
  %v1283 = vpop.f32.mrb[0].mxu0
  %1284 = vmatprep.mubr.bf16.mxu0 %v489
  %1285 = vmatmul.mubr.bf16.gmra.mrb[0].mxu0 %v488
  %v1286 = vpop.f32.mrb[0].mxu0
  %v1287 = vadd.f32 %v1190, %v1286
  %v1288 = vpop.f32.mrb[0].mxu0
  %v1289 = vpop.f32.mrb[0].mxu0
  %v1290 = vadd.f32 %v1193, %v1289
  %v1291 = vpop.f32.mrb[0].mxu0
  %1292 = vmatprep.mubr.bf16.mxu0 %v498
  %1293 = vmatmul.mubr.bf16.gmra.mrb[0].mxu0 %v497
  %v1294 = vpop.f32.mrb[0].mxu0
  %v1295 = vadd.f32 %v1198, %v1294
  %v1296 = vpop.f32.mrb[0].mxu0
  %v1297 = vpop.f32.mrb[0].mxu0
  %v1298 = vadd.f32 %v1201, %v1297
  %v1299 = vpop.f32.mrb[0].mxu0
  %1300 = vmatprep.mubr.bf16.mxu0 %v507
  %1301 = vmatmul.mubr.bf16.gmra.mrb[0].mxu0 %v506
  %v1302 = vpop.f32.mrb[0].mxu0
  %v1303 = vadd.f32 %v1206, %v1302
  %v1304 = vpop.f32.mrb[0].mxu0
  %v1305 = vpop.f32.mrb[0].mxu0
  %v1306 = vadd.f32 %v1209, %v1305
  %v1307 = vpop.f32.mrb[0].mxu0
  %1308 = vmatprep.mubr.bf16.mxu0 %v516
  %1309 = vmatmul.mubr.bf16.gmra.mrb[0].mxu0 %v515
  %v1310 = vpop.f32.mrb[0].mxu0
  %v1311 = vadd.f32 %v1214, %v1310
  %v1312 = vpop.f32.mrb[0].mxu0
  %v1313 = vpop.f32.mrb[0].mxu0
  %v1314 = vadd.f32 %v1217, %v1313
  %v1315 = vpop.f32.mrb[0].mxu0
  %1316 = vmatprep.mubr.bf16.mxu0 %v525
  %1317 = vmatmul.mubr.bf16.gmra.mrb[0].mxu0 %v524
  %v1318 = vpop.f32.mrb[0].mxu0
  %v1319 = vadd.f32 %v1222, %v1318
  %v1320 = vpop.f32.mrb[0].mxu0
  %v1321 = vpop.f32.mrb[0].mxu0
  %v1322 = vadd.f32 %v1225, %v1321
  %v1323 = vpop.f32.mrb[0].mxu0
  %1324 = vmatprep.mubr.bf16.mxu0 %v534
  %1325 = vmatmul.mubr.bf16.gmra.mrb[0].mxu0 %v533
  %v1326 = vpop.f32.mrb[0].mxu0
  %v1327 = vadd.f32 %v1230, %v1326
  %v1328 = vpop.f32.mrb[0].mxu0
  %v1329 = vpop.f32.mrb[0].mxu0
  %v1330 = vadd.f32 %v1233, %v1329
  %v1331 = vpop.f32.mrb[0].mxu0
  %1332 = vdwg.mxu0
  %1333 = vmatprep.subr.bf16.mxu0 0
  %1334 = vmatpush1.bf16.msra.mxu0 %v946
  %1335 = vmatprep.subr.bf16.mxu0 0
  %1336 = vmatpush1.bf16.msra.mxu0 %v947
  %1337 = vmatprep.subr.bf16.mxu0 0
  %1338 = vmatpush1.bf16.msra.mxu0 %v948
  %1339 = vmatprep.subr.bf16.mxu0 0
  %1340 = vmatpush1.bf16.msra.mxu0 %v949
  %1341 = vmatprep.subr.bf16.mxu0 0
  %1342 = vmatpush1.bf16.msra.mxu0 %v950
  %1343 = vmatprep.subr.bf16.mxu0 0
  %1344 = vmatpush1.bf16.msra.mxu0 %v951
  %1345 = vmatprep.subr.bf16.mxu0 0
  %1346 = vmatpush1.bf16.msra.mxu0 %v952
  %1347 = vmatprep.subr.bf16.mxu0 0
  %1348 = vmatpush1.bf16.msra.mxu0 %v953
  %1349 = vmatprep.subr.bf16.mxu0 0
  %1350 = vmatpush1.bf16.msra.mxu0 %v954
  %1351 = vmatprep.subr.bf16.mxu0 0
  %1352 = vmatpush1.bf16.msra.mxu0 %v955
  %1353 = vmatprep.subr.bf16.mxu0 0
  %1354 = vmatpush1.bf16.msra.mxu0 %v956
  %1355 = vmatprep.subr.bf16.mxu0 0
  %1356 = vmatpush1.bf16.msra.mxu0 %v957
  %1357 = vmatprep.subr.bf16.mxu0 0
  %1358 = vmatpush1.bf16.msra.mxu0 %v958
  %1359 = vmatprep.subr.bf16.mxu0 0
  %1360 = vmatpush1.bf16.msra.mxu0 %v959
  %1361 = vmatprep.subr.bf16.mxu0 0
  %1362 = vmatpush1.bf16.msra.mxu0 %v960
  %1363 = vmatprep.subr.bf16.mxu0 0
  %1364 = vmatpush1.bf16.msra.mxu0 %v961
  %1365 = vmatprep.mubr.bf16.mxu0 %v473
  %1366 = vmatmul.mubr.bf16.gmra.mrb[0].mxu0 %v472
  %v1367 = vpop.f32.mrb[0].mxu0
  %v1368 = vadd.f32 %v1271, %v1367
  %v1369 = vpop.f32.mrb[0].mxu0
  %v1370 = vpop.f32.mrb[0].mxu0
  %v1371 = vadd.f32 %v1274, %v1370
  %v1372 = vpop.f32.mrb[0].mxu0
  %1373 = vmatprep.mubr.bf16.mxu0 %v482
  %1374 = vmatmul.mubr.bf16.gmra.mrb[0].mxu0 %v481
  %v1375 = vpop.f32.mrb[0].mxu0
  %v1376 = vadd.f32 %v1279, %v1375
  %v1377 = vpop.f32.mrb[0].mxu0
  %v1378 = vpop.f32.mrb[0].mxu0
  %v1379 = vadd.f32 %v1282, %v1378
  %v1380 = vpop.f32.mrb[0].mxu0
  %1381 = vmatprep.mubr.bf16.mxu0 %v491
  %1382 = vmatmul.mubr.bf16.gmra.mrb[0].mxu0 %v490
  %v1383 = vpop.f32.mrb[0].mxu0
  %v1384 = vadd.f32 %v1287, %v1383
  %v1385 = vpop.f32.mrb[0].mxu0
  %v1386 = vpop.f32.mrb[0].mxu0
  %v1387 = vadd.f32 %v1290, %v1386
  %v1388 = vpop.f32.mrb[0].mxu0
  %1389 = vmatprep.mubr.bf16.mxu0 %v500
  %1390 = vmatmul.mubr.bf16.gmra.mrb[0].mxu0 %v499
  %v1391 = vpop.f32.mrb[0].mxu0
  %v1392 = vadd.f32 %v1295, %v1391
  %v1393 = vpop.f32.mrb[0].mxu0
  %v1394 = vpop.f32.mrb[0].mxu0
  %v1395 = vadd.f32 %v1298, %v1394
  %v1396 = vpop.f32.mrb[0].mxu0
  %1397 = vmatprep.mubr.bf16.mxu0 %v509
  %1398 = vmatmul.mubr.bf16.gmra.mrb[0].mxu0 %v508
  %v1399 = vpop.f32.mrb[0].mxu0
  %v1400 = vadd.f32 %v1303, %v1399
  %v1401 = vpop.f32.mrb[0].mxu0
  %v1402 = vpop.f32.mrb[0].mxu0
  %v1403 = vadd.f32 %v1306, %v1402
  %v1404 = vpop.f32.mrb[0].mxu0
  %1405 = vmatprep.mubr.bf16.mxu0 %v518
  %1406 = vmatmul.mubr.bf16.gmra.mrb[0].mxu0 %v517
  %v1407 = vpop.f32.mrb[0].mxu0
  %v1408 = vadd.f32 %v1311, %v1407
  %v1409 = vpop.f32.mrb[0].mxu0
  %v1410 = vpop.f32.mrb[0].mxu0
  %v1411 = vadd.f32 %v1314, %v1410
  %v1412 = vpop.f32.mrb[0].mxu0
  %1413 = vmatprep.mubr.bf16.mxu0 %v527
  %1414 = vmatmul.mubr.bf16.gmra.mrb[0].mxu0 %v526
  %v1415 = vpop.f32.mrb[0].mxu0
  %v1416 = vadd.f32 %v1319, %v1415
  %v1417 = vpop.f32.mrb[0].mxu0
  %v1418 = vpop.f32.mrb[0].mxu0
  %v1419 = vadd.f32 %v1322, %v1418
  %v1420 = vpop.f32.mrb[0].mxu0
  %1421 = vmatprep.mubr.bf16.mxu0 %v536
  %1422 = vmatmul.mubr.bf16.gmra.mrb[0].mxu0 %v535
  %v1423 = vpop.f32.mrb[0].mxu0
  %v1424 = vadd.f32 %v1327, %v1423
  %v1425 = vpop.f32.mrb[0].mxu0
  %v1426 = vpop.f32.mrb[0].mxu0
  %v1427 = vadd.f32 %v1330, %v1426
  %v1428 = vpop.f32.mrb[0].mxu0
  %1429 = vdwg.mxu0
  %1430 = vmatprep.subr.bf16.mxu0 0
  %1431 = vmatpush1.bf16.msra.mxu0 %v962
  %1432 = vmatprep.subr.bf16.mxu0 0
  %1433 = vmatpush1.bf16.msra.mxu0 %v963
  %1434 = vmatprep.subr.bf16.mxu0 0
  %1435 = vmatpush1.bf16.msra.mxu0 %v964
  %1436 = vmatprep.subr.bf16.mxu0 0
  %1437 = vmatpush1.bf16.msra.mxu0 %v965
  %1438 = vmatprep.subr.bf16.mxu0 0
  %1439 = vmatpush1.bf16.msra.mxu0 %v966
  %1440 = vmatprep.subr.bf16.mxu0 0
  %1441 = vmatpush1.bf16.msra.mxu0 %v967
  %1442 = vmatprep.subr.bf16.mxu0 0
  %1443 = vmatpush1.bf16.msra.mxu0 %v968
  %1444 = vmatprep.subr.bf16.mxu0 0
  %1445 = vmatpush1.bf16.msra.mxu0 %v969
  %1446 = vmatprep.subr.bf16.mxu0 0
  %1447 = vmatpush1.bf16.msra.mxu0 0
  %1448 = vmatprep.subr.bf16.mxu0 0
  %1449 = vmatpush1.bf16.msra.mxu0 0
  %1450 = vmatprep.subr.bf16.mxu0 0
  %1451 = vmatpush1.bf16.msra.mxu0 0
  %1452 = vmatprep.subr.bf16.mxu0 0
  %1453 = vmatpush1.bf16.msra.mxu0 0
  %1454 = vmatprep.subr.bf16.mxu0 0
  %1455 = vmatpush1.bf16.msra.mxu0 0
  %1456 = vmatprep.subr.bf16.mxu0 0
  %1457 = vmatpush1.bf16.msra.mxu0 0
  %1458 = vmatprep.subr.bf16.mxu0 0
  %1459 = vmatpush1.bf16.msra.mxu0 0
  %1460 = vmatprep.subr.bf16.mxu0 0
  %1461 = vmatpush1.bf16.msra.mxu0 0
  %1462 = vmatprep.mubr.bf16.mxu0 0
  %1463 = vmatmul.mubr.bf16.gmra.mrb[0].mxu0 %v474
  %v1464 = vpop.f32.mrb[0].mxu0
  %v1465 = vadd.f32 %v1368, %v1464
  %v1466 = vpop.f32.mrb[0].mxu0
  %v1467 = vpop.f32.mrb[0].mxu0
  %v1468 = vadd.f32 %v1371, %v1467
  %v1469 = vpop.f32.mrb[0].mxu0
  %1470 = vmatprep.mubr.bf16.mxu0 0
  %1471 = vmatmul.mubr.bf16.gmra.mrb[0].mxu0 %v483
  %v1472 = vpop.f32.mrb[0].mxu0
  %v1473 = vadd.f32 %v1376, %v1472
  %v1474 = vpop.f32.mrb[0].mxu0
  %v1475 = vpop.f32.mrb[0].mxu0
  %v1476 = vadd.f32 %v1379, %v1475
  %v1477 = vpop.f32.mrb[0].mxu0
  %1478 = vmatprep.mubr.bf16.mxu0 0
  %1479 = vmatmul.mubr.bf16.gmra.mrb[0].mxu0 %v492
  %v1480 = vpop.f32.mrb[0].mxu0
  %v1481 = vadd.f32 %v1384, %v1480
  %v1482 = vpop.f32.mrb[0].mxu0
  %v1483 = vpop.f32.mrb[0].mxu0
  %v1484 = vadd.f32 %v1387, %v1483
  %v1485 = vpop.f32.mrb[0].mxu0
  %1486 = vmatprep.mubr.bf16.mxu0 0
  %1487 = vmatmul.mubr.bf16.gmra.mrb[0].mxu0 %v501
  %v1488 = vpop.f32.mrb[0].mxu0
  %v1489 = vadd.f32 %v1392, %v1488
  %v1490 = vpop.f32.mrb[0].mxu0
  %v1491 = vpop.f32.mrb[0].mxu0
  %v1492 = vadd.f32 %v1395, %v1491
  %v1493 = vpop.f32.mrb[0].mxu0
  %1494 = vmatprep.mubr.bf16.mxu0 0
  %1495 = vmatmul.mubr.bf16.gmra.mrb[0].mxu0 %v510
  %v1496 = vpop.f32.mrb[0].mxu0
  %v1497 = vadd.f32 %v1400, %v1496
  %v1498 = vpop.f32.mrb[0].mxu0
  %v1499 = vpop.f32.mrb[0].mxu0
  %v1500 = vadd.f32 %v1403, %v1499
  %v1501 = vpop.f32.mrb[0].mxu0
  %1502 = vmatprep.mubr.bf16.mxu0 0
  %1503 = vmatmul.mubr.bf16.gmra.mrb[0].mxu0 %v519
  %v1504 = vpop.f32.mrb[0].mxu0
  %v1505 = vadd.f32 %v1408, %v1504
  %v1506 = vpop.f32.mrb[0].mxu0
  %v1507 = vpop.f32.mrb[0].mxu0
  %v1508 = vadd.f32 %v1411, %v1507
  %v1509 = vpop.f32.mrb[0].mxu0
  %1510 = vmatprep.mubr.bf16.mxu0 0
  %1511 = vmatmul.mubr.bf16.gmra.mrb[0].mxu0 %v528
  %v1512 = vpop.f32.mrb[0].mxu0
  %v1513 = vadd.f32 %v1416, %v1512
  %v1514 = vpop.f32.mrb[0].mxu0
  %v1515 = vpop.f32.mrb[0].mxu0
  %v1516 = vadd.f32 %v1419, %v1515
  %v1517 = vpop.f32.mrb[0].mxu0
  %1518 = vmatprep.mubr.bf16.mxu0 0
  %1519 = vmatmul.mubr.bf16.gmra.mrb[0].mxu0 %v537
  %v1520 = vpop.f32.mrb[0].mxu0
  %v1521 = vadd.f32 %v1424, %v1520
  %v1522 = vpop.f32.mrb[0].mxu0
  %v1523 = vpop.f32.mrb[0].mxu0
  %v1524 = vadd.f32 %v1427, %v1523
  %v1525 = vpop.f32.mrb[0].mxu0
  %1526 = vdwg.mxu0
  %1527 = vst [vmem:[#allocation2] sm:$0xff] %v1465
  %1528 = vst [vmem:[#allocation2 + $0x8] sm:$0xff] %v1468
  %1529 = vst [vmem:[#allocation2 + $0x10] sm:$0xff] %v1473
  %1530 = vst [vmem:[#allocation2 + $0x18] sm:$0xff] %v1476
  %1531 = vst [vmem:[#allocation2 + $0x20] sm:$0xff] %v1481
  %1532 = vst [vmem:[#allocation2 + $0x28] sm:$0xff] %v1484
  %1533 = vst [vmem:[#allocation2 + $0x30] sm:$0xff] %v1489
  %1534 = vst [vmem:[#allocation2 + $0x38] sm:$0xff] %v1492
  %1535 = vst [vmem:[#allocation2 + $0x40] sm:$0xff] %v1497
  %1536 = vst [vmem:[#allocation2 + $0x48] sm:$0xff] %v1500
  %1537 = vst [vmem:[#allocation2 + $0x50] sm:$0xff] %v1505
  %1538 = vst [vmem:[#allocation2 + $0x58] sm:$0xff] %v1508
  %1539 = vst [vmem:[#allocation2 + $0x60] sm:$0xff] %v1513
  %1540 = vst [vmem:[#allocation2 + $0x68] sm:$0xff] %v1516
  %1541 = vst [vmem:[#allocation2 + $0x70] sm:$0xff] %v1521
  %1542 = vst [vmem:[#allocation2 + $0x78] sm:$0xff] %v1524
  %v1543 = vld [vmem:[#allocation2] sm:$0xff]
  %v1544 = vld [vmem:[#allocation2 + $0x8] sm:$0xff]
  %v1545 = vld [vmem:[#allocation2 + $0x10] sm:$0xff]
  %v1546 = vld [vmem:[#allocation2 + $0x18] sm:$0xff]
  %v1547 = vld [vmem:[#allocation2 + $0x20] sm:$0xff]
  %v1548 = vld [vmem:[#allocation2 + $0x28] sm:$0xff]
  %v1549 = vld [vmem:[#allocation2 + $0x30] sm:$0xff]
  %v1550 = vld [vmem:[#allocation2 + $0x38] sm:$0xff]
  %v1551 = vld [vmem:[#allocation2 + $0x40] sm:$0xff]
  %v1552 = vld [vmem:[#allocation2 + $0x48] sm:$0xff]
  %v1553 = vld [vmem:[#allocation2 + $0x50] sm:$0xff]
  %v1554 = vld [vmem:[#allocation2 + $0x58] sm:$0xff]
  %v1555 = vld [vmem:[#allocation2 + $0x60] sm:$0xff]
  %v1556 = vld [vmem:[#allocation2 + $0x68] sm:$0xff]
  %v1557 = vld [vmem:[#allocation2 + $0x70] sm:$0xff]
  %v1558 = vld [vmem:[#allocation2 + $0x78] sm:$0xff]
  %v1559 = vadd.f32 %v1543, %v1544
  %v1560 = vadd.f32 %v1559, %v1545
  %v1561 = vadd.f32 %v1560, %v1546
  %v1562 = vadd.f32 %v1561, %v1547
  %v1563 = vadd.f32 %v1562, %v1548
  %v1564 = vadd.f32 %v1563, %v1549
  %v1565 = vadd.f32 %v1564, %v1550
  %v1566 = vadd.f32 %v1565, %v1551
  %v1567 = vadd.f32 %v1566, %v1552
  %v1568 = vadd.f32 %v1567, %v1553
  %v1569 = vadd.f32 %v1568, %v1554
  %v1570 = vadd.f32 %v1569, %v1555
  %v1571 = vadd.f32 %v1570, %v1556
  %v1572 = vadd.f32 %v1571, %v1557
  %v1573 = vadd.f32 %v1572, %v1558
  %v1574 = vrot.slane %v1573, 4
  %v1575 = vadd.f32 %v1573, %v1574
  %v1576 = vrot.slane %v1575, 2
  %v1577 = vadd.f32 %v1575, %v1576
  %v1578 = vrot.slane %v1577, 1
  %v1579 = vadd.f32 %v1577, %v1578
  %v1580 = vadd.f32 %v1579, 0.0
  %v1581 = vmul.f32 %v1543, %v1543
  %v1582 = vmul.f32 %v1544, %v1544
  %v1583 = vmul.f32 %v1545, %v1545
  %v1584 = vmul.f32 %v1546, %v1546
  %v1585 = vmul.f32 %v1547, %v1547
  %v1586 = vmul.f32 %v1548, %v1548
  %v1587 = vmul.f32 %v1549, %v1549
  %v1588 = vmul.f32 %v1550, %v1550
  %v1589 = vmul.f32 %v1551, %v1551
  %v1590 = vmul.f32 %v1552, %v1552
  %v1591 = vmul.f32 %v1553, %v1553
  %v1592 = vmul.f32 %v1554, %v1554
  %v1593 = vmul.f32 %v1555, %v1555
  %v1594 = vmul.f32 %v1556, %v1556
  %v1595 = vmul.f32 %v1557, %v1557
  %v1596 = vmul.f32 %v1558, %v1558
  %v1597 = vadd.f32 %v1581, %v1582
  %v1598 = vadd.f32 %v1597, %v1583
  %v1599 = vadd.f32 %v1598, %v1584
  %v1600 = vadd.f32 %v1599, %v1585
  %v1601 = vadd.f32 %v1600, %v1586
  %v1602 = vadd.f32 %v1601, %v1587
  %v1603 = vadd.f32 %v1602, %v1588
  %v1604 = vadd.f32 %v1603, %v1589
  %v1605 = vadd.f32 %v1604, %v1590
  %v1606 = vadd.f32 %v1605, %v1591
  %v1607 = vadd.f32 %v1606, %v1592
  %v1608 = vadd.f32 %v1607, %v1593
  %v1609 = vadd.f32 %v1608, %v1594
  %v1610 = vadd.f32 %v1609, %v1595
  %v1611 = vadd.f32 %v1610, %v1596
  %v1612 = vrot.slane %v1611, 4
  %v1613 = vadd.f32 %v1611, %v1612
  %v1614 = vrot.slane %v1613, 2
  %v1615 = vadd.f32 %v1613, %v1614
  %v1616 = vrot.slane %v1615, 1
  %v1617 = vadd.f32 %v1615, %v1616
  %v1618 = vadd.f32 %v1617, 0.0
  %v1619 = vmul.f32 %v1580, 0.0078125
  %v1620 = vmul.f32 %v1618, 0.0078125
  %v1621 = vmul.f32 %v1619, %v1619
  %v1622 = vsub.f32 %v1620, %v1621
  %v1623 = vld [vmem:[%s2] sm:$0x1]
  %v1624 = vadd.f32 %v1622, 1e-05
  %v1625 = vrsqrt.pop %v1624
  %v1626 = vmul.f32 %v1623, %v1625
  %v1627 = vld [vmem:[%s3] sm:$0x1]
  %v1628 = vmul.f32 %v1619, %v1626
  %v1629 = vsub.f32 %v1627, %v1628
  %v1631 = vlaneseq
  %v1632 = vshrl.u32 %v1631, 7
  %v1633 = vsub.s32 0, %v1632
  %v1634 = vrot.slane %v1626, %v1633
  %v1636 = vmul.f32 %v1543, %v1634
  %v1637 = vmul.f32 %v1544, %v1634
  %v1638 = vmul.f32 %v1545, %v1634
  %v1639 = vmul.f32 %v1546, %v1634
  %v1640 = vmul.f32 %v1547, %v1634
  %v1641 = vmul.f32 %v1548, %v1634
  %v1642 = vmul.f32 %v1549, %v1634
  %v1643 = vmul.f32 %v1550, %v1634
  %v1644 = vmul.f32 %v1551, %v1634
  %v1645 = vmul.f32 %v1552, %v1634
  %v1646 = vmul.f32 %v1553, %v1634
  %v1647 = vmul.f32 %v1554, %v1634
  %v1648 = vmul.f32 %v1555, %v1634
  %v1649 = vmul.f32 %v1556, %v1634
  %v1650 = vmul.f32 %v1557, %v1634
  %v1651 = vmul.f32 %v1558, %v1634
  %v1653 = vlaneseq
  %v1654 = vshrl.u32 %v1653, 7
  %v1655 = vsub.s32 0, %v1654
  %v1656 = vrot.slane %v1629, %v1655
  %v1658 = vadd.f32 %v1636, %v1656
  %v1659 = vadd.f32 %v1637, %v1656
  %v1660 = vadd.f32 %v1638, %v1656
  %v1661 = vadd.f32 %v1639, %v1656
  %v1662 = vadd.f32 %v1640, %v1656
  %v1663 = vadd.f32 %v1641, %v1656
  %v1664 = vadd.f32 %v1642, %v1656
  %v1665 = vadd.f32 %v1643, %v1656
  %v1666 = vadd.f32 %v1644, %v1656
  %v1667 = vadd.f32 %v1645, %v1656
  %v1668 = vadd.f32 %v1646, %v1656
  %v1669 = vadd.f32 %v1647, %v1656
  %v1670 = vadd.f32 %v1648, %v1656
  %v1671 = vadd.f32 %v1649, %v1656
  %v1672 = vadd.f32 %v1650, %v1656
  %v1673 = vadd.f32 %v1651, %v1656
  %vm1674 = vcmp.ge.f32.partialorder %v1658, 0.0
  %vm1675 = vcmp.ge.f32.partialorder %v1659, 0.0
  %vm1676 = vcmp.ge.f32.partialorder %v1660, 0.0
  %vm1677 = vcmp.ge.f32.partialorder %v1661, 0.0
  %vm1678 = vcmp.ge.f32.partialorder %v1662, 0.0
  %vm1679 = vcmp.ge.f32.partialorder %v1663, 0.0
  %vm1680 = vcmp.ge.f32.partialorder %v1664, 0.0
  %vm1681 = vcmp.ge.f32.partialorder %v1665, 0.0
  %vm1682 = vcmp.ge.f32.partialorder %v1666, 0.0
  %vm1683 = vcmp.ge.f32.partialorder %v1667, 0.0
  %vm1684 = vcmp.ge.f32.partialorder %v1668, 0.0
  %vm1685 = vcmp.ge.f32.partialorder %v1669, 0.0
  %vm1686 = vcmp.ge.f32.partialorder %v1670, 0.0
  %vm1687 = vcmp.ge.f32.partialorder %v1671, 0.0
  %vm1688 = vcmp.ge.f32.partialorder %v1672, 0.0
  %vm1689 = vcmp.ge.f32.partialorder %v1673, 0.0
  %v1690 = vmul.f32 %v1658, 0.2
  %v1691 = vmul.f32 %v1659, 0.2
  %v1692 = vmul.f32 %v1660, 0.2
  %v1693 = vmul.f32 %v1661, 0.2
  %v1694 = vmul.f32 %v1662, 0.2
  %v1695 = vmul.f32 %v1663, 0.2
  %v1696 = vmul.f32 %v1664, 0.2
  %v1697 = vmul.f32 %v1665, 0.2
  %v1698 = vmul.f32 %v1666, 0.2
  %v1699 = vmul.f32 %v1667, 0.2
  %v1700 = vmul.f32 %v1668, 0.2
  %v1701 = vmul.f32 %v1669, 0.2
  %v1702 = vmul.f32 %v1670, 0.2
  %v1703 = vmul.f32 %v1671, 0.2
  %v1704 = vmul.f32 %v1672, 0.2
  %v1705 = vmul.f32 %v1673, 0.2
  %v1706 = vsel %vm1674, %v1658, %v1690
  %v1707 = vsel %vm1675, %v1659, %v1691
  %v1708 = vsel %vm1676, %v1660, %v1692
  %v1709 = vsel %vm1677, %v1661, %v1693
  %v1710 = vsel %vm1678, %v1662, %v1694
  %v1711 = vsel %vm1679, %v1663, %v1695
  %v1712 = vsel %vm1680, %v1664, %v1696
  %v1713 = vsel %vm1681, %v1665, %v1697
  %v1714 = vsel %vm1682, %v1666, %v1698
  %v1715 = vsel %vm1683, %v1667, %v1699
  %v1716 = vsel %vm1684, %v1668, %v1700
  %v1717 = vsel %vm1685, %v1669, %v1701
  %v1718 = vsel %vm1686, %v1670, %v1702
  %v1719 = vsel %vm1687, %v1671, %v1703
  %v1720 = vsel %vm1688, %v1672, %v1704
  %v1721 = vsel %vm1689, %v1673, %v1705
  %v1722 = vpack.c.bf16 %v1707, %v1706
  %v1723 = vpack.c.bf16 %v1709, %v1708
  %v1724 = vpack.c.bf16 %v1711, %v1710
  %v1725 = vpack.c.bf16 %v1713, %v1712
  %v1726 = vpack.c.bf16 %v1715, %v1714
  %v1727 = vpack.c.bf16 %v1717, %v1716
  %v1728 = vpack.c.bf16 %v1719, %v1718
  %v1729 = vpack.c.bf16 %v1721, %v1720
  %v1738 = vunpack.c.l.b16 %v1722
  %v1739 = vunpack.c.h.b16 %v1722
  %v1740 = vunpack.c.l.b16 %v1723
  %v1741 = vunpack.c.h.b16 %v1723
  %v1742 = vunpack.c.l.b16 %v1724
  %v1743 = vunpack.c.h.b16 %v1724
  %v1744 = vunpack.c.l.b16 %v1725
  %v1745 = vunpack.c.h.b16 %v1725
  %v1746 = vunpack.c.l.b16 %v1726
  %v1747 = vunpack.c.h.b16 %v1726
  %v1748 = vunpack.c.l.b16 %v1727
  %v1749 = vunpack.c.h.b16 %v1727
  %v1750 = vunpack.c.l.b16 %v1728
  %v1751 = vunpack.c.h.b16 %v1728
  %v1752 = vunpack.c.l.b16 %v1729
  %v1753 = vunpack.c.h.b16 %v1729
  %v1754 = vpack.c.b16 %v1738, %v1738
  %v1755 = vpack.c.b16 %v1739, %v1739
  %v1756 = vpack.c.b16 %v1740, %v1740
  %v1757 = vpack.c.b16 %v1741, %v1741
  %v1758 = vpack.c.b16 %v1742, %v1742
  %v1759 = vpack.c.b16 %v1743, %v1743
  %v1760 = vpack.c.b16 %v1744, %v1744
  %v1761 = vpack.c.b16 %v1745, %v1745
  %v1762 = vpack.c.b16 %v1746, %v1746
  %v1763 = vpack.c.b16 %v1747, %v1747
  %v1764 = vpack.c.b16 %v1748, %v1748
  %v1765 = vpack.c.b16 %v1749, %v1749
  %v1766 = vpack.c.b16 %v1750, %v1750
  %v1767 = vpack.c.b16 %v1751, %v1751
  %v1768 = vpack.c.b16 %v1752, %v1752
  %v1769 = vpack.c.b16 %v1753, %v1753
  %1786 = vst [vmem:[%s4] sm:$0xf] %v1754
  %1787 = vst [vmem:[%s4 + $0x4] sm:$0xf] %v1755
  %1788 = vst [vmem:[%s4 + $0x8] sm:$0xf] %v1756
  %1789 = vst [vmem:[%s4 + $0xc] sm:$0xf] %v1757
  %1790 = vst [vmem:[%s4 + $0x10] sm:$0xf] %v1758
  %1791 = vst [vmem:[%s4 + $0x14] sm:$0xf] %v1759
  %1792 = vst [vmem:[%s4 + $0x18] sm:$0xf] %v1760
  %1793 = vst [vmem:[%s4 + $0x1c] sm:$0xf] %v1761
  %1794 = vst [vmem:[%s4 + $0x20] sm:$0xf] %v1762
  %1795 = vst [vmem:[%s4 + $0x24] sm:$0xf] %v1763
  %1796 = vst [vmem:[%s4 + $0x28] sm:$0xf] %v1764
  %1797 = vst [vmem:[%s4 + $0x2c] sm:$0xf] %v1765
  %1798 = vst [vmem:[%s4 + $0x30] sm:$0xf] %v1766
  %1799 = vst [vmem:[%s4 + $0x34] sm:$0xf] %v1767
  %1800 = vst [vmem:[%s4 + $0x38] sm:$0xf] %v1768
  %1801 = vst [vmem:[%s4 + $0x3c] sm:$0xf] %v1769
  // Predicated region
  $region18: #{forward.6} parent=0 // pred_check
    _
  $region19: #{forward.6} parent=0 // pred_check_branch
    %1803 = sbr.rel (0) target = $region21
  $region20: #{forward.6} parent=0 // pred_region
    _
  $region21: #{forward.6} parent=0 // pred_fallthru
    _
  // Predicated region
  $region22: #{forward.6} parent=0 // pred_check
    _
  $region23: #{forward.6} parent=0 // pred_check_branch
    %1805 = sbr.rel (0) target = $region25
  $region24: #{forward.6} parent=0 // pred_region
    _
  $region25: #{forward.6} parent=0 // pred_fallthru
    _

// kernel: forward.7
$region0: #{forward.7}
  #allocation0 [shape = 'u32[]', space=smem, size = 0x4, offset = 0x4, fixed_abs, tag = 'smem constant byte address 0x4 - core index']
  #allocation1 [shape = 'u32[144,128]{1,0:T(1,128)}', space=vmem, size = 0x12000, scoped, tag = 'internal scratch']
  #allocation2 [shape = 'f32[128,512]{1,0:T(8,128)}', space=vmem, size = 0x40000, scoped, tag = 'scratch operand']
  %s0 = inlined_call_operand.vmem [shape: bf16[128,1152], index: 0, kind: input, shape index: {}]
  %s1 = inlined_call_operand.vmem [shape: bf16[1152,512], index: 1, kind: input, shape index: {}]
  %s2 = inlined_call_operand.vmem [shape: f32[1,128], index: 2, kind: input, shape index: {}, may-alias: {2,3}]
  %s3 = inlined_call_operand.vmem [shape: f32[1,128], index: 3, kind: input, shape index: {}, may-alias: {2,3}]
  %s4 = inlined_call_operand.vmem [shape: bf16[128,512], index: 4, kind: output, shape index: {}]
  %s5 = sld [smem:[#allocation0]]
  $region26: #{forward.7} parent=0
    _
  %s7 = ssub.s32 1, %s5
  %s8 = scalar_select 0, %s7, %s5
  // Predicated region
  $region2: #{forward.7} parent=0 // pred_check
    _
  $region3: #{forward.7} parent=0 // pred_check_branch
    %10 = sbr.rel (0) target = $region5
  $region4: #{forward.7} parent=0 // pred_region
    _
  $region5: #{forward.7} parent=0 // pred_fallthru
    _
  // Predicated region
  $region6: #{forward.7} parent=0 // pred_check
    _
  $region7: #{forward.7} parent=0 // pred_check_branch
    %12 = sbr.rel (0) target = $region9
  $region8: #{forward.7} parent=0 // pred_region
    _
  $region9: #{forward.7} parent=0 // pred_fallthru
    _
  // Predicated region
  $region10: #{forward.7} parent=0 // pred_check
    _
  $region11: #{forward.7} parent=0 // pred_check_branch
    %14 = sbr.rel (0) target = $region13
  $region12: #{forward.7} parent=0 // pred_region
    _
  $region13: #{forward.7} parent=0 // pred_fallthru
    _
  // Predicated region
  $region14: #{forward.7} parent=0 // pred_check
    _
  $region15: #{forward.7} parent=0 // pred_check_branch
    %16 = sbr.rel (0) target = $region17
  $region16: #{forward.7} parent=0 // pred_region
    _
  $region17: #{forward.7} parent=0 // pred_fallthru
    _
  %v18 = vld [vmem:[%s0] sm:$0xff]
  %v19 = vld [vmem:[%s0 + $0x8] sm:$0xff]
  %v20 = vld [vmem:[%s0 + $0x10] sm:$0xff]
  %v21 = vld [vmem:[%s0 + $0x18] sm:$0xff]
  %v22 = vld [vmem:[%s0 + $0x20] sm:$0xf]
  %v23 = vld [vmem:[%s0 + $0x24] sm:$0xff]
  %v24 = vld [vmem:[%s0 + $0x2c] sm:$0xff]
  %v25 = vld [vmem:[%s0 + $0x34] sm:$0xff]
  %v26 = vld [vmem:[%s0 + $0x3c] sm:$0xff]
  %v27 = vld [vmem:[%s0 + $0x44] sm:$0xf]
  %v28 = vld [vmem:[%s0 + $0x48] sm:$0xff]
  %v29 = vld [vmem:[%s0 + $0x50] sm:$0xff]
  %v30 = vld [vmem:[%s0 + $0x58] sm:$0xff]
  %v31 = vld [vmem:[%s0 + $0x60] sm:$0xff]
  %v32 = vld [vmem:[%s0 + $0x68] sm:$0xf]
  %v33 = vld [vmem:[%s0 + $0x6c] sm:$0xff]
  %v34 = vld [vmem:[%s0 + $0x74] sm:$0xff]
  %v35 = vld [vmem:[%s0 + $0x7c] sm:$0xff]
  %v36 = vld [vmem:[%s0 + $0x84] sm:$0xff]
  %v37 = vld [vmem:[%s0 + $0x8c] sm:$0xf]
  %v38 = vld [vmem:[%s0 + $0x90] sm:$0xff]
  %v39 = vld [vmem:[%s0 + $0x98] sm:$0xff]
  %v40 = vld [vmem:[%s0 + $0xa0] sm:$0xff]
  %v41 = vld [vmem:[%s0 + $0xa8] sm:$0xff]
  %v42 = vld [vmem:[%s0 + $0xb0] sm:$0xf]
  %v43 = vld [vmem:[%s0 + $0xb4] sm:$0xff]
  %v44 = vld [vmem:[%s0 + $0xbc] sm:$0xff]
  %v45 = vld [vmem:[%s0 + $0xc4] sm:$0xff]
  %v46 = vld [vmem:[%s0 + $0xcc] sm:$0xff]
  %v47 = vld [vmem:[%s0 + $0xd4] sm:$0xf]
  %v48 = vld [vmem:[%s0 + $0xd8] sm:$0xff]
  %v49 = vld [vmem:[%s0 + $0xe0] sm:$0xff]
  %v50 = vld [vmem:[%s0 + $0xe8] sm:$0xff]
  %v51 = vld [vmem:[%s0 + $0xf0] sm:$0xff]
  %v52 = vld [vmem:[%s0 + $0xf8] sm:$0xf]
  %v53 = vld [vmem:[%s0 + $0xfc] sm:$0xff]
  %v54 = vld [vmem:[%s0 + $0x104] sm:$0xff]
  %v55 = vld [vmem:[%s0 + $0x10c] sm:$0xff]
  %v56 = vld [vmem:[%s0 + $0x114] sm:$0xff]
  %v57 = vld [vmem:[%s0 + $0x11c] sm:$0xf]
  %v58 = vld [vmem:[%s0 + $0x120] sm:$0xff]
  %v59 = vld [vmem:[%s0 + $0x128] sm:$0xff]
  %v60 = vld [vmem:[%s0 + $0x130] sm:$0xff]
  %v61 = vld [vmem:[%s0 + $0x138] sm:$0xff]
  %v62 = vld [vmem:[%s0 + $0x140] sm:$0xf]
  %v63 = vld [vmem:[%s0 + $0x144] sm:$0xff]
  %v64 = vld [vmem:[%s0 + $0x14c] sm:$0xff]
  %v65 = vld [vmem:[%s0 + $0x154] sm:$0xff]
  %v66 = vld [vmem:[%s0 + $0x15c] sm:$0xff]
  %v67 = vld [vmem:[%s0 + $0x164] sm:$0xf]
  %v68 = vld [vmem:[%s0 + $0x168] sm:$0xff]
  %v69 = vld [vmem:[%s0 + $0x170] sm:$0xff]
  %v70 = vld [vmem:[%s0 + $0x178] sm:$0xff]
  %v71 = vld [vmem:[%s0 + $0x180] sm:$0xff]
  %v72 = vld [vmem:[%s0 + $0x188] sm:$0xf]
  %v73 = vld [vmem:[%s0 + $0x18c] sm:$0xff]
  %v74 = vld [vmem:[%s0 + $0x194] sm:$0xff]
  %v75 = vld [vmem:[%s0 + $0x19c] sm:$0xff]
  %v76 = vld [vmem:[%s0 + $0x1a4] sm:$0xff]
  %v77 = vld [vmem:[%s0 + $0x1ac] sm:$0xf]
  %v78 = vld [vmem:[%s0 + $0x1b0] sm:$0xff]
  %v79 = vld [vmem:[%s0 + $0x1b8] sm:$0xff]
  %v80 = vld [vmem:[%s0 + $0x1c0] sm:$0xff]
  %v81 = vld [vmem:[%s0 + $0x1c8] sm:$0xff]
  %v82 = vld [vmem:[%s0 + $0x1d0] sm:$0xf]
  %v83 = vld [vmem:[%s0 + $0x1d4] sm:$0xff]
  %v84 = vld [vmem:[%s0 + $0x1dc] sm:$0xff]
  %v85 = vld [vmem:[%s0 + $0x1e4] sm:$0xff]
  %v86 = vld [vmem:[%s0 + $0x1ec] sm:$0xff]
  %v87 = vld [vmem:[%s0 + $0x1f4] sm:$0xf]
  %v88 = vld [vmem:[%s0 + $0x1f8] sm:$0xff]
  %v89 = vld [vmem:[%s0 + $0x200] sm:$0xff]
  %v90 = vld [vmem:[%s0 + $0x208] sm:$0xff]
  %v91 = vld [vmem:[%s0 + $0x210] sm:$0xff]
  %v92 = vld [vmem:[%s0 + $0x218] sm:$0xf]
  %v93 = vld [vmem:[%s0 + $0x21c] sm:$0xff]
  %v94 = vld [vmem:[%s0 + $0x224] sm:$0xff]
  %v95 = vld [vmem:[%s0 + $0x22c] sm:$0xff]
  %v96 = vld [vmem:[%s0 + $0x234] sm:$0xff]
  %v97 = vld [vmem:[%s0 + $0x23c] sm:$0xf]
  %v98 = vld [vmem:[%s1] sm:$0xff]
  %v99 = vld [vmem:[%s1 + $0x8] sm:$0xff]
  %v100 = vld [vmem:[%s1 + $0x10] sm:$0xff]
  %v101 = vld [vmem:[%s1 + $0x18] sm:$0xff]
  %v102 = vld [vmem:[%s1 + $0x20] sm:$0xff]
  %v103 = vld [vmem:[%s1 + $0x28] sm:$0xff]
  %v104 = vld [vmem:[%s1 + $0x30] sm:$0xff]
  %v105 = vld [vmem:[%s1 + $0x38] sm:$0xff]
  %v106 = vld [vmem:[%s1 + $0x40] sm:$0xff]
  %v107 = vld [vmem:[%s1 + $0x48] sm:$0xff]
  %v108 = vld [vmem:[%s1 + $0x50] sm:$0xff]
  %v109 = vld [vmem:[%s1 + $0x58] sm:$0xff]
  %v110 = vld [vmem:[%s1 + $0x60] sm:$0xff]
  %v111 = vld [vmem:[%s1 + $0x68] sm:$0xff]
  %v112 = vld [vmem:[%s1 + $0x70] sm:$0xff]
  %v113 = vld [vmem:[%s1 + $0x78] sm:$0xff]
  %v114 = vld [vmem:[%s1 + $0x80] sm:$0xff]
  %v115 = vld [vmem:[%s1 + $0x88] sm:$0xff]
  %v116 = vld [vmem:[%s1 + $0x90] sm:$0xff]
  %v117 = vld [vmem:[%s1 + $0x98] sm:$0xff]
  %v118 = vld [vmem:[%s1 + $0xa0] sm:$0xff]
  %v119 = vld [vmem:[%s1 + $0xa8] sm:$0xff]
  %v120 = vld [vmem:[%s1 + $0xb0] sm:$0xff]
  %v121 = vld [vmem:[%s1 + $0xb8] sm:$0xff]
  %v122 = vld [vmem:[%s1 + $0xc0] sm:$0xff]
  %v123 = vld [vmem:[%s1 + $0xc8] sm:$0xff]
  %v124 = vld [vmem:[%s1 + $0xd0] sm:$0xff]
  %v125 = vld [vmem:[%s1 + $0xd8] sm:$0xff]
  %v126 = vld [vmem:[%s1 + $0xe0] sm:$0xff]
  %v127 = vld [vmem:[%s1 + $0xe8] sm:$0xff]
  %v128 = vld [vmem:[%s1 + $0xf0] sm:$0xff]
  %v129 = vld [vmem:[%s1 + $0xf8] sm:$0xff]
  %v130 = vld [vmem:[%s1 + $0x100] sm:$0xff]
  %v131 = vld [vmem:[%s1 + $0x108] sm:$0xff]
  %v132 = vld [vmem:[%s1 + $0x110] sm:$0xff]
  %v133 = vld [vmem:[%s1 + $0x118] sm:$0xff]
  %v134 = vld [vmem:[%s1 + $0x120] sm:$0xff]
  %v135 = vld [vmem:[%s1 + $0x128] sm:$0xff]
  %v136 = vld [vmem:[%s1 + $0x130] sm:$0xff]
  %v137 = vld [vmem:[%s1 + $0x138] sm:$0xff]
  %v138 = vld [vmem:[%s1 + $0x140] sm:$0xff]
  %v139 = vld [vmem:[%s1 + $0x148] sm:$0xff]
  %v140 = vld [vmem:[%s1 + $0x150] sm:$0xff]
  %v141 = vld [vmem:[%s1 + $0x158] sm:$0xff]
  %v142 = vld [vmem:[%s1 + $0x160] sm:$0xff]
  %v143 = vld [vmem:[%s1 + $0x168] sm:$0xff]
  %v144 = vld [vmem:[%s1 + $0x170] sm:$0xff]
  %v145 = vld [vmem:[%s1 + $0x178] sm:$0xff]
  %v146 = vld [vmem:[%s1 + $0x180] sm:$0xff]
  %v147 = vld [vmem:[%s1 + $0x188] sm:$0xff]
  %v148 = vld [vmem:[%s1 + $0x190] sm:$0xff]
  %v149 = vld [vmem:[%s1 + $0x198] sm:$0xff]
  %v150 = vld [vmem:[%s1 + $0x1a0] sm:$0xff]
  %v151 = vld [vmem:[%s1 + $0x1a8] sm:$0xff]
  %v152 = vld [vmem:[%s1 + $0x1b0] sm:$0xff]
  %v153 = vld [vmem:[%s1 + $0x1b8] sm:$0xff]
  %v154 = vld [vmem:[%s1 + $0x1c0] sm:$0xff]
  %v155 = vld [vmem:[%s1 + $0x1c8] sm:$0xff]
  %v156 = vld [vmem:[%s1 + $0x1d0] sm:$0xff]
  %v157 = vld [vmem:[%s1 + $0x1d8] sm:$0xff]
  %v158 = vld [vmem:[%s1 + $0x1e0] sm:$0xff]
  %v159 = vld [vmem:[%s1 + $0x1e8] sm:$0xff]
  %v160 = vld [vmem:[%s1 + $0x1f0] sm:$0xff]
  %v161 = vld [vmem:[%s1 + $0x1f8] sm:$0xff]
  %v162 = vld [vmem:[%s1 + $0x200] sm:$0xff]
  %v163 = vld [vmem:[%s1 + $0x208] sm:$0xff]
  %v164 = vld [vmem:[%s1 + $0x210] sm:$0xff]
  %v165 = vld [vmem:[%s1 + $0x218] sm:$0xff]
  %v166 = vld [vmem:[%s1 + $0x220] sm:$0xff]
  %v167 = vld [vmem:[%s1 + $0x228] sm:$0xff]
  %v168 = vld [vmem:[%s1 + $0x230] sm:$0xff]
  %v169 = vld [vmem:[%s1 + $0x238] sm:$0xff]
  %v170 = vld [vmem:[%s1 + $0x240] sm:$0xff]
  %v171 = vld [vmem:[%s1 + $0x248] sm:$0xff]
  %v172 = vld [vmem:[%s1 + $0x250] sm:$0xff]
  %v173 = vld [vmem:[%s1 + $0x258] sm:$0xff]
  %v174 = vld [vmem:[%s1 + $0x260] sm:$0xff]
  %v175 = vld [vmem:[%s1 + $0x268] sm:$0xff]
  %v176 = vld [vmem:[%s1 + $0x270] sm:$0xff]
  %v177 = vld [vmem:[%s1 + $0x278] sm:$0xff]
  %v178 = vld [vmem:[%s1 + $0x280] sm:$0xff]
  %v179 = vld [vmem:[%s1 + $0x288] sm:$0xff]
  %v180 = vld [vmem:[%s1 + $0x290] sm:$0xff]
  %v181 = vld [vmem:[%s1 + $0x298] sm:$0xff]
  %v182 = vld [vmem:[%s1 + $0x2a0] sm:$0xff]
  %v183 = vld [vmem:[%s1 + $0x2a8] sm:$0xff]
  %v184 = vld [vmem:[%s1 + $0x2b0] sm:$0xff]
  %v185 = vld [vmem:[%s1 + $0x2b8] sm:$0xff]
  %v186 = vld [vmem:[%s1 + $0x2c0] sm:$0xff]
  %v187 = vld [vmem:[%s1 + $0x2c8] sm:$0xff]
  %v188 = vld [vmem:[%s1 + $0x2d0] sm:$0xff]
  %v189 = vld [vmem:[%s1 + $0x2d8] sm:$0xff]
  %v190 = vld [vmem:[%s1 + $0x2e0] sm:$0xff]
  %v191 = vld [vmem:[%s1 + $0x2e8] sm:$0xff]
  %v192 = vld [vmem:[%s1 + $0x2f0] sm:$0xff]
  %v193 = vld [vmem:[%s1 + $0x2f8] sm:$0xff]
  %v194 = vld [vmem:[%s1 + $0x300] sm:$0xff]
  %v195 = vld [vmem:[%s1 + $0x308] sm:$0xff]
  %v196 = vld [vmem:[%s1 + $0x310] sm:$0xff]
  %v197 = vld [vmem:[%s1 + $0x318] sm:$0xff]
  %v198 = vld [vmem:[%s1 + $0x320] sm:$0xff]
  %v199 = vld [vmem:[%s1 + $0x328] sm:$0xff]
  %v200 = vld [vmem:[%s1 + $0x330] sm:$0xff]
  %v201 = vld [vmem:[%s1 + $0x338] sm:$0xff]
  %v202 = vld [vmem:[%s1 + $0x340] sm:$0xff]
  %v203 = vld [vmem:[%s1 + $0x348] sm:$0xff]
  %v204 = vld [vmem:[%s1 + $0x350] sm:$0xff]
  %v205 = vld [vmem:[%s1 + $0x358] sm:$0xff]
  %v206 = vld [vmem:[%s1 + $0x360] sm:$0xff]
  %v207 = vld [vmem:[%s1 + $0x368] sm:$0xff]
  %v208 = vld [vmem:[%s1 + $0x370] sm:$0xff]
  %v209 = vld [vmem:[%s1 + $0x378] sm:$0xff]
  %v210 = vld [vmem:[%s1 + $0x380] sm:$0xff]
  %v211 = vld [vmem:[%s1 + $0x388] sm:$0xff]
  %v212 = vld [vmem:[%s1 + $0x390] sm:$0xff]
  %v213 = vld [vmem:[%s1 + $0x398] sm:$0xff]
  %v214 = vld [vmem:[%s1 + $0x3a0] sm:$0xff]
  %v215 = vld [vmem:[%s1 + $0x3a8] sm:$0xff]
  %v216 = vld [vmem:[%s1 + $0x3b0] sm:$0xff]
  %v217 = vld [vmem:[%s1 + $0x3b8] sm:$0xff]
  %v218 = vld [vmem:[%s1 + $0x3c0] sm:$0xff]
  %v219 = vld [vmem:[%s1 + $0x3c8] sm:$0xff]
  %v220 = vld [vmem:[%s1 + $0x3d0] sm:$0xff]
  %v221 = vld [vmem:[%s1 + $0x3d8] sm:$0xff]
  %v222 = vld [vmem:[%s1 + $0x3e0] sm:$0xff]
  %v223 = vld [vmem:[%s1 + $0x3e8] sm:$0xff]
  %v224 = vld [vmem:[%s1 + $0x3f0] sm:$0xff]
  %v225 = vld [vmem:[%s1 + $0x3f8] sm:$0xff]
  %v226 = vld [vmem:[%s1 + $0x400] sm:$0xff]
  %v227 = vld [vmem:[%s1 + $0x408] sm:$0xff]
  %v228 = vld [vmem:[%s1 + $0x410] sm:$0xff]
  %v229 = vld [vmem:[%s1 + $0x418] sm:$0xff]
  %v230 = vld [vmem:[%s1 + $0x420] sm:$0xff]
  %v231 = vld [vmem:[%s1 + $0x428] sm:$0xff]
  %v232 = vld [vmem:[%s1 + $0x430] sm:$0xff]
  %v233 = vld [vmem:[%s1 + $0x438] sm:$0xff]
  %v234 = vld [vmem:[%s1 + $0x440] sm:$0xff]
  %v235 = vld [vmem:[%s1 + $0x448] sm:$0xff]
  %v236 = vld [vmem:[%s1 + $0x450] sm:$0xff]
  %v237 = vld [vmem:[%s1 + $0x458] sm:$0xff]
  %v238 = vld [vmem:[%s1 + $0x460] sm:$0xff]
  %v239 = vld [vmem:[%s1 + $0x468] sm:$0xff]
  %v240 = vld [vmem:[%s1 + $0x470] sm:$0xff]
  %v241 = vld [vmem:[%s1 + $0x478] sm:$0xff]
  %v242 = vld [vmem:[%s1 + $0x480] sm:$0xff]
  %v243 = vld [vmem:[%s1 + $0x488] sm:$0xff]
  %v244 = vld [vmem:[%s1 + $0x490] sm:$0xff]
  %v245 = vld [vmem:[%s1 + $0x498] sm:$0xff]
  %v246 = vld [vmem:[%s1 + $0x4a0] sm:$0xff]
  %v247 = vld [vmem:[%s1 + $0x4a8] sm:$0xff]
  %v248 = vld [vmem:[%s1 + $0x4b0] sm:$0xff]
  %v249 = vld [vmem:[%s1 + $0x4b8] sm:$0xff]
  %v250 = vld [vmem:[%s1 + $0x4c0] sm:$0xff]
  %v251 = vld [vmem:[%s1 + $0x4c8] sm:$0xff]
  %v252 = vld [vmem:[%s1 + $0x4d0] sm:$0xff]
  %v253 = vld [vmem:[%s1 + $0x4d8] sm:$0xff]
  %v254 = vld [vmem:[%s1 + $0x4e0] sm:$0xff]
  %v255 = vld [vmem:[%s1 + $0x4e8] sm:$0xff]
  %v256 = vld [vmem:[%s1 + $0x4f0] sm:$0xff]
  %v257 = vld [vmem:[%s1 + $0x4f8] sm:$0xff]
  %v258 = vld [vmem:[%s1 + $0x500] sm:$0xff]
  %v259 = vld [vmem:[%s1 + $0x508] sm:$0xff]
  %v260 = vld [vmem:[%s1 + $0x510] sm:$0xff]
  %v261 = vld [vmem:[%s1 + $0x518] sm:$0xff]
  %v262 = vld [vmem:[%s1 + $0x520] sm:$0xff]
  %v263 = vld [vmem:[%s1 + $0x528] sm:$0xff]
  %v264 = vld [vmem:[%s1 + $0x530] sm:$0xff]
  %v265 = vld [vmem:[%s1 + $0x538] sm:$0xff]
  %v266 = vld [vmem:[%s1 + $0x540] sm:$0xff]
  %v267 = vld [vmem:[%s1 + $0x548] sm:$0xff]
  %v268 = vld [vmem:[%s1 + $0x550] sm:$0xff]
  %v269 = vld [vmem:[%s1 + $0x558] sm:$0xff]
  %v270 = vld [vmem:[%s1 + $0x560] sm:$0xff]
  %v271 = vld [vmem:[%s1 + $0x568] sm:$0xff]
  %v272 = vld [vmem:[%s1 + $0x570] sm:$0xff]
  %v273 = vld [vmem:[%s1 + $0x578] sm:$0xff]
  %v274 = vld [vmem:[%s1 + $0x580] sm:$0xff]
  %v275 = vld [vmem:[%s1 + $0x588] sm:$0xff]
  %v276 = vld [vmem:[%s1 + $0x590] sm:$0xff]
  %v277 = vld [vmem:[%s1 + $0x598] sm:$0xff]
  %v278 = vld [vmem:[%s1 + $0x5a0] sm:$0xff]
  %v279 = vld [vmem:[%s1 + $0x5a8] sm:$0xff]
  %v280 = vld [vmem:[%s1 + $0x5b0] sm:$0xff]
  %v281 = vld [vmem:[%s1 + $0x5b8] sm:$0xff]
  %v282 = vld [vmem:[%s1 + $0x5c0] sm:$0xff]
  %v283 = vld [vmem:[%s1 + $0x5c8] sm:$0xff]
  %v284 = vld [vmem:[%s1 + $0x5d0] sm:$0xff]
  %v285 = vld [vmem:[%s1 + $0x5d8] sm:$0xff]
  %v286 = vld [vmem:[%s1 + $0x5e0] sm:$0xff]
  %v287 = vld [vmem:[%s1 + $0x5e8] sm:$0xff]
  %v288 = vld [vmem:[%s1 + $0x5f0] sm:$0xff]
  %v289 = vld [vmem:[%s1 + $0x5f8] sm:$0xff]
  %v290 = vld [vmem:[%s1 + $0x600] sm:$0xff]
  %v291 = vld [vmem:[%s1 + $0x608] sm:$0xff]
  %v292 = vld [vmem:[%s1 + $0x610] sm:$0xff]
  %v293 = vld [vmem:[%s1 + $0x618] sm:$0xff]
  %v294 = vld [vmem:[%s1 + $0x620] sm:$0xff]
  %v295 = vld [vmem:[%s1 + $0x628] sm:$0xff]
  %v296 = vld [vmem:[%s1 + $0x630] sm:$0xff]
  %v297 = vld [vmem:[%s1 + $0x638] sm:$0xff]
  %v298 = vld [vmem:[%s1 + $0x640] sm:$0xff]
  %v299 = vld [vmem:[%s1 + $0x648] sm:$0xff]
  %v300 = vld [vmem:[%s1 + $0x650] sm:$0xff]
  %v301 = vld [vmem:[%s1 + $0x658] sm:$0xff]
  %v302 = vld [vmem:[%s1 + $0x660] sm:$0xff]
  %v303 = vld [vmem:[%s1 + $0x668] sm:$0xff]
  %v304 = vld [vmem:[%s1 + $0x670] sm:$0xff]
  %v305 = vld [vmem:[%s1 + $0x678] sm:$0xff]
  %v306 = vld [vmem:[%s1 + $0x680] sm:$0xff]
  %v307 = vld [vmem:[%s1 + $0x688] sm:$0xff]
  %v308 = vld [vmem:[%s1 + $0x690] sm:$0xff]
  %v309 = vld [vmem:[%s1 + $0x698] sm:$0xff]
  %v310 = vld [vmem:[%s1 + $0x6a0] sm:$0xff]
  %v311 = vld [vmem:[%s1 + $0x6a8] sm:$0xff]
  %v312 = vld [vmem:[%s1 + $0x6b0] sm:$0xff]
  %v313 = vld [vmem:[%s1 + $0x6b8] sm:$0xff]
  %v314 = vld [vmem:[%s1 + $0x6c0] sm:$0xff]
  %v315 = vld [vmem:[%s1 + $0x6c8] sm:$0xff]
  %v316 = vld [vmem:[%s1 + $0x6d0] sm:$0xff]
  %v317 = vld [vmem:[%s1 + $0x6d8] sm:$0xff]
  %v318 = vld [vmem:[%s1 + $0x6e0] sm:$0xff]
  %v319 = vld [vmem:[%s1 + $0x6e8] sm:$0xff]
  %v320 = vld [vmem:[%s1 + $0x6f0] sm:$0xff]
  %v321 = vld [vmem:[%s1 + $0x6f8] sm:$0xff]
  %v322 = vld [vmem:[%s1 + $0x700] sm:$0xff]
  %v323 = vld [vmem:[%s1 + $0x708] sm:$0xff]
  %v324 = vld [vmem:[%s1 + $0x710] sm:$0xff]
  %v325 = vld [vmem:[%s1 + $0x718] sm:$0xff]
  %v326 = vld [vmem:[%s1 + $0x720] sm:$0xff]
  %v327 = vld [vmem:[%s1 + $0x728] sm:$0xff]
  %v328 = vld [vmem:[%s1 + $0x730] sm:$0xff]
  %v329 = vld [vmem:[%s1 + $0x738] sm:$0xff]
  %v330 = vld [vmem:[%s1 + $0x740] sm:$0xff]
  %v331 = vld [vmem:[%s1 + $0x748] sm:$0xff]
  %v332 = vld [vmem:[%s1 + $0x750] sm:$0xff]
  %v333 = vld [vmem:[%s1 + $0x758] sm:$0xff]
  %v334 = vld [vmem:[%s1 + $0x760] sm:$0xff]
  %v335 = vld [vmem:[%s1 + $0x768] sm:$0xff]
  %v336 = vld [vmem:[%s1 + $0x770] sm:$0xff]
  %v337 = vld [vmem:[%s1 + $0x778] sm:$0xff]
  %v338 = vld [vmem:[%s1 + $0x780] sm:$0xff]
  %v339 = vld [vmem:[%s1 + $0x788] sm:$0xff]
  %v340 = vld [vmem:[%s1 + $0x790] sm:$0xff]
  %v341 = vld [vmem:[%s1 + $0x798] sm:$0xff]
  %v342 = vld [vmem:[%s1 + $0x7a0] sm:$0xff]
  %v343 = vld [vmem:[%s1 + $0x7a8] sm:$0xff]
  %v344 = vld [vmem:[%s1 + $0x7b0] sm:$0xff]
  %v345 = vld [vmem:[%s1 + $0x7b8] sm:$0xff]
  %v346 = vld [vmem:[%s1 + $0x7c0] sm:$0xff]
  %v347 = vld [vmem:[%s1 + $0x7c8] sm:$0xff]
  %v348 = vld [vmem:[%s1 + $0x7d0] sm:$0xff]
  %v349 = vld [vmem:[%s1 + $0x7d8] sm:$0xff]
  %v350 = vld [vmem:[%s1 + $0x7e0] sm:$0xff]
  %v351 = vld [vmem:[%s1 + $0x7e8] sm:$0xff]
  %v352 = vld [vmem:[%s1 + $0x7f0] sm:$0xff]
  %v353 = vld [vmem:[%s1 + $0x7f8] sm:$0xff]
  %v354 = vld [vmem:[%s1 + $0x800] sm:$0xff]
  %v355 = vld [vmem:[%s1 + $0x808] sm:$0xff]
  %v356 = vld [vmem:[%s1 + $0x810] sm:$0xff]
  %v357 = vld [vmem:[%s1 + $0x818] sm:$0xff]
  %v358 = vld [vmem:[%s1 + $0x820] sm:$0xff]
  %v359 = vld [vmem:[%s1 + $0x828] sm:$0xff]
  %v360 = vld [vmem:[%s1 + $0x830] sm:$0xff]
  %v361 = vld [vmem:[%s1 + $0x838] sm:$0xff]
  %v362 = vld [vmem:[%s1 + $0x840] sm:$0xff]
  %v363 = vld [vmem:[%s1 + $0x848] sm:$0xff]
  %v364 = vld [vmem:[%s1 + $0x850] sm:$0xff]
  %v365 = vld [vmem:[%s1 + $0x858] sm:$0xff]
  %v366 = vld [vmem:[%s1 + $0x860] sm:$0xff]
  %v367 = vld [vmem:[%s1 + $0x868] sm:$0xff]
  %v368 = vld [vmem:[%s1 + $0x870] sm:$0xff]
  %v369 = vld [vmem:[%s1 + $0x878] sm:$0xff]
  %v370 = vld [vmem:[%s1 + $0x880] sm:$0xff]
  %v371 = vld [vmem:[%s1 + $0x888] sm:$0xff]
  %v372 = vld [vmem:[%s1 + $0x890] sm:$0xff]
  %v373 = vld [vmem:[%s1 + $0x898] sm:$0xff]
  %v374 = vld [vmem:[%s1 + $0x8a0] sm:$0xff]
  %v375 = vld [vmem:[%s1 + $0x8a8] sm:$0xff]
  %v376 = vld [vmem:[%s1 + $0x8b0] sm:$0xff]
  %v377 = vld [vmem:[%s1 + $0x8b8] sm:$0xff]
  %v378 = vld [vmem:[%s1 + $0x8c0] sm:$0xff]
  %v379 = vld [vmem:[%s1 + $0x8c8] sm:$0xff]
  %v380 = vld [vmem:[%s1 + $0x8d0] sm:$0xff]
  %v381 = vld [vmem:[%s1 + $0x8d8] sm:$0xff]
  %v382 = vld [vmem:[%s1 + $0x8e0] sm:$0xff]
  %v383 = vld [vmem:[%s1 + $0x8e8] sm:$0xff]
  %v384 = vld [vmem:[%s1 + $0x8f0] sm:$0xff]
  %v385 = vld [vmem:[%s1 + $0x8f8] sm:$0xff]
  %v466 = vunpack.c.l.b16 %v18
  %v467 = vunpack.c.h.b16 %v18
  %v468 = vunpack.c.l.b16 %v19
  %v469 = vunpack.c.h.b16 %v19
  %v470 = vunpack.c.l.b16 %v20
  %v471 = vunpack.c.h.b16 %v20
  %v472 = vunpack.c.l.b16 %v21
  %v473 = vunpack.c.h.b16 %v21
  %v474 = vunpack.c.l.b16 %v22
  %v475 = vunpack.c.l.b16 %v23
  %v476 = vunpack.c.h.b16 %v23
  %v477 = vunpack.c.l.b16 %v24
  %v478 = vunpack.c.h.b16 %v24
  %v479 = vunpack.c.l.b16 %v25
  %v480 = vunpack.c.h.b16 %v25
  %v481 = vunpack.c.l.b16 %v26
  %v482 = vunpack.c.h.b16 %v26
  %v483 = vunpack.c.l.b16 %v27
  %v484 = vunpack.c.l.b16 %v28
  %v485 = vunpack.c.h.b16 %v28
  %v486 = vunpack.c.l.b16 %v29
  %v487 = vunpack.c.h.b16 %v29
  %v488 = vunpack.c.l.b16 %v30
  %v489 = vunpack.c.h.b16 %v30
  %v490 = vunpack.c.l.b16 %v31
  %v491 = vunpack.c.h.b16 %v31
  %v492 = vunpack.c.l.b16 %v32
  %v493 = vunpack.c.l.b16 %v33
  %v494 = vunpack.c.h.b16 %v33
  %v495 = vunpack.c.l.b16 %v34
  %v496 = vunpack.c.h.b16 %v34
  %v497 = vunpack.c.l.b16 %v35
  %v498 = vunpack.c.h.b16 %v35
  %v499 = vunpack.c.l.b16 %v36
  %v500 = vunpack.c.h.b16 %v36
  %v501 = vunpack.c.l.b16 %v37
  %v502 = vunpack.c.l.b16 %v38
  %v503 = vunpack.c.h.b16 %v38
  %v504 = vunpack.c.l.b16 %v39
  %v505 = vunpack.c.h.b16 %v39
  %v506 = vunpack.c.l.b16 %v40
  %v507 = vunpack.c.h.b16 %v40
  %v508 = vunpack.c.l.b16 %v41
  %v509 = vunpack.c.h.b16 %v41
  %v510 = vunpack.c.l.b16 %v42
  %v511 = vunpack.c.l.b16 %v43
  %v512 = vunpack.c.h.b16 %v43
  %v513 = vunpack.c.l.b16 %v44
  %v514 = vunpack.c.h.b16 %v44
  %v515 = vunpack.c.l.b16 %v45
  %v516 = vunpack.c.h.b16 %v45
  %v517 = vunpack.c.l.b16 %v46
  %v518 = vunpack.c.h.b16 %v46
  %v519 = vunpack.c.l.b16 %v47
  %v520 = vunpack.c.l.b16 %v48
  %v521 = vunpack.c.h.b16 %v48
  %v522 = vunpack.c.l.b16 %v49
  %v523 = vunpack.c.h.b16 %v49
  %v524 = vunpack.c.l.b16 %v50
  %v525 = vunpack.c.h.b16 %v50
  %v526 = vunpack.c.l.b16 %v51
  %v527 = vunpack.c.h.b16 %v51
  %v528 = vunpack.c.l.b16 %v52
  %v529 = vunpack.c.l.b16 %v53
  %v530 = vunpack.c.h.b16 %v53
  %v531 = vunpack.c.l.b16 %v54
  %v532 = vunpack.c.h.b16 %v54
  %v533 = vunpack.c.l.b16 %v55
  %v534 = vunpack.c.h.b16 %v55
  %v535 = vunpack.c.l.b16 %v56
  %v536 = vunpack.c.h.b16 %v56
  %v537 = vunpack.c.l.b16 %v57
  %v538 = vunpack.c.l.b16 %v58
  %v539 = vunpack.c.h.b16 %v58
  %v540 = vunpack.c.l.b16 %v59
  %v541 = vunpack.c.h.b16 %v59
  %v542 = vunpack.c.l.b16 %v60
  %v543 = vunpack.c.h.b16 %v60
  %v544 = vunpack.c.l.b16 %v61
  %v545 = vunpack.c.h.b16 %v61
  %v546 = vunpack.c.l.b16 %v62
  %v547 = vunpack.c.l.b16 %v63
  %v548 = vunpack.c.h.b16 %v63
  %v549 = vunpack.c.l.b16 %v64
  %v550 = vunpack.c.h.b16 %v64
  %v551 = vunpack.c.l.b16 %v65
  %v552 = vunpack.c.h.b16 %v65
  %v553 = vunpack.c.l.b16 %v66
  %v554 = vunpack.c.h.b16 %v66
  %v555 = vunpack.c.l.b16 %v67
  %v556 = vunpack.c.l.b16 %v68
  %v557 = vunpack.c.h.b16 %v68
  %v558 = vunpack.c.l.b16 %v69
  %v559 = vunpack.c.h.b16 %v69
  %v560 = vunpack.c.l.b16 %v70
  %v561 = vunpack.c.h.b16 %v70
  %v562 = vunpack.c.l.b16 %v71
  %v563 = vunpack.c.h.b16 %v71
  %v564 = vunpack.c.l.b16 %v72
  %v565 = vunpack.c.l.b16 %v73
  %v566 = vunpack.c.h.b16 %v73
  %v567 = vunpack.c.l.b16 %v74
  %v568 = vunpack.c.h.b16 %v74
  %v569 = vunpack.c.l.b16 %v75
  %v570 = vunpack.c.h.b16 %v75
  %v571 = vunpack.c.l.b16 %v76
  %v572 = vunpack.c.h.b16 %v76
  %v573 = vunpack.c.l.b16 %v77
  %v574 = vunpack.c.l.b16 %v78
  %v575 = vunpack.c.h.b16 %v78
  %v576 = vunpack.c.l.b16 %v79
  %v577 = vunpack.c.h.b16 %v79
  %v578 = vunpack.c.l.b16 %v80
  %v579 = vunpack.c.h.b16 %v80
  %v580 = vunpack.c.l.b16 %v81
  %v581 = vunpack.c.h.b16 %v81
  %v582 = vunpack.c.l.b16 %v82
  %v583 = vunpack.c.l.b16 %v83
  %v584 = vunpack.c.h.b16 %v83
  %v585 = vunpack.c.l.b16 %v84
  %v586 = vunpack.c.h.b16 %v84
  %v587 = vunpack.c.l.b16 %v85
  %v588 = vunpack.c.h.b16 %v85
  %v589 = vunpack.c.l.b16 %v86
  %v590 = vunpack.c.h.b16 %v86
  %v591 = vunpack.c.l.b16 %v87
  %v592 = vunpack.c.l.b16 %v88
  %v593 = vunpack.c.h.b16 %v88
  %v594 = vunpack.c.l.b16 %v89
  %v595 = vunpack.c.h.b16 %v89
  %v596 = vunpack.c.l.b16 %v90
  %v597 = vunpack.c.h.b16 %v90
  %v598 = vunpack.c.l.b16 %v91
  %v599 = vunpack.c.h.b16 %v91
  %v600 = vunpack.c.l.b16 %v92
  %v601 = vunpack.c.l.b16 %v93
  %v602 = vunpack.c.h.b16 %v93
  %v603 = vunpack.c.l.b16 %v94
  %v604 = vunpack.c.h.b16 %v94
  %v605 = vunpack.c.l.b16 %v95
  %v606 = vunpack.c.h.b16 %v95
  %v607 = vunpack.c.l.b16 %v96
  %v608 = vunpack.c.h.b16 %v96
  %v609 = vunpack.c.l.b16 %v97
  %v610 = vpack.c.b16 %v475, %v466
  %v611 = vpack.c.b16 %v476, %v467
  %v612 = vpack.c.b16 %v477, %v468
  %v613 = vpack.c.b16 %v478, %v469
  %v614 = vpack.c.b16 %v479, %v470
  %v615 = vpack.c.b16 %v480, %v471
  %v616 = vpack.c.b16 %v481, %v472
  %v617 = vpack.c.b16 %v482, %v473
  %v618 = vpack.c.b16 %v483, %v474
  %v619 = vpack.c.b16 %v493, %v484
  %v620 = vpack.c.b16 %v494, %v485
  %v621 = vpack.c.b16 %v495, %v486
  %v622 = vpack.c.b16 %v496, %v487
  %v623 = vpack.c.b16 %v497, %v488
  %v624 = vpack.c.b16 %v498, %v489
  %v625 = vpack.c.b16 %v499, %v490
  %v626 = vpack.c.b16 %v500, %v491
  %v627 = vpack.c.b16 %v501, %v492
  %v628 = vpack.c.b16 %v511, %v502
  %v629 = vpack.c.b16 %v512, %v503
  %v630 = vpack.c.b16 %v513, %v504
  %v631 = vpack.c.b16 %v514, %v505
  %v632 = vpack.c.b16 %v515, %v506
  %v633 = vpack.c.b16 %v516, %v507
  %v634 = vpack.c.b16 %v517, %v508
  %v635 = vpack.c.b16 %v518, %v509
  %v636 = vpack.c.b16 %v519, %v510
  %v637 = vpack.c.b16 %v529, %v520
  %v638 = vpack.c.b16 %v530, %v521
  %v639 = vpack.c.b16 %v531, %v522
  %v640 = vpack.c.b16 %v532, %v523
  %v641 = vpack.c.b16 %v533, %v524
  %v642 = vpack.c.b16 %v534, %v525
  %v643 = vpack.c.b16 %v535, %v526
  %v644 = vpack.c.b16 %v536, %v527
  %v645 = vpack.c.b16 %v537, %v528
  %v646 = vpack.c.b16 %v547, %v538
  %v647 = vpack.c.b16 %v548, %v539
  %v648 = vpack.c.b16 %v549, %v540
  %v649 = vpack.c.b16 %v550, %v541
  %v650 = vpack.c.b16 %v551, %v542
  %v651 = vpack.c.b16 %v552, %v543
  %v652 = vpack.c.b16 %v553, %v544
  %v653 = vpack.c.b16 %v554, %v545
  %v654 = vpack.c.b16 %v555, %v546
  %v655 = vpack.c.b16 %v565, %v556
  %v656 = vpack.c.b16 %v566, %v557
  %v657 = vpack.c.b16 %v567, %v558
  %v658 = vpack.c.b16 %v568, %v559
  %v659 = vpack.c.b16 %v569, %v560
  %v660 = vpack.c.b16 %v570, %v561
  %v661 = vpack.c.b16 %v571, %v562
  %v662 = vpack.c.b16 %v572, %v563
  %v663 = vpack.c.b16 %v573, %v564
  %v664 = vpack.c.b16 %v583, %v574
  %v665 = vpack.c.b16 %v584, %v575
  %v666 = vpack.c.b16 %v585, %v576
  %v667 = vpack.c.b16 %v586, %v577
  %v668 = vpack.c.b16 %v587, %v578
  %v669 = vpack.c.b16 %v588, %v579
  %v670 = vpack.c.b16 %v589, %v580
  %v671 = vpack.c.b16 %v590, %v581
  %v672 = vpack.c.b16 %v591, %v582
  %v673 = vpack.c.b16 %v601, %v592
  %v674 = vpack.c.b16 %v602, %v593
  %v675 = vpack.c.b16 %v603, %v594
  %v676 = vpack.c.b16 %v604, %v595
  %v677 = vpack.c.b16 %v605, %v596
  %v678 = vpack.c.b16 %v606, %v597
  %v679 = vpack.c.b16 %v607, %v598
  %v680 = vpack.c.b16 %v608, %v599
  %v681 = vpack.c.b16 %v609, %v600
  %v1042 = vunpack.c.l.b16 %v98
  %v1043 = vunpack.c.h.b16 %v98
  %v1044 = vunpack.c.l.b16 %v99
  %v1045 = vunpack.c.h.b16 %v99
  %v1046 = vunpack.c.l.b16 %v100
  %v1047 = vunpack.c.h.b16 %v100
  %v1048 = vunpack.c.l.b16 %v101
  %v1049 = vunpack.c.h.b16 %v101
  %v1050 = vunpack.c.l.b16 %v102
  %v1051 = vunpack.c.h.b16 %v102
  %v1052 = vunpack.c.l.b16 %v103
  %v1053 = vunpack.c.h.b16 %v103
  %v1054 = vunpack.c.l.b16 %v104
  %v1055 = vunpack.c.h.b16 %v104
  %v1056 = vunpack.c.l.b16 %v105
  %v1057 = vunpack.c.h.b16 %v105
  %v1058 = vunpack.c.l.b16 %v106
  %v1059 = vunpack.c.h.b16 %v106
  %v1060 = vunpack.c.l.b16 %v107
  %v1061 = vunpack.c.h.b16 %v107
  %v1062 = vunpack.c.l.b16 %v108
  %v1063 = vunpack.c.h.b16 %v108
  %v1064 = vunpack.c.l.b16 %v109
  %v1065 = vunpack.c.h.b16 %v109
  %v1066 = vunpack.c.l.b16 %v110
  %v1067 = vunpack.c.h.b16 %v110
  %v1068 = vunpack.c.l.b16 %v111
  %v1069 = vunpack.c.h.b16 %v111
  %v1070 = vunpack.c.l.b16 %v112
  %v1071 = vunpack.c.h.b16 %v112
  %v1072 = vunpack.c.l.b16 %v113
  %v1073 = vunpack.c.h.b16 %v113
  %v1074 = vunpack.c.l.b16 %v114
  %v1075 = vunpack.c.h.b16 %v114
  %v1076 = vunpack.c.l.b16 %v115
  %v1077 = vunpack.c.h.b16 %v115
  %v1078 = vunpack.c.l.b16 %v116
  %v1079 = vunpack.c.h.b16 %v116
  %v1080 = vunpack.c.l.b16 %v117
  %v1081 = vunpack.c.h.b16 %v117
  %v1082 = vunpack.c.l.b16 %v118
  %v1083 = vunpack.c.h.b16 %v118
  %v1084 = vunpack.c.l.b16 %v119
  %v1085 = vunpack.c.h.b16 %v119
  %v1086 = vunpack.c.l.b16 %v120
  %v1087 = vunpack.c.h.b16 %v120
  %v1088 = vunpack.c.l.b16 %v121
  %v1089 = vunpack.c.h.b16 %v121
  %v1090 = vunpack.c.l.b16 %v122
  %v1091 = vunpack.c.h.b16 %v122
  %v1092 = vunpack.c.l.b16 %v123
  %v1093 = vunpack.c.h.b16 %v123
  %v1094 = vunpack.c.l.b16 %v124
  %v1095 = vunpack.c.h.b16 %v124
  %v1096 = vunpack.c.l.b16 %v125
  %v1097 = vunpack.c.h.b16 %v125
  %v1098 = vunpack.c.l.b16 %v126
  %v1099 = vunpack.c.h.b16 %v126
  %v1100 = vunpack.c.l.b16 %v127
  %v1101 = vunpack.c.h.b16 %v127
  %v1102 = vunpack.c.l.b16 %v128
  %v1103 = vunpack.c.h.b16 %v128
  %v1104 = vunpack.c.l.b16 %v129
  %v1105 = vunpack.c.h.b16 %v129
  %v1106 = vunpack.c.l.b16 %v130
  %v1107 = vunpack.c.h.b16 %v130
  %v1108 = vunpack.c.l.b16 %v131
  %v1109 = vunpack.c.h.b16 %v131
  %v1110 = vunpack.c.l.b16 %v132
  %v1111 = vunpack.c.h.b16 %v132
  %v1112 = vunpack.c.l.b16 %v133
  %v1113 = vunpack.c.h.b16 %v133
  %v1114 = vunpack.c.l.b16 %v134
  %v1115 = vunpack.c.h.b16 %v134
  %v1116 = vunpack.c.l.b16 %v135
  %v1117 = vunpack.c.h.b16 %v135
  %v1118 = vunpack.c.l.b16 %v136
  %v1119 = vunpack.c.h.b16 %v136
  %v1120 = vunpack.c.l.b16 %v137
  %v1121 = vunpack.c.h.b16 %v137
  %v1122 = vunpack.c.l.b16 %v138
  %v1123 = vunpack.c.h.b16 %v138
  %v1124 = vunpack.c.l.b16 %v139
  %v1125 = vunpack.c.h.b16 %v139
  %v1126 = vunpack.c.l.b16 %v140
  %v1127 = vunpack.c.h.b16 %v140
  %v1128 = vunpack.c.l.b16 %v141
  %v1129 = vunpack.c.h.b16 %v141
  %v1130 = vunpack.c.l.b16 %v142
  %v1131 = vunpack.c.h.b16 %v142
  %v1132 = vunpack.c.l.b16 %v143
  %v1133 = vunpack.c.h.b16 %v143
  %v1134 = vunpack.c.l.b16 %v144
  %v1135 = vunpack.c.h.b16 %v144
  %v1136 = vunpack.c.l.b16 %v145
  %v1137 = vunpack.c.h.b16 %v145
  %v1138 = vunpack.c.l.b16 %v146
  %v1139 = vunpack.c.h.b16 %v146
  %v1140 = vunpack.c.l.b16 %v147
  %v1141 = vunpack.c.h.b16 %v147
  %v1142 = vunpack.c.l.b16 %v148
  %v1143 = vunpack.c.h.b16 %v148
  %v1144 = vunpack.c.l.b16 %v149
  %v1145 = vunpack.c.h.b16 %v149
  %v1146 = vunpack.c.l.b16 %v150
  %v1147 = vunpack.c.h.b16 %v150
  %v1148 = vunpack.c.l.b16 %v151
  %v1149 = vunpack.c.h.b16 %v151
  %v1150 = vunpack.c.l.b16 %v152
  %v1151 = vunpack.c.h.b16 %v152
  %v1152 = vunpack.c.l.b16 %v153
  %v1153 = vunpack.c.h.b16 %v153
  %v1154 = vunpack.c.l.b16 %v154
  %v1155 = vunpack.c.h.b16 %v154
  %v1156 = vunpack.c.l.b16 %v155
  %v1157 = vunpack.c.h.b16 %v155
  %v1158 = vunpack.c.l.b16 %v156
  %v1159 = vunpack.c.h.b16 %v156
  %v1160 = vunpack.c.l.b16 %v157
  %v1161 = vunpack.c.h.b16 %v157
  %v1162 = vunpack.c.l.b16 %v158
  %v1163 = vunpack.c.h.b16 %v158
  %v1164 = vunpack.c.l.b16 %v159
  %v1165 = vunpack.c.h.b16 %v159
  %v1166 = vunpack.c.l.b16 %v160
  %v1167 = vunpack.c.h.b16 %v160
  %v1168 = vunpack.c.l.b16 %v161
  %v1169 = vunpack.c.h.b16 %v161
  %v1170 = vunpack.c.l.b16 %v162
  %v1171 = vunpack.c.h.b16 %v162
  %v1172 = vunpack.c.l.b16 %v163
  %v1173 = vunpack.c.h.b16 %v163
  %v1174 = vunpack.c.l.b16 %v164
  %v1175 = vunpack.c.h.b16 %v164
  %v1176 = vunpack.c.l.b16 %v165
  %v1177 = vunpack.c.h.b16 %v165
  %v1178 = vunpack.c.l.b16 %v166
  %v1179 = vunpack.c.h.b16 %v166
  %v1180 = vunpack.c.l.b16 %v167
  %v1181 = vunpack.c.h.b16 %v167
  %v1182 = vunpack.c.l.b16 %v168
  %v1183 = vunpack.c.h.b16 %v168
  %v1184 = vunpack.c.l.b16 %v169
  %v1185 = vunpack.c.h.b16 %v169
  %v1186 = vunpack.c.l.b16 %v170
  %v1187 = vunpack.c.h.b16 %v170
  %v1188 = vunpack.c.l.b16 %v171
  %v1189 = vunpack.c.h.b16 %v171
  %v1190 = vunpack.c.l.b16 %v172
  %v1191 = vunpack.c.h.b16 %v172
  %v1192 = vunpack.c.l.b16 %v173
  %v1193 = vunpack.c.h.b16 %v173
  %v1194 = vunpack.c.l.b16 %v174
  %v1195 = vunpack.c.h.b16 %v174
  %v1196 = vunpack.c.l.b16 %v175
  %v1197 = vunpack.c.h.b16 %v175
  %v1198 = vunpack.c.l.b16 %v176
  %v1199 = vunpack.c.h.b16 %v176
  %v1200 = vunpack.c.l.b16 %v177
  %v1201 = vunpack.c.h.b16 %v177
  %v1202 = vunpack.c.l.b16 %v178
  %v1203 = vunpack.c.h.b16 %v178
  %v1204 = vunpack.c.l.b16 %v179
  %v1205 = vunpack.c.h.b16 %v179
  %v1206 = vunpack.c.l.b16 %v180
  %v1207 = vunpack.c.h.b16 %v180
  %v1208 = vunpack.c.l.b16 %v181
  %v1209 = vunpack.c.h.b16 %v181
  %v1210 = vunpack.c.l.b16 %v182
  %v1211 = vunpack.c.h.b16 %v182
  %v1212 = vunpack.c.l.b16 %v183
  %v1213 = vunpack.c.h.b16 %v183
  %v1214 = vunpack.c.l.b16 %v184
  %v1215 = vunpack.c.h.b16 %v184
  %v1216 = vunpack.c.l.b16 %v185
  %v1217 = vunpack.c.h.b16 %v185
  %v1218 = vunpack.c.l.b16 %v186
  %v1219 = vunpack.c.h.b16 %v186
  %v1220 = vunpack.c.l.b16 %v187
  %v1221 = vunpack.c.h.b16 %v187
  %v1222 = vunpack.c.l.b16 %v188
  %v1223 = vunpack.c.h.b16 %v188
  %v1224 = vunpack.c.l.b16 %v189
  %v1225 = vunpack.c.h.b16 %v189
  %v1226 = vunpack.c.l.b16 %v190
  %v1227 = vunpack.c.h.b16 %v190
  %v1228 = vunpack.c.l.b16 %v191
  %v1229 = vunpack.c.h.b16 %v191
  %v1230 = vunpack.c.l.b16 %v192
  %v1231 = vunpack.c.h.b16 %v192
  %v1232 = vunpack.c.l.b16 %v193
  %v1233 = vunpack.c.h.b16 %v193
  %v1234 = vunpack.c.l.b16 %v194
  %v1235 = vunpack.c.h.b16 %v194
  %v1236 = vunpack.c.l.b16 %v195
  %v1237 = vunpack.c.h.b16 %v195
  %v1238 = vunpack.c.l.b16 %v196
  %v1239 = vunpack.c.h.b16 %v196
  %v1240 = vunpack.c.l.b16 %v197
  %v1241 = vunpack.c.h.b16 %v197
  %v1242 = vunpack.c.l.b16 %v198
  %v1243 = vunpack.c.h.b16 %v198
  %v1244 = vunpack.c.l.b16 %v199
  %v1245 = vunpack.c.h.b16 %v199
  %v1246 = vunpack.c.l.b16 %v200
  %v1247 = vunpack.c.h.b16 %v200
  %v1248 = vunpack.c.l.b16 %v201
  %v1249 = vunpack.c.h.b16 %v201
  %v1250 = vunpack.c.l.b16 %v202
  %v1251 = vunpack.c.h.b16 %v202
  %v1252 = vunpack.c.l.b16 %v203
  %v1253 = vunpack.c.h.b16 %v203
  %v1254 = vunpack.c.l.b16 %v204
  %v1255 = vunpack.c.h.b16 %v204
  %v1256 = vunpack.c.l.b16 %v205
  %v1257 = vunpack.c.h.b16 %v205
  %v1258 = vunpack.c.l.b16 %v206
  %v1259 = vunpack.c.h.b16 %v206
  %v1260 = vunpack.c.l.b16 %v207
  %v1261 = vunpack.c.h.b16 %v207
  %v1262 = vunpack.c.l.b16 %v208
  %v1263 = vunpack.c.h.b16 %v208
  %v1264 = vunpack.c.l.b16 %v209
  %v1265 = vunpack.c.h.b16 %v209
  %v1266 = vunpack.c.l.b16 %v210
  %v1267 = vunpack.c.h.b16 %v210
  %v1268 = vunpack.c.l.b16 %v211
  %v1269 = vunpack.c.h.b16 %v211
  %v1270 = vunpack.c.l.b16 %v212
  %v1271 = vunpack.c.h.b16 %v212
  %v1272 = vunpack.c.l.b16 %v213
  %v1273 = vunpack.c.h.b16 %v213
  %v1274 = vunpack.c.l.b16 %v214
  %v1275 = vunpack.c.h.b16 %v214
  %v1276 = vunpack.c.l.b16 %v215
  %v1277 = vunpack.c.h.b16 %v215
  %v1278 = vunpack.c.l.b16 %v216
  %v1279 = vunpack.c.h.b16 %v216
  %v1280 = vunpack.c.l.b16 %v217
  %v1281 = vunpack.c.h.b16 %v217
  %v1282 = vunpack.c.l.b16 %v218
  %v1283 = vunpack.c.h.b16 %v218
  %v1284 = vunpack.c.l.b16 %v219
  %v1285 = vunpack.c.h.b16 %v219
  %v1286 = vunpack.c.l.b16 %v220
  %v1287 = vunpack.c.h.b16 %v220
  %v1288 = vunpack.c.l.b16 %v221
  %v1289 = vunpack.c.h.b16 %v221
  %v1290 = vunpack.c.l.b16 %v222
  %v1291 = vunpack.c.h.b16 %v222
  %v1292 = vunpack.c.l.b16 %v223
  %v1293 = vunpack.c.h.b16 %v223
  %v1294 = vunpack.c.l.b16 %v224
  %v1295 = vunpack.c.h.b16 %v224
  %v1296 = vunpack.c.l.b16 %v225
  %v1297 = vunpack.c.h.b16 %v225
  %v1298 = vunpack.c.l.b16 %v226
  %v1299 = vunpack.c.h.b16 %v226
  %v1300 = vunpack.c.l.b16 %v227
  %v1301 = vunpack.c.h.b16 %v227
  %v1302 = vunpack.c.l.b16 %v228
  %v1303 = vunpack.c.h.b16 %v228
  %v1304 = vunpack.c.l.b16 %v229
  %v1305 = vunpack.c.h.b16 %v229
  %v1306 = vunpack.c.l.b16 %v230
  %v1307 = vunpack.c.h.b16 %v230
  %v1308 = vunpack.c.l.b16 %v231
  %v1309 = vunpack.c.h.b16 %v231
  %v1310 = vunpack.c.l.b16 %v232
  %v1311 = vunpack.c.h.b16 %v232
  %v1312 = vunpack.c.l.b16 %v233
  %v1313 = vunpack.c.h.b16 %v233
  %v1314 = vunpack.c.l.b16 %v234
  %v1315 = vunpack.c.h.b16 %v234
  %v1316 = vunpack.c.l.b16 %v235
  %v1317 = vunpack.c.h.b16 %v235
  %v1318 = vunpack.c.l.b16 %v236
  %v1319 = vunpack.c.h.b16 %v236
  %v1320 = vunpack.c.l.b16 %v237
  %v1321 = vunpack.c.h.b16 %v237
  %v1322 = vunpack.c.l.b16 %v238
  %v1323 = vunpack.c.h.b16 %v238
  %v1324 = vunpack.c.l.b16 %v239
  %v1325 = vunpack.c.h.b16 %v239
  %v1326 = vunpack.c.l.b16 %v240
  %v1327 = vunpack.c.h.b16 %v240
  %v1328 = vunpack.c.l.b16 %v241
  %v1329 = vunpack.c.h.b16 %v241
  %v1330 = vunpack.c.l.b16 %v242
  %v1331 = vunpack.c.h.b16 %v242
  %v1332 = vunpack.c.l.b16 %v243
  %v1333 = vunpack.c.h.b16 %v243
  %v1334 = vunpack.c.l.b16 %v244
  %v1335 = vunpack.c.h.b16 %v244
  %v1336 = vunpack.c.l.b16 %v245
  %v1337 = vunpack.c.h.b16 %v245
  %v1338 = vunpack.c.l.b16 %v246
  %v1339 = vunpack.c.h.b16 %v246
  %v1340 = vunpack.c.l.b16 %v247
  %v1341 = vunpack.c.h.b16 %v247
  %v1342 = vunpack.c.l.b16 %v248
  %v1343 = vunpack.c.h.b16 %v248
  %v1344 = vunpack.c.l.b16 %v249
  %v1345 = vunpack.c.h.b16 %v249
  %v1346 = vunpack.c.l.b16 %v250
  %v1347 = vunpack.c.h.b16 %v250
  %v1348 = vunpack.c.l.b16 %v251
  %v1349 = vunpack.c.h.b16 %v251
  %v1350 = vunpack.c.l.b16 %v252
  %v1351 = vunpack.c.h.b16 %v252
  %v1352 = vunpack.c.l.b16 %v253
  %v1353 = vunpack.c.h.b16 %v253
  %v1354 = vunpack.c.l.b16 %v254
  %v1355 = vunpack.c.h.b16 %v254
  %v1356 = vunpack.c.l.b16 %v255
  %v1357 = vunpack.c.h.b16 %v255
  %v1358 = vunpack.c.l.b16 %v256
  %v1359 = vunpack.c.h.b16 %v256
  %v1360 = vunpack.c.l.b16 %v257
  %v1361 = vunpack.c.h.b16 %v257
  %v1362 = vunpack.c.l.b16 %v258
  %v1363 = vunpack.c.h.b16 %v258
  %v1364 = vunpack.c.l.b16 %v259
  %v1365 = vunpack.c.h.b16 %v259
  %v1366 = vunpack.c.l.b16 %v260
  %v1367 = vunpack.c.h.b16 %v260
  %v1368 = vunpack.c.l.b16 %v261
  %v1369 = vunpack.c.h.b16 %v261
  %v1370 = vunpack.c.l.b16 %v262
  %v1371 = vunpack.c.h.b16 %v262
  %v1372 = vunpack.c.l.b16 %v263
  %v1373 = vunpack.c.h.b16 %v263
  %v1374 = vunpack.c.l.b16 %v264
  %v1375 = vunpack.c.h.b16 %v264
  %v1376 = vunpack.c.l.b16 %v265
  %v1377 = vunpack.c.h.b16 %v265
  %v1378 = vunpack.c.l.b16 %v266
  %v1379 = vunpack.c.h.b16 %v266
  %v1380 = vunpack.c.l.b16 %v267
  %v1381 = vunpack.c.h.b16 %v267
  %v1382 = vunpack.c.l.b16 %v268
  %v1383 = vunpack.c.h.b16 %v268
  %v1384 = vunpack.c.l.b16 %v269
  %v1385 = vunpack.c.h.b16 %v269
  %v1386 = vunpack.c.l.b16 %v270
  %v1387 = vunpack.c.h.b16 %v270
  %v1388 = vunpack.c.l.b16 %v271
  %v1389 = vunpack.c.h.b16 %v271
  %v1390 = vunpack.c.l.b16 %v272
  %v1391 = vunpack.c.h.b16 %v272
  %v1392 = vunpack.c.l.b16 %v273
  %v1393 = vunpack.c.h.b16 %v273
  %v1394 = vunpack.c.l.b16 %v274
  %v1395 = vunpack.c.h.b16 %v274
  %v1396 = vunpack.c.l.b16 %v275
  %v1397 = vunpack.c.h.b16 %v275
  %v1398 = vunpack.c.l.b16 %v276
  %v1399 = vunpack.c.h.b16 %v276
  %v1400 = vunpack.c.l.b16 %v277
  %v1401 = vunpack.c.h.b16 %v277
  %v1402 = vunpack.c.l.b16 %v278
  %v1403 = vunpack.c.h.b16 %v278
  %v1404 = vunpack.c.l.b16 %v279
  %v1405 = vunpack.c.h.b16 %v279
  %v1406 = vunpack.c.l.b16 %v280
  %v1407 = vunpack.c.h.b16 %v280
  %v1408 = vunpack.c.l.b16 %v281
  %v1409 = vunpack.c.h.b16 %v281
  %v1410 = vunpack.c.l.b16 %v282
  %v1411 = vunpack.c.h.b16 %v282
  %v1412 = vunpack.c.l.b16 %v283
  %v1413 = vunpack.c.h.b16 %v283
  %v1414 = vunpack.c.l.b16 %v284
  %v1415 = vunpack.c.h.b16 %v284
  %v1416 = vunpack.c.l.b16 %v285
  %v1417 = vunpack.c.h.b16 %v285
  %v1418 = vunpack.c.l.b16 %v286
  %v1419 = vunpack.c.h.b16 %v286
  %v1420 = vunpack.c.l.b16 %v287
  %v1421 = vunpack.c.h.b16 %v287
  %v1422 = vunpack.c.l.b16 %v288
  %v1423 = vunpack.c.h.b16 %v288
  %v1424 = vunpack.c.l.b16 %v289
  %v1425 = vunpack.c.h.b16 %v289
  %v1426 = vunpack.c.l.b16 %v290
  %v1427 = vunpack.c.h.b16 %v290
  %v1428 = vunpack.c.l.b16 %v291
  %v1429 = vunpack.c.h.b16 %v291
  %v1430 = vunpack.c.l.b16 %v292
  %v1431 = vunpack.c.h.b16 %v292
  %v1432 = vunpack.c.l.b16 %v293
  %v1433 = vunpack.c.h.b16 %v293
  %v1434 = vunpack.c.l.b16 %v294
  %v1435 = vunpack.c.h.b16 %v294
  %v1436 = vunpack.c.l.b16 %v295
  %v1437 = vunpack.c.h.b16 %v295
  %v1438 = vunpack.c.l.b16 %v296
  %v1439 = vunpack.c.h.b16 %v296
  %v1440 = vunpack.c.l.b16 %v297
  %v1441 = vunpack.c.h.b16 %v297
  %v1442 = vunpack.c.l.b16 %v298
  %v1443 = vunpack.c.h.b16 %v298
  %v1444 = vunpack.c.l.b16 %v299
  %v1445 = vunpack.c.h.b16 %v299
  %v1446 = vunpack.c.l.b16 %v300
  %v1447 = vunpack.c.h.b16 %v300
  %v1448 = vunpack.c.l.b16 %v301
  %v1449 = vunpack.c.h.b16 %v301
  %v1450 = vunpack.c.l.b16 %v302
  %v1451 = vunpack.c.h.b16 %v302
  %v1452 = vunpack.c.l.b16 %v303
  %v1453 = vunpack.c.h.b16 %v303
  %v1454 = vunpack.c.l.b16 %v304
  %v1455 = vunpack.c.h.b16 %v304
  %v1456 = vunpack.c.l.b16 %v305
  %v1457 = vunpack.c.h.b16 %v305
  %v1458 = vunpack.c.l.b16 %v306
  %v1459 = vunpack.c.h.b16 %v306
  %v1460 = vunpack.c.l.b16 %v307
  %v1461 = vunpack.c.h.b16 %v307
  %v1462 = vunpack.c.l.b16 %v308
  %v1463 = vunpack.c.h.b16 %v308
  %v1464 = vunpack.c.l.b16 %v309
  %v1465 = vunpack.c.h.b16 %v309
  %v1466 = vunpack.c.l.b16 %v310
  %v1467 = vunpack.c.h.b16 %v310
  %v1468 = vunpack.c.l.b16 %v311
  %v1469 = vunpack.c.h.b16 %v311
  %v1470 = vunpack.c.l.b16 %v312
  %v1471 = vunpack.c.h.b16 %v312
  %v1472 = vunpack.c.l.b16 %v313
  %v1473 = vunpack.c.h.b16 %v313
  %v1474 = vunpack.c.l.b16 %v314
  %v1475 = vunpack.c.h.b16 %v314
  %v1476 = vunpack.c.l.b16 %v315
  %v1477 = vunpack.c.h.b16 %v315
  %v1478 = vunpack.c.l.b16 %v316
  %v1479 = vunpack.c.h.b16 %v316
  %v1480 = vunpack.c.l.b16 %v317
  %v1481 = vunpack.c.h.b16 %v317
  %v1482 = vunpack.c.l.b16 %v318
  %v1483 = vunpack.c.h.b16 %v318
  %v1484 = vunpack.c.l.b16 %v319
  %v1485 = vunpack.c.h.b16 %v319
  %v1486 = vunpack.c.l.b16 %v320
  %v1487 = vunpack.c.h.b16 %v320
  %v1488 = vunpack.c.l.b16 %v321
  %v1489 = vunpack.c.h.b16 %v321
  %v1490 = vunpack.c.l.b16 %v322
  %v1491 = vunpack.c.h.b16 %v322
  %v1492 = vunpack.c.l.b16 %v323
  %v1493 = vunpack.c.h.b16 %v323
  %v1494 = vunpack.c.l.b16 %v324
  %v1495 = vunpack.c.h.b16 %v324
  %v1496 = vunpack.c.l.b16 %v325
  %v1497 = vunpack.c.h.b16 %v325
  %v1498 = vunpack.c.l.b16 %v326
  %v1499 = vunpack.c.h.b16 %v326
  %v1500 = vunpack.c.l.b16 %v327
  %v1501 = vunpack.c.h.b16 %v327
  %v1502 = vunpack.c.l.b16 %v328
  %v1503 = vunpack.c.h.b16 %v328
  %v1504 = vunpack.c.l.b16 %v329
  %v1505 = vunpack.c.h.b16 %v329
  %v1506 = vunpack.c.l.b16 %v330
  %v1507 = vunpack.c.h.b16 %v330
  %v1508 = vunpack.c.l.b16 %v331
  %v1509 = vunpack.c.h.b16 %v331
  %v1510 = vunpack.c.l.b16 %v332
  %v1511 = vunpack.c.h.b16 %v332
  %v1512 = vunpack.c.l.b16 %v333
  %v1513 = vunpack.c.h.b16 %v333
  %v1514 = vunpack.c.l.b16 %v334
  %v1515 = vunpack.c.h.b16 %v334
  %v1516 = vunpack.c.l.b16 %v335
  %v1517 = vunpack.c.h.b16 %v335
  %v1518 = vunpack.c.l.b16 %v336
  %v1519 = vunpack.c.h.b16 %v336
  %v1520 = vunpack.c.l.b16 %v337
  %v1521 = vunpack.c.h.b16 %v337
  %v1522 = vunpack.c.l.b16 %v338
  %v1523 = vunpack.c.h.b16 %v338
  %v1524 = vunpack.c.l.b16 %v339
  %v1525 = vunpack.c.h.b16 %v339
  %v1526 = vunpack.c.l.b16 %v340
  %v1527 = vunpack.c.h.b16 %v340
  %v1528 = vunpack.c.l.b16 %v341
  %v1529 = vunpack.c.h.b16 %v341
  %v1530 = vunpack.c.l.b16 %v342
  %v1531 = vunpack.c.h.b16 %v342
  %v1532 = vunpack.c.l.b16 %v343
  %v1533 = vunpack.c.h.b16 %v343
  %v1534 = vunpack.c.l.b16 %v344
  %v1535 = vunpack.c.h.b16 %v344
  %v1536 = vunpack.c.l.b16 %v345
  %v1537 = vunpack.c.h.b16 %v345
  %v1538 = vunpack.c.l.b16 %v346
  %v1539 = vunpack.c.h.b16 %v346
  %v1540 = vunpack.c.l.b16 %v347
  %v1541 = vunpack.c.h.b16 %v347
  %v1542 = vunpack.c.l.b16 %v348
  %v1543 = vunpack.c.h.b16 %v348
  %v1544 = vunpack.c.l.b16 %v349
  %v1545 = vunpack.c.h.b16 %v349
  %v1546 = vunpack.c.l.b16 %v350
  %v1547 = vunpack.c.h.b16 %v350
  %v1548 = vunpack.c.l.b16 %v351
  %v1549 = vunpack.c.h.b16 %v351
  %v1550 = vunpack.c.l.b16 %v352
  %v1551 = vunpack.c.h.b16 %v352
  %v1552 = vunpack.c.l.b16 %v353
  %v1553 = vunpack.c.h.b16 %v353
  %v1554 = vunpack.c.l.b16 %v354
  %v1555 = vunpack.c.h.b16 %v354
  %v1556 = vunpack.c.l.b16 %v355
  %v1557 = vunpack.c.h.b16 %v355
  %v1558 = vunpack.c.l.b16 %v356
  %v1559 = vunpack.c.h.b16 %v356
  %v1560 = vunpack.c.l.b16 %v357
  %v1561 = vunpack.c.h.b16 %v357
  %v1562 = vunpack.c.l.b16 %v358
  %v1563 = vunpack.c.h.b16 %v358
  %v1564 = vunpack.c.l.b16 %v359
  %v1565 = vunpack.c.h.b16 %v359
  %v1566 = vunpack.c.l.b16 %v360
  %v1567 = vunpack.c.h.b16 %v360
  %v1568 = vunpack.c.l.b16 %v361
  %v1569 = vunpack.c.h.b16 %v361
  %v1570 = vunpack.c.l.b16 %v362
  %v1571 = vunpack.c.h.b16 %v362
  %v1572 = vunpack.c.l.b16 %v363
  %v1573 = vunpack.c.h.b16 %v363
  %v1574 = vunpack.c.l.b16 %v364
  %v1575 = vunpack.c.h.b16 %v364
  %v1576 = vunpack.c.l.b16 %v365
  %v1577 = vunpack.c.h.b16 %v365
  %v1578 = vunpack.c.l.b16 %v366
  %v1579 = vunpack.c.h.b16 %v366
  %v1580 = vunpack.c.l.b16 %v367
  %v1581 = vunpack.c.h.b16 %v367
  %v1582 = vunpack.c.l.b16 %v368
  %v1583 = vunpack.c.h.b16 %v368
  %v1584 = vunpack.c.l.b16 %v369
  %v1585 = vunpack.c.h.b16 %v369
  %v1586 = vunpack.c.l.b16 %v370
  %v1587 = vunpack.c.h.b16 %v370
  %v1588 = vunpack.c.l.b16 %v371
  %v1589 = vunpack.c.h.b16 %v371
  %v1590 = vunpack.c.l.b16 %v372
  %v1591 = vunpack.c.h.b16 %v372
  %v1592 = vunpack.c.l.b16 %v373
  %v1593 = vunpack.c.h.b16 %v373
  %v1594 = vunpack.c.l.b16 %v374
  %v1595 = vunpack.c.h.b16 %v374
  %v1596 = vunpack.c.l.b16 %v375
  %v1597 = vunpack.c.h.b16 %v375
  %v1598 = vunpack.c.l.b16 %v376
  %v1599 = vunpack.c.h.b16 %v376
  %v1600 = vunpack.c.l.b16 %v377
  %v1601 = vunpack.c.h.b16 %v377
  %v1602 = vunpack.c.l.b16 %v378
  %v1603 = vunpack.c.h.b16 %v378
  %v1604 = vunpack.c.l.b16 %v379
  %v1605 = vunpack.c.h.b16 %v379
  %v1606 = vunpack.c.l.b16 %v380
  %v1607 = vunpack.c.h.b16 %v380
  %v1608 = vunpack.c.l.b16 %v381
  %v1609 = vunpack.c.h.b16 %v381
  %v1610 = vunpack.c.l.b16 %v382
  %v1611 = vunpack.c.h.b16 %v382
  %v1612 = vunpack.c.l.b16 %v383
  %v1613 = vunpack.c.h.b16 %v383
  %v1614 = vunpack.c.l.b16 %v384
  %v1615 = vunpack.c.h.b16 %v384
  %v1616 = vunpack.c.l.b16 %v385
  %v1617 = vunpack.c.h.b16 %v385
  %v1618 = vpack.c.b16 %v1046, %v1042
  %v1619 = vpack.c.b16 %v1047, %v1043
  %v1620 = vpack.c.b16 %v1048, %v1044
  %v1621 = vpack.c.b16 %v1049, %v1045
  %v1622 = vpack.c.b16 %v1054, %v1050
  %v1623 = vpack.c.b16 %v1055, %v1051
  %v1624 = vpack.c.b16 %v1056, %v1052
  %v1625 = vpack.c.b16 %v1057, %v1053
  %v1626 = vpack.c.b16 %v1062, %v1058
  %v1627 = vpack.c.b16 %v1063, %v1059
  %v1628 = vpack.c.b16 %v1064, %v1060
  %v1629 = vpack.c.b16 %v1065, %v1061
  %v1630 = vpack.c.b16 %v1070, %v1066
  %v1631 = vpack.c.b16 %v1071, %v1067
  %v1632 = vpack.c.b16 %v1072, %v1068
  %v1633 = vpack.c.b16 %v1073, %v1069
  %v1634 = vpack.c.b16 %v1078, %v1074
  %v1635 = vpack.c.b16 %v1079, %v1075
  %v1636 = vpack.c.b16 %v1080, %v1076
  %v1637 = vpack.c.b16 %v1081, %v1077
  %v1638 = vpack.c.b16 %v1086, %v1082
  %v1639 = vpack.c.b16 %v1087, %v1083
  %v1640 = vpack.c.b16 %v1088, %v1084
  %v1641 = vpack.c.b16 %v1089, %v1085
  %v1642 = vpack.c.b16 %v1094, %v1090
  %v1643 = vpack.c.b16 %v1095, %v1091
  %v1644 = vpack.c.b16 %v1096, %v1092
  %v1645 = vpack.c.b16 %v1097, %v1093
  %v1646 = vpack.c.b16 %v1102, %v1098
  %v1647 = vpack.c.b16 %v1103, %v1099
  %v1648 = vpack.c.b16 %v1104, %v1100
  %v1649 = vpack.c.b16 %v1105, %v1101
  %v1650 = vpack.c.b16 %v1110, %v1106
  %v1651 = vpack.c.b16 %v1111, %v1107
  %v1652 = vpack.c.b16 %v1112, %v1108
  %v1653 = vpack.c.b16 %v1113, %v1109
  %v1654 = vpack.c.b16 %v1118, %v1114
  %v1655 = vpack.c.b16 %v1119, %v1115
  %v1656 = vpack.c.b16 %v1120, %v1116
  %v1657 = vpack.c.b16 %v1121, %v1117
  %v1658 = vpack.c.b16 %v1126, %v1122
  %v1659 = vpack.c.b16 %v1127, %v1123
  %v1660 = vpack.c.b16 %v1128, %v1124
  %v1661 = vpack.c.b16 %v1129, %v1125
  %v1662 = vpack.c.b16 %v1134, %v1130
  %v1663 = vpack.c.b16 %v1135, %v1131
  %v1664 = vpack.c.b16 %v1136, %v1132
  %v1665 = vpack.c.b16 %v1137, %v1133
  %v1666 = vpack.c.b16 %v1142, %v1138
  %v1667 = vpack.c.b16 %v1143, %v1139
  %v1668 = vpack.c.b16 %v1144, %v1140
  %v1669 = vpack.c.b16 %v1145, %v1141
  %v1670 = vpack.c.b16 %v1150, %v1146
  %v1671 = vpack.c.b16 %v1151, %v1147
  %v1672 = vpack.c.b16 %v1152, %v1148
  %v1673 = vpack.c.b16 %v1153, %v1149
  %v1674 = vpack.c.b16 %v1158, %v1154
  %v1675 = vpack.c.b16 %v1159, %v1155
  %v1676 = vpack.c.b16 %v1160, %v1156
  %v1677 = vpack.c.b16 %v1161, %v1157
  %v1678 = vpack.c.b16 %v1166, %v1162
  %v1679 = vpack.c.b16 %v1167, %v1163
  %v1680 = vpack.c.b16 %v1168, %v1164
  %v1681 = vpack.c.b16 %v1169, %v1165
  %v1682 = vpack.c.b16 %v1174, %v1170
  %v1683 = vpack.c.b16 %v1175, %v1171
  %v1684 = vpack.c.b16 %v1176, %v1172
  %v1685 = vpack.c.b16 %v1177, %v1173
  %v1686 = vpack.c.b16 %v1182, %v1178
  %v1687 = vpack.c.b16 %v1183, %v1179
  %v1688 = vpack.c.b16 %v1184, %v1180
  %v1689 = vpack.c.b16 %v1185, %v1181
  %v1690 = vpack.c.b16 %v1190, %v1186
  %v1691 = vpack.c.b16 %v1191, %v1187
  %v1692 = vpack.c.b16 %v1192, %v1188
  %v1693 = vpack.c.b16 %v1193, %v1189
  %v1694 = vpack.c.b16 %v1198, %v1194
  %v1695 = vpack.c.b16 %v1199, %v1195
  %v1696 = vpack.c.b16 %v1200, %v1196
  %v1697 = vpack.c.b16 %v1201, %v1197
  %v1698 = vpack.c.b16 %v1206, %v1202
  %v1699 = vpack.c.b16 %v1207, %v1203
  %v1700 = vpack.c.b16 %v1208, %v1204
  %v1701 = vpack.c.b16 %v1209, %v1205
  %v1702 = vpack.c.b16 %v1214, %v1210
  %v1703 = vpack.c.b16 %v1215, %v1211
  %v1704 = vpack.c.b16 %v1216, %v1212
  %v1705 = vpack.c.b16 %v1217, %v1213
  %v1706 = vpack.c.b16 %v1222, %v1218
  %v1707 = vpack.c.b16 %v1223, %v1219
  %v1708 = vpack.c.b16 %v1224, %v1220
  %v1709 = vpack.c.b16 %v1225, %v1221
  %v1710 = vpack.c.b16 %v1230, %v1226
  %v1711 = vpack.c.b16 %v1231, %v1227
  %v1712 = vpack.c.b16 %v1232, %v1228
  %v1713 = vpack.c.b16 %v1233, %v1229
  %v1714 = vpack.c.b16 %v1238, %v1234
  %v1715 = vpack.c.b16 %v1239, %v1235
  %v1716 = vpack.c.b16 %v1240, %v1236
  %v1717 = vpack.c.b16 %v1241, %v1237
  %v1718 = vpack.c.b16 %v1246, %v1242
  %v1719 = vpack.c.b16 %v1247, %v1243
  %v1720 = vpack.c.b16 %v1248, %v1244
  %v1721 = vpack.c.b16 %v1249, %v1245
  %v1722 = vpack.c.b16 %v1254, %v1250
  %v1723 = vpack.c.b16 %v1255, %v1251
  %v1724 = vpack.c.b16 %v1256, %v1252
  %v1725 = vpack.c.b16 %v1257, %v1253
  %v1726 = vpack.c.b16 %v1262, %v1258
  %v1727 = vpack.c.b16 %v1263, %v1259
  %v1728 = vpack.c.b16 %v1264, %v1260
  %v1729 = vpack.c.b16 %v1265, %v1261
  %v1730 = vpack.c.b16 %v1270, %v1266
  %v1731 = vpack.c.b16 %v1271, %v1267
  %v1732 = vpack.c.b16 %v1272, %v1268
  %v1733 = vpack.c.b16 %v1273, %v1269
  %v1734 = vpack.c.b16 %v1278, %v1274
  %v1735 = vpack.c.b16 %v1279, %v1275
  %v1736 = vpack.c.b16 %v1280, %v1276
  %v1737 = vpack.c.b16 %v1281, %v1277
  %v1738 = vpack.c.b16 %v1286, %v1282
  %v1739 = vpack.c.b16 %v1287, %v1283
  %v1740 = vpack.c.b16 %v1288, %v1284
  %v1741 = vpack.c.b16 %v1289, %v1285
  %v1742 = vpack.c.b16 %v1294, %v1290
  %v1743 = vpack.c.b16 %v1295, %v1291
  %v1744 = vpack.c.b16 %v1296, %v1292
  %v1745 = vpack.c.b16 %v1297, %v1293
  %v1746 = vpack.c.b16 %v1302, %v1298
  %v1747 = vpack.c.b16 %v1303, %v1299
  %v1748 = vpack.c.b16 %v1304, %v1300
  %v1749 = vpack.c.b16 %v1305, %v1301
  %v1750 = vpack.c.b16 %v1310, %v1306
  %v1751 = vpack.c.b16 %v1311, %v1307
  %v1752 = vpack.c.b16 %v1312, %v1308
  %v1753 = vpack.c.b16 %v1313, %v1309
  %v1754 = vpack.c.b16 %v1318, %v1314
  %v1755 = vpack.c.b16 %v1319, %v1315
  %v1756 = vpack.c.b16 %v1320, %v1316
  %v1757 = vpack.c.b16 %v1321, %v1317
  %v1758 = vpack.c.b16 %v1326, %v1322
  %v1759 = vpack.c.b16 %v1327, %v1323
  %v1760 = vpack.c.b16 %v1328, %v1324
  %v1761 = vpack.c.b16 %v1329, %v1325
  %v1762 = vpack.c.b16 %v1334, %v1330
  %v1763 = vpack.c.b16 %v1335, %v1331
  %v1764 = vpack.c.b16 %v1336, %v1332
  %v1765 = vpack.c.b16 %v1337, %v1333
  %v1766 = vpack.c.b16 %v1342, %v1338
  %v1767 = vpack.c.b16 %v1343, %v1339
  %v1768 = vpack.c.b16 %v1344, %v1340
  %v1769 = vpack.c.b16 %v1345, %v1341
  %v1770 = vpack.c.b16 %v1350, %v1346
  %v1771 = vpack.c.b16 %v1351, %v1347
  %v1772 = vpack.c.b16 %v1352, %v1348
  %v1773 = vpack.c.b16 %v1353, %v1349
  %v1774 = vpack.c.b16 %v1358, %v1354
  %v1775 = vpack.c.b16 %v1359, %v1355
  %v1776 = vpack.c.b16 %v1360, %v1356
  %v1777 = vpack.c.b16 %v1361, %v1357
  %v1778 = vpack.c.b16 %v1366, %v1362
  %v1779 = vpack.c.b16 %v1367, %v1363
  %v1780 = vpack.c.b16 %v1368, %v1364
  %v1781 = vpack.c.b16 %v1369, %v1365
  %v1782 = vpack.c.b16 %v1374, %v1370
  %v1783 = vpack.c.b16 %v1375, %v1371
  %v1784 = vpack.c.b16 %v1376, %v1372
  %v1785 = vpack.c.b16 %v1377, %v1373
  %v1786 = vpack.c.b16 %v1382, %v1378
  %v1787 = vpack.c.b16 %v1383, %v1379
  %v1788 = vpack.c.b16 %v1384, %v1380
  %v1789 = vpack.c.b16 %v1385, %v1381
  %v1790 = vpack.c.b16 %v1390, %v1386
  %v1791 = vpack.c.b16 %v1391, %v1387
  %v1792 = vpack.c.b16 %v1392, %v1388
  %v1793 = vpack.c.b16 %v1393, %v1389
  %v1794 = vpack.c.b16 %v1398, %v1394
  %v1795 = vpack.c.b16 %v1399, %v1395
  %v1796 = vpack.c.b16 %v1400, %v1396
  %v1797 = vpack.c.b16 %v1401, %v1397
  %v1798 = vpack.c.b16 %v1406, %v1402
  %v1799 = vpack.c.b16 %v1407, %v1403
  %v1800 = vpack.c.b16 %v1408, %v1404
  %v1801 = vpack.c.b16 %v1409, %v1405
  %v1802 = vpack.c.b16 %v1414, %v1410
  %v1803 = vpack.c.b16 %v1415, %v1411
  %v1804 = vpack.c.b16 %v1416, %v1412
  %v1805 = vpack.c.b16 %v1417, %v1413
  %v1806 = vpack.c.b16 %v1422, %v1418
  %v1807 = vpack.c.b16 %v1423, %v1419
  %v1808 = vpack.c.b16 %v1424, %v1420
  %v1809 = vpack.c.b16 %v1425, %v1421
  %v1810 = vpack.c.b16 %v1430, %v1426
  %v1811 = vpack.c.b16 %v1431, %v1427
  %v1812 = vpack.c.b16 %v1432, %v1428
  %v1813 = vpack.c.b16 %v1433, %v1429
  %v1814 = vpack.c.b16 %v1438, %v1434
  %v1815 = vpack.c.b16 %v1439, %v1435
  %v1816 = vpack.c.b16 %v1440, %v1436
  %v1817 = vpack.c.b16 %v1441, %v1437
  %v1818 = vpack.c.b16 %v1446, %v1442
  %v1819 = vpack.c.b16 %v1447, %v1443
  %v1820 = vpack.c.b16 %v1448, %v1444
  %v1821 = vpack.c.b16 %v1449, %v1445
  %v1822 = vpack.c.b16 %v1454, %v1450
  %v1823 = vpack.c.b16 %v1455, %v1451
  %v1824 = vpack.c.b16 %v1456, %v1452
  %v1825 = vpack.c.b16 %v1457, %v1453
  %v1826 = vpack.c.b16 %v1462, %v1458
  %v1827 = vpack.c.b16 %v1463, %v1459
  %v1828 = vpack.c.b16 %v1464, %v1460
  %v1829 = vpack.c.b16 %v1465, %v1461
  %v1830 = vpack.c.b16 %v1470, %v1466
  %v1831 = vpack.c.b16 %v1471, %v1467
  %v1832 = vpack.c.b16 %v1472, %v1468
  %v1833 = vpack.c.b16 %v1473, %v1469
  %v1834 = vpack.c.b16 %v1478, %v1474
  %v1835 = vpack.c.b16 %v1479, %v1475
  %v1836 = vpack.c.b16 %v1480, %v1476
  %v1837 = vpack.c.b16 %v1481, %v1477
  %v1838 = vpack.c.b16 %v1486, %v1482
  %v1839 = vpack.c.b16 %v1487, %v1483
  %v1840 = vpack.c.b16 %v1488, %v1484
  %v1841 = vpack.c.b16 %v1489, %v1485
  %v1842 = vpack.c.b16 %v1494, %v1490
  %v1843 = vpack.c.b16 %v1495, %v1491
  %v1844 = vpack.c.b16 %v1496, %v1492
  %v1845 = vpack.c.b16 %v1497, %v1493
  %v1846 = vpack.c.b16 %v1502, %v1498
  %v1847 = vpack.c.b16 %v1503, %v1499
  %v1848 = vpack.c.b16 %v1504, %v1500
  %v1849 = vpack.c.b16 %v1505, %v1501
  %v1850 = vpack.c.b16 %v1510, %v1506
  %v1851 = vpack.c.b16 %v1511, %v1507
  %v1852 = vpack.c.b16 %v1512, %v1508
  %v1853 = vpack.c.b16 %v1513, %v1509
  %v1854 = vpack.c.b16 %v1518, %v1514
  %v1855 = vpack.c.b16 %v1519, %v1515
  %v1856 = vpack.c.b16 %v1520, %v1516
  %v1857 = vpack.c.b16 %v1521, %v1517
  %v1858 = vpack.c.b16 %v1526, %v1522
  %v1859 = vpack.c.b16 %v1527, %v1523
  %v1860 = vpack.c.b16 %v1528, %v1524
  %v1861 = vpack.c.b16 %v1529, %v1525
  %v1862 = vpack.c.b16 %v1534, %v1530
  %v1863 = vpack.c.b16 %v1535, %v1531
  %v1864 = vpack.c.b16 %v1536, %v1532
  %v1865 = vpack.c.b16 %v1537, %v1533
  %v1866 = vpack.c.b16 %v1542, %v1538
  %v1867 = vpack.c.b16 %v1543, %v1539
  %v1868 = vpack.c.b16 %v1544, %v1540
  %v1869 = vpack.c.b16 %v1545, %v1541
  %v1870 = vpack.c.b16 %v1550, %v1546
  %v1871 = vpack.c.b16 %v1551, %v1547
  %v1872 = vpack.c.b16 %v1552, %v1548
  %v1873 = vpack.c.b16 %v1553, %v1549
  %v1874 = vpack.c.b16 %v1558, %v1554
  %v1875 = vpack.c.b16 %v1559, %v1555
  %v1876 = vpack.c.b16 %v1560, %v1556
  %v1877 = vpack.c.b16 %v1561, %v1557
  %v1878 = vpack.c.b16 %v1566, %v1562
  %v1879 = vpack.c.b16 %v1567, %v1563
  %v1880 = vpack.c.b16 %v1568, %v1564
  %v1881 = vpack.c.b16 %v1569, %v1565
  %v1882 = vpack.c.b16 %v1574, %v1570
  %v1883 = vpack.c.b16 %v1575, %v1571
  %v1884 = vpack.c.b16 %v1576, %v1572
  %v1885 = vpack.c.b16 %v1577, %v1573
  %v1886 = vpack.c.b16 %v1582, %v1578
  %v1887 = vpack.c.b16 %v1583, %v1579
  %v1888 = vpack.c.b16 %v1584, %v1580
  %v1889 = vpack.c.b16 %v1585, %v1581
  %v1890 = vpack.c.b16 %v1590, %v1586
  %v1891 = vpack.c.b16 %v1591, %v1587
  %v1892 = vpack.c.b16 %v1592, %v1588
  %v1893 = vpack.c.b16 %v1593, %v1589
  %v1894 = vpack.c.b16 %v1598, %v1594
  %v1895 = vpack.c.b16 %v1599, %v1595
  %v1896 = vpack.c.b16 %v1600, %v1596
  %v1897 = vpack.c.b16 %v1601, %v1597
  %v1898 = vpack.c.b16 %v1606, %v1602
  %v1899 = vpack.c.b16 %v1607, %v1603
  %v1900 = vpack.c.b16 %v1608, %v1604
  %v1901 = vpack.c.b16 %v1609, %v1605
  %v1902 = vpack.c.b16 %v1614, %v1610
  %v1903 = vpack.c.b16 %v1615, %v1611
  %v1904 = vpack.c.b16 %v1616, %v1612
  %v1905 = vpack.c.b16 %v1617, %v1613
  %2194 = vmatprep.subr.bf16.mxu0 %v1619
  %2195 = vmatpush1.bf16.msra.mxu0 %v1618
  %2196 = vmatprep.subr.bf16.mxu0 %v1623
  %2197 = vmatpush1.bf16.msra.mxu0 %v1622
  %2198 = vmatprep.subr.bf16.mxu0 %v1627
  %2199 = vmatpush1.bf16.msra.mxu0 %v1626
  %2200 = vmatprep.subr.bf16.mxu0 %v1631
  %2201 = vmatpush1.bf16.msra.mxu0 %v1630
  %2202 = vmatprep.subr.bf16.mxu0 %v1635
  %2203 = vmatpush1.bf16.msra.mxu0 %v1634
  %2204 = vmatprep.subr.bf16.mxu0 %v1639
  %2205 = vmatpush1.bf16.msra.mxu0 %v1638
  %2206 = vmatprep.subr.bf16.mxu0 %v1643
  %2207 = vmatpush1.bf16.msra.mxu0 %v1642
  %2208 = vmatprep.subr.bf16.mxu0 %v1647
  %2209 = vmatpush1.bf16.msra.mxu0 %v1646
  %2210 = vmatprep.subr.bf16.mxu0 %v1651
  %2211 = vmatpush1.bf16.msra.mxu0 %v1650
  %2212 = vmatprep.subr.bf16.mxu0 %v1655
  %2213 = vmatpush1.bf16.msra.mxu0 %v1654
  %2214 = vmatprep.subr.bf16.mxu0 %v1659
  %2215 = vmatpush1.bf16.msra.mxu0 %v1658
  %2216 = vmatprep.subr.bf16.mxu0 %v1663
  %2217 = vmatpush1.bf16.msra.mxu0 %v1662
  %2218 = vmatprep.subr.bf16.mxu0 %v1667
  %2219 = vmatpush1.bf16.msra.mxu0 %v1666
  %2220 = vmatprep.subr.bf16.mxu0 %v1671
  %2221 = vmatpush1.bf16.msra.mxu0 %v1670
  %2222 = vmatprep.subr.bf16.mxu0 %v1675
  %2223 = vmatpush1.bf16.msra.mxu0 %v1674
  %2224 = vmatprep.subr.bf16.mxu0 %v1679
  %2225 = vmatpush1.bf16.msra.mxu0 %v1678
  %2226 = vmatprep.mubr.bf16.mxu0 %v611
  %2227 = vmatmul.mubr.bf16.gmra.mrb[0].mxu0 %v610
  %v2228 = vpop.f32.mrb[0].mxu0
  %v2229 = vadd.f32 0.0, %v2228
  %v2230 = vpop.f32.mrb[0].mxu0
  %v2231 = vadd.f32 0.0, %v2230
  %v2232 = vpop.f32.mrb[0].mxu0
  %v2233 = vadd.f32 0.0, %v2232
  %v2234 = vpop.f32.mrb[0].mxu0
  %v2235 = vadd.f32 0.0, %v2234
  %2236 = vmatprep.mubr.bf16.mxu0 %v620
  %2237 = vmatmul.mubr.bf16.gmra.mrb[0].mxu0 %v619
  %v2238 = vpop.f32.mrb[0].mxu0
  %v2239 = vadd.f32 0.0, %v2238
  %v2240 = vpop.f32.mrb[0].mxu0
  %v2241 = vadd.f32 0.0, %v2240
  %v2242 = vpop.f32.mrb[0].mxu0
  %v2243 = vadd.f32 0.0, %v2242
  %v2244 = vpop.f32.mrb[0].mxu0
  %v2245 = vadd.f32 0.0, %v2244
  %2246 = vmatprep.mubr.bf16.mxu0 %v629
  %2247 = vmatmul.mubr.bf16.gmra.mrb[0].mxu0 %v628
  %v2248 = vpop.f32.mrb[0].mxu0
  %v2249 = vadd.f32 0.0, %v2248
  %v2250 = vpop.f32.mrb[0].mxu0
  %v2251 = vadd.f32 0.0, %v2250
  %v2252 = vpop.f32.mrb[0].mxu0
  %v2253 = vadd.f32 0.0, %v2252
  %v2254 = vpop.f32.mrb[0].mxu0
  %v2255 = vadd.f32 0.0, %v2254
  %2256 = vmatprep.mubr.bf16.mxu0 %v638
  %2257 = vmatmul.mubr.bf16.gmra.mrb[0].mxu0 %v637
  %v2258 = vpop.f32.mrb[0].mxu0
  %v2259 = vadd.f32 0.0, %v2258
  %v2260 = vpop.f32.mrb[0].mxu0
  %v2261 = vadd.f32 0.0, %v2260
  %v2262 = vpop.f32.mrb[0].mxu0
  %v2263 = vadd.f32 0.0, %v2262
  %v2264 = vpop.f32.mrb[0].mxu0
  %v2265 = vadd.f32 0.0, %v2264
  %2266 = vmatprep.mubr.bf16.mxu0 %v647
  %2267 = vmatmul.mubr.bf16.gmra.mrb[0].mxu0 %v646
  %v2268 = vpop.f32.mrb[0].mxu0
  %v2269 = vadd.f32 0.0, %v2268
  %v2270 = vpop.f32.mrb[0].mxu0
  %v2271 = vadd.f32 0.0, %v2270
  %v2272 = vpop.f32.mrb[0].mxu0
  %v2273 = vadd.f32 0.0, %v2272
  %v2274 = vpop.f32.mrb[0].mxu0
  %v2275 = vadd.f32 0.0, %v2274
  %2276 = vmatprep.mubr.bf16.mxu0 %v656
  %2277 = vmatmul.mubr.bf16.gmra.mrb[0].mxu0 %v655
  %v2278 = vpop.f32.mrb[0].mxu0
  %v2279 = vadd.f32 0.0, %v2278
  %v2280 = vpop.f32.mrb[0].mxu0
  %v2281 = vadd.f32 0.0, %v2280
  %v2282 = vpop.f32.mrb[0].mxu0
  %v2283 = vadd.f32 0.0, %v2282
  %v2284 = vpop.f32.mrb[0].mxu0
  %v2285 = vadd.f32 0.0, %v2284
  %2286 = vmatprep.mubr.bf16.mxu0 %v665
  %2287 = vmatmul.mubr.bf16.gmra.mrb[0].mxu0 %v664
  %v2288 = vpop.f32.mrb[0].mxu0
  %v2289 = vadd.f32 0.0, %v2288
  %v2290 = vpop.f32.mrb[0].mxu0
  %v2291 = vadd.f32 0.0, %v2290
  %v2292 = vpop.f32.mrb[0].mxu0
  %v2293 = vadd.f32 0.0, %v2292
  %v2294 = vpop.f32.mrb[0].mxu0
  %v2295 = vadd.f32 0.0, %v2294
  %2296 = vmatprep.mubr.bf16.mxu0 %v674
  %2297 = vmatmul.mubr.bf16.gmra.mrb[0].mxu0 %v673
  %v2298 = vpop.f32.mrb[0].mxu0
  %v2299 = vadd.f32 0.0, %v2298
  %v2300 = vpop.f32.mrb[0].mxu0
  %v2301 = vadd.f32 0.0, %v2300
  %v2302 = vpop.f32.mrb[0].mxu0
  %v2303 = vadd.f32 0.0, %v2302
  %v2304 = vpop.f32.mrb[0].mxu0
  %v2305 = vadd.f32 0.0, %v2304
  %2306 = vdwg.mxu0
  %2307 = vmatprep.subr.bf16.mxu0 %v1683
  %2308 = vmatpush1.bf16.msra.mxu0 %v1682
  %2309 = vmatprep.subr.bf16.mxu0 %v1687
  %2310 = vmatpush1.bf16.msra.mxu0 %v1686
  %2311 = vmatprep.subr.bf16.mxu0 %v1691
  %2312 = vmatpush1.bf16.msra.mxu0 %v1690
  %2313 = vmatprep.subr.bf16.mxu0 %v1695
  %2314 = vmatpush1.bf16.msra.mxu0 %v1694
  %2315 = vmatprep.subr.bf16.mxu0 %v1699
  %2316 = vmatpush1.bf16.msra.mxu0 %v1698
  %2317 = vmatprep.subr.bf16.mxu0 %v1703
  %2318 = vmatpush1.bf16.msra.mxu0 %v1702
  %2319 = vmatprep.subr.bf16.mxu0 %v1707
  %2320 = vmatpush1.bf16.msra.mxu0 %v1706
  %2321 = vmatprep.subr.bf16.mxu0 %v1711
  %2322 = vmatpush1.bf16.msra.mxu0 %v1710
  %2323 = vmatprep.subr.bf16.mxu0 %v1715
  %2324 = vmatpush1.bf16.msra.mxu0 %v1714
  %2325 = vmatprep.subr.bf16.mxu0 %v1719
  %2326 = vmatpush1.bf16.msra.mxu0 %v1718
  %2327 = vmatprep.subr.bf16.mxu0 %v1723
  %2328 = vmatpush1.bf16.msra.mxu0 %v1722
  %2329 = vmatprep.subr.bf16.mxu0 %v1727
  %2330 = vmatpush1.bf16.msra.mxu0 %v1726
  %2331 = vmatprep.subr.bf16.mxu0 %v1731
  %2332 = vmatpush1.bf16.msra.mxu0 %v1730
  %2333 = vmatprep.subr.bf16.mxu0 %v1735
  %2334 = vmatpush1.bf16.msra.mxu0 %v1734
  %2335 = vmatprep.subr.bf16.mxu0 %v1739
  %2336 = vmatpush1.bf16.msra.mxu0 %v1738
  %2337 = vmatprep.subr.bf16.mxu0 %v1743
  %2338 = vmatpush1.bf16.msra.mxu0 %v1742
  %2339 = vmatprep.mubr.bf16.mxu0 %v613
  %2340 = vmatmul.mubr.bf16.gmra.mrb[0].mxu0 %v612
  %v2341 = vpop.f32.mrb[0].mxu0
  %v2342 = vadd.f32 %v2229, %v2341
  %v2343 = vpop.f32.mrb[0].mxu0
  %v2344 = vadd.f32 %v2231, %v2343
  %v2345 = vpop.f32.mrb[0].mxu0
  %v2346 = vadd.f32 %v2233, %v2345
  %v2347 = vpop.f32.mrb[0].mxu0
  %v2348 = vadd.f32 %v2235, %v2347
  %2349 = vmatprep.mubr.bf16.mxu0 %v622
  %2350 = vmatmul.mubr.bf16.gmra.mrb[0].mxu0 %v621
  %v2351 = vpop.f32.mrb[0].mxu0
  %v2352 = vadd.f32 %v2239, %v2351
  %v2353 = vpop.f32.mrb[0].mxu0
  %v2354 = vadd.f32 %v2241, %v2353
  %v2355 = vpop.f32.mrb[0].mxu0
  %v2356 = vadd.f32 %v2243, %v2355
  %v2357 = vpop.f32.mrb[0].mxu0
  %v2358 = vadd.f32 %v2245, %v2357
  %2359 = vmatprep.mubr.bf16.mxu0 %v631
  %2360 = vmatmul.mubr.bf16.gmra.mrb[0].mxu0 %v630
  %v2361 = vpop.f32.mrb[0].mxu0
  %v2362 = vadd.f32 %v2249, %v2361
  %v2363 = vpop.f32.mrb[0].mxu0
  %v2364 = vadd.f32 %v2251, %v2363
  %v2365 = vpop.f32.mrb[0].mxu0
  %v2366 = vadd.f32 %v2253, %v2365
  %v2367 = vpop.f32.mrb[0].mxu0
  %v2368 = vadd.f32 %v2255, %v2367
  %2369 = vmatprep.mubr.bf16.mxu0 %v640
  %2370 = vmatmul.mubr.bf16.gmra.mrb[0].mxu0 %v639
  %v2371 = vpop.f32.mrb[0].mxu0
  %v2372 = vadd.f32 %v2259, %v2371
  %v2373 = vpop.f32.mrb[0].mxu0
  %v2374 = vadd.f32 %v2261, %v2373
  %v2375 = vpop.f32.mrb[0].mxu0
  %v2376 = vadd.f32 %v2263, %v2375
  %v2377 = vpop.f32.mrb[0].mxu0
  %v2378 = vadd.f32 %v2265, %v2377
  %2379 = vmatprep.mubr.bf16.mxu0 %v649
  %2380 = vmatmul.mubr.bf16.gmra.mrb[0].mxu0 %v648
  %v2381 = vpop.f32.mrb[0].mxu0
  %v2382 = vadd.f32 %v2269, %v2381
  %v2383 = vpop.f32.mrb[0].mxu0
  %v2384 = vadd.f32 %v2271, %v2383
  %v2385 = vpop.f32.mrb[0].mxu0
  %v2386 = vadd.f32 %v2273, %v2385
  %v2387 = vpop.f32.mrb[0].mxu0
  %v2388 = vadd.f32 %v2275, %v2387
  %2389 = vmatprep.mubr.bf16.mxu0 %v658
  %2390 = vmatmul.mubr.bf16.gmra.mrb[0].mxu0 %v657
  %v2391 = vpop.f32.mrb[0].mxu0
  %v2392 = vadd.f32 %v2279, %v2391
  %v2393 = vpop.f32.mrb[0].mxu0
  %v2394 = vadd.f32 %v2281, %v2393
  %v2395 = vpop.f32.mrb[0].mxu0
  %v2396 = vadd.f32 %v2283, %v2395
  %v2397 = vpop.f32.mrb[0].mxu0
  %v2398 = vadd.f32 %v2285, %v2397
  %2399 = vmatprep.mubr.bf16.mxu0 %v667
  %2400 = vmatmul.mubr.bf16.gmra.mrb[0].mxu0 %v666
  %v2401 = vpop.f32.mrb[0].mxu0
  %v2402 = vadd.f32 %v2289, %v2401
  %v2403 = vpop.f32.mrb[0].mxu0
  %v2404 = vadd.f32 %v2291, %v2403
  %v2405 = vpop.f32.mrb[0].mxu0
  %v2406 = vadd.f32 %v2293, %v2405
  %v2407 = vpop.f32.mrb[0].mxu0
  %v2408 = vadd.f32 %v2295, %v2407
  %2409 = vmatprep.mubr.bf16.mxu0 %v676
  %2410 = vmatmul.mubr.bf16.gmra.mrb[0].mxu0 %v675
  %v2411 = vpop.f32.mrb[0].mxu0
  %v2412 = vadd.f32 %v2299, %v2411
  %v2413 = vpop.f32.mrb[0].mxu0
  %v2414 = vadd.f32 %v2301, %v2413
  %v2415 = vpop.f32.mrb[0].mxu0
  %v2416 = vadd.f32 %v2303, %v2415
  %v2417 = vpop.f32.mrb[0].mxu0
  %v2418 = vadd.f32 %v2305, %v2417
  %2419 = vdwg.mxu0
  %2420 = vmatprep.subr.bf16.mxu0 %v1747
  %2421 = vmatpush1.bf16.msra.mxu0 %v1746
  %2422 = vmatprep.subr.bf16.mxu0 %v1751
  %2423 = vmatpush1.bf16.msra.mxu0 %v1750
  %2424 = vmatprep.subr.bf16.mxu0 %v1755
  %2425 = vmatpush1.bf16.msra.mxu0 %v1754
  %2426 = vmatprep.subr.bf16.mxu0 %v1759
  %2427 = vmatpush1.bf16.msra.mxu0 %v1758
  %2428 = vmatprep.subr.bf16.mxu0 %v1763
  %2429 = vmatpush1.bf16.msra.mxu0 %v1762
  %2430 = vmatprep.subr.bf16.mxu0 %v1767
  %2431 = vmatpush1.bf16.msra.mxu0 %v1766
  %2432 = vmatprep.subr.bf16.mxu0 %v1771
  %2433 = vmatpush1.bf16.msra.mxu0 %v1770
  %2434 = vmatprep.subr.bf16.mxu0 %v1775
  %2435 = vmatpush1.bf16.msra.mxu0 %v1774
  %2436 = vmatprep.subr.bf16.mxu0 %v1779
  %2437 = vmatpush1.bf16.msra.mxu0 %v1778
  %2438 = vmatprep.subr.bf16.mxu0 %v1783
  %2439 = vmatpush1.bf16.msra.mxu0 %v1782
  %2440 = vmatprep.subr.bf16.mxu0 %v1787
  %2441 = vmatpush1.bf16.msra.mxu0 %v1786
  %2442 = vmatprep.subr.bf16.mxu0 %v1791
  %2443 = vmatpush1.bf16.msra.mxu0 %v1790
  %2444 = vmatprep.subr.bf16.mxu0 %v1795
  %2445 = vmatpush1.bf16.msra.mxu0 %v1794
  %2446 = vmatprep.subr.bf16.mxu0 %v1799
  %2447 = vmatpush1.bf16.msra.mxu0 %v1798
  %2448 = vmatprep.subr.bf16.mxu0 %v1803
  %2449 = vmatpush1.bf16.msra.mxu0 %v1802
  %2450 = vmatprep.subr.bf16.mxu0 %v1807
  %2451 = vmatpush1.bf16.msra.mxu0 %v1806
  %2452 = vmatprep.mubr.bf16.mxu0 %v615
  %2453 = vmatmul.mubr.bf16.gmra.mrb[0].mxu0 %v614
  %v2454 = vpop.f32.mrb[0].mxu0
  %v2455 = vadd.f32 %v2342, %v2454
  %v2456 = vpop.f32.mrb[0].mxu0
  %v2457 = vadd.f32 %v2344, %v2456
  %v2458 = vpop.f32.mrb[0].mxu0
  %v2459 = vadd.f32 %v2346, %v2458
  %v2460 = vpop.f32.mrb[0].mxu0
  %v2461 = vadd.f32 %v2348, %v2460
  %2462 = vmatprep.mubr.bf16.mxu0 %v624
  %2463 = vmatmul.mubr.bf16.gmra.mrb[0].mxu0 %v623
  %v2464 = vpop.f32.mrb[0].mxu0
  %v2465 = vadd.f32 %v2352, %v2464
  %v2466 = vpop.f32.mrb[0].mxu0
  %v2467 = vadd.f32 %v2354, %v2466
  %v2468 = vpop.f32.mrb[0].mxu0
  %v2469 = vadd.f32 %v2356, %v2468
  %v2470 = vpop.f32.mrb[0].mxu0
  %v2471 = vadd.f32 %v2358, %v2470
  %2472 = vmatprep.mubr.bf16.mxu0 %v633
  %2473 = vmatmul.mubr.bf16.gmra.mrb[0].mxu0 %v632
  %v2474 = vpop.f32.mrb[0].mxu0
  %v2475 = vadd.f32 %v2362, %v2474
  %v2476 = vpop.f32.mrb[0].mxu0
  %v2477 = vadd.f32 %v2364, %v2476
  %v2478 = vpop.f32.mrb[0].mxu0
  %v2479 = vadd.f32 %v2366, %v2478
  %v2480 = vpop.f32.mrb[0].mxu0
  %v2481 = vadd.f32 %v2368, %v2480
  %2482 = vmatprep.mubr.bf16.mxu0 %v642
  %2483 = vmatmul.mubr.bf16.gmra.mrb[0].mxu0 %v641
  %v2484 = vpop.f32.mrb[0].mxu0
  %v2485 = vadd.f32 %v2372, %v2484
  %v2486 = vpop.f32.mrb[0].mxu0
  %v2487 = vadd.f32 %v2374, %v2486
  %v2488 = vpop.f32.mrb[0].mxu0
  %v2489 = vadd.f32 %v2376, %v2488
  %v2490 = vpop.f32.mrb[0].mxu0
  %v2491 = vadd.f32 %v2378, %v2490
  %2492 = vmatprep.mubr.bf16.mxu0 %v651
  %2493 = vmatmul.mubr.bf16.gmra.mrb[0].mxu0 %v650
  %v2494 = vpop.f32.mrb[0].mxu0
  %v2495 = vadd.f32 %v2382, %v2494
  %v2496 = vpop.f32.mrb[0].mxu0
  %v2497 = vadd.f32 %v2384, %v2496
  %v2498 = vpop.f32.mrb[0].mxu0
  %v2499 = vadd.f32 %v2386, %v2498
  %v2500 = vpop.f32.mrb[0].mxu0
  %v2501 = vadd.f32 %v2388, %v2500
  %2502 = vmatprep.mubr.bf16.mxu0 %v660
  %2503 = vmatmul.mubr.bf16.gmra.mrb[0].mxu0 %v659
  %v2504 = vpop.f32.mrb[0].mxu0
  %v2505 = vadd.f32 %v2392, %v2504
  %v2506 = vpop.f32.mrb[0].mxu0
  %v2507 = vadd.f32 %v2394, %v2506
  %v2508 = vpop.f32.mrb[0].mxu0
  %v2509 = vadd.f32 %v2396, %v2508
  %v2510 = vpop.f32.mrb[0].mxu0
  %v2511 = vadd.f32 %v2398, %v2510
  %2512 = vmatprep.mubr.bf16.mxu0 %v669
  %2513 = vmatmul.mubr.bf16.gmra.mrb[0].mxu0 %v668
  %v2514 = vpop.f32.mrb[0].mxu0
  %v2515 = vadd.f32 %v2402, %v2514
  %v2516 = vpop.f32.mrb[0].mxu0
  %v2517 = vadd.f32 %v2404, %v2516
  %v2518 = vpop.f32.mrb[0].mxu0
  %v2519 = vadd.f32 %v2406, %v2518
  %v2520 = vpop.f32.mrb[0].mxu0
  %v2521 = vadd.f32 %v2408, %v2520
  %2522 = vmatprep.mubr.bf16.mxu0 %v678
  %2523 = vmatmul.mubr.bf16.gmra.mrb[0].mxu0 %v677
  %v2524 = vpop.f32.mrb[0].mxu0
  %v2525 = vadd.f32 %v2412, %v2524
  %v2526 = vpop.f32.mrb[0].mxu0
  %v2527 = vadd.f32 %v2414, %v2526
  %v2528 = vpop.f32.mrb[0].mxu0
  %v2529 = vadd.f32 %v2416, %v2528
  %v2530 = vpop.f32.mrb[0].mxu0
  %v2531 = vadd.f32 %v2418, %v2530
  %2532 = vdwg.mxu0
  %2533 = vmatprep.subr.bf16.mxu0 %v1811
  %2534 = vmatpush1.bf16.msra.mxu0 %v1810
  %2535 = vmatprep.subr.bf16.mxu0 %v1815
  %2536 = vmatpush1.bf16.msra.mxu0 %v1814
  %2537 = vmatprep.subr.bf16.mxu0 %v1819
  %2538 = vmatpush1.bf16.msra.mxu0 %v1818
  %2539 = vmatprep.subr.bf16.mxu0 %v1823
  %2540 = vmatpush1.bf16.msra.mxu0 %v1822
  %2541 = vmatprep.subr.bf16.mxu0 %v1827
  %2542 = vmatpush1.bf16.msra.mxu0 %v1826
  %2543 = vmatprep.subr.bf16.mxu0 %v1831
  %2544 = vmatpush1.bf16.msra.mxu0 %v1830
  %2545 = vmatprep.subr.bf16.mxu0 %v1835
  %2546 = vmatpush1.bf16.msra.mxu0 %v1834
  %2547 = vmatprep.subr.bf16.mxu0 %v1839
  %2548 = vmatpush1.bf16.msra.mxu0 %v1838
  %2549 = vmatprep.subr.bf16.mxu0 %v1843
  %2550 = vmatpush1.bf16.msra.mxu0 %v1842
  %2551 = vmatprep.subr.bf16.mxu0 %v1847
  %2552 = vmatpush1.bf16.msra.mxu0 %v1846
  %2553 = vmatprep.subr.bf16.mxu0 %v1851
  %2554 = vmatpush1.bf16.msra.mxu0 %v1850
  %2555 = vmatprep.subr.bf16.mxu0 %v1855
  %2556 = vmatpush1.bf16.msra.mxu0 %v1854
  %2557 = vmatprep.subr.bf16.mxu0 %v1859
  %2558 = vmatpush1.bf16.msra.mxu0 %v1858
  %2559 = vmatprep.subr.bf16.mxu0 %v1863
  %2560 = vmatpush1.bf16.msra.mxu0 %v1862
  %2561 = vmatprep.subr.bf16.mxu0 %v1867
  %2562 = vmatpush1.bf16.msra.mxu0 %v1866
  %2563 = vmatprep.subr.bf16.mxu0 %v1871
  %2564 = vmatpush1.bf16.msra.mxu0 %v1870
  %2565 = vmatprep.mubr.bf16.mxu0 %v617
  %2566 = vmatmul.mubr.bf16.gmra.mrb[0].mxu0 %v616
  %v2567 = vpop.f32.mrb[0].mxu0
  %v2568 = vadd.f32 %v2455, %v2567
  %v2569 = vpop.f32.mrb[0].mxu0
  %v2570 = vadd.f32 %v2457, %v2569
  %v2571 = vpop.f32.mrb[0].mxu0
  %v2572 = vadd.f32 %v2459, %v2571
  %v2573 = vpop.f32.mrb[0].mxu0
  %v2574 = vadd.f32 %v2461, %v2573
  %2575 = vmatprep.mubr.bf16.mxu0 %v626
  %2576 = vmatmul.mubr.bf16.gmra.mrb[0].mxu0 %v625
  %v2577 = vpop.f32.mrb[0].mxu0
  %v2578 = vadd.f32 %v2465, %v2577
  %v2579 = vpop.f32.mrb[0].mxu0
  %v2580 = vadd.f32 %v2467, %v2579
  %v2581 = vpop.f32.mrb[0].mxu0
  %v2582 = vadd.f32 %v2469, %v2581
  %v2583 = vpop.f32.mrb[0].mxu0
  %v2584 = vadd.f32 %v2471, %v2583
  %2585 = vmatprep.mubr.bf16.mxu0 %v635
  %2586 = vmatmul.mubr.bf16.gmra.mrb[0].mxu0 %v634
  %v2587 = vpop.f32.mrb[0].mxu0
  %v2588 = vadd.f32 %v2475, %v2587
  %v2589 = vpop.f32.mrb[0].mxu0
  %v2590 = vadd.f32 %v2477, %v2589
  %v2591 = vpop.f32.mrb[0].mxu0
  %v2592 = vadd.f32 %v2479, %v2591
  %v2593 = vpop.f32.mrb[0].mxu0
  %v2594 = vadd.f32 %v2481, %v2593
  %2595 = vmatprep.mubr.bf16.mxu0 %v644
  %2596 = vmatmul.mubr.bf16.gmra.mrb[0].mxu0 %v643
  %v2597 = vpop.f32.mrb[0].mxu0
  %v2598 = vadd.f32 %v2485, %v2597
  %v2599 = vpop.f32.mrb[0].mxu0
  %v2600 = vadd.f32 %v2487, %v2599
  %v2601 = vpop.f32.mrb[0].mxu0
  %v2602 = vadd.f32 %v2489, %v2601
  %v2603 = vpop.f32.mrb[0].mxu0
  %v2604 = vadd.f32 %v2491, %v2603
  %2605 = vmatprep.mubr.bf16.mxu0 %v653
  %2606 = vmatmul.mubr.bf16.gmra.mrb[0].mxu0 %v652
  %v2607 = vpop.f32.mrb[0].mxu0
  %v2608 = vadd.f32 %v2495, %v2607
  %v2609 = vpop.f32.mrb[0].mxu0
  %v2610 = vadd.f32 %v2497, %v2609
  %v2611 = vpop.f32.mrb[0].mxu0
  %v2612 = vadd.f32 %v2499, %v2611
  %v2613 = vpop.f32.mrb[0].mxu0
  %v2614 = vadd.f32 %v2501, %v2613
  %2615 = vmatprep.mubr.bf16.mxu0 %v662
  %2616 = vmatmul.mubr.bf16.gmra.mrb[0].mxu0 %v661
  %v2617 = vpop.f32.mrb[0].mxu0
  %v2618 = vadd.f32 %v2505, %v2617
  %v2619 = vpop.f32.mrb[0].mxu0
  %v2620 = vadd.f32 %v2507, %v2619
  %v2621 = vpop.f32.mrb[0].mxu0
  %v2622 = vadd.f32 %v2509, %v2621
  %v2623 = vpop.f32.mrb[0].mxu0
  %v2624 = vadd.f32 %v2511, %v2623
  %2625 = vmatprep.mubr.bf16.mxu0 %v671
  %2626 = vmatmul.mubr.bf16.gmra.mrb[0].mxu0 %v670
  %v2627 = vpop.f32.mrb[0].mxu0
  %v2628 = vadd.f32 %v2515, %v2627
  %v2629 = vpop.f32.mrb[0].mxu0
  %v2630 = vadd.f32 %v2517, %v2629
  %v2631 = vpop.f32.mrb[0].mxu0
  %v2632 = vadd.f32 %v2519, %v2631
  %v2633 = vpop.f32.mrb[0].mxu0
  %v2634 = vadd.f32 %v2521, %v2633
  %2635 = vmatprep.mubr.bf16.mxu0 %v680
  %2636 = vmatmul.mubr.bf16.gmra.mrb[0].mxu0 %v679
  %v2637 = vpop.f32.mrb[0].mxu0
  %v2638 = vadd.f32 %v2525, %v2637
  %v2639 = vpop.f32.mrb[0].mxu0
  %v2640 = vadd.f32 %v2527, %v2639
  %v2641 = vpop.f32.mrb[0].mxu0
  %v2642 = vadd.f32 %v2529, %v2641
  %v2643 = vpop.f32.mrb[0].mxu0
  %v2644 = vadd.f32 %v2531, %v2643
  %2645 = vdwg.mxu0
  %2646 = vmatprep.subr.bf16.mxu0 %v1875
  %2647 = vmatpush1.bf16.msra.mxu0 %v1874
  %2648 = vmatprep.subr.bf16.mxu0 %v1879
  %2649 = vmatpush1.bf16.msra.mxu0 %v1878
  %2650 = vmatprep.subr.bf16.mxu0 %v1883
  %2651 = vmatpush1.bf16.msra.mxu0 %v1882
  %2652 = vmatprep.subr.bf16.mxu0 %v1887
  %2653 = vmatpush1.bf16.msra.mxu0 %v1886
  %2654 = vmatprep.subr.bf16.mxu0 %v1891
  %2655 = vmatpush1.bf16.msra.mxu0 %v1890
  %2656 = vmatprep.subr.bf16.mxu0 %v1895
  %2657 = vmatpush1.bf16.msra.mxu0 %v1894
  %2658 = vmatprep.subr.bf16.mxu0 %v1899
  %2659 = vmatpush1.bf16.msra.mxu0 %v1898
  %2660 = vmatprep.subr.bf16.mxu0 %v1903
  %2661 = vmatpush1.bf16.msra.mxu0 %v1902
  %2662 = vmatprep.subr.bf16.mxu0 0
  %2663 = vmatpush1.bf16.msra.mxu0 0
  %2664 = vmatprep.subr.bf16.mxu0 0
  %2665 = vmatpush1.bf16.msra.mxu0 0
  %2666 = vmatprep.subr.bf16.mxu0 0
  %2667 = vmatpush1.bf16.msra.mxu0 0
  %2668 = vmatprep.subr.bf16.mxu0 0
  %2669 = vmatpush1.bf16.msra.mxu0 0
  %2670 = vmatprep.subr.bf16.mxu0 0
  %2671 = vmatpush1.bf16.msra.mxu0 0
  %2672 = vmatprep.subr.bf16.mxu0 0
  %2673 = vmatpush1.bf16.msra.mxu0 0
  %2674 = vmatprep.subr.bf16.mxu0 0
  %2675 = vmatpush1.bf16.msra.mxu0 0
  %2676 = vmatprep.subr.bf16.mxu0 0
  %2677 = vmatpush1.bf16.msra.mxu0 0
  %2678 = vmatprep.mubr.bf16.mxu0 0
  %2679 = vmatmul.mubr.bf16.gmra.mrb[0].mxu0 %v618
  %v2680 = vpop.f32.mrb[0].mxu0
  %v2681 = vadd.f32 %v2568, %v2680
  %v2682 = vpop.f32.mrb[0].mxu0
  %v2683 = vadd.f32 %v2570, %v2682
  %v2684 = vpop.f32.mrb[0].mxu0
  %v2685 = vadd.f32 %v2572, %v2684
  %v2686 = vpop.f32.mrb[0].mxu0
  %v2687 = vadd.f32 %v2574, %v2686
  %2688 = vmatprep.mubr.bf16.mxu0 0
  %2689 = vmatmul.mubr.bf16.gmra.mrb[0].mxu0 %v627
  %v2690 = vpop.f32.mrb[0].mxu0
  %v2691 = vadd.f32 %v2578, %v2690
  %v2692 = vpop.f32.mrb[0].mxu0
  %v2693 = vadd.f32 %v2580, %v2692
  %v2694 = vpop.f32.mrb[0].mxu0
  %v2695 = vadd.f32 %v2582, %v2694
  %v2696 = vpop.f32.mrb[0].mxu0
  %v2697 = vadd.f32 %v2584, %v2696
  %2698 = vmatprep.mubr.bf16.mxu0 0
  %2699 = vmatmul.mubr.bf16.gmra.mrb[0].mxu0 %v636
  %v2700 = vpop.f32.mrb[0].mxu0
  %v2701 = vadd.f32 %v2588, %v2700
  %v2702 = vpop.f32.mrb[0].mxu0
  %v2703 = vadd.f32 %v2590, %v2702
  %v2704 = vpop.f32.mrb[0].mxu0
  %v2705 = vadd.f32 %v2592, %v2704
  %v2706 = vpop.f32.mrb[0].mxu0
  %v2707 = vadd.f32 %v2594, %v2706
  %2708 = vmatprep.mubr.bf16.mxu0 0
  %2709 = vmatmul.mubr.bf16.gmra.mrb[0].mxu0 %v645
  %v2710 = vpop.f32.mrb[0].mxu0
  %v2711 = vadd.f32 %v2598, %v2710
  %v2712 = vpop.f32.mrb[0].mxu0
  %v2713 = vadd.f32 %v2600, %v2712
  %v2714 = vpop.f32.mrb[0].mxu0
  %v2715 = vadd.f32 %v2602, %v2714
  %v2716 = vpop.f32.mrb[0].mxu0
  %v2717 = vadd.f32 %v2604, %v2716
  %2718 = vmatprep.mubr.bf16.mxu0 0
  %2719 = vmatmul.mubr.bf16.gmra.mrb[0].mxu0 %v654
  %v2720 = vpop.f32.mrb[0].mxu0
  %v2721 = vadd.f32 %v2608, %v2720
  %v2722 = vpop.f32.mrb[0].mxu0
  %v2723 = vadd.f32 %v2610, %v2722
  %v2724 = vpop.f32.mrb[0].mxu0
  %v2725 = vadd.f32 %v2612, %v2724
  %v2726 = vpop.f32.mrb[0].mxu0
  %v2727 = vadd.f32 %v2614, %v2726
  %2728 = vmatprep.mubr.bf16.mxu0 0
  %2729 = vmatmul.mubr.bf16.gmra.mrb[0].mxu0 %v663
  %v2730 = vpop.f32.mrb[0].mxu0
  %v2731 = vadd.f32 %v2618, %v2730
  %v2732 = vpop.f32.mrb[0].mxu0
  %v2733 = vadd.f32 %v2620, %v2732
  %v2734 = vpop.f32.mrb[0].mxu0
  %v2735 = vadd.f32 %v2622, %v2734
  %v2736 = vpop.f32.mrb[0].mxu0
  %v2737 = vadd.f32 %v2624, %v2736
  %2738 = vmatprep.mubr.bf16.mxu0 0
  %2739 = vmatmul.mubr.bf16.gmra.mrb[0].mxu0 %v672
  %v2740 = vpop.f32.mrb[0].mxu0
  %v2741 = vadd.f32 %v2628, %v2740
  %v2742 = vpop.f32.mrb[0].mxu0
  %v2743 = vadd.f32 %v2630, %v2742
  %v2744 = vpop.f32.mrb[0].mxu0
  %v2745 = vadd.f32 %v2632, %v2744
  %v2746 = vpop.f32.mrb[0].mxu0
  %v2747 = vadd.f32 %v2634, %v2746
  %2748 = vmatprep.mubr.bf16.mxu0 0
  %2749 = vmatmul.mubr.bf16.gmra.mrb[0].mxu0 %v681
  %v2750 = vpop.f32.mrb[0].mxu0
  %v2751 = vadd.f32 %v2638, %v2750
  %v2752 = vpop.f32.mrb[0].mxu0
  %v2753 = vadd.f32 %v2640, %v2752
  %v2754 = vpop.f32.mrb[0].mxu0
  %v2755 = vadd.f32 %v2642, %v2754
  %v2756 = vpop.f32.mrb[0].mxu0
  %v2757 = vadd.f32 %v2644, %v2756
  %2758 = vdwg.mxu0
  %2759 = vmatprep.subr.bf16.mxu0 %v1621
  %2760 = vmatpush1.bf16.msra.mxu0 %v1620
  %2761 = vmatprep.subr.bf16.mxu0 %v1625
  %2762 = vmatpush1.bf16.msra.mxu0 %v1624
  %2763 = vmatprep.subr.bf16.mxu0 %v1629
  %2764 = vmatpush1.bf16.msra.mxu0 %v1628
  %2765 = vmatprep.subr.bf16.mxu0 %v1633
  %2766 = vmatpush1.bf16.msra.mxu0 %v1632
  %2767 = vmatprep.subr.bf16.mxu0 %v1637
  %2768 = vmatpush1.bf16.msra.mxu0 %v1636
  %2769 = vmatprep.subr.bf16.mxu0 %v1641
  %2770 = vmatpush1.bf16.msra.mxu0 %v1640
  %2771 = vmatprep.subr.bf16.mxu0 %v1645
  %2772 = vmatpush1.bf16.msra.mxu0 %v1644
  %2773 = vmatprep.subr.bf16.mxu0 %v1649
  %2774 = vmatpush1.bf16.msra.mxu0 %v1648
  %2775 = vmatprep.subr.bf16.mxu0 %v1653
  %2776 = vmatpush1.bf16.msra.mxu0 %v1652
  %2777 = vmatprep.subr.bf16.mxu0 %v1657
  %2778 = vmatpush1.bf16.msra.mxu0 %v1656
  %2779 = vmatprep.subr.bf16.mxu0 %v1661
  %2780 = vmatpush1.bf16.msra.mxu0 %v1660
  %2781 = vmatprep.subr.bf16.mxu0 %v1665
  %2782 = vmatpush1.bf16.msra.mxu0 %v1664
  %2783 = vmatprep.subr.bf16.mxu0 %v1669
  %2784 = vmatpush1.bf16.msra.mxu0 %v1668
  %2785 = vmatprep.subr.bf16.mxu0 %v1673
  %2786 = vmatpush1.bf16.msra.mxu0 %v1672
  %2787 = vmatprep.subr.bf16.mxu0 %v1677
  %2788 = vmatpush1.bf16.msra.mxu0 %v1676
  %2789 = vmatprep.subr.bf16.mxu0 %v1681
  %2790 = vmatpush1.bf16.msra.mxu0 %v1680
  %2791 = vmatprep.mubr.bf16.mxu0 %v611
  %2792 = vmatmul.mubr.bf16.gmra.mrb[0].mxu0 %v610
  %v2793 = vpop.f32.mrb[0].mxu0
  %v2794 = vadd.f32 0.0, %v2793
  %v2795 = vpop.f32.mrb[0].mxu0
  %v2796 = vadd.f32 0.0, %v2795
  %v2797 = vpop.f32.mrb[0].mxu0
  %v2798 = vadd.f32 0.0, %v2797
  %v2799 = vpop.f32.mrb[0].mxu0
  %v2800 = vadd.f32 0.0, %v2799
  %2801 = vmatprep.mubr.bf16.mxu0 %v620
  %2802 = vmatmul.mubr.bf16.gmra.mrb[0].mxu0 %v619
  %v2803 = vpop.f32.mrb[0].mxu0
  %v2804 = vadd.f32 0.0, %v2803
  %v2805 = vpop.f32.mrb[0].mxu0
  %v2806 = vadd.f32 0.0, %v2805
  %v2807 = vpop.f32.mrb[0].mxu0
  %v2808 = vadd.f32 0.0, %v2807
  %v2809 = vpop.f32.mrb[0].mxu0
  %v2810 = vadd.f32 0.0, %v2809
  %2811 = vmatprep.mubr.bf16.mxu0 %v629
  %2812 = vmatmul.mubr.bf16.gmra.mrb[0].mxu0 %v628
  %v2813 = vpop.f32.mrb[0].mxu0
  %v2814 = vadd.f32 0.0, %v2813
  %v2815 = vpop.f32.mrb[0].mxu0
  %v2816 = vadd.f32 0.0, %v2815
  %v2817 = vpop.f32.mrb[0].mxu0
  %v2818 = vadd.f32 0.0, %v2817
  %v2819 = vpop.f32.mrb[0].mxu0
  %v2820 = vadd.f32 0.0, %v2819
  %2821 = vmatprep.mubr.bf16.mxu0 %v638
  %2822 = vmatmul.mubr.bf16.gmra.mrb[0].mxu0 %v637
  %v2823 = vpop.f32.mrb[0].mxu0
  %v2824 = vadd.f32 0.0, %v2823
  %v2825 = vpop.f32.mrb[0].mxu0
  %v2826 = vadd.f32 0.0, %v2825
  %v2827 = vpop.f32.mrb[0].mxu0
  %v2828 = vadd.f32 0.0, %v2827
  %v2829 = vpop.f32.mrb[0].mxu0
  %v2830 = vadd.f32 0.0, %v2829
  %2831 = vmatprep.mubr.bf16.mxu0 %v647
  %2832 = vmatmul.mubr.bf16.gmra.mrb[0].mxu0 %v646
  %v2833 = vpop.f32.mrb[0].mxu0
  %v2834 = vadd.f32 0.0, %v2833
  %v2835 = vpop.f32.mrb[0].mxu0
  %v2836 = vadd.f32 0.0, %v2835
  %v2837 = vpop.f32.mrb[0].mxu0
  %v2838 = vadd.f32 0.0, %v2837
  %v2839 = vpop.f32.mrb[0].mxu0
  %v2840 = vadd.f32 0.0, %v2839
  %2841 = vmatprep.mubr.bf16.mxu0 %v656
  %2842 = vmatmul.mubr.bf16.gmra.mrb[0].mxu0 %v655
  %v2843 = vpop.f32.mrb[0].mxu0
  %v2844 = vadd.f32 0.0, %v2843
  %v2845 = vpop.f32.mrb[0].mxu0
  %v2846 = vadd.f32 0.0, %v2845
  %v2847 = vpop.f32.mrb[0].mxu0
  %v2848 = vadd.f32 0.0, %v2847
  %v2849 = vpop.f32.mrb[0].mxu0
  %v2850 = vadd.f32 0.0, %v2849
  %2851 = vmatprep.mubr.bf16.mxu0 %v665
  %2852 = vmatmul.mubr.bf16.gmra.mrb[0].mxu0 %v664
  %v2853 = vpop.f32.mrb[0].mxu0
  %v2854 = vadd.f32 0.0, %v2853
  %v2855 = vpop.f32.mrb[0].mxu0
  %v2856 = vadd.f32 0.0, %v2855
  %v2857 = vpop.f32.mrb[0].mxu0
  %v2858 = vadd.f32 0.0, %v2857
  %v2859 = vpop.f32.mrb[0].mxu0
  %v2860 = vadd.f32 0.0, %v2859
  %2861 = vmatprep.mubr.bf16.mxu0 %v674
  %2862 = vmatmul.mubr.bf16.gmra.mrb[0].mxu0 %v673
  %v2863 = vpop.f32.mrb[0].mxu0
  %v2864 = vadd.f32 0.0, %v2863
  %v2865 = vpop.f32.mrb[0].mxu0
  %v2866 = vadd.f32 0.0, %v2865
  %v2867 = vpop.f32.mrb[0].mxu0
  %v2868 = vadd.f32 0.0, %v2867
  %v2869 = vpop.f32.mrb[0].mxu0
  %v2870 = vadd.f32 0.0, %v2869
  %2871 = vdwg.mxu0
  %2872 = vmatprep.subr.bf16.mxu0 %v1685
  %2873 = vmatpush1.bf16.msra.mxu0 %v1684
  %2874 = vmatprep.subr.bf16.mxu0 %v1689
  %2875 = vmatpush1.bf16.msra.mxu0 %v1688
  %2876 = vmatprep.subr.bf16.mxu0 %v1693
  %2877 = vmatpush1.bf16.msra.mxu0 %v1692
  %2878 = vmatprep.subr.bf16.mxu0 %v1697
  %2879 = vmatpush1.bf16.msra.mxu0 %v1696
  %2880 = vmatprep.subr.bf16.mxu0 %v1701
  %2881 = vmatpush1.bf16.msra.mxu0 %v1700
  %2882 = vmatprep.subr.bf16.mxu0 %v1705
  %2883 = vmatpush1.bf16.msra.mxu0 %v1704
  %2884 = vmatprep.subr.bf16.mxu0 %v1709
  %2885 = vmatpush1.bf16.msra.mxu0 %v1708
  %2886 = vmatprep.subr.bf16.mxu0 %v1713
  %2887 = vmatpush1.bf16.msra.mxu0 %v1712
  %2888 = vmatprep.subr.bf16.mxu0 %v1717
  %2889 = vmatpush1.bf16.msra.mxu0 %v1716
  %2890 = vmatprep.subr.bf16.mxu0 %v1721
  %2891 = vmatpush1.bf16.msra.mxu0 %v1720
  %2892 = vmatprep.subr.bf16.mxu0 %v1725
  %2893 = vmatpush1.bf16.msra.mxu0 %v1724
  %2894 = vmatprep.subr.bf16.mxu0 %v1729
  %2895 = vmatpush1.bf16.msra.mxu0 %v1728
  %2896 = vmatprep.subr.bf16.mxu0 %v1733
  %2897 = vmatpush1.bf16.msra.mxu0 %v1732
  %2898 = vmatprep.subr.bf16.mxu0 %v1737
  %2899 = vmatpush1.bf16.msra.mxu0 %v1736
  %2900 = vmatprep.subr.bf16.mxu0 %v1741
  %2901 = vmatpush1.bf16.msra.mxu0 %v1740
  %2902 = vmatprep.subr.bf16.mxu0 %v1745
  %2903 = vmatpush1.bf16.msra.mxu0 %v1744
  %2904 = vmatprep.mubr.bf16.mxu0 %v613
  %2905 = vmatmul.mubr.bf16.gmra.mrb[0].mxu0 %v612
  %v2906 = vpop.f32.mrb[0].mxu0
  %v2907 = vadd.f32 %v2794, %v2906
  %v2908 = vpop.f32.mrb[0].mxu0
  %v2909 = vadd.f32 %v2796, %v2908
  %v2910 = vpop.f32.mrb[0].mxu0
  %v2911 = vadd.f32 %v2798, %v2910
  %v2912 = vpop.f32.mrb[0].mxu0
  %v2913 = vadd.f32 %v2800, %v2912
  %2914 = vmatprep.mubr.bf16.mxu0 %v622
  %2915 = vmatmul.mubr.bf16.gmra.mrb[0].mxu0 %v621
  %v2916 = vpop.f32.mrb[0].mxu0
  %v2917 = vadd.f32 %v2804, %v2916
  %v2918 = vpop.f32.mrb[0].mxu0
  %v2919 = vadd.f32 %v2806, %v2918
  %v2920 = vpop.f32.mrb[0].mxu0
  %v2921 = vadd.f32 %v2808, %v2920
  %v2922 = vpop.f32.mrb[0].mxu0
  %v2923 = vadd.f32 %v2810, %v2922
  %2924 = vmatprep.mubr.bf16.mxu0 %v631
  %2925 = vmatmul.mubr.bf16.gmra.mrb[0].mxu0 %v630
  %v2926 = vpop.f32.mrb[0].mxu0
  %v2927 = vadd.f32 %v2814, %v2926
  %v2928 = vpop.f32.mrb[0].mxu0
  %v2929 = vadd.f32 %v2816, %v2928
  %v2930 = vpop.f32.mrb[0].mxu0
  %v2931 = vadd.f32 %v2818, %v2930
  %v2932 = vpop.f32.mrb[0].mxu0
  %v2933 = vadd.f32 %v2820, %v2932
  %2934 = vmatprep.mubr.bf16.mxu0 %v640
  %2935 = vmatmul.mubr.bf16.gmra.mrb[0].mxu0 %v639
  %v2936 = vpop.f32.mrb[0].mxu0
  %v2937 = vadd.f32 %v2824, %v2936
  %v2938 = vpop.f32.mrb[0].mxu0
  %v2939 = vadd.f32 %v2826, %v2938
  %v2940 = vpop.f32.mrb[0].mxu0
  %v2941 = vadd.f32 %v2828, %v2940
  %v2942 = vpop.f32.mrb[0].mxu0
  %v2943 = vadd.f32 %v2830, %v2942
  %2944 = vmatprep.mubr.bf16.mxu0 %v649
  %2945 = vmatmul.mubr.bf16.gmra.mrb[0].mxu0 %v648
  %v2946 = vpop.f32.mrb[0].mxu0
  %v2947 = vadd.f32 %v2834, %v2946
  %v2948 = vpop.f32.mrb[0].mxu0
  %v2949 = vadd.f32 %v2836, %v2948
  %v2950 = vpop.f32.mrb[0].mxu0
  %v2951 = vadd.f32 %v2838, %v2950
  %v2952 = vpop.f32.mrb[0].mxu0
  %v2953 = vadd.f32 %v2840, %v2952
  %2954 = vmatprep.mubr.bf16.mxu0 %v658
  %2955 = vmatmul.mubr.bf16.gmra.mrb[0].mxu0 %v657
  %v2956 = vpop.f32.mrb[0].mxu0
  %v2957 = vadd.f32 %v2844, %v2956
  %v2958 = vpop.f32.mrb[0].mxu0
  %v2959 = vadd.f32 %v2846, %v2958
  %v2960 = vpop.f32.mrb[0].mxu0
  %v2961 = vadd.f32 %v2848, %v2960
  %v2962 = vpop.f32.mrb[0].mxu0
  %v2963 = vadd.f32 %v2850, %v2962
  %2964 = vmatprep.mubr.bf16.mxu0 %v667
  %2965 = vmatmul.mubr.bf16.gmra.mrb[0].mxu0 %v666
  %v2966 = vpop.f32.mrb[0].mxu0
  %v2967 = vadd.f32 %v2854, %v2966
  %v2968 = vpop.f32.mrb[0].mxu0
  %v2969 = vadd.f32 %v2856, %v2968
  %v2970 = vpop.f32.mrb[0].mxu0
  %v2971 = vadd.f32 %v2858, %v2970
  %v2972 = vpop.f32.mrb[0].mxu0
  %v2973 = vadd.f32 %v2860, %v2972
  %2974 = vmatprep.mubr.bf16.mxu0 %v676
  %2975 = vmatmul.mubr.bf16.gmra.mrb[0].mxu0 %v675
  %v2976 = vpop.f32.mrb[0].mxu0
  %v2977 = vadd.f32 %v2864, %v2976
  %v2978 = vpop.f32.mrb[0].mxu0
  %v2979 = vadd.f32 %v2866, %v2978
  %v2980 = vpop.f32.mrb[0].mxu0
  %v2981 = vadd.f32 %v2868, %v2980
  %v2982 = vpop.f32.mrb[0].mxu0
  %v2983 = vadd.f32 %v2870, %v2982
  %2984 = vdwg.mxu0
  %2985 = vmatprep.subr.bf16.mxu0 %v1749
  %2986 = vmatpush1.bf16.msra.mxu0 %v1748
  %2987 = vmatprep.subr.bf16.mxu0 %v1753
  %2988 = vmatpush1.bf16.msra.mxu0 %v1752
  %2989 = vmatprep.subr.bf16.mxu0 %v1757
  %2990 = vmatpush1.bf16.msra.mxu0 %v1756
  %2991 = vmatprep.subr.bf16.mxu0 %v1761
  %2992 = vmatpush1.bf16.msra.mxu0 %v1760
  %2993 = vmatprep.subr.bf16.mxu0 %v1765
  %2994 = vmatpush1.bf16.msra.mxu0 %v1764
  %2995 = vmatprep.subr.bf16.mxu0 %v1769
  %2996 = vmatpush1.bf16.msra.mxu0 %v1768
  %2997 = vmatprep.subr.bf16.mxu0 %v1773
  %2998 = vmatpush1.bf16.msra.mxu0 %v1772
  %2999 = vmatprep.subr.bf16.mxu0 %v1777
  %3000 = vmatpush1.bf16.msra.mxu0 %v1776
  %3001 = vmatprep.subr.bf16.mxu0 %v1781
  %3002 = vmatpush1.bf16.msra.mxu0 %v1780
  %3003 = vmatprep.subr.bf16.mxu0 %v1785
  %3004 = vmatpush1.bf16.msra.mxu0 %v1784
  %3005 = vmatprep.subr.bf16.mxu0 %v1789
  %3006 = vmatpush1.bf16.msra.mxu0 %v1788
  %3007 = vmatprep.subr.bf16.mxu0 %v1793
  %3008 = vmatpush1.bf16.msra.mxu0 %v1792
  %3009 = vmatprep.subr.bf16.mxu0 %v1797
  %3010 = vmatpush1.bf16.msra.mxu0 %v1796
  %3011 = vmatprep.subr.bf16.mxu0 %v1801
  %3012 = vmatpush1.bf16.msra.mxu0 %v1800
  %3013 = vmatprep.subr.bf16.mxu0 %v1805
  %3014 = vmatpush1.bf16.msra.mxu0 %v1804
  %3015 = vmatprep.subr.bf16.mxu0 %v1809
  %3016 = vmatpush1.bf16.msra.mxu0 %v1808
  %3017 = vmatprep.mubr.bf16.mxu0 %v615
  %3018 = vmatmul.mubr.bf16.gmra.mrb[0].mxu0 %v614
  %v3019 = vpop.f32.mrb[0].mxu0
  %v3020 = vadd.f32 %v2907, %v3019
  %v3021 = vpop.f32.mrb[0].mxu0
  %v3022 = vadd.f32 %v2909, %v3021
  %v3023 = vpop.f32.mrb[0].mxu0
  %v3024 = vadd.f32 %v2911, %v3023
  %v3025 = vpop.f32.mrb[0].mxu0
  %v3026 = vadd.f32 %v2913, %v3025
  %3027 = vmatprep.mubr.bf16.mxu0 %v624
  %3028 = vmatmul.mubr.bf16.gmra.mrb[0].mxu0 %v623
  %v3029 = vpop.f32.mrb[0].mxu0
  %v3030 = vadd.f32 %v2917, %v3029
  %v3031 = vpop.f32.mrb[0].mxu0
  %v3032 = vadd.f32 %v2919, %v3031
  %v3033 = vpop.f32.mrb[0].mxu0
  %v3034 = vadd.f32 %v2921, %v3033
  %v3035 = vpop.f32.mrb[0].mxu0
  %v3036 = vadd.f32 %v2923, %v3035
  %3037 = vmatprep.mubr.bf16.mxu0 %v633
  %3038 = vmatmul.mubr.bf16.gmra.mrb[0].mxu0 %v632
  %v3039 = vpop.f32.mrb[0].mxu0
  %v3040 = vadd.f32 %v2927, %v3039
  %v3041 = vpop.f32.mrb[0].mxu0
  %v3042 = vadd.f32 %v2929, %v3041
  %v3043 = vpop.f32.mrb[0].mxu0
  %v3044 = vadd.f32 %v2931, %v3043
  %v3045 = vpop.f32.mrb[0].mxu0
  %v3046 = vadd.f32 %v2933, %v3045
  %3047 = vmatprep.mubr.bf16.mxu0 %v642
  %3048 = vmatmul.mubr.bf16.gmra.mrb[0].mxu0 %v641
  %v3049 = vpop.f32.mrb[0].mxu0
  %v3050 = vadd.f32 %v2937, %v3049
  %v3051 = vpop.f32.mrb[0].mxu0
  %v3052 = vadd.f32 %v2939, %v3051
  %v3053 = vpop.f32.mrb[0].mxu0
  %v3054 = vadd.f32 %v2941, %v3053
  %v3055 = vpop.f32.mrb[0].mxu0
  %v3056 = vadd.f32 %v2943, %v3055
  %3057 = vmatprep.mubr.bf16.mxu0 %v651
  %3058 = vmatmul.mubr.bf16.gmra.mrb[0].mxu0 %v650
  %v3059 = vpop.f32.mrb[0].mxu0
  %v3060 = vadd.f32 %v2947, %v3059
  %v3061 = vpop.f32.mrb[0].mxu0
  %v3062 = vadd.f32 %v2949, %v3061
  %v3063 = vpop.f32.mrb[0].mxu0
  %v3064 = vadd.f32 %v2951, %v3063
  %v3065 = vpop.f32.mrb[0].mxu0
  %v3066 = vadd.f32 %v2953, %v3065
  %3067 = vmatprep.mubr.bf16.mxu0 %v660
  %3068 = vmatmul.mubr.bf16.gmra.mrb[0].mxu0 %v659
  %v3069 = vpop.f32.mrb[0].mxu0
  %v3070 = vadd.f32 %v2957, %v3069
  %v3071 = vpop.f32.mrb[0].mxu0
  %v3072 = vadd.f32 %v2959, %v3071
  %v3073 = vpop.f32.mrb[0].mxu0
  %v3074 = vadd.f32 %v2961, %v3073
  %v3075 = vpop.f32.mrb[0].mxu0
  %v3076 = vadd.f32 %v2963, %v3075
  %3077 = vmatprep.mubr.bf16.mxu0 %v669
  %3078 = vmatmul.mubr.bf16.gmra.mrb[0].mxu0 %v668
  %v3079 = vpop.f32.mrb[0].mxu0
  %v3080 = vadd.f32 %v2967, %v3079
  %v3081 = vpop.f32.mrb[0].mxu0
  %v3082 = vadd.f32 %v2969, %v3081
  %v3083 = vpop.f32.mrb[0].mxu0
  %v3084 = vadd.f32 %v2971, %v3083
  %v3085 = vpop.f32.mrb[0].mxu0
  %v3086 = vadd.f32 %v2973, %v3085
  %3087 = vmatprep.mubr.bf16.mxu0 %v678
  %3088 = vmatmul.mubr.bf16.gmra.mrb[0].mxu0 %v677
  %v3089 = vpop.f32.mrb[0].mxu0
  %v3090 = vadd.f32 %v2977, %v3089
  %v3091 = vpop.f32.mrb[0].mxu0
  %v3092 = vadd.f32 %v2979, %v3091
  %v3093 = vpop.f32.mrb[0].mxu0
  %v3094 = vadd.f32 %v2981, %v3093
  %v3095 = vpop.f32.mrb[0].mxu0
  %v3096 = vadd.f32 %v2983, %v3095
  %3097 = vdwg.mxu0
  %3098 = vmatprep.subr.bf16.mxu0 %v1813
  %3099 = vmatpush1.bf16.msra.mxu0 %v1812
  %3100 = vmatprep.subr.bf16.mxu0 %v1817
  %3101 = vmatpush1.bf16.msra.mxu0 %v1816
  %3102 = vmatprep.subr.bf16.mxu0 %v1821
  %3103 = vmatpush1.bf16.msra.mxu0 %v1820
  %3104 = vmatprep.subr.bf16.mxu0 %v1825
  %3105 = vmatpush1.bf16.msra.mxu0 %v1824
  %3106 = vmatprep.subr.bf16.mxu0 %v1829
  %3107 = vmatpush1.bf16.msra.mxu0 %v1828
  %3108 = vmatprep.subr.bf16.mxu0 %v1833
  %3109 = vmatpush1.bf16.msra.mxu0 %v1832
  %3110 = vmatprep.subr.bf16.mxu0 %v1837
  %3111 = vmatpush1.bf16.msra.mxu0 %v1836
  %3112 = vmatprep.subr.bf16.mxu0 %v1841
  %3113 = vmatpush1.bf16.msra.mxu0 %v1840
  %3114 = vmatprep.subr.bf16.mxu0 %v1845
  %3115 = vmatpush1.bf16.msra.mxu0 %v1844
  %3116 = vmatprep.subr.bf16.mxu0 %v1849
  %3117 = vmatpush1.bf16.msra.mxu0 %v1848
  %3118 = vmatprep.subr.bf16.mxu0 %v1853
  %3119 = vmatpush1.bf16.msra.mxu0 %v1852
  %3120 = vmatprep.subr.bf16.mxu0 %v1857
  %3121 = vmatpush1.bf16.msra.mxu0 %v1856
  %3122 = vmatprep.subr.bf16.mxu0 %v1861
  %3123 = vmatpush1.bf16.msra.mxu0 %v1860
  %3124 = vmatprep.subr.bf16.mxu0 %v1865
  %3125 = vmatpush1.bf16.msra.mxu0 %v1864
  %3126 = vmatprep.subr.bf16.mxu0 %v1869
  %3127 = vmatpush1.bf16.msra.mxu0 %v1868
  %3128 = vmatprep.subr.bf16.mxu0 %v1873
  %3129 = vmatpush1.bf16.msra.mxu0 %v1872
  %3130 = vmatprep.mubr.bf16.mxu0 %v617
  %3131 = vmatmul.mubr.bf16.gmra.mrb[0].mxu0 %v616
  %v3132 = vpop.f32.mrb[0].mxu0
  %v3133 = vadd.f32 %v3020, %v3132
  %v3134 = vpop.f32.mrb[0].mxu0
  %v3135 = vadd.f32 %v3022, %v3134
  %v3136 = vpop.f32.mrb[0].mxu0
  %v3137 = vadd.f32 %v3024, %v3136
  %v3138 = vpop.f32.mrb[0].mxu0
  %v3139 = vadd.f32 %v3026, %v3138
  %3140 = vmatprep.mubr.bf16.mxu0 %v626
  %3141 = vmatmul.mubr.bf16.gmra.mrb[0].mxu0 %v625
  %v3142 = vpop.f32.mrb[0].mxu0
  %v3143 = vadd.f32 %v3030, %v3142
  %v3144 = vpop.f32.mrb[0].mxu0
  %v3145 = vadd.f32 %v3032, %v3144
  %v3146 = vpop.f32.mrb[0].mxu0
  %v3147 = vadd.f32 %v3034, %v3146
  %v3148 = vpop.f32.mrb[0].mxu0
  %v3149 = vadd.f32 %v3036, %v3148
  %3150 = vmatprep.mubr.bf16.mxu0 %v635
  %3151 = vmatmul.mubr.bf16.gmra.mrb[0].mxu0 %v634
  %v3152 = vpop.f32.mrb[0].mxu0
  %v3153 = vadd.f32 %v3040, %v3152
  %v3154 = vpop.f32.mrb[0].mxu0
  %v3155 = vadd.f32 %v3042, %v3154
  %v3156 = vpop.f32.mrb[0].mxu0
  %v3157 = vadd.f32 %v3044, %v3156
  %v3158 = vpop.f32.mrb[0].mxu0
  %v3159 = vadd.f32 %v3046, %v3158
  %3160 = vmatprep.mubr.bf16.mxu0 %v644
  %3161 = vmatmul.mubr.bf16.gmra.mrb[0].mxu0 %v643
  %v3162 = vpop.f32.mrb[0].mxu0
  %v3163 = vadd.f32 %v3050, %v3162
  %v3164 = vpop.f32.mrb[0].mxu0
  %v3165 = vadd.f32 %v3052, %v3164
  %v3166 = vpop.f32.mrb[0].mxu0
  %v3167 = vadd.f32 %v3054, %v3166
  %v3168 = vpop.f32.mrb[0].mxu0
  %v3169 = vadd.f32 %v3056, %v3168
  %3170 = vmatprep.mubr.bf16.mxu0 %v653
  %3171 = vmatmul.mubr.bf16.gmra.mrb[0].mxu0 %v652
  %v3172 = vpop.f32.mrb[0].mxu0
  %v3173 = vadd.f32 %v3060, %v3172
  %v3174 = vpop.f32.mrb[0].mxu0
  %v3175 = vadd.f32 %v3062, %v3174
  %v3176 = vpop.f32.mrb[0].mxu0
  %v3177 = vadd.f32 %v3064, %v3176
  %v3178 = vpop.f32.mrb[0].mxu0
  %v3179 = vadd.f32 %v3066, %v3178
  %3180 = vmatprep.mubr.bf16.mxu0 %v662
  %3181 = vmatmul.mubr.bf16.gmra.mrb[0].mxu0 %v661
  %v3182 = vpop.f32.mrb[0].mxu0
  %v3183 = vadd.f32 %v3070, %v3182
  %v3184 = vpop.f32.mrb[0].mxu0
  %v3185 = vadd.f32 %v3072, %v3184
  %v3186 = vpop.f32.mrb[0].mxu0
  %v3187 = vadd.f32 %v3074, %v3186
  %v3188 = vpop.f32.mrb[0].mxu0
  %v3189 = vadd.f32 %v3076, %v3188
  %3190 = vmatprep.mubr.bf16.mxu0 %v671
  %3191 = vmatmul.mubr.bf16.gmra.mrb[0].mxu0 %v670
  %v3192 = vpop.f32.mrb[0].mxu0
  %v3193 = vadd.f32 %v3080, %v3192
  %v3194 = vpop.f32.mrb[0].mxu0
  %v3195 = vadd.f32 %v3082, %v3194
  %v3196 = vpop.f32.mrb[0].mxu0
  %v3197 = vadd.f32 %v3084, %v3196
  %v3198 = vpop.f32.mrb[0].mxu0
  %v3199 = vadd.f32 %v3086, %v3198
  %3200 = vmatprep.mubr.bf16.mxu0 %v680
  %3201 = vmatmul.mubr.bf16.gmra.mrb[0].mxu0 %v679
  %v3202 = vpop.f32.mrb[0].mxu0
  %v3203 = vadd.f32 %v3090, %v3202
  %v3204 = vpop.f32.mrb[0].mxu0
  %v3205 = vadd.f32 %v3092, %v3204
  %v3206 = vpop.f32.mrb[0].mxu0
  %v3207 = vadd.f32 %v3094, %v3206
  %v3208 = vpop.f32.mrb[0].mxu0
  %v3209 = vadd.f32 %v3096, %v3208
  %3210 = vdwg.mxu0
  %3211 = vmatprep.subr.bf16.mxu0 %v1877
  %3212 = vmatpush1.bf16.msra.mxu0 %v1876
  %3213 = vmatprep.subr.bf16.mxu0 %v1881
  %3214 = vmatpush1.bf16.msra.mxu0 %v1880
  %3215 = vmatprep.subr.bf16.mxu0 %v1885
  %3216 = vmatpush1.bf16.msra.mxu0 %v1884
  %3217 = vmatprep.subr.bf16.mxu0 %v1889
  %3218 = vmatpush1.bf16.msra.mxu0 %v1888
  %3219 = vmatprep.subr.bf16.mxu0 %v1893
  %3220 = vmatpush1.bf16.msra.mxu0 %v1892
  %3221 = vmatprep.subr.bf16.mxu0 %v1897
  %3222 = vmatpush1.bf16.msra.mxu0 %v1896
  %3223 = vmatprep.subr.bf16.mxu0 %v1901
  %3224 = vmatpush1.bf16.msra.mxu0 %v1900
  %3225 = vmatprep.subr.bf16.mxu0 %v1905
  %3226 = vmatpush1.bf16.msra.mxu0 %v1904
  %3227 = vmatprep.subr.bf16.mxu0 0
  %3228 = vmatpush1.bf16.msra.mxu0 0
  %3229 = vmatprep.subr.bf16.mxu0 0
  %3230 = vmatpush1.bf16.msra.mxu0 0
  %3231 = vmatprep.subr.bf16.mxu0 0
  %3232 = vmatpush1.bf16.msra.mxu0 0
  %3233 = vmatprep.subr.bf16.mxu0 0
  %3234 = vmatpush1.bf16.msra.mxu0 0
  %3235 = vmatprep.subr.bf16.mxu0 0
  %3236 = vmatpush1.bf16.msra.mxu0 0
  %3237 = vmatprep.subr.bf16.mxu0 0
  %3238 = vmatpush1.bf16.msra.mxu0 0
  %3239 = vmatprep.subr.bf16.mxu0 0
  %3240 = vmatpush1.bf16.msra.mxu0 0
  %3241 = vmatprep.subr.bf16.mxu0 0
  %3242 = vmatpush1.bf16.msra.mxu0 0
  %3243 = vmatprep.mubr.bf16.mxu0 0
  %3244 = vmatmul.mubr.bf16.gmra.mrb[0].mxu0 %v618
  %v3245 = vpop.f32.mrb[0].mxu0
  %v3246 = vadd.f32 %v3133, %v3245
  %v3247 = vpop.f32.mrb[0].mxu0
  %v3248 = vadd.f32 %v3135, %v3247
  %v3249 = vpop.f32.mrb[0].mxu0
  %v3250 = vadd.f32 %v3137, %v3249
  %v3251 = vpop.f32.mrb[0].mxu0
  %v3252 = vadd.f32 %v3139, %v3251
  %3253 = vmatprep.mubr.bf16.mxu0 0
  %3254 = vmatmul.mubr.bf16.gmra.mrb[0].mxu0 %v627
  %v3255 = vpop.f32.mrb[0].mxu0
  %v3256 = vadd.f32 %v3143, %v3255
  %v3257 = vpop.f32.mrb[0].mxu0
  %v3258 = vadd.f32 %v3145, %v3257
  %v3259 = vpop.f32.mrb[0].mxu0
  %v3260 = vadd.f32 %v3147, %v3259
  %v3261 = vpop.f32.mrb[0].mxu0
  %v3262 = vadd.f32 %v3149, %v3261
  %3263 = vmatprep.mubr.bf16.mxu0 0
  %3264 = vmatmul.mubr.bf16.gmra.mrb[0].mxu0 %v636
  %v3265 = vpop.f32.mrb[0].mxu0
  %v3266 = vadd.f32 %v3153, %v3265
  %v3267 = vpop.f32.mrb[0].mxu0
  %v3268 = vadd.f32 %v3155, %v3267
  %v3269 = vpop.f32.mrb[0].mxu0
  %v3270 = vadd.f32 %v3157, %v3269
  %v3271 = vpop.f32.mrb[0].mxu0
  %v3272 = vadd.f32 %v3159, %v3271
  %3273 = vmatprep.mubr.bf16.mxu0 0
  %3274 = vmatmul.mubr.bf16.gmra.mrb[0].mxu0 %v645
  %v3275 = vpop.f32.mrb[0].mxu0
  %v3276 = vadd.f32 %v3163, %v3275
  %v3277 = vpop.f32.mrb[0].mxu0
  %v3278 = vadd.f32 %v3165, %v3277
  %v3279 = vpop.f32.mrb[0].mxu0
  %v3280 = vadd.f32 %v3167, %v3279
  %v3281 = vpop.f32.mrb[0].mxu0
  %v3282 = vadd.f32 %v3169, %v3281
  %3283 = vmatprep.mubr.bf16.mxu0 0
  %3284 = vmatmul.mubr.bf16.gmra.mrb[0].mxu0 %v654
  %v3285 = vpop.f32.mrb[0].mxu0
  %v3286 = vadd.f32 %v3173, %v3285
  %v3287 = vpop.f32.mrb[0].mxu0
  %v3288 = vadd.f32 %v3175, %v3287
  %v3289 = vpop.f32.mrb[0].mxu0
  %v3290 = vadd.f32 %v3177, %v3289
  %v3291 = vpop.f32.mrb[0].mxu0
  %v3292 = vadd.f32 %v3179, %v3291
  %3293 = vmatprep.mubr.bf16.mxu0 0
  %3294 = vmatmul.mubr.bf16.gmra.mrb[0].mxu0 %v663
  %v3295 = vpop.f32.mrb[0].mxu0
  %v3296 = vadd.f32 %v3183, %v3295
  %v3297 = vpop.f32.mrb[0].mxu0
  %v3298 = vadd.f32 %v3185, %v3297
  %v3299 = vpop.f32.mrb[0].mxu0
  %v3300 = vadd.f32 %v3187, %v3299
  %v3301 = vpop.f32.mrb[0].mxu0
  %v3302 = vadd.f32 %v3189, %v3301
  %3303 = vmatprep.mubr.bf16.mxu0 0
  %3304 = vmatmul.mubr.bf16.gmra.mrb[0].mxu0 %v672
  %v3305 = vpop.f32.mrb[0].mxu0
  %v3306 = vadd.f32 %v3193, %v3305
  %v3307 = vpop.f32.mrb[0].mxu0
  %v3308 = vadd.f32 %v3195, %v3307
  %v3309 = vpop.f32.mrb[0].mxu0
  %v3310 = vadd.f32 %v3197, %v3309
  %v3311 = vpop.f32.mrb[0].mxu0
  %v3312 = vadd.f32 %v3199, %v3311
  %3313 = vmatprep.mubr.bf16.mxu0 0
  %3314 = vmatmul.mubr.bf16.gmra.mrb[0].mxu0 %v681
  %v3315 = vpop.f32.mrb[0].mxu0
  %v3316 = vadd.f32 %v3203, %v3315
  %v3317 = vpop.f32.mrb[0].mxu0
  %v3318 = vadd.f32 %v3205, %v3317
  %v3319 = vpop.f32.mrb[0].mxu0
  %v3320 = vadd.f32 %v3207, %v3319
  %v3321 = vpop.f32.mrb[0].mxu0
  %v3322 = vadd.f32 %v3209, %v3321
  %3323 = vdwg.mxu0
  %3324 = vst [vmem:[#allocation2] sm:$0xff] %v2681
  %3325 = vst [vmem:[#allocation2 + $0x8] sm:$0xff] %v2683
  %3326 = vst [vmem:[#allocation2 + $0x10] sm:$0xff] %v3246
  %3327 = vst [vmem:[#allocation2 + $0x18] sm:$0xff] %v3248
  %3328 = vst [vmem:[#allocation2 + $0x20] sm:$0xff] %v2685
  %3329 = vst [vmem:[#allocation2 + $0x28] sm:$0xff] %v2687
  %3330 = vst [vmem:[#allocation2 + $0x30] sm:$0xff] %v3250
  %3331 = vst [vmem:[#allocation2 + $0x38] sm:$0xff] %v3252
  %3332 = vst [vmem:[#allocation2 + $0x40] sm:$0xff] %v2691
  %3333 = vst [vmem:[#allocation2 + $0x48] sm:$0xff] %v2693
  %3334 = vst [vmem:[#allocation2 + $0x50] sm:$0xff] %v3256
  %3335 = vst [vmem:[#allocation2 + $0x58] sm:$0xff] %v3258
  %3336 = vst [vmem:[#allocation2 + $0x60] sm:$0xff] %v2695
  %3337 = vst [vmem:[#allocation2 + $0x68] sm:$0xff] %v2697
  %3338 = vst [vmem:[#allocation2 + $0x70] sm:$0xff] %v3260
  %3339 = vst [vmem:[#allocation2 + $0x78] sm:$0xff] %v3262
  %3340 = vst [vmem:[#allocation2 + $0x80] sm:$0xff] %v2701
  %3341 = vst [vmem:[#allocation2 + $0x88] sm:$0xff] %v2703
  %3342 = vst [vmem:[#allocation2 + $0x90] sm:$0xff] %v3266
  %3343 = vst [vmem:[#allocation2 + $0x98] sm:$0xff] %v3268
  %3344 = vst [vmem:[#allocation2 + $0xa0] sm:$0xff] %v2705
  %3345 = vst [vmem:[#allocation2 + $0xa8] sm:$0xff] %v2707
  %3346 = vst [vmem:[#allocation2 + $0xb0] sm:$0xff] %v3270
  %3347 = vst [vmem:[#allocation2 + $0xb8] sm:$0xff] %v3272
  %3348 = vst [vmem:[#allocation2 + $0xc0] sm:$0xff] %v2711
  %3349 = vst [vmem:[#allocation2 + $0xc8] sm:$0xff] %v2713
  %3350 = vst [vmem:[#allocation2 + $0xd0] sm:$0xff] %v3276
  %3351 = vst [vmem:[#allocation2 + $0xd8] sm:$0xff] %v3278
  %3352 = vst [vmem:[#allocation2 + $0xe0] sm:$0xff] %v2715
  %3353 = vst [vmem:[#allocation2 + $0xe8] sm:$0xff] %v2717
  %3354 = vst [vmem:[#allocation2 + $0xf0] sm:$0xff] %v3280
  %3355 = vst [vmem:[#allocation2 + $0xf8] sm:$0xff] %v3282
  %3356 = vst [vmem:[#allocation2 + $0x100] sm:$0xff] %v2721
  %3357 = vst [vmem:[#allocation2 + $0x108] sm:$0xff] %v2723
  %3358 = vst [vmem:[#allocation2 + $0x110] sm:$0xff] %v3286
  %3359 = vst [vmem:[#allocation2 + $0x118] sm:$0xff] %v3288
  %3360 = vst [vmem:[#allocation2 + $0x120] sm:$0xff] %v2725
  %3361 = vst [vmem:[#allocation2 + $0x128] sm:$0xff] %v2727
  %3362 = vst [vmem:[#allocation2 + $0x130] sm:$0xff] %v3290
  %3363 = vst [vmem:[#allocation2 + $0x138] sm:$0xff] %v3292
  %3364 = vst [vmem:[#allocation2 + $0x140] sm:$0xff] %v2731
  %3365 = vst [vmem:[#allocation2 + $0x148] sm:$0xff] %v2733
  %3366 = vst [vmem:[#allocation2 + $0x150] sm:$0xff] %v3296
  %3367 = vst [vmem:[#allocation2 + $0x158] sm:$0xff] %v3298
  %3368 = vst [vmem:[#allocation2 + $0x160] sm:$0xff] %v2735
  %3369 = vst [vmem:[#allocation2 + $0x168] sm:$0xff] %v2737
  %3370 = vst [vmem:[#allocation2 + $0x170] sm:$0xff] %v3300
  %3371 = vst [vmem:[#allocation2 + $0x178] sm:$0xff] %v3302
  %3372 = vst [vmem:[#allocation2 + $0x180] sm:$0xff] %v2741
  %3373 = vst [vmem:[#allocation2 + $0x188] sm:$0xff] %v2743
  %3374 = vst [vmem:[#allocation2 + $0x190] sm:$0xff] %v3306
  %3375 = vst [vmem:[#allocation2 + $0x198] sm:$0xff] %v3308
  %3376 = vst [vmem:[#allocation2 + $0x1a0] sm:$0xff] %v2745
  %3377 = vst [vmem:[#allocation2 + $0x1a8] sm:$0xff] %v2747
  %3378 = vst [vmem:[#allocation2 + $0x1b0] sm:$0xff] %v3310
  %3379 = vst [vmem:[#allocation2 + $0x1b8] sm:$0xff] %v3312
  %3380 = vst [vmem:[#allocation2 + $0x1c0] sm:$0xff] %v2751
  %3381 = vst [vmem:[#allocation2 + $0x1c8] sm:$0xff] %v2753
  %3382 = vst [vmem:[#allocation2 + $0x1d0] sm:$0xff] %v3316
  %3383 = vst [vmem:[#allocation2 + $0x1d8] sm:$0xff] %v3318
  %3384 = vst [vmem:[#allocation2 + $0x1e0] sm:$0xff] %v2755
  %3385 = vst [vmem:[#allocation2 + $0x1e8] sm:$0xff] %v2757
  %3386 = vst [vmem:[#allocation2 + $0x1f0] sm:$0xff] %v3320
  %3387 = vst [vmem:[#allocation2 + $0x1f8] sm:$0xff] %v3322
  %v3388 = vld [vmem:[#allocation2] sm:$0xff]
  %v3389 = vld [vmem:[#allocation2 + $0x20] sm:$0xff]
  %v3390 = vld [vmem:[#allocation2 + $0x40] sm:$0xff]
  %v3391 = vld [vmem:[#allocation2 + $0x60] sm:$0xff]
  %v3392 = vld [vmem:[#allocation2 + $0x80] sm:$0xff]
  %v3393 = vld [vmem:[#allocation2 + $0xa0] sm:$0xff]
  %v3394 = vld [vmem:[#allocation2 + $0xc0] sm:$0xff]
  %v3395 = vld [vmem:[#allocation2 + $0xe0] sm:$0xff]
  %v3396 = vld [vmem:[#allocation2 + $0x100] sm:$0xff]
  %v3397 = vld [vmem:[#allocation2 + $0x120] sm:$0xff]
  %v3398 = vld [vmem:[#allocation2 + $0x140] sm:$0xff]
  %v3399 = vld [vmem:[#allocation2 + $0x160] sm:$0xff]
  %v3400 = vld [vmem:[#allocation2 + $0x180] sm:$0xff]
  %v3401 = vld [vmem:[#allocation2 + $0x1a0] sm:$0xff]
  %v3402 = vld [vmem:[#allocation2 + $0x1c0] sm:$0xff]
  %v3403 = vld [vmem:[#allocation2 + $0x1e0] sm:$0xff]
  %v3404 = vtanh.pop %v3388
  %v3405 = vtanh.pop %v3389
  %v3406 = vtanh.pop %v3390
  %v3407 = vtanh.pop %v3391
  %v3408 = vtanh.pop %v3392
  %v3409 = vtanh.pop %v3393
  %v3410 = vtanh.pop %v3394
  %v3411 = vtanh.pop %v3395
  %v3412 = vtanh.pop %v3396
  %v3413 = vtanh.pop %v3397
  %v3414 = vtanh.pop %v3398
  %v3415 = vtanh.pop %v3399
  %v3416 = vtanh.pop %v3400
  %v3417 = vtanh.pop %v3401
  %v3418 = vtanh.pop %v3402
  %v3419 = vtanh.pop %v3403
  %v3420 = vpack.c.bf16 %v3405, %v3404
  %v3421 = vpack.c.bf16 %v3407, %v3406
  %v3422 = vpack.c.bf16 %v3409, %v3408
  %v3423 = vpack.c.bf16 %v3411, %v3410
  %v3424 = vpack.c.bf16 %v3413, %v3412
  %v3425 = vpack.c.bf16 %v3415, %v3414
  %v3426 = vpack.c.bf16 %v3417, %v3416
  %v3427 = vpack.c.bf16 %v3419, %v3418
  %v3436 = vunpack.c.l.b16 %v3420
  %v3437 = vunpack.c.h.b16 %v3420
  %v3438 = vunpack.c.l.b16 %v3421
  %v3439 = vunpack.c.h.b16 %v3421
  %v3440 = vunpack.c.l.b16 %v3422
  %v3441 = vunpack.c.h.b16 %v3422
  %v3442 = vunpack.c.l.b16 %v3423
  %v3443 = vunpack.c.h.b16 %v3423
  %v3444 = vunpack.c.l.b16 %v3424
  %v3445 = vunpack.c.h.b16 %v3424
  %v3446 = vunpack.c.l.b16 %v3425
  %v3447 = vunpack.c.h.b16 %v3425
  %v3448 = vunpack.c.l.b16 %v3426
  %v3449 = vunpack.c.h.b16 %v3426
  %v3450 = vunpack.c.l.b16 %v3427
  %v3451 = vunpack.c.h.b16 %v3427
  %v3452 = vpack.c.b16 %v3436, %v3436
  %v3453 = vpack.c.b16 %v3437, %v3437
  %v3454 = vpack.c.b16 %v3438, %v3438
  %v3455 = vpack.c.b16 %v3439, %v3439
  %v3456 = vpack.c.b16 %v3440, %v3440
  %v3457 = vpack.c.b16 %v3441, %v3441
  %v3458 = vpack.c.b16 %v3442, %v3442
  %v3459 = vpack.c.b16 %v3443, %v3443
  %v3460 = vpack.c.b16 %v3444, %v3444
  %v3461 = vpack.c.b16 %v3445, %v3445
  %v3462 = vpack.c.b16 %v3446, %v3446
  %v3463 = vpack.c.b16 %v3447, %v3447
  %v3464 = vpack.c.b16 %v3448, %v3448
  %v3465 = vpack.c.b16 %v3449, %v3449
  %v3466 = vpack.c.b16 %v3450, %v3450
  %v3467 = vpack.c.b16 %v3451, %v3451
  %3484 = vst [vmem:[%s4] sm:$0xf] %v3452
  %3485 = vst [vmem:[%s4 + $0x10] sm:$0xf] %v3453
  %3486 = vst [vmem:[%s4 + $0x20] sm:$0xf] %v3454
  %3487 = vst [vmem:[%s4 + $0x30] sm:$0xf] %v3455
  %3488 = vst [vmem:[%s4 + $0x40] sm:$0xf] %v3456
  %3489 = vst [vmem:[%s4 + $0x50] sm:$0xf] %v3457
  %3490 = vst [vmem:[%s4 + $0x60] sm:$0xf] %v3458
  %3491 = vst [vmem:[%s4 + $0x70] sm:$0xf] %v3459
  %3492 = vst [vmem:[%s4 + $0x80] sm:$0xf] %v3460
  %3493 = vst [vmem:[%s4 + $0x90] sm:$0xf] %v3461
  %3494 = vst [vmem:[%s4 + $0xa0] sm:$0xf] %v3462
  %3495 = vst [vmem:[%s4 + $0xb0] sm:$0xf] %v3463
  %3496 = vst [vmem:[%s4 + $0xc0] sm:$0xf] %v3464
  %3497 = vst [vmem:[%s4 + $0xd0] sm:$0xf] %v3465
  %3498 = vst [vmem:[%s4 + $0xe0] sm:$0xf] %v3466
  %3499 = vst [vmem:[%s4 + $0xf0] sm:$0xf] %v3467
  %v3500 = vld [vmem:[#allocation2 + $0x8] sm:$0xff]
  %v3501 = vld [vmem:[#allocation2 + $0x28] sm:$0xff]
  %v3502 = vld [vmem:[#allocation2 + $0x48] sm:$0xff]
  %v3503 = vld [vmem:[#allocation2 + $0x68] sm:$0xff]
  %v3504 = vld [vmem:[#allocation2 + $0x88] sm:$0xff]
  %v3505 = vld [vmem:[#allocation2 + $0xa8] sm:$0xff]
  %v3506 = vld [vmem:[#allocation2 + $0xc8] sm:$0xff]
  %v3507 = vld [vmem:[#allocation2 + $0xe8] sm:$0xff]
  %v3508 = vld [vmem:[#allocation2 + $0x108] sm:$0xff]
  %v3509 = vld [vmem:[#allocation2 + $0x128] sm:$0xff]
  %v3510 = vld [vmem:[#allocation2 + $0x148] sm:$0xff]
  %v3511 = vld [vmem:[#allocation2 + $0x168] sm:$0xff]
  %v3512 = vld [vmem:[#allocation2 + $0x188] sm:$0xff]
  %v3513 = vld [vmem:[#allocation2 + $0x1a8] sm:$0xff]
  %v3514 = vld [vmem:[#allocation2 + $0x1c8] sm:$0xff]
  %v3515 = vld [vmem:[#allocation2 + $0x1e8] sm:$0xff]
  %v3516 = vtanh.pop %v3500
  %v3517 = vtanh.pop %v3501
  %v3518 = vtanh.pop %v3502
  %v3519 = vtanh.pop %v3503
  %v3520 = vtanh.pop %v3504
  %v3521 = vtanh.pop %v3505
  %v3522 = vtanh.pop %v3506
  %v3523 = vtanh.pop %v3507
  %v3524 = vtanh.pop %v3508
  %v3525 = vtanh.pop %v3509
  %v3526 = vtanh.pop %v3510
  %v3527 = vtanh.pop %v3511
  %v3528 = vtanh.pop %v3512
  %v3529 = vtanh.pop %v3513
  %v3530 = vtanh.pop %v3514
  %v3531 = vtanh.pop %v3515
  %v3532 = vpack.c.bf16 %v3517, %v3516
  %v3533 = vpack.c.bf16 %v3519, %v3518
  %v3534 = vpack.c.bf16 %v3521, %v3520
  %v3535 = vpack.c.bf16 %v3523, %v3522
  %v3536 = vpack.c.bf16 %v3525, %v3524
  %v3537 = vpack.c.bf16 %v3527, %v3526
  %v3538 = vpack.c.bf16 %v3529, %v3528
  %v3539 = vpack.c.bf16 %v3531, %v3530
  %v3548 = vunpack.c.l.b16 %v3532
  %v3549 = vunpack.c.h.b16 %v3532
  %v3550 = vunpack.c.l.b16 %v3533
  %v3551 = vunpack.c.h.b16 %v3533
  %v3552 = vunpack.c.l.b16 %v3534
  %v3553 = vunpack.c.h.b16 %v3534
  %v3554 = vunpack.c.l.b16 %v3535
  %v3555 = vunpack.c.h.b16 %v3535
  %v3556 = vunpack.c.l.b16 %v3536
  %v3557 = vunpack.c.h.b16 %v3536
  %v3558 = vunpack.c.l.b16 %v3537
  %v3559 = vunpack.c.h.b16 %v3537
  %v3560 = vunpack.c.l.b16 %v3538
  %v3561 = vunpack.c.h.b16 %v3538
  %v3562 = vunpack.c.l.b16 %v3539
  %v3563 = vunpack.c.h.b16 %v3539
  %v3564 = vpack.c.b16 %v3548, %v3548
  %v3565 = vpack.c.b16 %v3549, %v3549
  %v3566 = vpack.c.b16 %v3550, %v3550
  %v3567 = vpack.c.b16 %v3551, %v3551
  %v3568 = vpack.c.b16 %v3552, %v3552
  %v3569 = vpack.c.b16 %v3553, %v3553
  %v3570 = vpack.c.b16 %v3554, %v3554
  %v3571 = vpack.c.b16 %v3555, %v3555
  %v3572 = vpack.c.b16 %v3556, %v3556
  %v3573 = vpack.c.b16 %v3557, %v3557
  %v3574 = vpack.c.b16 %v3558, %v3558
  %v3575 = vpack.c.b16 %v3559, %v3559
  %v3576 = vpack.c.b16 %v3560, %v3560
  %v3577 = vpack.c.b16 %v3561, %v3561
  %v3578 = vpack.c.b16 %v3562, %v3562
  %v3579 = vpack.c.b16 %v3563, %v3563
  %3596 = vst [vmem:[%s4 + $0x4] sm:$0xf] %v3564
  %3597 = vst [vmem:[%s4 + $0x14] sm:$0xf] %v3565
  %3598 = vst [vmem:[%s4 + $0x24] sm:$0xf] %v3566
  %3599 = vst [vmem:[%s4 + $0x34] sm:$0xf] %v3567
  %3600 = vst [vmem:[%s4 + $0x44] sm:$0xf] %v3568
  %3601 = vst [vmem:[%s4 + $0x54] sm:$0xf] %v3569
  %3602 = vst [vmem:[%s4 + $0x64] sm:$0xf] %v3570
  %3603 = vst [vmem:[%s4 + $0x74] sm:$0xf] %v3571
  %3604 = vst [vmem:[%s4 + $0x84] sm:$0xf] %v3572
  %3605 = vst [vmem:[%s4 + $0x94] sm:$0xf] %v3573
  %3606 = vst [vmem:[%s4 + $0xa4] sm:$0xf] %v3574
  %3607 = vst [vmem:[%s4 + $0xb4] sm:$0xf] %v3575
  %3608 = vst [vmem:[%s4 + $0xc4] sm:$0xf] %v3576
  %3609 = vst [vmem:[%s4 + $0xd4] sm:$0xf] %v3577
  %3610 = vst [vmem:[%s4 + $0xe4] sm:$0xf] %v3578
  %3611 = vst [vmem:[%s4 + $0xf4] sm:$0xf] %v3579
  %v3612 = vld [vmem:[#allocation2 + $0x10] sm:$0xff]
  %v3613 = vld [vmem:[#allocation2 + $0x30] sm:$0xff]
  %v3614 = vld [vmem:[#allocation2 + $0x50] sm:$0xff]
  %v3615 = vld [vmem:[#allocation2 + $0x70] sm:$0xff]
  %v3616 = vld [vmem:[#allocation2 + $0x90] sm:$0xff]
  %v3617 = vld [vmem:[#allocation2 + $0xb0] sm:$0xff]
  %v3618 = vld [vmem:[#allocation2 + $0xd0] sm:$0xff]
  %v3619 = vld [vmem:[#allocation2 + $0xf0] sm:$0xff]
  %v3620 = vld [vmem:[#allocation2 + $0x110] sm:$0xff]
  %v3621 = vld [vmem:[#allocation2 + $0x130] sm:$0xff]
  %v3622 = vld [vmem:[#allocation2 + $0x150] sm:$0xff]
  %v3623 = vld [vmem:[#allocation2 + $0x170] sm:$0xff]
  %v3624 = vld [vmem:[#allocation2 + $0x190] sm:$0xff]
  %v3625 = vld [vmem:[#allocation2 + $0x1b0] sm:$0xff]
  %v3626 = vld [vmem:[#allocation2 + $0x1d0] sm:$0xff]
  %v3627 = vld [vmem:[#allocation2 + $0x1f0] sm:$0xff]
  %v3628 = vtanh.pop %v3612
  %v3629 = vtanh.pop %v3613
  %v3630 = vtanh.pop %v3614
  %v3631 = vtanh.pop %v3615
  %v3632 = vtanh.pop %v3616
  %v3633 = vtanh.pop %v3617
  %v3634 = vtanh.pop %v3618
  %v3635 = vtanh.pop %v3619
  %v3636 = vtanh.pop %v3620
  %v3637 = vtanh.pop %v3621
  %v3638 = vtanh.pop %v3622
  %v3639 = vtanh.pop %v3623
  %v3640 = vtanh.pop %v3624
  %v3641 = vtanh.pop %v3625
  %v3642 = vtanh.pop %v3626
  %v3643 = vtanh.pop %v3627
  %v3644 = vpack.c.bf16 %v3629, %v3628
  %v3645 = vpack.c.bf16 %v3631, %v3630
  %v3646 = vpack.c.bf16 %v3633, %v3632
  %v3647 = vpack.c.bf16 %v3635, %v3634
  %v3648 = vpack.c.bf16 %v3637, %v3636
  %v3649 = vpack.c.bf16 %v3639, %v3638
  %v3650 = vpack.c.bf16 %v3641, %v3640
  %v3651 = vpack.c.bf16 %v3643, %v3642
  %v3660 = vunpack.c.l.b16 %v3644
  %v3661 = vunpack.c.h.b16 %v3644
  %v3662 = vunpack.c.l.b16 %v3645
  %v3663 = vunpack.c.h.b16 %v3645
  %v3664 = vunpack.c.l.b16 %v3646
  %v3665 = vunpack.c.h.b16 %v3646
  %v3666 = vunpack.c.l.b16 %v3647
  %v3667 = vunpack.c.h.b16 %v3647
  %v3668 = vunpack.c.l.b16 %v3648
  %v3669 = vunpack.c.h.b16 %v3648
  %v3670 = vunpack.c.l.b16 %v3649
  %v3671 = vunpack.c.h.b16 %v3649
  %v3672 = vunpack.c.l.b16 %v3650
  %v3673 = vunpack.c.h.b16 %v3650
  %v3674 = vunpack.c.l.b16 %v3651
  %v3675 = vunpack.c.h.b16 %v3651
  %v3676 = vpack.c.b16 %v3660, %v3660
  %v3677 = vpack.c.b16 %v3661, %v3661
  %v3678 = vpack.c.b16 %v3662, %v3662
  %v3679 = vpack.c.b16 %v3663, %v3663
  %v3680 = vpack.c.b16 %v3664, %v3664
  %v3681 = vpack.c.b16 %v3665, %v3665
  %v3682 = vpack.c.b16 %v3666, %v3666
  %v3683 = vpack.c.b16 %v3667, %v3667
  %v3684 = vpack.c.b16 %v3668, %v3668
  %v3685 = vpack.c.b16 %v3669, %v3669
  %v3686 = vpack.c.b16 %v3670, %v3670
  %v3687 = vpack.c.b16 %v3671, %v3671
  %v3688 = vpack.c.b16 %v3672, %v3672
  %v3689 = vpack.c.b16 %v3673, %v3673
  %v3690 = vpack.c.b16 %v3674, %v3674
  %v3691 = vpack.c.b16 %v3675, %v3675
  %3708 = vst [vmem:[%s4 + $0x8] sm:$0xf] %v3676
  %3709 = vst [vmem:[%s4 + $0x18] sm:$0xf] %v3677
  %3710 = vst [vmem:[%s4 + $0x28] sm:$0xf] %v3678
  %3711 = vst [vmem:[%s4 + $0x38] sm:$0xf] %v3679
  %3712 = vst [vmem:[%s4 + $0x48] sm:$0xf] %v3680
  %3713 = vst [vmem:[%s4 + $0x58] sm:$0xf] %v3681
  %3714 = vst [vmem:[%s4 + $0x68] sm:$0xf] %v3682
  %3715 = vst [vmem:[%s4 + $0x78] sm:$0xf] %v3683
  %3716 = vst [vmem:[%s4 + $0x88] sm:$0xf] %v3684
  %3717 = vst [vmem:[%s4 + $0x98] sm:$0xf] %v3685
  %3718 = vst [vmem:[%s4 + $0xa8] sm:$0xf] %v3686
  %3719 = vst [vmem:[%s4 + $0xb8] sm:$0xf] %v3687
  %3720 = vst [vmem:[%s4 + $0xc8] sm:$0xf] %v3688
  %3721 = vst [vmem:[%s4 + $0xd8] sm:$0xf] %v3689
  %3722 = vst [vmem:[%s4 + $0xe8] sm:$0xf] %v3690
  %3723 = vst [vmem:[%s4 + $0xf8] sm:$0xf] %v3691
  %v3724 = vld [vmem:[#allocation2 + $0x18] sm:$0xff]
  %v3725 = vld [vmem:[#allocation2 + $0x38] sm:$0xff]
  %v3726 = vld [vmem:[#allocation2 + $0x58] sm:$0xff]
  %v3727 = vld [vmem:[#allocation2 + $0x78] sm:$0xff]
  %v3728 = vld [vmem:[#allocation2 + $0x98] sm:$0xff]
  %v3729 = vld [vmem:[#allocation2 + $0xb8] sm:$0xff]
  %v3730 = vld [vmem:[#allocation2 + $0xd8] sm:$0xff]
  %v3731 = vld [vmem:[#allocation2 + $0xf8] sm:$0xff]
  %v3732 = vld [vmem:[#allocation2 + $0x118] sm:$0xff]
  %v3733 = vld [vmem:[#allocation2 + $0x138] sm:$0xff]
  %v3734 = vld [vmem:[#allocation2 + $0x158] sm:$0xff]
  %v3735 = vld [vmem:[#allocation2 + $0x178] sm:$0xff]
  %v3736 = vld [vmem:[#allocation2 + $0x198] sm:$0xff]
  %v3737 = vld [vmem:[#allocation2 + $0x1b8] sm:$0xff]
  %v3738 = vld [vmem:[#allocation2 + $0x1d8] sm:$0xff]
  %v3739 = vld [vmem:[#allocation2 + $0x1f8] sm:$0xff]
  %v3740 = vtanh.pop %v3724
  %v3741 = vtanh.pop %v3725
  %v3742 = vtanh.pop %v3726
  %v3743 = vtanh.pop %v3727
  %v3744 = vtanh.pop %v3728
  %v3745 = vtanh.pop %v3729
  %v3746 = vtanh.pop %v3730
  %v3747 = vtanh.pop %v3731
  %v3748 = vtanh.pop %v3732
  %v3749 = vtanh.pop %v3733
  %v3750 = vtanh.pop %v3734
  %v3751 = vtanh.pop %v3735
  %v3752 = vtanh.pop %v3736
  %v3753 = vtanh.pop %v3737
  %v3754 = vtanh.pop %v3738
  %v3755 = vtanh.pop %v3739
  %v3756 = vpack.c.bf16 %v3741, %v3740
  %v3757 = vpack.c.bf16 %v3743, %v3742
  %v3758 = vpack.c.bf16 %v3745, %v3744
  %v3759 = vpack.c.bf16 %v3747, %v3746
  %v3760 = vpack.c.bf16 %v3749, %v3748
  %v3761 = vpack.c.bf16 %v3751, %v3750
  %v3762 = vpack.c.bf16 %v3753, %v3752
  %v3763 = vpack.c.bf16 %v3755, %v3754
  %v3772 = vunpack.c.l.b16 %v3756
  %v3773 = vunpack.c.h.b16 %v3756
  %v3774 = vunpack.c.l.b16 %v3757
  %v3775 = vunpack.c.h.b16 %v3757
  %v3776 = vunpack.c.l.b16 %v3758
  %v3777 = vunpack.c.h.b16 %v3758
  %v3778 = vunpack.c.l.b16 %v3759
  %v3779 = vunpack.c.h.b16 %v3759
  %v3780 = vunpack.c.l.b16 %v3760
  %v3781 = vunpack.c.h.b16 %v3760
  %v3782 = vunpack.c.l.b16 %v3761
  %v3783 = vunpack.c.h.b16 %v3761
  %v3784 = vunpack.c.l.b16 %v3762
  %v3785 = vunpack.c.h.b16 %v3762
  %v3786 = vunpack.c.l.b16 %v3763
  %v3787 = vunpack.c.h.b16 %v3763
  %v3788 = vpack.c.b16 %v3772, %v3772
  %v3789 = vpack.c.b16 %v3773, %v3773
  %v3790 = vpack.c.b16 %v3774, %v3774
  %v3791 = vpack.c.b16 %v3775, %v3775
  %v3792 = vpack.c.b16 %v3776, %v3776
  %v3793 = vpack.c.b16 %v3777, %v3777
  %v3794 = vpack.c.b16 %v3778, %v3778
  %v3795 = vpack.c.b16 %v3779, %v3779
  %v3796 = vpack.c.b16 %v3780, %v3780
  %v3797 = vpack.c.b16 %v3781, %v3781
  %v3798 = vpack.c.b16 %v3782, %v3782
  %v3799 = vpack.c.b16 %v3783, %v3783
  %v3800 = vpack.c.b16 %v3784, %v3784
  %v3801 = vpack.c.b16 %v3785, %v3785
  %v3802 = vpack.c.b16 %v3786, %v3786
  %v3803 = vpack.c.b16 %v3787, %v3787
  %3820 = vst [vmem:[%s4 + $0xc] sm:$0xf] %v3788
  %3821 = vst [vmem:[%s4 + $0x1c] sm:$0xf] %v3789
  %3822 = vst [vmem:[%s4 + $0x2c] sm:$0xf] %v3790
  %3823 = vst [vmem:[%s4 + $0x3c] sm:$0xf] %v3791
  %3824 = vst [vmem:[%s4 + $0x4c] sm:$0xf] %v3792
  %3825 = vst [vmem:[%s4 + $0x5c] sm:$0xf] %v3793
  %3826 = vst [vmem:[%s4 + $0x6c] sm:$0xf] %v3794
  %3827 = vst [vmem:[%s4 + $0x7c] sm:$0xf] %v3795
  %3828 = vst [vmem:[%s4 + $0x8c] sm:$0xf] %v3796
  %3829 = vst [vmem:[%s4 + $0x9c] sm:$0xf] %v3797
  %3830 = vst [vmem:[%s4 + $0xac] sm:$0xf] %v3798
  %3831 = vst [vmem:[%s4 + $0xbc] sm:$0xf] %v3799
  %3832 = vst [vmem:[%s4 + $0xcc] sm:$0xf] %v3800
  %3833 = vst [vmem:[%s4 + $0xdc] sm:$0xf] %v3801
  %3834 = vst [vmem:[%s4 + $0xec] sm:$0xf] %v3802
  %3835 = vst [vmem:[%s4 + $0xfc] sm:$0xf] %v3803
  // Predicated region
  $region18: #{forward.7} parent=0 // pred_check
    _
  $region19: #{forward.7} parent=0 // pred_check_branch
    %3837 = sbr.rel (0) target = $region21
  $region20: #{forward.7} parent=0 // pred_region
    _
  $region21: #{forward.7} parent=0 // pred_fallthru
    _
  // Predicated region
  $region22: #{forward.7} parent=0 // pred_check
    _
  $region23: #{forward.7} parent=0 // pred_check_branch
    %3839 = sbr.rel (0) target = $region25
  $region24: #{forward.7} parent=0 // pred_region
    _
  $region25: #{forward.7} parent=0 // pred_fallthru
    _

</llo_original>
